<compile_context>
chip_gen: v6e
topology: v6e:2x2x1
jax: 0.10.0
libtpu: 0.0.40
codegen_flags: <defaults>
</compile_context>

<pallas_src>
import functools

import jax
import jax.numpy as jnp
from jax.experimental import pallas as pl
from jax.experimental.pallas import tpu as pltpu

# ---------------------------------------------------------------------------
# Small configuration consistent with ModelGNN('EdgeNet', node_features, ...)
# (hidden_channels=300 -> 32, latent_channels=100 -> 16 for a synthetic run).
# ---------------------------------------------------------------------------
N_GRAPHS = 2
NODES_PER_GRAPH = 32
N_NODES = N_GRAPHS * NODES_PER_GRAPH
NODE_FEATURES = 8     # data.x feature dim
N_LAYERS = 2
HIDDEN = 32           # hidden_channels
LATENT = 16           # latent_channels
U_DIM = 2             # data.u feature dim (lin_in = 3*latent + 2)
RADIUS = 0.45         # k_nn is used as the radius in radius_graph
LOOP = False          # EdgeNet => self.loop = False


# ---------------------------------------------------------------------------
# Fused per-graph kernel: radius graph -> N_LAYERS EdgeLayers (+ReLU) ->
# add/mean/max pooling -> lin head.
# ---------------------------------------------------------------------------
def fused_gnn_kernel(x_ref, pos_ref, post_ref, u_ref, p_ref, out_ref, *,
                     layout, r2, loop, n_layers):
    n = x_ref.shape[0]
    neg = jnp.float32(-1e30)

    def getp(name):
        # Static, 8-aligned ref slice from the packed parameter blob, then a
        # register-level value slice down to the true extent.
        off, r, c = layout[name]
        rp = -(-r // 8) * 8
        return p_ref[off:off + rp, :c][:r, :]

    # ---- radius_graph within this graph block (lane-dense 2-D mask) ----
    pos = pos_ref[...]                 # [n, 3]
    post = post_ref[...][0]            # [3, n]  (transposed in the wrapper)
    d2 = jnp.zeros((n, n), jnp.float32)
    for k in range(3):                 # per-coordinate accumulation: pure VPU
        dk = pos[:, k:k + 1] - post[k:k + 1, :]        # [n,1] - [1,n] -> [n,n]
        d2 = d2 + dk * dk
    adj = d2 < r2
    if not loop:
        ia = jax.lax.broadcasted_iota(jnp.int32, (n, n), 0)
        ib = jax.lax.broadcasted_iota(jnp.int32, (n, n), 1)
        adj = adj & (ia != ib)
    madd = jnp.where(adj, 0.0, neg)                    # additive mask, finite
    has_nb = jnp.max(adj.astype(jnp.float32), axis=1, keepdims=True) > 0.5

    # ---- EdgeLayer stack (dense pair messages, max aggregation) ----
    h = x_ref[...]
    for li in range(n_layers):
        w1d = getp(f"l{li}_w1d")       # W1[:C] - W1[C:]  (pre-split in wrapper)
        w1b = getp(f"l{li}_w1b")       # W1[C:]
        b1 = getp(f"l{li}_b1")
        w2 = getp(f"l{li}_w2")
        b2 = getp(f"l{li}_b2")
        w3 = getp(f"l{li}_w3")
        b3 = getp(f"l{li}_b3")
        hid = w2.shape[0]
        lat = w3.shape[1]

        # cat[x_i, x_j - x_i] @ W1 = x_i @ (W1a - W1b) + x_j @ W1b
        a_tgt = jnp.dot(h, w1d, preferred_element_type=jnp.float32) + b1   # [n,H]
        b_src = jnp.dot(h, w1b, preferred_element_type=jnp.float32)        # [n,H]

        # Dense pair tensor [src j, tgt i, H]; heavy dots in bf16 (f32 accum).
        h1 = jnp.maximum(b_src[:, None, :] + a_tgt[None, :, :], 0.0)       # [n,n,H]
        h1 = h1.reshape(n * n, hid).astype(jnp.bfloat16)
        h2 = jnp.maximum(
            jnp.dot(h1, w2.astype(jnp.bfloat16),
                    preferred_element_type=jnp.float32) + b2, 0.0)         # [n*n,H]
        msg = (jnp.dot(h2.astype(jnp.bfloat16), w3.astype(jnp.bfloat16),
                       preferred_element_type=jnp.float32) + b3)           # [n*n,L]
        msg = msg.reshape(n, n, lat) + madd[:, :, None]                    # mask
        agg = jnp.max(msg, axis=0)                                         # [n,L]

        # isolated-node zeroing + the model's post-layer ReLU, fused here.
        h = jnp.where(has_nb, jnp.maximum(agg, 0.0), 0.0)

    # ---- global add / mean / max pooling (one graph per block) ----
    addp = jnp.sum(h, axis=0, keepdims=True)                               # [1,L]
    meanp = addp * (1.0 / n)
    maxp = jnp.max(h, axis=0, keepdims=True)                               # [1,L]
    uu = u_ref[...][0, 0:1, :]                                             # [1,U]
    pooled = jnp.concatenate([addp, meanp, maxp, uu], axis=1)              # [1,3L+U]

    # ---- lin head (tiny, f32) ----
    z = jnp.maximum(jnp.dot(pooled, getp("lin_w1"),
                            preferred_element_type=jnp.float32)
                    + getp("lin_b1"), 0.0)
    z = jnp.maximum(jnp.dot(z, getp("lin_w2"),
                            preferred_element_type=jnp.float32)
                    + getp("lin_b2"), 0.0)
    y = jnp.dot(z, getp("lin_w3"),
                preferred_element_type=jnp.float32) + getp("lin_b3")       # [1,2]
    out_ref[...] = jnp.broadcast_to(y.reshape(1, 1, 2), out_ref.shape)


# ---------------------------------------------------------------------------
# Parameter packing: one (8,128)-padded f32 blob -> one prologue DMA.
# ---------------------------------------------------------------------------
def _pack_params(params):
    entries = []
    for li, (w1, b1, w2, b2, w3, b3) in enumerate(params["layers"]):
        c = w1.shape[0] // 2
        entries += [(f"l{li}_w1d", w1[:c] - w1[c:]), (f"l{li}_w1b", w1[c:]),
                    (f"l{li}_b1", b1), (f"l{li}_w2", w2), (f"l{li}_b2", b2),
                    (f"l{li}_w3", w3), (f"l{li}_b3", b3)]
    entries += list(zip(("lin_w1", "lin_b1", "lin_w2", "lin_b2",
                         "lin_w3", "lin_b3"), params["lin"]))

    layout = {}
    blocks = []
    off = 0
    for name, a in entries:
        r, c = a.shape
        rp = -(-r // 8) * 8                              # 8-sublane aligned rows
        layout[name] = (off, r, c)
        blk = jnp.zeros((rp, 128), jnp.float32).at[:r, :c].set(
            a.astype(jnp.float32))
        blocks.append(blk)
        off += rp
    return jnp.concatenate(blocks, axis=0), layout


def model_gnn_forward(x, pos, u, params):
    # Graphs are assumed contiguous blocks of NODES_PER_GRAPH nodes (as built
    # by the dataloader / `batch = repeat(arange(G), npg)`).
    # TODO(synk): ragged `batch` handling would need scalar-prefetched graph
    # offsets (PrefetchScalarGridSpec) instead of fixed-size graph blocks.
    n, f = x.shape
    assert n == N_GRAPHS * NODES_PER_GRAPH
    npg = NODES_PER_GRAPH

    blob, layout = _pack_params(params)
    p_rows = blob.shape[0]

    pos_t = pos.reshape(N_GRAPHS, npg, 3).transpose(0, 2, 1)          # [G,3,npg]
    u_rep = jnp.broadcast_to(u[:, None, :].astype(jnp.float32),
                             (N_GRAPHS, 8, u.shape[1]))               # [G,8,U]

    kernel = functools.partial(
        fused_gnn_kernel, layout=layout, r2=float(RADIUS * RADIUS),
        loop=LOOP, n_layers=len(params["layers"]))

    out = pl.pallas_call(
        kernel,
        out_shape=jax.ShapeDtypeStruct((N_GRAPHS, 8, 2), jnp.float32),
        grid=(N_GRAPHS,),
        in_specs=[
            pl.BlockSpec((npg, f), lambda g: (g, 0)),                 # x
            pl.BlockSpec((npg, 3), lambda g: (g, 0)),                 # pos
            pl.BlockSpec((1, 3, npg), lambda g: (g, 0, 0)),           # pos^T
            pl.BlockSpec((1, 8, u.shape[1]), lambda g: (g, 0, 0)),    # u
            pl.BlockSpec((p_rows, 128), lambda g: (0, 0)),            # params
        ],
        out_specs=pl.BlockSpec((1, 8, 2), lambda g: (g, 0, 0)),
        compiler_params=pltpu.CompilerParams(
            # One graph per grid step; independent -> shard across TCs on v7x.
            dimension_semantics=("parallel",)),
    )(x, pos, pos_t, u_rep, blob)
    return out[:, 0, :]


model_gnn_forward_jit = jax.jit(model_gnn_forward)


# ---------------------------------------------------------------------------
# Parameter init (PyTorch Linear-style uniform init, deterministic)
# ---------------------------------------------------------------------------
def init_linear(key, fan_in, fan_out):
    k = 1.0 / float(fan_in) ** 0.5
    kw, kb = jax.random.split(key)
    w = jax.random.uniform(kw, (fan_in, fan_out), jnp.float32, -k, k)
    b = jax.random.uniform(kb, (1, fan_out), jnp.float32, -k, k)
    return w, b


def init_model_params(key):
    keys = jax.random.split(key, 3 * N_LAYERS + 3)
    ki = 0
    layers = []
    in_ch = NODE_FEATURES
    for _ in range(N_LAYERS):
        w1, b1 = init_linear(keys[ki], 2 * in_ch, HIDDEN); ki += 1
        w2, b2 = init_linear(keys[ki], HIDDEN, HIDDEN); ki += 1
        w3, b3 = init_linear(keys[ki], HIDDEN, LATENT); ki += 1
        layers.append((w1, b1, w2, b2, w3, b3))
        in_ch = LATENT
    lw1, lb1 = init_linear(keys[ki], 3 * LATENT + U_DIM, LATENT); ki += 1
    lw2, lb2 = init_linear(keys[ki], LATENT, LATENT); ki += 1
    lw3, lb3 = init_linear(keys[ki], LATENT, 2); ki += 1
    return {"layers": layers, "lin": (lw1, lb1, lw2, lb2, lw3, lb3)}


# ---------------------------------------------------------------------------
# Plain-JAX reference (mirrors the PyTorch forward)
# ---------------------------------------------------------------------------
def _edge_layer_ref(x, pos, batch, p, r, loop):
    w1, b1, w2, b2, w3, b3 = p
    n = x.shape[0]
    diff = pos[:, None, :] - pos[None, :, :]
    d2 = jnp.sum(diff * diff, axis=-1)
    mask = (d2 < r * r) & (batch[:, None] == batch[None, :])
    if not loop:
        mask = mask & ~jnp.eye(n, dtype=bool)
    x_i = jnp.broadcast_to(x[:, None, :], (n, n, x.shape[1]))
    x_j = jnp.broadcast_to(x[None, :, :], (n, n, x.shape[1]))
    inp = jnp.concatenate([x_i, x_j - x_i], axis=-1)
    h = jnp.maximum(inp @ w1 + b1, 0.0)
    h = jnp.maximum(h @ w2 + b2, 0.0)
    msg = h @ w3 + b3
    msg = jnp.where(mask[:, :, None], msg, -1e30)
    out = jnp.max(msg, axis=1)
    has_nb = jnp.any(mask, axis=1, keepdims=True)
    return jnp.where(has_nb, out, 0.0)


def model_gnn_ref(x, pos, batch, u, params):
    h = x
    for lp in params["layers"]:
        h = jnp.maximum(_edge_layer_ref(h, pos, batch, lp, RADIUS, LOOP), 0.0)
    member = (batch[None, :] ==
              jnp.arange(N_GRAPHS, dtype=jnp.int32)[:, None]).astype(jnp.float32)
    counts = jnp.sum(member, axis=1, keepdims=True)
    addp = member @ h
    meanp = addp / counts
    maxp = jnp.max(jnp.where(member[:, :, None] > 0.5, h[None, :, :], -1e30), axis=1)
    pooled = jnp.concatenate([addp, meanp, maxp, u], axis=1)
    w1, b1, w2, b2, w3, b3 = params["lin"]
    z = jnp.maximum(pooled @ w1 + b1, 0.0)
    z = jnp.maximum(z @ w2 + b2, 0.0)
    return z @ w3 + b3


if __name__ == "__main__":
    key = jax.random.PRNGKey(0)
    k_x, k_pos, k_u, k_par = jax.random.split(key, 4)
    x = jax.random.normal(k_x, (N_NODES, NODE_FEATURES), jnp.float32)
    pos = jax.random.uniform(k_pos, (N_NODES, 3), jnp.float32)
    batch = jnp.repeat(jnp.arange(N_GRAPHS, dtype=jnp.int32), NODES_PER_GRAPH)
    u = jax.random.normal(k_u, (N_GRAPHS, U_DIM), jnp.float32)

    params = init_model_params(k_par)

    out = model_gnn_forward_jit(x, pos, u, params)
    out = jax.block_until_ready(out)
    assert out.shape == (N_GRAPHS, 2)

    ref = model_gnn_ref(x, pos, batch, u, params)
    # bf16 MXU operands in the heavy pair-message matmuls (f32 accumulation,
    # f32 reference) -> slightly looser tolerance than a pure-f32 comparison.
    if not jnp.allclose(out, ref, rtol=2e-2, atol=2e-2):
        raise AssertionError(f"Pallas output mismatch:\n{out}\nvs ref\n{ref}")

    print("KERNEL_OK")
</pallas_src>

<mosaic_0001>
module attributes {stable_mosaic.version = 11 : i64} {
  func.func @fused_gnn_kernel(%arg0: i32, %arg1: memref<32x8xf32, #tpu.memory_space<vmem>>, %arg2: memref<32x3xf32, #tpu.memory_space<vmem>>, %arg3: memref<1x3x32xf32, #tpu.memory_space<vmem>>, %arg4: memref<1x8x2xf32, #tpu.memory_space<vmem>>, %arg5: memref<336x128xf32, #tpu.memory_space<vmem>>, %arg6: memref<1x8x2xf32, #tpu.memory_space<vmem>>) attributes {dimension_semantics = [#tpu.dimension_semantics<parallel>], iteration_bounds = array<i64: 2>, scalar_prefetch = 0 : i64, scratch_operands = 0 : i64, tpu.core_type = #tpu.core_type<tc>, window_params = [{transform_indices = @transform_0, window_bounds = array<i64: 32, 8>}, {transform_indices = @transform_1, window_bounds = array<i64: 32, 3>}, {transform_indices = @transform_2, window_bounds = array<i64: 1, 3, 32>}, {transform_indices = @transform_3, window_bounds = array<i64: 1, 8, 2>}, {pipeline_mode = #tpu.pipeline_mode<synchronous>, transform_indices = @transform_4, window_bounds = array<i64: 336, 128>}, {transform_indices = @transform_5, window_bounds = array<i64: 1, 8, 2>}]} {
    %c0 = arith.constant 0 : index
    %c0_0 = arith.constant 0 : index
    %0 = vector.load %arg2[%c0, %c0_0] : memref<32x3xf32, #tpu.memory_space<vmem>>, vector<32x3xf32>
    %c0_1 = arith.constant 0 : index
    %c0_2 = arith.constant 0 : index
    %c0_3 = arith.constant 0 : index
    %1 = vector.load %arg3[%c0_1, %c0_2, %c0_3] : memref<1x3x32xf32, #tpu.memory_space<vmem>>, vector<1x3x32xf32>
    %2 = vector.shape_cast %1 : vector<1x3x32xf32> to vector<3x32xf32>
    %cst = arith.constant 0.000000e+00 : f32
    %3 = vector.broadcast %cst : f32 to vector<32x32xf32>
    %4 = vector.extract_strided_slice %0 {offsets = [0, 0], sizes = [32, 1], strides = [1, 1]} : vector<32x3xf32> to vector<32x1xf32>
    %5 = vector.extract_strided_slice %2 {offsets = [0, 0], sizes = [1, 32], strides = [1, 1]} : vector<3x32xf32> to vector<1x32xf32>
    %6 = vector.broadcast %4 : vector<32x1xf32> to vector<32x32xf32>
    %7 = vector.broadcast %5 : vector<1x32xf32> to vector<32x32xf32>
    %8 = arith.subf %6, %7 : vector<32x32xf32>
    %9 = arith.mulf %8, %8 : vector<32x32xf32>
    %10 = arith.addf %3, %9 : vector<32x32xf32>
    %11 = vector.extract_strided_slice %0 {offsets = [0, 1], sizes = [32, 1], strides = [1, 1]} : vector<32x3xf32> to vector<32x1xf32>
    %12 = vector.extract_strided_slice %2 {offsets = [1, 0], sizes = [1, 32], strides = [1, 1]} : vector<3x32xf32> to vector<1x32xf32>
    %13 = vector.broadcast %11 : vector<32x1xf32> to vector<32x32xf32>
    %14 = vector.broadcast %12 : vector<1x32xf32> to vector<32x32xf32>
    %15 = arith.subf %13, %14 : vector<32x32xf32>
    %16 = arith.mulf %15, %15 : vector<32x32xf32>
    %17 = arith.addf %10, %16 : vector<32x32xf32>
    %18 = vector.extract_strided_slice %0 {offsets = [0, 2], sizes = [32, 1], strides = [1, 1]} : vector<32x3xf32> to vector<32x1xf32>
    %19 = vector.extract_strided_slice %2 {offsets = [2, 0], sizes = [1, 32], strides = [1, 1]} : vector<3x32xf32> to vector<1x32xf32>
    %20 = vector.broadcast %18 : vector<32x1xf32> to vector<32x32xf32>
    %21 = vector.broadcast %19 : vector<1x32xf32> to vector<32x32xf32>
    %22 = arith.subf %20, %21 : vector<32x32xf32>
    %23 = arith.mulf %22, %22 : vector<32x32xf32>
    %24 = arith.addf %17, %23 : vector<32x32xf32>
    %cst_4 = arith.constant 2.025000e-01 : f32
    %25 = vector.broadcast %cst_4 : f32 to vector<32x32xf32>
    %26 = arith.cmpf olt, %24, %25 : vector<32x32xf32>
    %27 = tpu.iota {dimensions = array<i32: 0>} : vector<32x32xi32>
    %28 = tpu.iota {dimensions = array<i32: 1>} : vector<32x32xi32>
    %29 = arith.cmpi ne, %27, %28 : vector<32x32xi32>
    %30 = arith.andi %26, %29 : vector<32x32xi1>
    %cst_5 = arith.constant 0.000000e+00 : f32
    %cst_6 = arith.constant -1.000000e+30 : f32
    %31 = vector.broadcast %cst_5 : f32 to vector<32x32xf32>
    %32 = vector.broadcast %cst_6 : f32 to vector<32x32xf32>
    %33 = arith.select %30, %31, %32 : vector<32x32xi1>, vector<32x32xf32>
    %34 = arith.extui %30 : vector<32x32xi1> to vector<32x32xi32>
    %35 = arith.sitofp %34 : vector<32x32xi32> to vector<32x32xf32>
    %cst_7 = arith.constant dense<0xFF800000> : vector<32xf32>
    %36 = vector.multi_reduction <maximumf>, %35, %cst_7 [1] : vector<32x32xf32> to vector<32xf32>
    %37 = vector.shape_cast %36 : vector<32xf32> to vector<32x1xf32>
    %cst_8 = arith.constant 5.000000e-01 : f32
    %38 = vector.broadcast %cst_8 : f32 to vector<32x1xf32>
    %39 = arith.cmpf ogt, %37, %38 : vector<32x1xf32>
    %c0_9 = arith.constant 0 : index
    %c0_10 = arith.constant 0 : index
    %40 = vector.load %arg1[%c0_9, %c0_10] : memref<32x8xf32, #tpu.memory_space<vmem>>, vector<32x8xf32>
    %c0_11 = arith.constant 0 : index
    %c0_12 = arith.constant 0 : index
    %41 = vector.load %arg5[%c0_11, %c0_12] : memref<336x128xf32, #tpu.memory_space<vmem>>, vector<8x32xf32>
    %c8 = arith.constant 8 : index
    %c0_13 = arith.constant 0 : index
    %42 = vector.load %arg5[%c8, %c0_13] : memref<336x128xf32, #tpu.memory_space<vmem>>, vector<8x32xf32>
    %c16 = arith.constant 16 : index
    %c0_14 = arith.constant 0 : index
    %43 = vector.load %arg5[%c16, %c0_14] : memref<336x128xf32, #tpu.memory_space<vmem>>, vector<8x32xf32>
    %44 = vector.extract_strided_slice %43 {offsets = [0, 0], sizes = [1, 32], strides = [1, 1]} : vector<8x32xf32> to vector<1x32xf32>
    %c24 = arith.constant 24 : index
    %c0_15 = arith.constant 0 : index
    %45 = vector.load %arg5[%c24, %c0_15] : memref<336x128xf32, #tpu.memory_space<vmem>>, vector<32x32xf32>
    %c56 = arith.constant 56 : index
    %c0_16 = arith.constant 0 : index
    %46 = vector.load %arg5[%c56, %c0_16] : memref<336x128xf32, #tpu.memory_space<vmem>>, vector<8x32xf32>
    %47 = vector.extract_strided_slice %46 {offsets = [0, 0], sizes = [1, 32], strides = [1, 1]} : vector<8x32xf32> to vector<1x32xf32>
    %c64 = arith.constant 64 : index
    %c0_17 = arith.constant 0 : index
    %48 = vector.load %arg5[%c64, %c0_17] : memref<336x128xf32, #tpu.memory_space<vmem>>, vector<32x16xf32>
    %c96 = arith.constant 96 : index
    %c0_18 = arith.constant 0 : index
    %49 = vector.load %arg5[%c96, %c0_18] : memref<336x128xf32, #tpu.memory_space<vmem>>, vector<8x16xf32>
    %50 = vector.extract_strided_slice %49 {offsets = [0, 0], sizes = [1, 16], strides = [1, 1]} : vector<8x16xf32> to vector<1x16xf32>
    %cst_19 = arith.constant dense<0.000000e+00> : vector<32x32xf32>
    %51 = tpu.matmul %40, %41, %cst_19 {dimension_numbers = #tpu.dot_dimension_numbers<[1], [0], [0], [1], [0, 0, 1, 1], [], []>} : vector<32x8xf32>, vector<8x32xf32>, vector<32x32xf32> -> vector<32x32xf32>
    %52 = vector.broadcast %44 : vector<1x32xf32> to vector<32x32xf32>
    %53 = arith.addf %51, %52 : vector<32x32xf32>
    %cst_20 = arith.constant dense<0.000000e+00> : vector<32x32xf32>
    %54 = tpu.matmul %40, %42, %cst_20 {dimension_numbers = #tpu.dot_dimension_numbers<[1], [0], [0], [1], [0, 0, 1, 1], [], []>} : vector<32x8xf32>, vector<8x32xf32>, vector<32x32xf32> -> vector<32x32xf32>
    %55 = vector.shape_cast %54 : vector<32x32xf32> to vector<32x1x32xf32>
    %56 = vector.shape_cast %53 : vector<32x32xf32> to vector<1x32x32xf32>
    %57 = vector.broadcast %55 : vector<32x1x32xf32> to vector<32x32x32xf32>
    %58 = vector.broadcast %56 : vector<1x32x32xf32> to vector<32x32x32xf32>
    %59 = arith.addf %57, %58 : vector<32x32x32xf32>
    %cst_21 = arith.constant 0.000000e+00 : f32
    %60 = vector.broadcast %cst_21 : f32 to vector<32x32x32xf32>
    %61 = arith.maximumf %59, %60 : vector<32x32x32xf32>
    %62 = vector.shape_cast %61 : vector<32x32x32xf32> to vector<1024x32xf32>
    %63 = arith.truncf %62 : vector<1024x32xf32> to vector<1024x32xbf16>
    %64 = arith.truncf %45 : vector<32x32xf32> to vector<32x32xbf16>
    %cst_22 = arith.constant dense<0.000000e+00> : vector<1024x32xf32>
    %65 = tpu.matmul %63, %64, %cst_22 {dimension_numbers = #tpu.dot_dimension_numbers<[1], [0], [0], [1], [0, 0, 1, 1], [], []>} : vector<1024x32xbf16>, vector<32x32xbf16>, vector<1024x32xf32> -> vector<1024x32xf32>
    %66 = vector.broadcast %47 : vector<1x32xf32> to vector<1024x32xf32>
    %67 = arith.addf %65, %66 : vector<1024x32xf32>
    %cst_23 = arith.constant 0.000000e+00 : f32
    %68 = vector.broadcast %cst_23 : f32 to vector<1024x32xf32>
    %69 = arith.maximumf %67, %68 : vector<1024x32xf32>
    %70 = arith.truncf %69 : vector<1024x32xf32> to vector<1024x32xbf16>
    %71 = arith.truncf %48 : vector<32x16xf32> to vector<32x16xbf16>
    %cst_24 = arith.constant dense<0.000000e+00> : vector<1024x16xf32>
    %72 = tpu.matmul %70, %71, %cst_24 {dimension_numbers = #tpu.dot_dimension_numbers<[1], [0], [0], [1], [0, 0, 1, 1], [], []>} : vector<1024x32xbf16>, vector<32x16xbf16>, vector<1024x16xf32> -> vector<1024x16xf32>
    %73 = vector.broadcast %50 : vector<1x16xf32> to vector<1024x16xf32>
    %74 = arith.addf %72, %73 : vector<1024x16xf32>
    %75 = vector.shape_cast %74 : vector<1024x16xf32> to vector<32x32x16xf32>
    %76 = vector.shape_cast %33 : vector<32x32xf32> to vector<32x32x1xf32>
    %77 = vector.broadcast %76 : vector<32x32x1xf32> to vector<32x32x16xf32>
    %78 = arith.addf %75, %77 : vector<32x32x16xf32>
    %cst_25 = arith.constant dense<0xFF800000> : vector<32x16xf32>
    %79 = vector.multi_reduction <maximumf>, %78, %cst_25 [0] : vector<32x32x16xf32> to vector<32x16xf32>
    %cst_26 = arith.constant 0.000000e+00 : f32
    %80 = vector.broadcast %cst_26 : f32 to vector<32x16xf32>
    %81 = arith.maximumf %79, %80 : vector<32x16xf32>
    %cst_27 = arith.constant 0.000000e+00 : f32
    %82 = vector.shape_cast %39 : vector<32x1xi1> to vector<32x1xi1>
    %83 = vector.broadcast %82 : vector<32x1xi1> to vector<32x16xi1>
    %84 = vector.broadcast %cst_27 : f32 to vector<32x16xf32>
    %85 = arith.select %83, %81, %84 : vector<32x16xi1>, vector<32x16xf32>
    %c104 = arith.constant 104 : index
    %c0_28 = arith.constant 0 : index
    %86 = vector.load %arg5[%c104, %c0_28] : memref<336x128xf32, #tpu.memory_space<vmem>>, vector<16x32xf32>
    %c120 = arith.constant 120 : index
    %c0_29 = arith.constant 0 : index
    %87 = vector.load %arg5[%c120, %c0_29] : memref<336x128xf32, #tpu.memory_space<vmem>>, vector<16x32xf32>
    %c136 = arith.constant 136 : index
    %c0_30 = arith.constant 0 : index
    %88 = vector.load %arg5[%c136, %c0_30] : memref<336x128xf32, #tpu.memory_space<vmem>>, vector<8x32xf32>
    %89 = vector.extract_strided_slice %88 {offsets = [0, 0], sizes = [1, 32], strides = [1, 1]} : vector<8x32xf32> to vector<1x32xf32>
    %c144 = arith.constant 144 : index
    %c0_31 = arith.constant 0 : index
    %90 = vector.load %arg5[%c144, %c0_31] : memref<336x128xf32, #tpu.memory_space<vmem>>, vector<32x32xf32>
    %c176 = arith.constant 176 : index
    %c0_32 = arith.constant 0 : index
    %91 = vector.load %arg5[%c176, %c0_32] : memref<336x128xf32, #tpu.memory_space<vmem>>, vector<8x32xf32>
    %92 = vector.extract_strided_slice %91 {offsets = [0, 0], sizes = [1, 32], strides = [1, 1]} : vector<8x32xf32> to vector<1x32xf32>
    %c184 = arith.constant 184 : index
    %c0_33 = arith.constant 0 : index
    %93 = vector.load %arg5[%c184, %c0_33] : memref<336x128xf32, #tpu.memory_space<vmem>>, vector<32x16xf32>
    %c216 = arith.constant 216 : index
    %c0_34 = arith.constant 0 : index
    %94 = vector.load %arg5[%c216, %c0_34] : memref<336x128xf32, #tpu.memory_space<vmem>>, vector<8x16xf32>
    %95 = vector.extract_strided_slice %94 {offsets = [0, 0], sizes = [1, 16], strides = [1, 1]} : vector<8x16xf32> to vector<1x16xf32>
    %cst_35 = arith.constant dense<0.000000e+00> : vector<32x32xf32>
    %96 = tpu.matmul %85, %86, %cst_35 {dimension_numbers = #tpu.dot_dimension_numbers<[1], [0], [0], [1], [0, 0, 1, 1], [], []>} : vector<32x16xf32>, vector<16x32xf32>, vector<32x32xf32> -> vector<32x32xf32>
    %97 = vector.broadcast %89 : vector<1x32xf32> to vector<32x32xf32>
    %98 = arith.addf %96, %97 : vector<32x32xf32>
    %cst_36 = arith.constant dense<0.000000e+00> : vector<32x32xf32>
    %99 = tpu.matmul %85, %87, %cst_36 {dimension_numbers = #tpu.dot_dimension_numbers<[1], [0], [0], [1], [0, 0, 1, 1], [], []>} : vector<32x16xf32>, vector<16x32xf32>, vector<32x32xf32> -> vector<32x32xf32>
    %100 = vector.shape_cast %99 : vector<32x32xf32> to vector<32x1x32xf32>
    %101 = vector.shape_cast %98 : vector<32x32xf32> to vector<1x32x32xf32>
    %102 = vector.broadcast %100 : vector<32x1x32xf32> to vector<32x32x32xf32>
    %103 = vector.broadcast %101 : vector<1x32x32xf32> to vector<32x32x32xf32>
    %104 = arith.addf %102, %103 : vector<32x32x32xf32>
    %cst_37 = arith.constant 0.000000e+00 : f32
    %105 = vector.broadcast %cst_37 : f32 to vector<32x32x32xf32>
    %106 = arith.maximumf %104, %105 : vector<32x32x32xf32>
    %107 = vector.shape_cast %106 : vector<32x32x32xf32> to vector<1024x32xf32>
    %108 = arith.truncf %107 : vector<1024x32xf32> to vector<1024x32xbf16>
    %109 = arith.truncf %90 : vector<32x32xf32> to vector<32x32xbf16>
    %cst_38 = arith.constant dense<0.000000e+00> : vector<1024x32xf32>
    %110 = tpu.matmul %108, %109, %cst_38 {dimension_numbers = #tpu.dot_dimension_numbers<[1], [0], [0], [1], [0, 0, 1, 1], [], []>} : vector<1024x32xbf16>, vector<32x32xbf16>, vector<1024x32xf32> -> vector<1024x32xf32>
    %111 = vector.broadcast %92 : vector<1x32xf32> to vector<1024x32xf32>
    %112 = arith.addf %110, %111 : vector<1024x32xf32>
    %cst_39 = arith.constant 0.000000e+00 : f32
    %113 = vector.broadcast %cst_39 : f32 to vector<1024x32xf32>
    %114 = arith.maximumf %112, %113 : vector<1024x32xf32>
    %115 = arith.truncf %114 : vector<1024x32xf32> to vector<1024x32xbf16>
    %116 = arith.truncf %93 : vector<32x16xf32> to vector<32x16xbf16>
    %cst_40 = arith.constant dense<0.000000e+00> : vector<1024x16xf32>
    %117 = tpu.matmul %115, %116, %cst_40 {dimension_numbers = #tpu.dot_dimension_numbers<[1], [0], [0], [1], [0, 0, 1, 1], [], []>} : vector<1024x32xbf16>, vector<32x16xbf16>, vector<1024x16xf32> -> vector<1024x16xf32>
    %118 = vector.broadcast %95 : vector<1x16xf32> to vector<1024x16xf32>
    %119 = arith.addf %117, %118 : vector<1024x16xf32>
    %120 = vector.shape_cast %119 : vector<1024x16xf32> to vector<32x32x16xf32>
    %121 = vector.shape_cast %33 : vector<32x32xf32> to vector<32x32x1xf32>
    %122 = vector.broadcast %121 : vector<32x32x1xf32> to vector<32x32x16xf32>
    %123 = arith.addf %120, %122 : vector<32x32x16xf32>
    %cst_41 = arith.constant dense<0xFF800000> : vector<32x16xf32>
    %124 = vector.multi_reduction <maximumf>, %123, %cst_41 [0] : vector<32x32x16xf32> to vector<32x16xf32>
    %cst_42 = arith.constant 0.000000e+00 : f32
    %125 = vector.broadcast %cst_42 : f32 to vector<32x16xf32>
    %126 = arith.maximumf %124, %125 : vector<32x16xf32>
    %cst_43 = arith.constant 0.000000e+00 : f32
    %127 = vector.shape_cast %39 : vector<32x1xi1> to vector<32x1xi1>
    %128 = vector.broadcast %127 : vector<32x1xi1> to vector<32x16xi1>
    %129 = vector.broadcast %cst_43 : f32 to vector<32x16xf32>
    %130 = arith.select %128, %126, %129 : vector<32x16xi1>, vector<32x16xf32>
    %cst_44 = arith.constant dense<0.000000e+00> : vector<16xf32>
    %131 = vector.multi_reduction <add>, %130, %cst_44 [0] : vector<32x16xf32> to vector<16xf32>
    %132 = vector.shape_cast %131 : vector<16xf32> to vector<1x16xf32>
    %cst_45 = arith.constant 3.125000e-02 : f32
    %133 = vector.broadcast %cst_45 : f32 to vector<1x16xf32>
    %134 = arith.mulf %132, %133 : vector<1x16xf32>
    %cst_46 = arith.constant dense<0xFF800000> : vector<16xf32>
    %135 = vector.multi_reduction <maximumf>, %130, %cst_46 [0] : vector<32x16xf32> to vector<16xf32>
    %136 = vector.shape_cast %135 : vector<16xf32> to vector<1x16xf32>
    %c0_47 = arith.constant 0 : index
    %c0_48 = arith.constant 0 : index
    %c0_49 = arith.constant 0 : index
    %137 = vector.load %arg4[%c0_47, %c0_48, %c0_49] : memref<1x8x2xf32, #tpu.memory_space<vmem>>, vector<1x8x2xf32>
    %138 = vector.extract_strided_slice %137 {offsets = [0, 0, 0], sizes = [1, 1, 2], strides = [1, 1, 1]} : vector<1x8x2xf32> to vector<1x1x2xf32>
    %139 = vector.shape_cast %138 : vector<1x1x2xf32> to vector<1x2xf32>
    %140 = tpu.concatenate %132, %134, %136, %139 in 1 : vector<1x16xf32>, vector<1x16xf32>, vector<1x16xf32>, vector<1x2xf32> -> vector<1x50xf32>
    %c224 = arith.constant 224 : index
    %c0_50 = arith.constant 0 : index
    %141 = vector.load %arg5[%c224, %c0_50] : memref<336x128xf32, #tpu.memory_space<vmem>>, vector<56x16xf32>
    %142 = vector.extract_strided_slice %141 {offsets = [0, 0], sizes = [50, 16], strides = [1, 1]} : vector<56x16xf32> to vector<50x16xf32>
    %cst_51 = arith.constant dense<0.000000e+00> : vector<1x16xf32>
    %143 = tpu.matmul %140, %142, %cst_51 {dimension_numbers = #tpu.dot_dimension_numbers<[1], [0], [0], [1], [0, 0, 1, 1], [], []>} : vector<1x50xf32>, vector<50x16xf32>, vector<1x16xf32> -> vector<1x16xf32>
    %c280 = arith.constant 280 : index
    %c0_52 = arith.constant 0 : index
    %144 = vector.load %arg5[%c280, %c0_52] : memref<336x128xf32, #tpu.memory_space<vmem>>, vector<8x16xf32>
    %145 = vector.extract_strided_slice %144 {offsets = [0, 0], sizes = [1, 16], strides = [1, 1]} : vector<8x16xf32> to vector<1x16xf32>
    %146 = arith.addf %143, %145 : vector<1x16xf32>
    %cst_53 = arith.constant 0.000000e+00 : f32
    %147 = vector.broadcast %cst_53 : f32 to vector<1x16xf32>
    %148 = arith.maximumf %146, %147 : vector<1x16xf32>
    %c288 = arith.constant 288 : index
    %c0_54 = arith.constant 0 : index
    %149 = vector.load %arg5[%c288, %c0_54] : memref<336x128xf32, #tpu.memory_space<vmem>>, vector<16x16xf32>
    %cst_55 = arith.constant dense<0.000000e+00> : vector<1x16xf32>
    %150 = tpu.matmul %148, %149, %cst_55 {dimension_numbers = #tpu.dot_dimension_numbers<[1], [0], [0], [1], [0, 0, 1, 1], [], []>} : vector<1x16xf32>, vector<16x16xf32>, vector<1x16xf32> -> vector<1x16xf32>
    %c304 = arith.constant 304 : index
    %c0_56 = arith.constant 0 : index
    %151 = vector.load %arg5[%c304, %c0_56] : memref<336x128xf32, #tpu.memory_space<vmem>>, vector<8x16xf32>
    %152 = vector.extract_strided_slice %151 {offsets = [0, 0], sizes = [1, 16], strides = [1, 1]} : vector<8x16xf32> to vector<1x16xf32>
    %153 = arith.addf %150, %152 : vector<1x16xf32>
    %cst_57 = arith.constant 0.000000e+00 : f32
    %154 = vector.broadcast %cst_57 : f32 to vector<1x16xf32>
    %155 = arith.maximumf %153, %154 : vector<1x16xf32>
    %c312 = arith.constant 312 : index
    %c0_58 = arith.constant 0 : index
    %156 = vector.load %arg5[%c312, %c0_58] : memref<336x128xf32, #tpu.memory_space<vmem>>, vector<16x2xf32>
    %cst_59 = arith.constant dense<0.000000e+00> : vector<1x2xf32>
    %157 = tpu.matmul %155, %156, %cst_59 {dimension_numbers = #tpu.dot_dimension_numbers<[1], [0], [0], [1], [0, 0, 1, 1], [], []>} : vector<1x16xf32>, vector<16x2xf32>, vector<1x2xf32> -> vector<1x2xf32>
    %c328 = arith.constant 328 : index
    %c0_60 = arith.constant 0 : index
    %158 = vector.load %arg5[%c328, %c0_60] : memref<336x128xf32, #tpu.memory_space<vmem>>, vector<8x2xf32>
    %159 = vector.extract_strided_slice %158 {offsets = [0, 0], sizes = [1, 2], strides = [1, 1]} : vector<8x2xf32> to vector<1x2xf32>
    %160 = arith.addf %157, %159 : vector<1x2xf32>
    %161 = vector.shape_cast %160 : vector<1x2xf32> to vector<1x1x2xf32>
    %162 = vector.shape_cast %161 : vector<1x1x2xf32> to vector<1x1x2xf32>
    %163 = vector.broadcast %162 : vector<1x1x2xf32> to vector<1x8x2xf32>
    %c0_61 = arith.constant 0 : index
    %c0_62 = arith.constant 0 : index
    %c0_63 = arith.constant 0 : index
    %164 = vector.load %arg6[%c0_61, %c0_62, %c0_63] : memref<1x8x2xf32, #tpu.memory_space<vmem>>, vector<1x8x2xf32>
    tpu.vector_store %arg6[%c0_61, %c0_62, %c0_63], %163 {strides = array<i32>} : memref<1x8x2xf32, #tpu.memory_space<vmem>>, vector<1x8x2xf32>,
    return
  }
  func.func @transform_0(%arg0: i32) -> (i32, i32) {
    %c0_i32 = arith.constant 0 : i32
    %c0_i32_0 = arith.constant 0 : i32
    return %arg0, %c0_i32 : i32, i32
  }
  func.func @transform_1(%arg0: i32) -> (i32, i32) {
    %c0_i32 = arith.constant 0 : i32
    %c0_i32_0 = arith.constant 0 : i32
    return %arg0, %c0_i32 : i32, i32
  }
  func.func @transform_2(%arg0: i32) -> (i32, i32, i32) {
    %c0_i32 = arith.constant 0 : i32
    %c0_i32_0 = arith.constant 0 : i32
    %c0_i32_1 = arith.constant 0 : i32
    return %arg0, %c0_i32, %c0_i32_0 : i32, i32, i32
  }
  func.func @transform_3(%arg0: i32) -> (i32, i32, i32) {
    %c0_i32 = arith.constant 0 : i32
    %c0_i32_0 = arith.constant 0 : i32
    %c0_i32_1 = arith.constant 0 : i32
    return %arg0, %c0_i32, %c0_i32_0 : i32, i32, i32
  }
  func.func @transform_4(%arg0: i32) -> (i32, i32) {
    %c0_i32 = arith.constant 0 : i32
    %c0_i32_0 = arith.constant 0 : i32
    %c0_i32_1 = arith.constant 0 : i32
    return %c0_i32, %c0_i32_0 : i32, i32
  }
  func.func @transform_5(%arg0: i32) -> (i32, i32, i32) {
    %c0_i32 = arith.constant 0 : i32
    %c0_i32_0 = arith.constant 0 : i32
    %c0_i32_1 = arith.constant 0 : i32
    return %arg0, %c0_i32, %c0_i32_0 : i32, i32, i32
  }
}

</mosaic_0001>

<llo_original>
// kernel: model_gnn_forward.1
$region0: #{model_gnn_forward.1}
  #allocation0 [shape = 'u32[]', space=smem, size = 0x4, offset = 0x4, fixed_abs, tag = 'smem constant byte address 0x4 - core index']
  #allocation1 [shape = 'u32[144,128]{1,0:T(1,128)}', space=vmem, size = 0x12000, scoped, tag = 'internal scratch']
  %s0 = inlined_call_operand.vmem [shape: f32[64,8], index: 0, kind: input, shape index: {}]
  %s1 = inlined_call_operand.vmem [shape: f32[64,3], index: 1, kind: input, shape index: {}]
  %s2 = inlined_call_operand.vmem [shape: f32[2,3,32], index: 2, kind: input, shape index: {}]
  %s3 = inlined_call_operand.vmem [shape: f32[2,8,2], index: 3, kind: input, shape index: {}]
  %s4 = inlined_call_operand.vmem [shape: f32[336,128], index: 4, kind: input, shape index: {}]
  %s5 = inlined_call_operand.vmem [shape: f32[2,8,2], index: 5, kind: output, shape index: {}]
  %s6 = sld [smem:[#allocation0]]
  $region53: #{model_gnn_forward.1} parent=0
    _
  %s8 = ssub.s32 1, %s6
  %s9 = scalar_select 0, %s8, %s6
  loop: start=0, step=1, limit=4
  $region2: #{model_gnn_forward.1} parent=0 // loop_pre_header
    _
  $region3: #{model_gnn_forward.1} parent=0 // loop_header
    %s11 = sphi 0, %s15
    %p12 = scmp.ge.s32.totalorder %s11, 4
    %s21 = sphi 0, %s23
    %s24 = sphi 0, %s21
    %s25 = sphi 0, %s24
    %s41 = sphi 0, %s25
    %s47 = sphi 0, %s49
    %s50 = sphi 0, %s47
    %s51 = sphi 0, %s50
    %s67 = sphi 0, %s51
    %s73 = sphi 0, %s75
    %s76 = sphi 0, %s73
    %s77 = sphi 0, %s76
    %s93 = sphi 0, %s77
    %s99 = sphi 0, %s101
    %s102 = sphi 0, %s99
    %s103 = sphi 0, %s102
    %s119 = sphi 0, %s103
    %s123 = sphi 0, %s123
    %s125 = sphi 0, %s123
    %s126 = sphi 0, %s125
    %s140 = sphi 0, %s126
    %s146 = sphi 0, %s148
    %s149 = sphi 0, %s146
    %s150 = sphi 0, %s149
    %s166 = sphi 0, %s150
  $region4: #{model_gnn_forward.1} parent=0 // loop_header_branch
    %14 = sbr.rel (%p12) target = $region8
  $region5: #{model_gnn_forward.1} parent=0 // loop_body
    %s16 = ssub.s32 %s11, 1
    %s17 = ssub.s32 %s11, 2
    %s18 = sadd.s32 %s11, 1
    %s19 = ssub.s32 %s11, %s18
    %p20 = scmp.eq.s32.totalorder %s19, 0
    %s22 = sadd.s32 %s21, 1
    %s23 = scalar_select %p20, %s21, %s22
    %p26 = pneg %p20
    %p27 = scmp.eq.s32.totalorder %s11, 1
    %p28 = por %p26, %p27
    %p29 = scmp.ne.s32.totalorder %s21, %s24
    %p30 = scmp.eq.s32.totalorder %s11, 0
    %p31 = por %p29, %p30
    %p32 = scmp.ne.s32.totalorder %s21, %s24
    %p33 = scmp.eq.s32.totalorder %s16, 1
    %p34 = por %p32, %p33
    %p35 = scmp.ne.s32.totalorder %s24, %s25
    %p36 = scmp.eq.s32.totalorder %s16, 0
    %p37 = por %p35, %p36
    %p38 = scmp.ne.s32.totalorder %s24, %s25
    %p39 = scmp.eq.s32.totalorder %s17, 1
    %p40 = por %p38, %p39
    %p42 = scmp.ne.s32.totalorder %s25, %s41
    %p43 = scmp.eq.s32.totalorder %s17, 0
    %p44 = por %p42, %p43
    %s45 = ssub.s32 %s11, %s18
    %p46 = scmp.eq.s32.totalorder %s45, 0
    %s48 = sadd.s32 %s47, 1
    %s49 = scalar_select %p46, %s47, %s48
    %p52 = pneg %p46
    %p53 = scmp.eq.s32.totalorder %s11, 1
    %p54 = por %p52, %p53
    %p55 = scmp.ne.s32.totalorder %s47, %s50
    %p56 = scmp.eq.s32.totalorder %s11, 0
    %p57 = por %p55, %p56
    %p58 = scmp.ne.s32.totalorder %s47, %s50
    %p59 = scmp.eq.s32.totalorder %s16, 1
    %p60 = por %p58, %p59
    %p61 = scmp.ne.s32.totalorder %s50, %s51
    %p62 = scmp.eq.s32.totalorder %s16, 0
    %p63 = por %p61, %p62
    %p64 = scmp.ne.s32.totalorder %s50, %s51
    %p65 = scmp.eq.s32.totalorder %s17, 1
    %p66 = por %p64, %p65
    %p68 = scmp.ne.s32.totalorder %s51, %s67
    %p69 = scmp.eq.s32.totalorder %s17, 0
    %p70 = por %p68, %p69
    %s71 = ssub.s32 %s11, %s18
    %p72 = scmp.eq.s32.totalorder %s71, 0
    %s74 = sadd.s32 %s73, 1
    %s75 = scalar_select %p72, %s73, %s74
    %p78 = pneg %p72
    %p79 = scmp.eq.s32.totalorder %s11, 1
    %p80 = por %p78, %p79
    %p81 = scmp.ne.s32.totalorder %s73, %s76
    %p82 = scmp.eq.s32.totalorder %s11, 0
    %p83 = por %p81, %p82
    %p84 = scmp.ne.s32.totalorder %s73, %s76
    %p85 = scmp.eq.s32.totalorder %s16, 1
    %p86 = por %p84, %p85
    %p87 = scmp.ne.s32.totalorder %s76, %s77
    %p88 = scmp.eq.s32.totalorder %s16, 0
    %p89 = por %p87, %p88
    %p90 = scmp.ne.s32.totalorder %s76, %s77
    %p91 = scmp.eq.s32.totalorder %s17, 1
    %p92 = por %p90, %p91
    %p94 = scmp.ne.s32.totalorder %s77, %s93
    %p95 = scmp.eq.s32.totalorder %s17, 0
    %p96 = por %p94, %p95
    %s97 = ssub.s32 %s11, %s18
    %p98 = scmp.eq.s32.totalorder %s97, 0
    %s100 = sadd.s32 %s99, 1
    %s101 = scalar_select %p98, %s99, %s100
    %p104 = pneg %p98
    %p105 = scmp.eq.s32.totalorder %s11, 1
    %p106 = por %p104, %p105
    %p107 = scmp.ne.s32.totalorder %s99, %s102
    %p108 = scmp.eq.s32.totalorder %s11, 0
    %p109 = por %p107, %p108
    %p110 = scmp.ne.s32.totalorder %s99, %s102
    %p111 = scmp.eq.s32.totalorder %s16, 1
    %p112 = por %p110, %p111
    %p113 = scmp.ne.s32.totalorder %s102, %s103
    %p114 = scmp.eq.s32.totalorder %s16, 0
    %p115 = por %p113, %p114
    %p116 = scmp.ne.s32.totalorder %s102, %s103
    %p117 = scmp.eq.s32.totalorder %s17, 1
    %p118 = por %p116, %p117
    %p120 = scmp.ne.s32.totalorder %s103, %s119
    %p121 = scmp.eq.s32.totalorder %s17, 0
    %p122 = por %p120, %p121
    %s124 = sadd.s32 %s123, 1
    %p127 = scmp.eq.s32.totalorder %s11, 1
    %p128 = scmp.ne.s32.totalorder %s123, %s125
    %p129 = scmp.eq.s32.totalorder %s11, 0
    %p130 = por %p128, %p129
    %p131 = scmp.ne.s32.totalorder %s123, %s125
    %p132 = scmp.eq.s32.totalorder %s16, 1
    %p133 = por %p131, %p132
    %p134 = scmp.ne.s32.totalorder %s125, %s126
    %p135 = scmp.eq.s32.totalorder %s16, 0
    %p136 = por %p134, %p135
    %p137 = scmp.ne.s32.totalorder %s125, %s126
    %p138 = scmp.eq.s32.totalorder %s17, 1
    %p139 = por %p137, %p138
    %p141 = scmp.ne.s32.totalorder %s126, %s140
    %p142 = scmp.eq.s32.totalorder %s17, 0
    %p143 = por %p141, %p142
    %s144 = ssub.s32 %s11, %s18
    %p145 = scmp.eq.s32.totalorder %s144, 0
    %s147 = sadd.s32 %s146, 1
    %s148 = scalar_select %p145, %s146, %s147
    %p151 = pneg %p145
    %p152 = scmp.eq.s32.totalorder %s11, 1
    %p153 = por %p151, %p152
    %p154 = scmp.ne.s32.totalorder %s146, %s149
    %p155 = scmp.eq.s32.totalorder %s11, 0
    %p156 = por %p154, %p155
    %p157 = scmp.ne.s32.totalorder %s146, %s149
    %p158 = scmp.eq.s32.totalorder %s16, 1
    %p159 = por %p157, %p158
    %p160 = scmp.ne.s32.totalorder %s149, %s150
    %p161 = scmp.eq.s32.totalorder %s16, 0
    %p162 = por %p160, %p161
    %p163 = scmp.ne.s32.totalorder %s149, %s150
    %p164 = scmp.eq.s32.totalorder %s17, 1
    %p165 = por %p163, %p164
    %p167 = scmp.ne.s32.totalorder %s150, %s166
    %p168 = scmp.eq.s32.totalorder %s17, 0
    %p169 = por %p167, %p168
    %p170 = scmp.le.s32.totalorder 1, %s11
    %p171 = scmp.lt.s32.totalorder %s11, 3
    %p172 = pnand %p170, %p171
    %p173 = pneg %p172
    // Predicated region
    $region9: #{model_gnn_forward.1} parent=5 // pred_check
      _
    $region10: #{model_gnn_forward.1} parent=5 // pred_check_branch
      %175 = sbr.rel (%p172) target = $region12
    $region11: #{model_gnn_forward.1} parent=5 // pred_region
      %s176 = ssub.s32 %s11, 1
      // Predicated region
      $region13: #{model_gnn_forward.1} parent=11 // pred_check
        %p177 = pneg %p136
      $region14: #{model_gnn_forward.1} parent=11 // pred_check_branch
        %179 = sbr.rel (%p177) target = $region16
      $region15: #{model_gnn_forward.1} parent=11 // pred_region
        _
      $region16: #{model_gnn_forward.1} parent=11 // pred_fallthru
        _
    $region12: #{model_gnn_forward.1} parent=5 // pred_fallthru
      _
    %p180 = scmp.lt.s32.totalorder %s11, 2
    // Predicated region
    $region17: #{model_gnn_forward.1} parent=5 // pred_check
      %p181 = pneg %p180
    $region18: #{model_gnn_forward.1} parent=5 // pred_check_branch
      %183 = sbr.rel (%p181) target = $region20
    $region19: #{model_gnn_forward.1} parent=5 // pred_region
      // Predicated region
      $region21: #{model_gnn_forward.1} parent=19 // pred_check
        %p184 = pneg %p31
      $region22: #{model_gnn_forward.1} parent=19 // pred_check_branch
        %186 = sbr.rel (%p184) target = $region24
      $region23: #{model_gnn_forward.1} parent=19 // pred_region
        %s187 = smul.u32 4, %s11
        %p188 = scmp.lt.s32.totalorder %s187, 7
        %s189 = scalar_select %p188, %s187, 7
        %s190 = smul.addr %s189, 8
        %s191 = scalar_lea.vmem %s0, %s190
        %s192 = smul.u32 4, %s11
      $region24: #{model_gnn_forward.1} parent=19 // pred_fallthru
        _
      // Predicated region
      $region25: #{model_gnn_forward.1} parent=19 // pred_check
        %p193 = pneg %p57
      $region26: #{model_gnn_forward.1} parent=19 // pred_check_branch
        %195 = sbr.rel (%p193) target = $region28
      $region27: #{model_gnn_forward.1} parent=19 // pred_region
        %s196 = smul.u32 4, %s11
        %p197 = scmp.lt.s32.totalorder %s196, 7
        %s198 = scalar_select %p197, %s196, 7
        %s199 = smul.addr %s198, 8
        %s200 = scalar_lea.vmem %s1, %s199
        %s201 = smul.u32 4, %s11
      $region28: #{model_gnn_forward.1} parent=19 // pred_fallthru
        _
      // Predicated region
      $region29: #{model_gnn_forward.1} parent=19 // pred_check
        %p202 = pneg %p83
      $region30: #{model_gnn_forward.1} parent=19 // pred_check_branch
        %204 = sbr.rel (%p202) target = $region32
      $region31: #{model_gnn_forward.1} parent=19 // pred_region
        %p205 = scmp.lt.s32.totalorder %s11, 1
        %s206 = scalar_select %p205, %s11, 1
        %s207 = smul.addr %s206, 4
        %s208 = scalar_lea.vmem %s2, %s207
      $region32: #{model_gnn_forward.1} parent=19 // pred_fallthru
        _
      // Predicated region
      $region33: #{model_gnn_forward.1} parent=19 // pred_check
        %p209 = pneg %p109
      $region34: #{model_gnn_forward.1} parent=19 // pred_check_branch
        %211 = sbr.rel (%p209) target = $region36
      $region35: #{model_gnn_forward.1} parent=19 // pred_region
        %p212 = scmp.lt.s32.totalorder %s11, 1
        %s213 = scalar_select %p212, %s11, 1
        %s214 = smul.addr %s213, 8
        %s215 = scalar_lea.vmem %s3, %s214
      $region36: #{model_gnn_forward.1} parent=19 // pred_fallthru
        _
    $region20: #{model_gnn_forward.1} parent=5 // pred_fallthru
      _
    %p216 = scmp.le.s32.totalorder 1, %s11
    %p217 = scmp.lt.s32.totalorder %s11, 3
    %p218 = pnand %p216, %p217
    %p219 = pneg %p218
    // Predicated region
    $region37: #{model_gnn_forward.1} parent=5 // pred_check
      _
    $region38: #{model_gnn_forward.1} parent=5 // pred_check_branch
      %221 = sbr.rel (%p218) target = $region40
    $region39: #{model_gnn_forward.1} parent=5 // pred_region
      %s222 = ssub.s32 %s11, 1
      %s223 = smul.u32 4, %s16
      %p224 = scmp.lt.s32.totalorder %s223, 7
      %s225 = scalar_select %p224, %s223, 7
      %s226 = smul.addr %s225, 8
      %s227 = scalar_lea.vmem %s0, %s226
      %p228 = pneg %p37
      %p229 = pneg %p34
      %s230 = smul.u32 4, %s16
      %p231 = scmp.lt.s32.totalorder %s230, 7
      %s232 = scalar_select %p231, %s230, 7
      %s233 = smul.addr %s232, 8
      %s234 = scalar_lea.vmem %s1, %s233
      %p235 = pneg %p63
      %p236 = pneg %p60
      %p237 = scmp.lt.s32.totalorder %s16, 1
      %s238 = scalar_select %p237, %s16, 1
      %s239 = smul.addr %s238, 4
      %s240 = scalar_lea.vmem %s2, %s239
      %p241 = pneg %p89
      %p242 = pneg %p86
      %p243 = scmp.lt.s32.totalorder %s16, 1
      %s244 = scalar_select %p243, %s16, 1
      %s245 = smul.addr %s244, 8
      %s246 = scalar_lea.vmem %s3, %s245
      %p247 = pneg %p115
      %p248 = pneg %p112
      %p249 = pneg %p136
      %p250 = pneg %p133
      %p251 = pneg %p162
      %p252 = pneg %p159
      %p253 = scmp.lt.s32.totalorder %s16, 1
      %s254 = scalar_select %p253, %s16, 1
      %s255 = smul.addr %s254, 8
      %s256 = scalar_lea.vmem %s5, %s255
      %s257 = smul.u32 4, %s16
      %p258 = scmp.lt.s32.totalorder %s257, 7
      %s259 = scalar_select %p258, %s257, 7
      %s260 = smul.addr %s259, 8
      %s261 = scalar_lea.vmem %s0, %s260
      %s262 = smul.u32 4, %s16
      %s263 = smul.u32 4, %s16
      %p264 = scmp.lt.s32.totalorder %s263, 7
      %s265 = scalar_select %p264, %s263, 7
      %s266 = smul.addr %s265, 8
      %s267 = scalar_lea.vmem %s1, %s266
      %s268 = smul.u32 4, %s16
      %p269 = scmp.lt.s32.totalorder %s16, 1
      %s270 = scalar_select %p269, %s16, 1
      %s271 = smul.addr %s270, 4
      %s272 = scalar_lea.vmem %s2, %s271
      %p273 = scmp.lt.s32.totalorder %s16, 1
      %s274 = scalar_select %p273, %s16, 1
      %s275 = smul.addr %s274, 8
      %s276 = scalar_lea.vmem %s3, %s275
      %p277 = scmp.lt.s32.totalorder %s16, 1
      %s278 = scalar_select %p277, %s16, 1
      %s279 = smul.addr %s278, 8
      %s280 = scalar_lea.vmem %s5, %s279
      %v282 = vld [vmem:[%s267] sm:$0xff]
      %v283 = vld [vmem:[%s267 + $0x8] sm:$0xff]
      %v284 = vld [vmem:[%s267 + $0x10] sm:$0xff]
      %v285 = vld [vmem:[%s267 + $0x18] sm:$0xff]
      %v286 = vld [vmem:[%s272] sm:$0x7]
      %288 = vset.pattern.permute.xlu0 0
      %289 = vperm.xlu0 %288, %v282
      %v290 = vpop.permute.xlu0 %289
      %293 = vset.pattern.permute.xlu0 0
      %294 = vperm.xlu0 %293, %v283
      %v295 = vpop.permute.xlu0 %294
      %298 = vset.pattern.permute.xlu0 0
      %299 = vperm.xlu0 %298, %v284
      %v300 = vpop.permute.xlu0 %299
      %303 = vset.pattern.permute.xlu0 0
      %304 = vperm.xlu0 %303, %v285
      %v305 = vpop.permute.xlu0 %304
      %v307 = vlaneseq
      %v308 = vshrl.u32 %v307, 7
      %v309 = vsub.s32 0, %v308
      %v310 = vrot.slane %v286, %v309
      %v311 = vsub.f32 %v290, %v310
      %v312 = vsub.f32 %v295, %v310
      %v313 = vsub.f32 %v300, %v310
      %v314 = vsub.f32 %v305, %v310
      %v315 = vmul.f32 %v311, %v311
      %v316 = vmul.f32 %v312, %v312
      %v317 = vmul.f32 %v313, %v313
      %v318 = vmul.f32 %v314, %v314
      %v319 = vadd.f32 %v315, 0.0
      %v320 = vadd.f32 %v316, 0.0
      %v321 = vadd.f32 %v317, 0.0
      %v322 = vadd.f32 %v318, 0.0
      %323 = vset.pattern.permute.xlu0 1
      %324 = vperm.xlu0 %323, %v282
      %v325 = vpop.permute.xlu0 %324
      %327 = vset.pattern.permute.xlu0 1
      %328 = vperm.xlu0 %327, %v283
      %v329 = vpop.permute.xlu0 %328
      %331 = vset.pattern.permute.xlu0 1
      %332 = vperm.xlu0 %331, %v284
      %v333 = vpop.permute.xlu0 %332
      %335 = vset.pattern.permute.xlu0 1
      %336 = vperm.xlu0 %335, %v285
      %v337 = vpop.permute.xlu0 %336
      %v339 = vlaneseq
      %v340 = vshrl.u32 %v339, 7
      %v341 = vsub.s32 1, %v340
      %v342 = vrot.slane %v286, %v341
      %v343 = vsub.f32 %v325, %v342
      %v344 = vsub.f32 %v329, %v342
      %v345 = vsub.f32 %v333, %v342
      %v346 = vsub.f32 %v337, %v342
      %v347 = vmul.f32 %v343, %v343
      %v348 = vmul.f32 %v344, %v344
      %v349 = vmul.f32 %v345, %v345
      %v350 = vmul.f32 %v346, %v346
      %v351 = vadd.f32 %v319, %v347
      %v352 = vadd.f32 %v320, %v348
      %v353 = vadd.f32 %v321, %v349
      %v354 = vadd.f32 %v322, %v350
      %355 = vset.pattern.permute.xlu0 2
      %356 = vperm.xlu0 %355, %v282
      %v357 = vpop.permute.xlu0 %356
      %359 = vset.pattern.permute.xlu0 2
      %360 = vperm.xlu0 %359, %v283
      %v361 = vpop.permute.xlu0 %360
      %363 = vset.pattern.permute.xlu0 2
      %364 = vperm.xlu0 %363, %v284
      %v365 = vpop.permute.xlu0 %364
      %367 = vset.pattern.permute.xlu0 2
      %368 = vperm.xlu0 %367, %v285
      %v369 = vpop.permute.xlu0 %368
      %v371 = vlaneseq
      %v372 = vshrl.u32 %v371, 7
      %v373 = vsub.s32 2, %v372
      %v374 = vrot.slane %v286, %v373
      %v375 = vsub.f32 %v357, %v374
      %v376 = vsub.f32 %v361, %v374
      %v377 = vsub.f32 %v365, %v374
      %v378 = vsub.f32 %v369, %v374
      %v379 = vmul.f32 %v375, %v375
      %v380 = vmul.f32 %v376, %v376
      %v381 = vmul.f32 %v377, %v377
      %v382 = vmul.f32 %v378, %v378
      %v383 = vadd.f32 %v351, %v379
      %v384 = vadd.f32 %v352, %v380
      %v385 = vadd.f32 %v353, %v381
      %v386 = vadd.f32 %v354, %v382
      %vm387 = vcmp.lt.f32.partialorder %v383, 0.2025
      %vm388 = vcmp.lt.f32.partialorder %v384, 0.2025
      %vm389 = vcmp.lt.f32.partialorder %v385, 0.2025
      %vm390 = vcmp.lt.f32.partialorder %v386, 0.2025
      %v391 = vlaneseq
      %v392 = vshrl.u32 %v391, 7
      %v393 = vadd.s32 %v392, 8
      %v394 = vadd.s32 %v392, 16
      %v395 = vadd.s32 %v392, 24
      %v396 = vlaneseq
      %v397 = vand.u32 %v396, 127
      %vm398 = vcmp.ne.s32.totalorder %v392, %v397
      %vm399 = vcmp.ne.s32.totalorder %v393, %v397
      %vm400 = vcmp.ne.s32.totalorder %v394, %v397
      %vm401 = vcmp.ne.s32.totalorder %v395, %v397
      %vm402 = vmand %vm387, %vm398
      %vm403 = vmand %vm388, %vm399
      %vm404 = vmand %vm389, %vm400
      %vm405 = vmand %vm390, %vm401
      %v406 = vsel %vm402, 0.0, -1e+30
      %v407 = vsel %vm403, 0.0, -1e+30
      %v408 = vsel %vm404, 0.0, -1e+30
      %v409 = vsel %vm405, 0.0, -1e+30
      %v410 = vsel %vm402, 1, 0
      %v411 = vsel %vm403, 1, 0
      %v412 = vsel %vm404, 1, 0
      %v413 = vsel %vm405, 1, 0
      %v414 = vcvt.s32.f32 %v410
      %v415 = vcvt.s32.f32 %v411
      %v416 = vcvt.s32.f32 %v412
      %v417 = vcvt.s32.f32 %v413
      %vm418 = vcmask 261120
      %v419 = vsel %vm418, %v414, -inf
      %420 = vmax.xlane.f32.xlu0 %v419
      %v421 = vpop.xlane.xlu0 %420
      %v422 = vsel %vm418, %v415, -inf
      %423 = vmax.xlane.f32.xlu0 %v422
      %v424 = vpop.xlane.xlu0 %423
      %v425 = vsel %vm418, %v416, -inf
      %426 = vmax.xlane.f32.xlu0 %v425
      %v427 = vpop.xlane.xlu0 %426
      %v428 = vsel %vm418, %v417, -inf
      %429 = vmax.xlane.f32.xlu0 %v428
      %v430 = vpop.xlane.xlu0 %429
      %vm431 = vcmp.gt.f32.partialorder %v421, 0.5
      %vm432 = vcmp.gt.f32.partialorder %v424, 0.5
      %vm433 = vcmp.gt.f32.partialorder %v427, 0.5
      %vm434 = vcmp.gt.f32.partialorder %v430, 0.5
      %v435 = vld [vmem:[%s261] sm:$0xff]
      %v436 = vld [vmem:[%s261 + $0x8] sm:$0xff]
      %v437 = vld [vmem:[%s261 + $0x10] sm:$0xff]
      %v438 = vld [vmem:[%s261 + $0x18] sm:$0xff]
      %v439 = vld [vmem:[%s4] sm:$0xff]
      %v440 = vld [vmem:[%s4 + $0x8] sm:$0xff]
      %v441 = vld [vmem:[%s4 + $0x10] sm:$0xff]
      %v442 = vld [vmem:[%s4 + $0x18] sm:$0xff]
      %v443 = vld [vmem:[%s4 + $0x20] sm:$0xff]
      %v444 = vld [vmem:[%s4 + $0x28] sm:$0xff]
      %v445 = vld [vmem:[%s4 + $0x30] sm:$0xff]
      %v446 = vld [vmem:[%s4 + $0x38] sm:$0xff]
      %v447 = vld [vmem:[%s4 + $0x40] sm:$0xff]
      %v448 = vld [vmem:[%s4 + $0x48] sm:$0xff]
      %v449 = vld [vmem:[%s4 + $0x50] sm:$0xff]
      %v450 = vld [vmem:[%s4 + $0x58] sm:$0xff]
      %v451 = vld [vmem:[%s4 + $0x60] sm:$0xff]
      %v452 = vlaneseq
      %v453 = vshrl.u32 %v452, 7
      %v454 = vsub.s32 0, %v453
      %v455 = vrot.slane %v441, %v454
      %vm456 = vcmask 64512
      %v458 = vsel %vm456, %v435, 0
      %v461 = vsel %vm456, %v436, 0
      %v464 = vsel %vm456, %v437, 0
      %v467 = vsel %vm456, %v438, 0
      %469 = vmatprep.subr.mxu0 0.0
      %470 = vmatpush1.msra.mxu0 0.0
      %471 = vmatprep.subr.mxu0 0.0
      %472 = vmatpush1.msra.mxu0 0.0
      %473 = vmatprep.subr.mxu0 0.0
      %474 = vmatpush1.msra.mxu0 0.0
      %475 = vmatprep.subr.mxu0 0.0
      %476 = vmatpush1.msra.mxu0 0.0
      %477 = vmatprep.subr.mxu0 0.0
      %478 = vmatpush1.msra.mxu0 0.0
      %479 = vmatprep.subr.mxu0 0.0
      %480 = vmatpush1.msra.mxu0 0.0
      %481 = vmatprep.subr.mxu0 0.0
      %482 = vmatpush1.msra.mxu0 0.0
      %483 = vmatprep.subr.mxu0 0.0
      %484 = vmatpush1.msra.mxu0 0.0
      %485 = vmatprep.subr.mxu0 0.0
      %486 = vmatpush1.msra.mxu0 0.0
      %487 = vmatprep.subr.mxu0 0.0
      %488 = vmatpush1.msra.mxu0 0.0
      %489 = vmatprep.subr.mxu0 0.0
      %490 = vmatpush1.msra.mxu0 0.0
      %491 = vmatprep.subr.mxu0 0.0
      %492 = vmatpush1.msra.mxu0 0.0
      %493 = vmatprep.subr.mxu0 0.0
      %494 = vmatpush1.msra.mxu0 0.0
      %495 = vmatprep.subr.mxu0 0.0
      %496 = vmatpush1.msra.mxu0 0.0
      %497 = vmatprep.subr.mxu0 0.0
      %498 = vmatpush1.msra.mxu0 0.0
      %499 = vmatprep.subr.mxu0 0.0
      %500 = vmatpush1.msra.mxu0 %v439
      %501 = vmatprep.subr.mxu0 0.0
      %502 = vmatpush2.msra.mxu0 0.0
      %503 = vmatprep.subr.mxu0 0.0
      %504 = vmatpush2.msra.mxu0 0.0
      %505 = vmatprep.subr.mxu0 0.0
      %506 = vmatpush2.msra.mxu0 0.0
      %507 = vmatprep.subr.mxu0 0.0
      %508 = vmatpush2.msra.mxu0 0.0
      %509 = vmatprep.subr.mxu0 0.0
      %510 = vmatpush2.msra.mxu0 0.0
      %511 = vmatprep.subr.mxu0 0.0
      %512 = vmatpush2.msra.mxu0 0.0
      %513 = vmatprep.subr.mxu0 0.0
      %514 = vmatpush2.msra.mxu0 0.0
      %515 = vmatprep.subr.mxu0 0.0
      %516 = vmatpush2.msra.mxu0 0.0
      %517 = vmatprep.subr.mxu0 0.0
      %518 = vmatpush2.msra.mxu0 0.0
      %519 = vmatprep.subr.mxu0 0.0
      %520 = vmatpush2.msra.mxu0 0.0
      %521 = vmatprep.subr.mxu0 0.0
      %522 = vmatpush2.msra.mxu0 0.0
      %523 = vmatprep.subr.mxu0 0.0
      %524 = vmatpush2.msra.mxu0 0.0
      %525 = vmatprep.subr.mxu0 0.0
      %526 = vmatpush2.msra.mxu0 0.0
      %527 = vmatprep.subr.mxu0 0.0
      %528 = vmatpush2.msra.mxu0 0.0
      %529 = vmatprep.subr.mxu0 0.0
      %530 = vmatpush2.msra.mxu0 0.0
      %531 = vmatprep.subr.mxu0 0.0
      %532 = vmatpush2.msra.mxu0 0.0
      %533 = vmatprep.mubr.f32.mxu0 0.0
      %534 = vmatmul.mubr.f32.gmra.mxu0 %v458
      %v535 = vpop.f32.mrf.mxu0
      %v536 = vadd.f32 %v455, %v535
      %v537 = vpop.f32.mrf.mxu0
      %538 = vmatprep.mubr.f32.mxu0 0.0
      %539 = vmatmul.mubr.f32.gmra.mxu0 %v461
      %v540 = vpop.f32.mrf.mxu0
      %v541 = vadd.f32 %v455, %v540
      %v542 = vpop.f32.mrf.mxu0
      %543 = vmatprep.mubr.f32.mxu0 0.0
      %544 = vmatmul.mubr.f32.gmra.mxu0 %v464
      %v545 = vpop.f32.mrf.mxu0
      %v546 = vadd.f32 %v455, %v545
      %v547 = vpop.f32.mrf.mxu0
      %548 = vmatprep.mubr.f32.mxu0 0.0
      %549 = vmatmul.mubr.f32.gmra.mxu0 %v467
      %v550 = vpop.f32.mrf.mxu0
      %v551 = vadd.f32 %v455, %v550
      %v552 = vpop.f32.mrf.mxu0
      %553 = vdwg.mxu0
      %554 = vmatprep.subr.mxu0 0.0
      %555 = vmatpush1.msra.mxu0 0.0
      %556 = vmatprep.subr.mxu0 0.0
      %557 = vmatpush1.msra.mxu0 0.0
      %558 = vmatprep.subr.mxu0 0.0
      %559 = vmatpush1.msra.mxu0 0.0
      %560 = vmatprep.subr.mxu0 0.0
      %561 = vmatpush1.msra.mxu0 0.0
      %562 = vmatprep.subr.mxu0 0.0
      %563 = vmatpush1.msra.mxu0 0.0
      %564 = vmatprep.subr.mxu0 0.0
      %565 = vmatpush1.msra.mxu0 0.0
      %566 = vmatprep.subr.mxu0 0.0
      %567 = vmatpush1.msra.mxu0 0.0
      %568 = vmatprep.subr.mxu0 0.0
      %569 = vmatpush1.msra.mxu0 0.0
      %570 = vmatprep.subr.mxu0 0.0
      %571 = vmatpush1.msra.mxu0 0.0
      %572 = vmatprep.subr.mxu0 0.0
      %573 = vmatpush1.msra.mxu0 0.0
      %574 = vmatprep.subr.mxu0 0.0
      %575 = vmatpush1.msra.mxu0 0.0
      %576 = vmatprep.subr.mxu0 0.0
      %577 = vmatpush1.msra.mxu0 0.0
      %578 = vmatprep.subr.mxu0 0.0
      %579 = vmatpush1.msra.mxu0 0.0
      %580 = vmatprep.subr.mxu0 0.0
      %581 = vmatpush1.msra.mxu0 0.0
      %582 = vmatprep.subr.mxu0 0.0
      %583 = vmatpush1.msra.mxu0 0.0
      %584 = vmatprep.subr.mxu0 0.0
      %585 = vmatpush1.msra.mxu0 %v440
      %586 = vmatprep.subr.mxu0 0.0
      %587 = vmatpush2.msra.mxu0 0.0
      %588 = vmatprep.subr.mxu0 0.0
      %589 = vmatpush2.msra.mxu0 0.0
      %590 = vmatprep.subr.mxu0 0.0
      %591 = vmatpush2.msra.mxu0 0.0
      %592 = vmatprep.subr.mxu0 0.0
      %593 = vmatpush2.msra.mxu0 0.0
      %594 = vmatprep.subr.mxu0 0.0
      %595 = vmatpush2.msra.mxu0 0.0
      %596 = vmatprep.subr.mxu0 0.0
      %597 = vmatpush2.msra.mxu0 0.0
      %598 = vmatprep.subr.mxu0 0.0
      %599 = vmatpush2.msra.mxu0 0.0
      %600 = vmatprep.subr.mxu0 0.0
      %601 = vmatpush2.msra.mxu0 0.0
      %602 = vmatprep.subr.mxu0 0.0
      %603 = vmatpush2.msra.mxu0 0.0
      %604 = vmatprep.subr.mxu0 0.0
      %605 = vmatpush2.msra.mxu0 0.0
      %606 = vmatprep.subr.mxu0 0.0
      %607 = vmatpush2.msra.mxu0 0.0
      %608 = vmatprep.subr.mxu0 0.0
      %609 = vmatpush2.msra.mxu0 0.0
      %610 = vmatprep.subr.mxu0 0.0
      %611 = vmatpush2.msra.mxu0 0.0
      %612 = vmatprep.subr.mxu0 0.0
      %613 = vmatpush2.msra.mxu0 0.0
      %614 = vmatprep.subr.mxu0 0.0
      %615 = vmatpush2.msra.mxu0 0.0
      %616 = vmatprep.subr.mxu0 0.0
      %617 = vmatpush2.msra.mxu0 0.0
      %618 = vmatprep.mubr.f32.mxu0 0.0
      %619 = vmatmul.mubr.f32.gmra.mxu0 %v458
      %v620 = vpop.f32.mrf.mxu0
      %v621 = vadd.f32 0.0, %v620
      %v622 = vpop.f32.mrf.mxu0
      %623 = vmatprep.mubr.f32.mxu0 0.0
      %624 = vmatmul.mubr.f32.gmra.mxu0 %v461
      %v625 = vpop.f32.mrf.mxu0
      %v626 = vadd.f32 0.0, %v625
      %v627 = vpop.f32.mrf.mxu0
      %628 = vmatprep.mubr.f32.mxu0 0.0
      %629 = vmatmul.mubr.f32.gmra.mxu0 %v464
      %v630 = vpop.f32.mrf.mxu0
      %v631 = vadd.f32 0.0, %v630
      %v632 = vpop.f32.mrf.mxu0
      %633 = vmatprep.mubr.f32.mxu0 0.0
      %634 = vmatmul.mubr.f32.gmra.mxu0 %v467
      %v635 = vpop.f32.mrf.mxu0
      %v636 = vadd.f32 0.0, %v635
      %v637 = vpop.f32.mrf.mxu0
      %638 = vdwg.mxu0
      %v643 = vcombine.high %v621, %v621
      %v645 = vunpack.c.l.s4 1966171168
      %v646 = vunpack.c.0.s8 %v645
      %v647 = vlaneseq
      %v648 = vshrl.u32 %v647, 7
      %v649 = vsub.s32 %v646, %v648
      %v650 = vrot.slane %v621, %v649
      %v652 = vunpack.c.l.s4 1966171168
      %v653 = vunpack.c.0.s8 %v652
      %v654 = vlaneseq
      %v655 = vshrl.u32 %v654, 7
      %v656 = vsub.s32 %v653, %v655
      %v657 = vrot.slane %v643, %v656
      %v658 = vcombine.high %v650, %v650
      %v659 = vcombine.high %v657, %v657
      %v661 = vunpack.c.l.s4 1966171168
      %v662 = vunpack.c.0.s8 %v661
      %v663 = vlaneseq
      %v664 = vshrl.u32 %v663, 7
      %v665 = vsub.s32 %v662, %v664
      %v666 = vrot.slane %v650, %v665
      %v668 = vunpack.c.l.s4 1966171168
      %v669 = vunpack.c.0.s8 %v668
      %v670 = vlaneseq
      %v671 = vshrl.u32 %v670, 7
      %v672 = vsub.s32 %v669, %v671
      %v673 = vrot.slane %v657, %v672
      %v675 = vunpack.c.l.s4 1966171168
      %v676 = vunpack.c.0.s8 %v675
      %v677 = vlaneseq
      %v678 = vshrl.u32 %v677, 7
      %v679 = vsub.s32 %v676, %v678
      %v680 = vrot.slane %v658, %v679
      %v682 = vunpack.c.l.s4 1966171168
      %v683 = vunpack.c.0.s8 %v682
      %v684 = vlaneseq
      %v685 = vshrl.u32 %v684, 7
      %v686 = vsub.s32 %v683, %v685
      %v687 = vrot.slane %v659, %v686
      %v688 = vcombine.high %v666, %v666
      %v689 = vcombine.high %v673, %v673
      %v690 = vcombine.high %v680, %v680
      %v691 = vcombine.high %v687, %v687
      %v692 = vcombine.high %v626, %v626
      %v694 = vunpack.c.l.s4 1966171168
      %v695 = vunpack.c.0.s8 %v694
      %v696 = vlaneseq
      %v697 = vshrl.u32 %v696, 7
      %v698 = vsub.s32 %v695, %v697
      %v699 = vrot.slane %v626, %v698
      %v701 = vunpack.c.l.s4 1966171168
      %v702 = vunpack.c.0.s8 %v701
      %v703 = vlaneseq
      %v704 = vshrl.u32 %v703, 7
      %v705 = vsub.s32 %v702, %v704
      %v706 = vrot.slane %v692, %v705
      %v707 = vcombine.high %v699, %v699
      %v708 = vcombine.high %v706, %v706
      %v710 = vunpack.c.l.s4 1966171168
      %v711 = vunpack.c.0.s8 %v710
      %v712 = vlaneseq
      %v713 = vshrl.u32 %v712, 7
      %v714 = vsub.s32 %v711, %v713
      %v715 = vrot.slane %v699, %v714
      %v717 = vunpack.c.l.s4 1966171168
      %v718 = vunpack.c.0.s8 %v717
      %v719 = vlaneseq
      %v720 = vshrl.u32 %v719, 7
      %v721 = vsub.s32 %v718, %v720
      %v722 = vrot.slane %v706, %v721
      %v724 = vunpack.c.l.s4 1966171168
      %v725 = vunpack.c.0.s8 %v724
      %v726 = vlaneseq
      %v727 = vshrl.u32 %v726, 7
      %v728 = vsub.s32 %v725, %v727
      %v729 = vrot.slane %v707, %v728
      %v731 = vunpack.c.l.s4 1966171168
      %v732 = vunpack.c.0.s8 %v731
      %v733 = vlaneseq
      %v734 = vshrl.u32 %v733, 7
      %v735 = vsub.s32 %v732, %v734
      %v736 = vrot.slane %v708, %v735
      %v737 = vcombine.high %v715, %v715
      %v738 = vcombine.high %v722, %v722
      %v739 = vcombine.high %v729, %v729
      %v740 = vcombine.high %v736, %v736
      %v741 = vcombine.high %v631, %v631
      %v743 = vunpack.c.l.s4 1966171168
      %v744 = vunpack.c.0.s8 %v743
      %v745 = vlaneseq
      %v746 = vshrl.u32 %v745, 7
      %v747 = vsub.s32 %v744, %v746
      %v748 = vrot.slane %v631, %v747
      %v750 = vunpack.c.l.s4 1966171168
      %v751 = vunpack.c.0.s8 %v750
      %v752 = vlaneseq
      %v753 = vshrl.u32 %v752, 7
      %v754 = vsub.s32 %v751, %v753
      %v755 = vrot.slane %v741, %v754
      %v756 = vcombine.high %v748, %v748
      %v757 = vcombine.high %v755, %v755
      %v759 = vunpack.c.l.s4 1966171168
      %v760 = vunpack.c.0.s8 %v759
      %v761 = vlaneseq
      %v762 = vshrl.u32 %v761, 7
      %v763 = vsub.s32 %v760, %v762
      %v764 = vrot.slane %v748, %v763
      %v766 = vunpack.c.l.s4 1966171168
      %v767 = vunpack.c.0.s8 %v766
      %v768 = vlaneseq
      %v769 = vshrl.u32 %v768, 7
      %v770 = vsub.s32 %v767, %v769
      %v771 = vrot.slane %v755, %v770
      %v773 = vunpack.c.l.s4 1966171168
      %v774 = vunpack.c.0.s8 %v773
      %v775 = vlaneseq
      %v776 = vshrl.u32 %v775, 7
      %v777 = vsub.s32 %v774, %v776
      %v778 = vrot.slane %v756, %v777
      %v780 = vunpack.c.l.s4 1966171168
      %v781 = vunpack.c.0.s8 %v780
      %v782 = vlaneseq
      %v783 = vshrl.u32 %v782, 7
      %v784 = vsub.s32 %v781, %v783
      %v785 = vrot.slane %v757, %v784
      %v786 = vcombine.high %v764, %v764
      %v787 = vcombine.high %v771, %v771
      %v788 = vcombine.high %v778, %v778
      %v789 = vcombine.high %v785, %v785
      %v790 = vcombine.high %v636, %v636
      %v792 = vunpack.c.l.s4 1966171168
      %v793 = vunpack.c.0.s8 %v792
      %v794 = vlaneseq
      %v795 = vshrl.u32 %v794, 7
      %v796 = vsub.s32 %v793, %v795
      %v797 = vrot.slane %v636, %v796
      %v799 = vunpack.c.l.s4 1966171168
      %v800 = vunpack.c.0.s8 %v799
      %v801 = vlaneseq
      %v802 = vshrl.u32 %v801, 7
      %v803 = vsub.s32 %v800, %v802
      %v804 = vrot.slane %v790, %v803
      %v805 = vcombine.high %v797, %v797
      %v806 = vcombine.high %v804, %v804
      %v808 = vunpack.c.l.s4 1966171168
      %v809 = vunpack.c.0.s8 %v808
      %v810 = vlaneseq
      %v811 = vshrl.u32 %v810, 7
      %v812 = vsub.s32 %v809, %v811
      %v813 = vrot.slane %v797, %v812
      %v815 = vunpack.c.l.s4 1966171168
      %v816 = vunpack.c.0.s8 %v815
      %v817 = vlaneseq
      %v818 = vshrl.u32 %v817, 7
      %v819 = vsub.s32 %v816, %v818
      %v820 = vrot.slane %v804, %v819
      %v822 = vunpack.c.l.s4 1966171168
      %v823 = vunpack.c.0.s8 %v822
      %v824 = vlaneseq
      %v825 = vshrl.u32 %v824, 7
      %v826 = vsub.s32 %v823, %v825
      %v827 = vrot.slane %v805, %v826
      %v829 = vunpack.c.l.s4 1966171168
      %v830 = vunpack.c.0.s8 %v829
      %v831 = vlaneseq
      %v832 = vshrl.u32 %v831, 7
      %v833 = vsub.s32 %v830, %v832
      %v834 = vrot.slane %v806, %v833
      %v835 = vcombine.high %v813, %v813
      %v836 = vcombine.high %v820, %v820
      %v837 = vcombine.high %v827, %v827
      %v838 = vcombine.high %v834, %v834
      %v839 = vlaneseq
      %v840 = vshrl.u32 %v839, 7
      %v841 = vsub.s32 0, %v840
      %v842 = vrot.slane %v666, %v841
      %v843 = vlaneseq
      %v844 = vshrl.u32 %v843, 7
      %v845 = vsub.s32 0, %v844
      %v846 = vrot.slane %v680, %v845
      %v847 = vlaneseq
      %v848 = vshrl.u32 %v847, 7
      %v849 = vsub.s32 0, %v848
      %v850 = vrot.slane %v688, %v849
      %v851 = vlaneseq
      %v852 = vshrl.u32 %v851, 7
      %v853 = vsub.s32 0, %v852
      %v854 = vrot.slane %v690, %v853
      %v855 = vlaneseq
      %v856 = vshrl.u32 %v855, 7
      %v857 = vsub.s32 0, %v856
      %v858 = vrot.slane %v673, %v857
      %v859 = vlaneseq
      %v860 = vshrl.u32 %v859, 7
      %v861 = vsub.s32 0, %v860
      %v862 = vrot.slane %v687, %v861
      %v863 = vlaneseq
      %v864 = vshrl.u32 %v863, 7
      %v865 = vsub.s32 0, %v864
      %v866 = vrot.slane %v689, %v865
      %v867 = vlaneseq
      %v868 = vshrl.u32 %v867, 7
      %v869 = vsub.s32 0, %v868
      %v870 = vrot.slane %v691, %v869
      %v871 = vlaneseq
      %v872 = vshrl.u32 %v871, 7
      %v873 = vsub.s32 0, %v872
      %v874 = vrot.slane %v715, %v873
      %v875 = vlaneseq
      %v876 = vshrl.u32 %v875, 7
      %v877 = vsub.s32 0, %v876
      %v878 = vrot.slane %v729, %v877
      %v879 = vlaneseq
      %v880 = vshrl.u32 %v879, 7
      %v881 = vsub.s32 0, %v880
      %v882 = vrot.slane %v737, %v881
      %v883 = vlaneseq
      %v884 = vshrl.u32 %v883, 7
      %v885 = vsub.s32 0, %v884
      %v886 = vrot.slane %v739, %v885
      %v887 = vlaneseq
      %v888 = vshrl.u32 %v887, 7
      %v889 = vsub.s32 0, %v888
      %v890 = vrot.slane %v722, %v889
      %v891 = vlaneseq
      %v892 = vshrl.u32 %v891, 7
      %v893 = vsub.s32 0, %v892
      %v894 = vrot.slane %v736, %v893
      %v895 = vlaneseq
      %v896 = vshrl.u32 %v895, 7
      %v897 = vsub.s32 0, %v896
      %v898 = vrot.slane %v738, %v897
      %v899 = vlaneseq
      %v900 = vshrl.u32 %v899, 7
      %v901 = vsub.s32 0, %v900
      %v902 = vrot.slane %v740, %v901
      %v903 = vlaneseq
      %v904 = vshrl.u32 %v903, 7
      %v905 = vsub.s32 0, %v904
      %v906 = vrot.slane %v764, %v905
      %v907 = vlaneseq
      %v908 = vshrl.u32 %v907, 7
      %v909 = vsub.s32 0, %v908
      %v910 = vrot.slane %v778, %v909
      %v911 = vlaneseq
      %v912 = vshrl.u32 %v911, 7
      %v913 = vsub.s32 0, %v912
      %v914 = vrot.slane %v786, %v913
      %v915 = vlaneseq
      %v916 = vshrl.u32 %v915, 7
      %v917 = vsub.s32 0, %v916
      %v918 = vrot.slane %v788, %v917
      %v919 = vlaneseq
      %v920 = vshrl.u32 %v919, 7
      %v921 = vsub.s32 0, %v920
      %v922 = vrot.slane %v771, %v921
      %v923 = vlaneseq
      %v924 = vshrl.u32 %v923, 7
      %v925 = vsub.s32 0, %v924
      %v926 = vrot.slane %v785, %v925
      %v927 = vlaneseq
      %v928 = vshrl.u32 %v927, 7
      %v929 = vsub.s32 0, %v928
      %v930 = vrot.slane %v787, %v929
      %v931 = vlaneseq
      %v932 = vshrl.u32 %v931, 7
      %v933 = vsub.s32 0, %v932
      %v934 = vrot.slane %v789, %v933
      %v935 = vlaneseq
      %v936 = vshrl.u32 %v935, 7
      %v937 = vsub.s32 0, %v936
      %v938 = vrot.slane %v813, %v937
      %v939 = vlaneseq
      %v940 = vshrl.u32 %v939, 7
      %v941 = vsub.s32 0, %v940
      %v942 = vrot.slane %v827, %v941
      %v943 = vlaneseq
      %v944 = vshrl.u32 %v943, 7
      %v945 = vsub.s32 0, %v944
      %v946 = vrot.slane %v835, %v945
      %v947 = vlaneseq
      %v948 = vshrl.u32 %v947, 7
      %v949 = vsub.s32 0, %v948
      %v950 = vrot.slane %v837, %v949
      %v951 = vlaneseq
      %v952 = vshrl.u32 %v951, 7
      %v953 = vsub.s32 0, %v952
      %v954 = vrot.slane %v820, %v953
      %v955 = vlaneseq
      %v956 = vshrl.u32 %v955, 7
      %v957 = vsub.s32 0, %v956
      %v958 = vrot.slane %v834, %v957
      %v959 = vlaneseq
      %v960 = vshrl.u32 %v959, 7
      %v961 = vsub.s32 0, %v960
      %v962 = vrot.slane %v836, %v961
      %v963 = vlaneseq
      %v964 = vshrl.u32 %v963, 7
      %v965 = vsub.s32 0, %v964
      %v966 = vrot.slane %v838, %v965
      %v999 = vadd.f32 %v842, %v536
      %v1000 = vadd.f32 %v842, %v541
      %v1001 = vadd.f32 %v842, %v546
      %v1002 = vadd.f32 %v842, %v551
      %v1003 = vadd.f32 %v846, %v536
      %v1004 = vadd.f32 %v846, %v541
      %v1005 = vadd.f32 %v846, %v546
      %v1006 = vadd.f32 %v846, %v551
      %v1007 = vadd.f32 %v850, %v536
      %v1008 = vadd.f32 %v850, %v541
      %v1009 = vadd.f32 %v850, %v546
      %v1010 = vadd.f32 %v850, %v551
      %v1011 = vadd.f32 %v854, %v536
      %v1012 = vadd.f32 %v854, %v541
      %v1013 = vadd.f32 %v854, %v546
      %v1014 = vadd.f32 %v854, %v551
      %v1015 = vadd.f32 %v858, %v536
      %v1016 = vadd.f32 %v858, %v541
      %v1017 = vadd.f32 %v858, %v546
      %v1018 = vadd.f32 %v858, %v551
      %v1019 = vadd.f32 %v862, %v536
      %v1020 = vadd.f32 %v862, %v541
      %v1021 = vadd.f32 %v862, %v546
      %v1022 = vadd.f32 %v862, %v551
      %v1023 = vadd.f32 %v866, %v536
      %v1024 = vadd.f32 %v866, %v541
      %v1025 = vadd.f32 %v866, %v546
      %v1026 = vadd.f32 %v866, %v551
      %v1027 = vadd.f32 %v870, %v536
      %v1028 = vadd.f32 %v870, %v541
      %v1029 = vadd.f32 %v870, %v546
      %v1030 = vadd.f32 %v870, %v551
      %v1031 = vadd.f32 %v874, %v536
      %v1032 = vadd.f32 %v874, %v541
      %v1033 = vadd.f32 %v874, %v546
      %v1034 = vadd.f32 %v874, %v551
      %v1035 = vadd.f32 %v878, %v536
      %v1036 = vadd.f32 %v878, %v541
      %v1037 = vadd.f32 %v878, %v546
      %v1038 = vadd.f32 %v878, %v551
      %v1039 = vadd.f32 %v882, %v536
      %v1040 = vadd.f32 %v882, %v541
      %v1041 = vadd.f32 %v882, %v546
      %v1042 = vadd.f32 %v882, %v551
      %v1043 = vadd.f32 %v886, %v536
      %v1044 = vadd.f32 %v886, %v541
      %v1045 = vadd.f32 %v886, %v546
      %v1046 = vadd.f32 %v886, %v551
      %v1047 = vadd.f32 %v890, %v536
      %v1048 = vadd.f32 %v890, %v541
      %v1049 = vadd.f32 %v890, %v546
      %v1050 = vadd.f32 %v890, %v551
      %v1051 = vadd.f32 %v894, %v536
      %v1052 = vadd.f32 %v894, %v541
      %v1053 = vadd.f32 %v894, %v546
      %v1054 = vadd.f32 %v894, %v551
      %v1055 = vadd.f32 %v898, %v536
      %v1056 = vadd.f32 %v898, %v541
      %v1057 = vadd.f32 %v898, %v546
      %v1058 = vadd.f32 %v898, %v551
      %v1059 = vadd.f32 %v902, %v536
      %v1060 = vadd.f32 %v902, %v541
      %v1061 = vadd.f32 %v902, %v546
      %v1062 = vadd.f32 %v902, %v551
      %v1063 = vadd.f32 %v906, %v536
      %v1064 = vadd.f32 %v906, %v541
      %v1065 = vadd.f32 %v906, %v546
      %v1066 = vadd.f32 %v906, %v551
      %v1067 = vadd.f32 %v910, %v536
      %v1068 = vadd.f32 %v910, %v541
      %v1069 = vadd.f32 %v910, %v546
      %v1070 = vadd.f32 %v910, %v551
      %v1071 = vadd.f32 %v914, %v536
      %v1072 = vadd.f32 %v914, %v541
      %v1073 = vadd.f32 %v914, %v546
      %v1074 = vadd.f32 %v914, %v551
      %v1075 = vadd.f32 %v918, %v536
      %v1076 = vadd.f32 %v918, %v541
      %v1077 = vadd.f32 %v918, %v546
      %v1078 = vadd.f32 %v918, %v551
      %v1079 = vadd.f32 %v922, %v536
      %v1080 = vadd.f32 %v922, %v541
      %v1081 = vadd.f32 %v922, %v546
      %v1082 = vadd.f32 %v922, %v551
      %v1083 = vadd.f32 %v926, %v536
      %v1084 = vadd.f32 %v926, %v541
      %v1085 = vadd.f32 %v926, %v546
      %v1086 = vadd.f32 %v926, %v551
      %v1087 = vadd.f32 %v930, %v536
      %v1088 = vadd.f32 %v930, %v541
      %v1089 = vadd.f32 %v930, %v546
      %v1090 = vadd.f32 %v930, %v551
      %v1091 = vadd.f32 %v934, %v536
      %v1092 = vadd.f32 %v934, %v541
      %v1093 = vadd.f32 %v934, %v546
      %v1094 = vadd.f32 %v934, %v551
      %v1095 = vadd.f32 %v938, %v536
      %v1096 = vadd.f32 %v938, %v541
      %v1097 = vadd.f32 %v938, %v546
      %v1098 = vadd.f32 %v938, %v551
      %v1099 = vadd.f32 %v942, %v536
      %v1100 = vadd.f32 %v942, %v541
      %v1101 = vadd.f32 %v942, %v546
      %v1102 = vadd.f32 %v942, %v551
      %v1103 = vadd.f32 %v946, %v536
      %v1104 = vadd.f32 %v946, %v541
      %v1105 = vadd.f32 %v946, %v546
      %v1106 = vadd.f32 %v946, %v551
      %v1107 = vadd.f32 %v950, %v536
      %v1108 = vadd.f32 %v950, %v541
      %v1109 = vadd.f32 %v950, %v546
      %v1110 = vadd.f32 %v950, %v551
      %v1111 = vadd.f32 %v954, %v536
      %v1112 = vadd.f32 %v954, %v541
      %v1113 = vadd.f32 %v954, %v546
      %v1114 = vadd.f32 %v954, %v551
      %v1115 = vadd.f32 %v958, %v536
      %v1116 = vadd.f32 %v958, %v541
      %v1117 = vadd.f32 %v958, %v546
      %v1118 = vadd.f32 %v958, %v551
      %v1119 = vadd.f32 %v962, %v536
      %v1120 = vadd.f32 %v962, %v541
      %v1121 = vadd.f32 %v962, %v546
      %v1122 = vadd.f32 %v962, %v551
      %v1123 = vadd.f32 %v966, %v536
      %v1124 = vadd.f32 %v966, %v541
      %v1125 = vadd.f32 %v966, %v546
      %v1126 = vadd.f32 %v966, %v551
      %v1127 = vmax.f32 %v999, 0.0
      %v1128 = vmax.f32 %v1000, 0.0
      %v1129 = vmax.f32 %v1001, 0.0
      %v1130 = vmax.f32 %v1002, 0.0
      %v1131 = vmax.f32 %v1003, 0.0
      %v1132 = vmax.f32 %v1004, 0.0
      %v1133 = vmax.f32 %v1005, 0.0
      %v1134 = vmax.f32 %v1006, 0.0
      %v1135 = vmax.f32 %v1007, 0.0
      %v1136 = vmax.f32 %v1008, 0.0
      %v1137 = vmax.f32 %v1009, 0.0
      %v1138 = vmax.f32 %v1010, 0.0
      %v1139 = vmax.f32 %v1011, 0.0
      %v1140 = vmax.f32 %v1012, 0.0
      %v1141 = vmax.f32 %v1013, 0.0
      %v1142 = vmax.f32 %v1014, 0.0
      %v1143 = vmax.f32 %v1015, 0.0
      %v1144 = vmax.f32 %v1016, 0.0
      %v1145 = vmax.f32 %v1017, 0.0
      %v1146 = vmax.f32 %v1018, 0.0
      %v1147 = vmax.f32 %v1019, 0.0
      %v1148 = vmax.f32 %v1020, 0.0
      %v1149 = vmax.f32 %v1021, 0.0
      %v1150 = vmax.f32 %v1022, 0.0
      %v1151 = vmax.f32 %v1023, 0.0
      %v1152 = vmax.f32 %v1024, 0.0
      %v1153 = vmax.f32 %v1025, 0.0
      %v1154 = vmax.f32 %v1026, 0.0
      %v1155 = vmax.f32 %v1027, 0.0
      %v1156 = vmax.f32 %v1028, 0.0
      %v1157 = vmax.f32 %v1029, 0.0
      %v1158 = vmax.f32 %v1030, 0.0
      %v1159 = vmax.f32 %v1031, 0.0
      %v1160 = vmax.f32 %v1032, 0.0
      %v1161 = vmax.f32 %v1033, 0.0
      %v1162 = vmax.f32 %v1034, 0.0
      %v1163 = vmax.f32 %v1035, 0.0
      %v1164 = vmax.f32 %v1036, 0.0
      %v1165 = vmax.f32 %v1037, 0.0
      %v1166 = vmax.f32 %v1038, 0.0
      %v1167 = vmax.f32 %v1039, 0.0
      %v1168 = vmax.f32 %v1040, 0.0
      %v1169 = vmax.f32 %v1041, 0.0
      %v1170 = vmax.f32 %v1042, 0.0
      %v1171 = vmax.f32 %v1043, 0.0
      %v1172 = vmax.f32 %v1044, 0.0
      %v1173 = vmax.f32 %v1045, 0.0
      %v1174 = vmax.f32 %v1046, 0.0
      %v1175 = vmax.f32 %v1047, 0.0
      %v1176 = vmax.f32 %v1048, 0.0
      %v1177 = vmax.f32 %v1049, 0.0
      %v1178 = vmax.f32 %v1050, 0.0
      %v1179 = vmax.f32 %v1051, 0.0
      %v1180 = vmax.f32 %v1052, 0.0
      %v1181 = vmax.f32 %v1053, 0.0
      %v1182 = vmax.f32 %v1054, 0.0
      %v1183 = vmax.f32 %v1055, 0.0
      %v1184 = vmax.f32 %v1056, 0.0
      %v1185 = vmax.f32 %v1057, 0.0
      %v1186 = vmax.f32 %v1058, 0.0
      %v1187 = vmax.f32 %v1059, 0.0
      %v1188 = vmax.f32 %v1060, 0.0
      %v1189 = vmax.f32 %v1061, 0.0
      %v1190 = vmax.f32 %v1062, 0.0
      %v1191 = vmax.f32 %v1063, 0.0
      %v1192 = vmax.f32 %v1064, 0.0
      %v1193 = vmax.f32 %v1065, 0.0
      %v1194 = vmax.f32 %v1066, 0.0
      %v1195 = vmax.f32 %v1067, 0.0
      %v1196 = vmax.f32 %v1068, 0.0
      %v1197 = vmax.f32 %v1069, 0.0
      %v1198 = vmax.f32 %v1070, 0.0
      %v1199 = vmax.f32 %v1071, 0.0
      %v1200 = vmax.f32 %v1072, 0.0
      %v1201 = vmax.f32 %v1073, 0.0
      %v1202 = vmax.f32 %v1074, 0.0
      %v1203 = vmax.f32 %v1075, 0.0
      %v1204 = vmax.f32 %v1076, 0.0
      %v1205 = vmax.f32 %v1077, 0.0
      %v1206 = vmax.f32 %v1078, 0.0
      %v1207 = vmax.f32 %v1079, 0.0
      %v1208 = vmax.f32 %v1080, 0.0
      %v1209 = vmax.f32 %v1081, 0.0
      %v1210 = vmax.f32 %v1082, 0.0
      %v1211 = vmax.f32 %v1083, 0.0
      %v1212 = vmax.f32 %v1084, 0.0
      %v1213 = vmax.f32 %v1085, 0.0
      %v1214 = vmax.f32 %v1086, 0.0
      %v1215 = vmax.f32 %v1087, 0.0
      %v1216 = vmax.f32 %v1088, 0.0
      %v1217 = vmax.f32 %v1089, 0.0
      %v1218 = vmax.f32 %v1090, 0.0
      %v1219 = vmax.f32 %v1091, 0.0
      %v1220 = vmax.f32 %v1092, 0.0
      %v1221 = vmax.f32 %v1093, 0.0
      %v1222 = vmax.f32 %v1094, 0.0
      %v1223 = vmax.f32 %v1095, 0.0
      %v1224 = vmax.f32 %v1096, 0.0
      %v1225 = vmax.f32 %v1097, 0.0
      %v1226 = vmax.f32 %v1098, 0.0
      %v1227 = vmax.f32 %v1099, 0.0
      %v1228 = vmax.f32 %v1100, 0.0
      %v1229 = vmax.f32 %v1101, 0.0
      %v1230 = vmax.f32 %v1102, 0.0
      %v1231 = vmax.f32 %v1103, 0.0
      %v1232 = vmax.f32 %v1104, 0.0
      %v1233 = vmax.f32 %v1105, 0.0
      %v1234 = vmax.f32 %v1106, 0.0
      %v1235 = vmax.f32 %v1107, 0.0
      %v1236 = vmax.f32 %v1108, 0.0
      %v1237 = vmax.f32 %v1109, 0.0
      %v1238 = vmax.f32 %v1110, 0.0
      %v1239 = vmax.f32 %v1111, 0.0
      %v1240 = vmax.f32 %v1112, 0.0
      %v1241 = vmax.f32 %v1113, 0.0
      %v1242 = vmax.f32 %v1114, 0.0
      %v1243 = vmax.f32 %v1115, 0.0
      %v1244 = vmax.f32 %v1116, 0.0
      %v1245 = vmax.f32 %v1117, 0.0
      %v1246 = vmax.f32 %v1118, 0.0
      %v1247 = vmax.f32 %v1119, 0.0
      %v1248 = vmax.f32 %v1120, 0.0
      %v1249 = vmax.f32 %v1121, 0.0
      %v1250 = vmax.f32 %v1122, 0.0
      %v1251 = vmax.f32 %v1123, 0.0
      %v1252 = vmax.f32 %v1124, 0.0
      %v1253 = vmax.f32 %v1125, 0.0
      %v1254 = vmax.f32 %v1126, 0.0
      %v1255 = vpack.c.bf16 %v1128, %v1127
      %v1256 = vpack.c.bf16 %v1130, %v1129
      %v1257 = vpack.c.bf16 %v1132, %v1131
      %v1258 = vpack.c.bf16 %v1134, %v1133
      %v1259 = vpack.c.bf16 %v1136, %v1135
      %v1260 = vpack.c.bf16 %v1138, %v1137
      %v1261 = vpack.c.bf16 %v1140, %v1139
      %v1262 = vpack.c.bf16 %v1142, %v1141
      %v1263 = vpack.c.bf16 %v1144, %v1143
      %v1264 = vpack.c.bf16 %v1146, %v1145
      %v1265 = vpack.c.bf16 %v1148, %v1147
      %v1266 = vpack.c.bf16 %v1150, %v1149
      %v1267 = vpack.c.bf16 %v1152, %v1151
      %v1268 = vpack.c.bf16 %v1154, %v1153
      %v1269 = vpack.c.bf16 %v1156, %v1155
      %v1270 = vpack.c.bf16 %v1158, %v1157
      %v1271 = vpack.c.bf16 %v1160, %v1159
      %v1272 = vpack.c.bf16 %v1162, %v1161
      %v1273 = vpack.c.bf16 %v1164, %v1163
      %v1274 = vpack.c.bf16 %v1166, %v1165
      %v1275 = vpack.c.bf16 %v1168, %v1167
      %v1276 = vpack.c.bf16 %v1170, %v1169
      %v1277 = vpack.c.bf16 %v1172, %v1171
      %v1278 = vpack.c.bf16 %v1174, %v1173
      %v1279 = vpack.c.bf16 %v1176, %v1175
      %v1280 = vpack.c.bf16 %v1178, %v1177
      %v1281 = vpack.c.bf16 %v1180, %v1179
      %v1282 = vpack.c.bf16 %v1182, %v1181
      %v1283 = vpack.c.bf16 %v1184, %v1183
      %v1284 = vpack.c.bf16 %v1186, %v1185
      %v1285 = vpack.c.bf16 %v1188, %v1187
      %v1286 = vpack.c.bf16 %v1190, %v1189
      %v1287 = vpack.c.bf16 %v1192, %v1191
      %v1288 = vpack.c.bf16 %v1194, %v1193
      %v1289 = vpack.c.bf16 %v1196, %v1195
      %v1290 = vpack.c.bf16 %v1198, %v1197
      %v1291 = vpack.c.bf16 %v1200, %v1199
      %v1292 = vpack.c.bf16 %v1202, %v1201
      %v1293 = vpack.c.bf16 %v1204, %v1203
      %v1294 = vpack.c.bf16 %v1206, %v1205
      %v1295 = vpack.c.bf16 %v1208, %v1207
      %v1296 = vpack.c.bf16 %v1210, %v1209
      %v1297 = vpack.c.bf16 %v1212, %v1211
      %v1298 = vpack.c.bf16 %v1214, %v1213
      %v1299 = vpack.c.bf16 %v1216, %v1215
      %v1300 = vpack.c.bf16 %v1218, %v1217
      %v1301 = vpack.c.bf16 %v1220, %v1219
      %v1302 = vpack.c.bf16 %v1222, %v1221
      %v1303 = vpack.c.bf16 %v1224, %v1223
      %v1304 = vpack.c.bf16 %v1226, %v1225
      %v1305 = vpack.c.bf16 %v1228, %v1227
      %v1306 = vpack.c.bf16 %v1230, %v1229
      %v1307 = vpack.c.bf16 %v1232, %v1231
      %v1308 = vpack.c.bf16 %v1234, %v1233
      %v1309 = vpack.c.bf16 %v1236, %v1235
      %v1310 = vpack.c.bf16 %v1238, %v1237
      %v1311 = vpack.c.bf16 %v1240, %v1239
      %v1312 = vpack.c.bf16 %v1242, %v1241
      %v1313 = vpack.c.bf16 %v1244, %v1243
      %v1314 = vpack.c.bf16 %v1246, %v1245
      %v1315 = vpack.c.bf16 %v1248, %v1247
      %v1316 = vpack.c.bf16 %v1250, %v1249
      %v1317 = vpack.c.bf16 %v1252, %v1251
      %v1318 = vpack.c.bf16 %v1254, %v1253
      %v1319 = vpack.c.bf16 %v443, %v442
      %v1320 = vpack.c.bf16 %v445, %v444
      %v1321 = vlaneseq
      %v1322 = vshrl.u32 %v1321, 7
      %v1323 = vsub.s32 0, %v1322
      %v1324 = vrot.slane %v446, %v1323
      %v1326 = vsel %vm418, %v1255, 0
      %v1329 = vsel %vm418, %v1256, 0
      %v1332 = vsel %vm418, %v1257, 0
      %v1335 = vsel %vm418, %v1258, 0
      %v1338 = vsel %vm418, %v1259, 0
      %v1341 = vsel %vm418, %v1260, 0
      %v1344 = vsel %vm418, %v1261, 0
      %v1347 = vsel %vm418, %v1262, 0
      %v1350 = vsel %vm418, %v1263, 0
      %v1353 = vsel %vm418, %v1264, 0
      %v1356 = vsel %vm418, %v1265, 0
      %v1359 = vsel %vm418, %v1266, 0
      %v1362 = vsel %vm418, %v1267, 0
      %v1365 = vsel %vm418, %v1268, 0
      %v1368 = vsel %vm418, %v1269, 0
      %v1371 = vsel %vm418, %v1270, 0
      %v1374 = vsel %vm418, %v1271, 0
      %v1377 = vsel %vm418, %v1272, 0
      %v1380 = vsel %vm418, %v1273, 0
      %v1383 = vsel %vm418, %v1274, 0
      %v1386 = vsel %vm418, %v1275, 0
      %v1389 = vsel %vm418, %v1276, 0
      %v1392 = vsel %vm418, %v1277, 0
      %v1395 = vsel %vm418, %v1278, 0
      %v1398 = vsel %vm418, %v1279, 0
      %v1401 = vsel %vm418, %v1280, 0
      %v1404 = vsel %vm418, %v1281, 0
      %v1407 = vsel %vm418, %v1282, 0
      %v1410 = vsel %vm418, %v1283, 0
      %v1413 = vsel %vm418, %v1284, 0
      %v1416 = vsel %vm418, %v1285, 0
      %v1419 = vsel %vm418, %v1286, 0
      %v1422 = vsel %vm418, %v1287, 0
      %v1425 = vsel %vm418, %v1288, 0
      %v1428 = vsel %vm418, %v1289, 0
      %v1431 = vsel %vm418, %v1290, 0
      %v1434 = vsel %vm418, %v1291, 0
      %v1437 = vsel %vm418, %v1292, 0
      %v1440 = vsel %vm418, %v1293, 0
      %v1443 = vsel %vm418, %v1294, 0
      %v1446 = vsel %vm418, %v1295, 0
      %v1449 = vsel %vm418, %v1296, 0
      %v1452 = vsel %vm418, %v1297, 0
      %v1455 = vsel %vm418, %v1298, 0
      %v1458 = vsel %vm418, %v1299, 0
      %v1461 = vsel %vm418, %v1300, 0
      %v1464 = vsel %vm418, %v1301, 0
      %v1467 = vsel %vm418, %v1302, 0
      %v1470 = vsel %vm418, %v1303, 0
      %v1473 = vsel %vm418, %v1304, 0
      %v1476 = vsel %vm418, %v1305, 0
      %v1479 = vsel %vm418, %v1306, 0
      %v1482 = vsel %vm418, %v1307, 0
      %v1485 = vsel %vm418, %v1308, 0
      %v1488 = vsel %vm418, %v1309, 0
      %v1491 = vsel %vm418, %v1310, 0
      %v1494 = vsel %vm418, %v1311, 0
      %v1497 = vsel %vm418, %v1312, 0
      %v1500 = vsel %vm418, %v1313, 0
      %v1503 = vsel %vm418, %v1314, 0
      %v1506 = vsel %vm418, %v1315, 0
      %v1509 = vsel %vm418, %v1316, 0
      %v1512 = vsel %vm418, %v1317, 0
      %v1515 = vsel %vm418, %v1318, 0
      %1517 = vmatprep.subr.bf16.mxu0 0
      %1518 = vmatpush1.bf16.msra.mxu0 0
      %1519 = vmatprep.subr.bf16.mxu0 0
      %1520 = vmatpush1.bf16.msra.mxu0 0
      %1521 = vmatprep.subr.bf16.mxu0 0
      %1522 = vmatpush1.bf16.msra.mxu0 0
      %1523 = vmatprep.subr.bf16.mxu0 0
      %1524 = vmatpush1.bf16.msra.mxu0 0
      %1525 = vmatprep.subr.bf16.mxu0 0
      %1526 = vmatpush1.bf16.msra.mxu0 0
      %1527 = vmatprep.subr.bf16.mxu0 0
      %1528 = vmatpush1.bf16.msra.mxu0 0
      %1529 = vmatprep.subr.bf16.mxu0 0
      %1530 = vmatpush1.bf16.msra.mxu0 %v1320
      %1531 = vmatprep.subr.bf16.mxu0 0
      %1532 = vmatpush1.bf16.msra.mxu0 %v1319
      %1533 = vmatprep.subr.bf16.mxu0 0
      %1534 = vmatpush2.bf16.msra.mxu0 0
      %1535 = vmatprep.subr.bf16.mxu0 0
      %1536 = vmatpush2.bf16.msra.mxu0 0
      %1537 = vmatprep.subr.bf16.mxu0 0
      %1538 = vmatpush2.bf16.msra.mxu0 0
      %1539 = vmatprep.subr.bf16.mxu0 0
      %1540 = vmatpush2.bf16.msra.mxu0 0
      %1541 = vmatprep.subr.bf16.mxu0 0
      %1542 = vmatpush2.bf16.msra.mxu0 0
      %1543 = vmatprep.subr.bf16.mxu0 0
      %1544 = vmatpush2.bf16.msra.mxu0 0
      %1545 = vmatprep.subr.bf16.mxu0 0
      %1546 = vmatpush2.bf16.msra.mxu0 0
      %1547 = vmatprep.subr.bf16.mxu0 0
      %1548 = vmatpush2.bf16.msra.mxu0 0
      %1549 = vmatprep.mubr.bf16.mxu0 0
      %1550 = vmatmul.mubr.bf16.gmra.mxu0 %v1326
      %v1551 = vpop.f32.mrf.mxu0
      %v1552 = vadd.f32 %v1324, %v1551
      %v1553 = vpop.f32.mrf.mxu0
      %v1554 = vpop.f32.mrf.mxu0
      %v1555 = vadd.f32 %v1324, %v1554
      %v1556 = vpop.f32.mrf.mxu0
      %1557 = vmatprep.mubr.bf16.mxu0 0
      %1558 = vmatmul.mubr.bf16.gmra.mxu0 %v1329
      %v1559 = vpop.f32.mrf.mxu0
      %v1560 = vadd.f32 %v1324, %v1559
      %v1561 = vpop.f32.mrf.mxu0
      %v1562 = vpop.f32.mrf.mxu0
      %v1563 = vadd.f32 %v1324, %v1562
      %v1564 = vpop.f32.mrf.mxu0
      %1565 = vmatprep.mubr.bf16.mxu0 0
      %1566 = vmatmul.mubr.bf16.gmra.mxu0 %v1332
      %v1567 = vpop.f32.mrf.mxu0
      %v1568 = vadd.f32 %v1324, %v1567
      %v1569 = vpop.f32.mrf.mxu0
      %v1570 = vpop.f32.mrf.mxu0
      %v1571 = vadd.f32 %v1324, %v1570
      %v1572 = vpop.f32.mrf.mxu0
      %1573 = vmatprep.mubr.bf16.mxu0 0
      %1574 = vmatmul.mubr.bf16.gmra.mxu0 %v1335
      %v1575 = vpop.f32.mrf.mxu0
      %v1576 = vadd.f32 %v1324, %v1575
      %v1577 = vpop.f32.mrf.mxu0
      %v1578 = vpop.f32.mrf.mxu0
      %v1579 = vadd.f32 %v1324, %v1578
      %v1580 = vpop.f32.mrf.mxu0
      %1581 = vmatprep.mubr.bf16.mxu0 0
      %1582 = vmatmul.mubr.bf16.gmra.mxu0 %v1338
      %v1583 = vpop.f32.mrf.mxu0
      %v1584 = vadd.f32 %v1324, %v1583
      %v1585 = vpop.f32.mrf.mxu0
      %v1586 = vpop.f32.mrf.mxu0
      %v1587 = vadd.f32 %v1324, %v1586
      %v1588 = vpop.f32.mrf.mxu0
      %1589 = vmatprep.mubr.bf16.mxu0 0
      %1590 = vmatmul.mubr.bf16.gmra.mxu0 %v1341
      %v1591 = vpop.f32.mrf.mxu0
      %v1592 = vadd.f32 %v1324, %v1591
      %v1593 = vpop.f32.mrf.mxu0
      %v1594 = vpop.f32.mrf.mxu0
      %v1595 = vadd.f32 %v1324, %v1594
      %v1596 = vpop.f32.mrf.mxu0
      %1597 = vmatprep.mubr.bf16.mxu0 0
      %1598 = vmatmul.mubr.bf16.gmra.mxu0 %v1344
      %v1599 = vpop.f32.mrf.mxu0
      %v1600 = vadd.f32 %v1324, %v1599
      %v1601 = vpop.f32.mrf.mxu0
      %v1602 = vpop.f32.mrf.mxu0
      %v1603 = vadd.f32 %v1324, %v1602
      %v1604 = vpop.f32.mrf.mxu0
      %1605 = vmatprep.mubr.bf16.mxu0 0
      %1606 = vmatmul.mubr.bf16.gmra.mxu0 %v1347
      %v1607 = vpop.f32.mrf.mxu0
      %v1608 = vadd.f32 %v1324, %v1607
      %v1609 = vpop.f32.mrf.mxu0
      %v1610 = vpop.f32.mrf.mxu0
      %v1611 = vadd.f32 %v1324, %v1610
      %v1612 = vpop.f32.mrf.mxu0
      %1613 = vmatprep.mubr.bf16.mxu0 0
      %1614 = vmatmul.mubr.bf16.gmra.mxu0 %v1350
      %v1615 = vpop.f32.mrf.mxu0
      %v1616 = vadd.f32 %v1324, %v1615
      %v1617 = vpop.f32.mrf.mxu0
      %v1618 = vpop.f32.mrf.mxu0
      %v1619 = vadd.f32 %v1324, %v1618
      %v1620 = vpop.f32.mrf.mxu0
      %1621 = vmatprep.mubr.bf16.mxu0 0
      %1622 = vmatmul.mubr.bf16.gmra.mxu0 %v1353
      %v1623 = vpop.f32.mrf.mxu0
      %v1624 = vadd.f32 %v1324, %v1623
      %v1625 = vpop.f32.mrf.mxu0
      %v1626 = vpop.f32.mrf.mxu0
      %v1627 = vadd.f32 %v1324, %v1626
      %v1628 = vpop.f32.mrf.mxu0
      %1629 = vmatprep.mubr.bf16.mxu0 0
      %1630 = vmatmul.mubr.bf16.gmra.mxu0 %v1356
      %v1631 = vpop.f32.mrf.mxu0
      %v1632 = vadd.f32 %v1324, %v1631
      %v1633 = vpop.f32.mrf.mxu0
      %v1634 = vpop.f32.mrf.mxu0
      %v1635 = vadd.f32 %v1324, %v1634
      %v1636 = vpop.f32.mrf.mxu0
      %1637 = vmatprep.mubr.bf16.mxu0 0
      %1638 = vmatmul.mubr.bf16.gmra.mxu0 %v1359
      %v1639 = vpop.f32.mrf.mxu0
      %v1640 = vadd.f32 %v1324, %v1639
      %v1641 = vpop.f32.mrf.mxu0
      %v1642 = vpop.f32.mrf.mxu0
      %v1643 = vadd.f32 %v1324, %v1642
      %v1644 = vpop.f32.mrf.mxu0
      %1645 = vmatprep.mubr.bf16.mxu0 0
      %1646 = vmatmul.mubr.bf16.gmra.mxu0 %v1362
      %v1647 = vpop.f32.mrf.mxu0
      %v1648 = vadd.f32 %v1324, %v1647
      %v1649 = vpop.f32.mrf.mxu0
      %v1650 = vpop.f32.mrf.mxu0
      %v1651 = vadd.f32 %v1324, %v1650
      %v1652 = vpop.f32.mrf.mxu0
      %1653 = vmatprep.mubr.bf16.mxu0 0
      %1654 = vmatmul.mubr.bf16.gmra.mxu0 %v1365
      %v1655 = vpop.f32.mrf.mxu0
      %v1656 = vadd.f32 %v1324, %v1655
      %v1657 = vpop.f32.mrf.mxu0
      %v1658 = vpop.f32.mrf.mxu0
      %v1659 = vadd.f32 %v1324, %v1658
      %v1660 = vpop.f32.mrf.mxu0
      %1661 = vmatprep.mubr.bf16.mxu0 0
      %1662 = vmatmul.mubr.bf16.gmra.mxu0 %v1368
      %v1663 = vpop.f32.mrf.mxu0
      %v1664 = vadd.f32 %v1324, %v1663
      %v1665 = vpop.f32.mrf.mxu0
      %v1666 = vpop.f32.mrf.mxu0
      %v1667 = vadd.f32 %v1324, %v1666
      %v1668 = vpop.f32.mrf.mxu0
      %1669 = vmatprep.mubr.bf16.mxu0 0
      %1670 = vmatmul.mubr.bf16.gmra.mxu0 %v1371
      %v1671 = vpop.f32.mrf.mxu0
      %v1672 = vadd.f32 %v1324, %v1671
      %v1673 = vpop.f32.mrf.mxu0
      %v1674 = vpop.f32.mrf.mxu0
      %v1675 = vadd.f32 %v1324, %v1674
      %v1676 = vpop.f32.mrf.mxu0
      %1677 = vmatprep.mubr.bf16.mxu0 0
      %1678 = vmatmul.mubr.bf16.gmra.mxu0 %v1374
      %v1679 = vpop.f32.mrf.mxu0
      %v1680 = vadd.f32 %v1324, %v1679
      %v1681 = vpop.f32.mrf.mxu0
      %v1682 = vpop.f32.mrf.mxu0
      %v1683 = vadd.f32 %v1324, %v1682
      %v1684 = vpop.f32.mrf.mxu0
      %1685 = vmatprep.mubr.bf16.mxu0 0
      %1686 = vmatmul.mubr.bf16.gmra.mxu0 %v1377
      %v1687 = vpop.f32.mrf.mxu0
      %v1688 = vadd.f32 %v1324, %v1687
      %v1689 = vpop.f32.mrf.mxu0
      %v1690 = vpop.f32.mrf.mxu0
      %v1691 = vadd.f32 %v1324, %v1690
      %v1692 = vpop.f32.mrf.mxu0
      %1693 = vmatprep.mubr.bf16.mxu0 0
      %1694 = vmatmul.mubr.bf16.gmra.mxu0 %v1380
      %v1695 = vpop.f32.mrf.mxu0
      %v1696 = vadd.f32 %v1324, %v1695
      %v1697 = vpop.f32.mrf.mxu0
      %v1698 = vpop.f32.mrf.mxu0
      %v1699 = vadd.f32 %v1324, %v1698
      %v1700 = vpop.f32.mrf.mxu0
      %1701 = vmatprep.mubr.bf16.mxu0 0
      %1702 = vmatmul.mubr.bf16.gmra.mxu0 %v1383
      %v1703 = vpop.f32.mrf.mxu0
      %v1704 = vadd.f32 %v1324, %v1703
      %v1705 = vpop.f32.mrf.mxu0
      %v1706 = vpop.f32.mrf.mxu0
      %v1707 = vadd.f32 %v1324, %v1706
      %v1708 = vpop.f32.mrf.mxu0
      %1709 = vmatprep.mubr.bf16.mxu0 0
      %1710 = vmatmul.mubr.bf16.gmra.mxu0 %v1386
      %v1711 = vpop.f32.mrf.mxu0
      %v1712 = vadd.f32 %v1324, %v1711
      %v1713 = vpop.f32.mrf.mxu0
      %v1714 = vpop.f32.mrf.mxu0
      %v1715 = vadd.f32 %v1324, %v1714
      %v1716 = vpop.f32.mrf.mxu0
      %1717 = vmatprep.mubr.bf16.mxu0 0
      %1718 = vmatmul.mubr.bf16.gmra.mxu0 %v1389
      %v1719 = vpop.f32.mrf.mxu0
      %v1720 = vadd.f32 %v1324, %v1719
      %v1721 = vpop.f32.mrf.mxu0
      %v1722 = vpop.f32.mrf.mxu0
      %v1723 = vadd.f32 %v1324, %v1722
      %v1724 = vpop.f32.mrf.mxu0
      %1725 = vmatprep.mubr.bf16.mxu0 0
      %1726 = vmatmul.mubr.bf16.gmra.mxu0 %v1392
      %v1727 = vpop.f32.mrf.mxu0
      %v1728 = vadd.f32 %v1324, %v1727
      %v1729 = vpop.f32.mrf.mxu0
      %v1730 = vpop.f32.mrf.mxu0
      %v1731 = vadd.f32 %v1324, %v1730
      %v1732 = vpop.f32.mrf.mxu0
      %1733 = vmatprep.mubr.bf16.mxu0 0
      %1734 = vmatmul.mubr.bf16.gmra.mxu0 %v1395
      %v1735 = vpop.f32.mrf.mxu0
      %v1736 = vadd.f32 %v1324, %v1735
      %v1737 = vpop.f32.mrf.mxu0
      %v1738 = vpop.f32.mrf.mxu0
      %v1739 = vadd.f32 %v1324, %v1738
      %v1740 = vpop.f32.mrf.mxu0
      %1741 = vmatprep.mubr.bf16.mxu0 0
      %1742 = vmatmul.mubr.bf16.gmra.mxu0 %v1398
      %v1743 = vpop.f32.mrf.mxu0
      %v1744 = vadd.f32 %v1324, %v1743
      %v1745 = vpop.f32.mrf.mxu0
      %v1746 = vpop.f32.mrf.mxu0
      %v1747 = vadd.f32 %v1324, %v1746
      %v1748 = vpop.f32.mrf.mxu0
      %1749 = vmatprep.mubr.bf16.mxu0 0
      %1750 = vmatmul.mubr.bf16.gmra.mxu0 %v1401
      %v1751 = vpop.f32.mrf.mxu0
      %v1752 = vadd.f32 %v1324, %v1751
      %v1753 = vpop.f32.mrf.mxu0
      %v1754 = vpop.f32.mrf.mxu0
      %v1755 = vadd.f32 %v1324, %v1754
      %v1756 = vpop.f32.mrf.mxu0
      %1757 = vmatprep.mubr.bf16.mxu0 0
      %1758 = vmatmul.mubr.bf16.gmra.mxu0 %v1404
      %v1759 = vpop.f32.mrf.mxu0
      %v1760 = vadd.f32 %v1324, %v1759
      %v1761 = vpop.f32.mrf.mxu0
      %v1762 = vpop.f32.mrf.mxu0
      %v1763 = vadd.f32 %v1324, %v1762
      %v1764 = vpop.f32.mrf.mxu0
      %1765 = vmatprep.mubr.bf16.mxu0 0
      %1766 = vmatmul.mubr.bf16.gmra.mxu0 %v1407
      %v1767 = vpop.f32.mrf.mxu0
      %v1768 = vadd.f32 %v1324, %v1767
      %v1769 = vpop.f32.mrf.mxu0
      %v1770 = vpop.f32.mrf.mxu0
      %v1771 = vadd.f32 %v1324, %v1770
      %v1772 = vpop.f32.mrf.mxu0
      %1773 = vmatprep.mubr.bf16.mxu0 0
      %1774 = vmatmul.mubr.bf16.gmra.mxu0 %v1410
      %v1775 = vpop.f32.mrf.mxu0
      %v1776 = vadd.f32 %v1324, %v1775
      %v1777 = vpop.f32.mrf.mxu0
      %v1778 = vpop.f32.mrf.mxu0
      %v1779 = vadd.f32 %v1324, %v1778
      %v1780 = vpop.f32.mrf.mxu0
      %1781 = vmatprep.mubr.bf16.mxu0 0
      %1782 = vmatmul.mubr.bf16.gmra.mxu0 %v1413
      %v1783 = vpop.f32.mrf.mxu0
      %v1784 = vadd.f32 %v1324, %v1783
      %v1785 = vpop.f32.mrf.mxu0
      %v1786 = vpop.f32.mrf.mxu0
      %v1787 = vadd.f32 %v1324, %v1786
      %v1788 = vpop.f32.mrf.mxu0
      %1789 = vmatprep.mubr.bf16.mxu0 0
      %1790 = vmatmul.mubr.bf16.gmra.mxu0 %v1416
      %v1791 = vpop.f32.mrf.mxu0
      %v1792 = vadd.f32 %v1324, %v1791
      %v1793 = vpop.f32.mrf.mxu0
      %v1794 = vpop.f32.mrf.mxu0
      %v1795 = vadd.f32 %v1324, %v1794
      %v1796 = vpop.f32.mrf.mxu0
      %1797 = vmatprep.mubr.bf16.mxu0 0
      %1798 = vmatmul.mubr.bf16.gmra.mxu0 %v1419
      %v1799 = vpop.f32.mrf.mxu0
      %v1800 = vadd.f32 %v1324, %v1799
      %v1801 = vpop.f32.mrf.mxu0
      %v1802 = vpop.f32.mrf.mxu0
      %v1803 = vadd.f32 %v1324, %v1802
      %v1804 = vpop.f32.mrf.mxu0
      %1805 = vmatprep.mubr.bf16.mxu0 0
      %1806 = vmatmul.mubr.bf16.gmra.mxu0 %v1422
      %v1807 = vpop.f32.mrf.mxu0
      %v1808 = vadd.f32 %v1324, %v1807
      %v1809 = vpop.f32.mrf.mxu0
      %v1810 = vpop.f32.mrf.mxu0
      %v1811 = vadd.f32 %v1324, %v1810
      %v1812 = vpop.f32.mrf.mxu0
      %1813 = vmatprep.mubr.bf16.mxu0 0
      %1814 = vmatmul.mubr.bf16.gmra.mxu0 %v1425
      %v1815 = vpop.f32.mrf.mxu0
      %v1816 = vadd.f32 %v1324, %v1815
      %v1817 = vpop.f32.mrf.mxu0
      %v1818 = vpop.f32.mrf.mxu0
      %v1819 = vadd.f32 %v1324, %v1818
      %v1820 = vpop.f32.mrf.mxu0
      %1821 = vmatprep.mubr.bf16.mxu0 0
      %1822 = vmatmul.mubr.bf16.gmra.mxu0 %v1428
      %v1823 = vpop.f32.mrf.mxu0
      %v1824 = vadd.f32 %v1324, %v1823
      %v1825 = vpop.f32.mrf.mxu0
      %v1826 = vpop.f32.mrf.mxu0
      %v1827 = vadd.f32 %v1324, %v1826
      %v1828 = vpop.f32.mrf.mxu0
      %1829 = vmatprep.mubr.bf16.mxu0 0
      %1830 = vmatmul.mubr.bf16.gmra.mxu0 %v1431
      %v1831 = vpop.f32.mrf.mxu0
      %v1832 = vadd.f32 %v1324, %v1831
      %v1833 = vpop.f32.mrf.mxu0
      %v1834 = vpop.f32.mrf.mxu0
      %v1835 = vadd.f32 %v1324, %v1834
      %v1836 = vpop.f32.mrf.mxu0
      %1837 = vmatprep.mubr.bf16.mxu0 0
      %1838 = vmatmul.mubr.bf16.gmra.mxu0 %v1434
      %v1839 = vpop.f32.mrf.mxu0
      %v1840 = vadd.f32 %v1324, %v1839
      %v1841 = vpop.f32.mrf.mxu0
      %v1842 = vpop.f32.mrf.mxu0
      %v1843 = vadd.f32 %v1324, %v1842
      %v1844 = vpop.f32.mrf.mxu0
      %1845 = vmatprep.mubr.bf16.mxu0 0
      %1846 = vmatmul.mubr.bf16.gmra.mxu0 %v1437
      %v1847 = vpop.f32.mrf.mxu0
      %v1848 = vadd.f32 %v1324, %v1847
      %v1849 = vpop.f32.mrf.mxu0
      %v1850 = vpop.f32.mrf.mxu0
      %v1851 = vadd.f32 %v1324, %v1850
      %v1852 = vpop.f32.mrf.mxu0
      %1853 = vmatprep.mubr.bf16.mxu0 0
      %1854 = vmatmul.mubr.bf16.gmra.mxu0 %v1440
      %v1855 = vpop.f32.mrf.mxu0
      %v1856 = vadd.f32 %v1324, %v1855
      %v1857 = vpop.f32.mrf.mxu0
      %v1858 = vpop.f32.mrf.mxu0
      %v1859 = vadd.f32 %v1324, %v1858
      %v1860 = vpop.f32.mrf.mxu0
      %1861 = vmatprep.mubr.bf16.mxu0 0
      %1862 = vmatmul.mubr.bf16.gmra.mxu0 %v1443
      %v1863 = vpop.f32.mrf.mxu0
      %v1864 = vadd.f32 %v1324, %v1863
      %v1865 = vpop.f32.mrf.mxu0
      %v1866 = vpop.f32.mrf.mxu0
      %v1867 = vadd.f32 %v1324, %v1866
      %v1868 = vpop.f32.mrf.mxu0
      %1869 = vmatprep.mubr.bf16.mxu0 0
      %1870 = vmatmul.mubr.bf16.gmra.mxu0 %v1446
      %v1871 = vpop.f32.mrf.mxu0
      %v1872 = vadd.f32 %v1324, %v1871
      %v1873 = vpop.f32.mrf.mxu0
      %v1874 = vpop.f32.mrf.mxu0
      %v1875 = vadd.f32 %v1324, %v1874
      %v1876 = vpop.f32.mrf.mxu0
      %1877 = vmatprep.mubr.bf16.mxu0 0
      %1878 = vmatmul.mubr.bf16.gmra.mxu0 %v1449
      %v1879 = vpop.f32.mrf.mxu0
      %v1880 = vadd.f32 %v1324, %v1879
      %v1881 = vpop.f32.mrf.mxu0
      %v1882 = vpop.f32.mrf.mxu0
      %v1883 = vadd.f32 %v1324, %v1882
      %v1884 = vpop.f32.mrf.mxu0
      %1885 = vmatprep.mubr.bf16.mxu0 0
      %1886 = vmatmul.mubr.bf16.gmra.mxu0 %v1452
      %v1887 = vpop.f32.mrf.mxu0
      %v1888 = vadd.f32 %v1324, %v1887
      %v1889 = vpop.f32.mrf.mxu0
      %v1890 = vpop.f32.mrf.mxu0
      %v1891 = vadd.f32 %v1324, %v1890
      %v1892 = vpop.f32.mrf.mxu0
      %1893 = vmatprep.mubr.bf16.mxu0 0
      %1894 = vmatmul.mubr.bf16.gmra.mxu0 %v1455
      %v1895 = vpop.f32.mrf.mxu0
      %v1896 = vadd.f32 %v1324, %v1895
      %v1897 = vpop.f32.mrf.mxu0
      %v1898 = vpop.f32.mrf.mxu0
      %v1899 = vadd.f32 %v1324, %v1898
      %v1900 = vpop.f32.mrf.mxu0
      %1901 = vmatprep.mubr.bf16.mxu0 0
      %1902 = vmatmul.mubr.bf16.gmra.mxu0 %v1458
      %v1903 = vpop.f32.mrf.mxu0
      %v1904 = vadd.f32 %v1324, %v1903
      %v1905 = vpop.f32.mrf.mxu0
      %v1906 = vpop.f32.mrf.mxu0
      %v1907 = vadd.f32 %v1324, %v1906
      %v1908 = vpop.f32.mrf.mxu0
      %1909 = vmatprep.mubr.bf16.mxu0 0
      %1910 = vmatmul.mubr.bf16.gmra.mxu0 %v1461
      %v1911 = vpop.f32.mrf.mxu0
      %v1912 = vadd.f32 %v1324, %v1911
      %v1913 = vpop.f32.mrf.mxu0
      %v1914 = vpop.f32.mrf.mxu0
      %v1915 = vadd.f32 %v1324, %v1914
      %v1916 = vpop.f32.mrf.mxu0
      %1917 = vmatprep.mubr.bf16.mxu0 0
      %1918 = vmatmul.mubr.bf16.gmra.mxu0 %v1464
      %v1919 = vpop.f32.mrf.mxu0
      %v1920 = vadd.f32 %v1324, %v1919
      %v1921 = vpop.f32.mrf.mxu0
      %v1922 = vpop.f32.mrf.mxu0
      %v1923 = vadd.f32 %v1324, %v1922
      %v1924 = vpop.f32.mrf.mxu0
      %1925 = vmatprep.mubr.bf16.mxu0 0
      %1926 = vmatmul.mubr.bf16.gmra.mxu0 %v1467
      %v1927 = vpop.f32.mrf.mxu0
      %v1928 = vadd.f32 %v1324, %v1927
      %v1929 = vpop.f32.mrf.mxu0
      %v1930 = vpop.f32.mrf.mxu0
      %v1931 = vadd.f32 %v1324, %v1930
      %v1932 = vpop.f32.mrf.mxu0
      %1933 = vmatprep.mubr.bf16.mxu0 0
      %1934 = vmatmul.mubr.bf16.gmra.mxu0 %v1470
      %v1935 = vpop.f32.mrf.mxu0
      %v1936 = vadd.f32 %v1324, %v1935
      %v1937 = vpop.f32.mrf.mxu0
      %v1938 = vpop.f32.mrf.mxu0
      %v1939 = vadd.f32 %v1324, %v1938
      %v1940 = vpop.f32.mrf.mxu0
      %1941 = vmatprep.mubr.bf16.mxu0 0
      %1942 = vmatmul.mubr.bf16.gmra.mxu0 %v1473
      %v1943 = vpop.f32.mrf.mxu0
      %v1944 = vadd.f32 %v1324, %v1943
      %v1945 = vpop.f32.mrf.mxu0
      %v1946 = vpop.f32.mrf.mxu0
      %v1947 = vadd.f32 %v1324, %v1946
      %v1948 = vpop.f32.mrf.mxu0
      %1949 = vmatprep.mubr.bf16.mxu0 0
      %1950 = vmatmul.mubr.bf16.gmra.mxu0 %v1476
      %v1951 = vpop.f32.mrf.mxu0
      %v1952 = vadd.f32 %v1324, %v1951
      %v1953 = vpop.f32.mrf.mxu0
      %v1954 = vpop.f32.mrf.mxu0
      %v1955 = vadd.f32 %v1324, %v1954
      %v1956 = vpop.f32.mrf.mxu0
      %1957 = vmatprep.mubr.bf16.mxu0 0
      %1958 = vmatmul.mubr.bf16.gmra.mxu0 %v1479
      %v1959 = vpop.f32.mrf.mxu0
      %v1960 = vadd.f32 %v1324, %v1959
      %v1961 = vpop.f32.mrf.mxu0
      %v1962 = vpop.f32.mrf.mxu0
      %v1963 = vadd.f32 %v1324, %v1962
      %v1964 = vpop.f32.mrf.mxu0
      %1965 = vmatprep.mubr.bf16.mxu0 0
      %1966 = vmatmul.mubr.bf16.gmra.mxu0 %v1482
      %v1967 = vpop.f32.mrf.mxu0
      %v1968 = vadd.f32 %v1324, %v1967
      %v1969 = vpop.f32.mrf.mxu0
      %v1970 = vpop.f32.mrf.mxu0
      %v1971 = vadd.f32 %v1324, %v1970
      %v1972 = vpop.f32.mrf.mxu0
      %1973 = vmatprep.mubr.bf16.mxu0 0
      %1974 = vmatmul.mubr.bf16.gmra.mxu0 %v1485
      %v1975 = vpop.f32.mrf.mxu0
      %v1976 = vadd.f32 %v1324, %v1975
      %v1977 = vpop.f32.mrf.mxu0
      %v1978 = vpop.f32.mrf.mxu0
      %v1979 = vadd.f32 %v1324, %v1978
      %v1980 = vpop.f32.mrf.mxu0
      %1981 = vmatprep.mubr.bf16.mxu0 0
      %1982 = vmatmul.mubr.bf16.gmra.mxu0 %v1488
      %v1983 = vpop.f32.mrf.mxu0
      %v1984 = vadd.f32 %v1324, %v1983
      %v1985 = vpop.f32.mrf.mxu0
      %v1986 = vpop.f32.mrf.mxu0
      %v1987 = vadd.f32 %v1324, %v1986
      %v1988 = vpop.f32.mrf.mxu0
      %1989 = vmatprep.mubr.bf16.mxu0 0
      %1990 = vmatmul.mubr.bf16.gmra.mxu0 %v1491
      %v1991 = vpop.f32.mrf.mxu0
      %v1992 = vadd.f32 %v1324, %v1991
      %v1993 = vpop.f32.mrf.mxu0
      %v1994 = vpop.f32.mrf.mxu0
      %v1995 = vadd.f32 %v1324, %v1994
      %v1996 = vpop.f32.mrf.mxu0
      %1997 = vmatprep.mubr.bf16.mxu0 0
      %1998 = vmatmul.mubr.bf16.gmra.mxu0 %v1494
      %v1999 = vpop.f32.mrf.mxu0
      %v2000 = vadd.f32 %v1324, %v1999
      %v2001 = vpop.f32.mrf.mxu0
      %v2002 = vpop.f32.mrf.mxu0
      %v2003 = vadd.f32 %v1324, %v2002
      %v2004 = vpop.f32.mrf.mxu0
      %2005 = vmatprep.mubr.bf16.mxu0 0
      %2006 = vmatmul.mubr.bf16.gmra.mxu0 %v1497
      %v2007 = vpop.f32.mrf.mxu0
      %v2008 = vadd.f32 %v1324, %v2007
      %v2009 = vpop.f32.mrf.mxu0
      %v2010 = vpop.f32.mrf.mxu0
      %v2011 = vadd.f32 %v1324, %v2010
      %v2012 = vpop.f32.mrf.mxu0
      %2013 = vmatprep.mubr.bf16.mxu0 0
      %2014 = vmatmul.mubr.bf16.gmra.mxu0 %v1500
      %v2015 = vpop.f32.mrf.mxu0
      %v2016 = vadd.f32 %v1324, %v2015
      %v2017 = vpop.f32.mrf.mxu0
      %v2018 = vpop.f32.mrf.mxu0
      %v2019 = vadd.f32 %v1324, %v2018
      %v2020 = vpop.f32.mrf.mxu0
      %2021 = vmatprep.mubr.bf16.mxu0 0
      %2022 = vmatmul.mubr.bf16.gmra.mxu0 %v1503
      %v2023 = vpop.f32.mrf.mxu0
      %v2024 = vadd.f32 %v1324, %v2023
      %v2025 = vpop.f32.mrf.mxu0
      %v2026 = vpop.f32.mrf.mxu0
      %v2027 = vadd.f32 %v1324, %v2026
      %v2028 = vpop.f32.mrf.mxu0
      %2029 = vmatprep.mubr.bf16.mxu0 0
      %2030 = vmatmul.mubr.bf16.gmra.mxu0 %v1506
      %v2031 = vpop.f32.mrf.mxu0
      %v2032 = vadd.f32 %v1324, %v2031
      %v2033 = vpop.f32.mrf.mxu0
      %v2034 = vpop.f32.mrf.mxu0
      %v2035 = vadd.f32 %v1324, %v2034
      %v2036 = vpop.f32.mrf.mxu0
      %2037 = vmatprep.mubr.bf16.mxu0 0
      %2038 = vmatmul.mubr.bf16.gmra.mxu0 %v1509
      %v2039 = vpop.f32.mrf.mxu0
      %v2040 = vadd.f32 %v1324, %v2039
      %v2041 = vpop.f32.mrf.mxu0
      %v2042 = vpop.f32.mrf.mxu0
      %v2043 = vadd.f32 %v1324, %v2042
      %v2044 = vpop.f32.mrf.mxu0
      %2045 = vmatprep.mubr.bf16.mxu0 0
      %2046 = vmatmul.mubr.bf16.gmra.mxu0 %v1512
      %v2047 = vpop.f32.mrf.mxu0
      %v2048 = vadd.f32 %v1324, %v2047
      %v2049 = vpop.f32.mrf.mxu0
      %v2050 = vpop.f32.mrf.mxu0
      %v2051 = vadd.f32 %v1324, %v2050
      %v2052 = vpop.f32.mrf.mxu0
      %2053 = vmatprep.mubr.bf16.mxu0 0
      %2054 = vmatmul.mubr.bf16.gmra.mxu0 %v1515
      %v2055 = vpop.f32.mrf.mxu0
      %v2056 = vadd.f32 %v1324, %v2055
      %v2057 = vpop.f32.mrf.mxu0
      %v2058 = vpop.f32.mrf.mxu0
      %v2059 = vadd.f32 %v1324, %v2058
      %v2060 = vpop.f32.mrf.mxu0
      %2061 = vdwg.mxu0
      %v2062 = vmax.f32 %v1552, 0.0
      %v2063 = vmax.f32 %v1555, 0.0
      %v2064 = vmax.f32 %v1560, 0.0
      %v2065 = vmax.f32 %v1563, 0.0
      %v2066 = vmax.f32 %v1568, 0.0
      %v2067 = vmax.f32 %v1571, 0.0
      %v2068 = vmax.f32 %v1576, 0.0
      %v2069 = vmax.f32 %v1579, 0.0
      %v2070 = vmax.f32 %v1584, 0.0
      %v2071 = vmax.f32 %v1587, 0.0
      %v2072 = vmax.f32 %v1592, 0.0
      %v2073 = vmax.f32 %v1595, 0.0
      %v2074 = vmax.f32 %v1600, 0.0
      %v2075 = vmax.f32 %v1603, 0.0
      %v2076 = vmax.f32 %v1608, 0.0
      %v2077 = vmax.f32 %v1611, 0.0
      %v2078 = vmax.f32 %v1616, 0.0
      %v2079 = vmax.f32 %v1619, 0.0
      %v2080 = vmax.f32 %v1624, 0.0
      %v2081 = vmax.f32 %v1627, 0.0
      %v2082 = vmax.f32 %v1632, 0.0
      %v2083 = vmax.f32 %v1635, 0.0
      %v2084 = vmax.f32 %v1640, 0.0
      %v2085 = vmax.f32 %v1643, 0.0
      %v2086 = vmax.f32 %v1648, 0.0
      %v2087 = vmax.f32 %v1651, 0.0
      %v2088 = vmax.f32 %v1656, 0.0
      %v2089 = vmax.f32 %v1659, 0.0
      %v2090 = vmax.f32 %v1664, 0.0
      %v2091 = vmax.f32 %v1667, 0.0
      %v2092 = vmax.f32 %v1672, 0.0
      %v2093 = vmax.f32 %v1675, 0.0
      %v2094 = vmax.f32 %v1680, 0.0
      %v2095 = vmax.f32 %v1683, 0.0
      %v2096 = vmax.f32 %v1688, 0.0
      %v2097 = vmax.f32 %v1691, 0.0
      %v2098 = vmax.f32 %v1696, 0.0
      %v2099 = vmax.f32 %v1699, 0.0
      %v2100 = vmax.f32 %v1704, 0.0
      %v2101 = vmax.f32 %v1707, 0.0
      %v2102 = vmax.f32 %v1712, 0.0
      %v2103 = vmax.f32 %v1715, 0.0
      %v2104 = vmax.f32 %v1720, 0.0
      %v2105 = vmax.f32 %v1723, 0.0
      %v2106 = vmax.f32 %v1728, 0.0
      %v2107 = vmax.f32 %v1731, 0.0
      %v2108 = vmax.f32 %v1736, 0.0
      %v2109 = vmax.f32 %v1739, 0.0
      %v2110 = vmax.f32 %v1744, 0.0
      %v2111 = vmax.f32 %v1747, 0.0
      %v2112 = vmax.f32 %v1752, 0.0
      %v2113 = vmax.f32 %v1755, 0.0
      %v2114 = vmax.f32 %v1760, 0.0
      %v2115 = vmax.f32 %v1763, 0.0
      %v2116 = vmax.f32 %v1768, 0.0
      %v2117 = vmax.f32 %v1771, 0.0
      %v2118 = vmax.f32 %v1776, 0.0
      %v2119 = vmax.f32 %v1779, 0.0
      %v2120 = vmax.f32 %v1784, 0.0
      %v2121 = vmax.f32 %v1787, 0.0
      %v2122 = vmax.f32 %v1792, 0.0
      %v2123 = vmax.f32 %v1795, 0.0
      %v2124 = vmax.f32 %v1800, 0.0
      %v2125 = vmax.f32 %v1803, 0.0
      %v2126 = vmax.f32 %v1808, 0.0
      %v2127 = vmax.f32 %v1811, 0.0
      %v2128 = vmax.f32 %v1816, 0.0
      %v2129 = vmax.f32 %v1819, 0.0
      %v2130 = vmax.f32 %v1824, 0.0
      %v2131 = vmax.f32 %v1827, 0.0
      %v2132 = vmax.f32 %v1832, 0.0
      %v2133 = vmax.f32 %v1835, 0.0
      %v2134 = vmax.f32 %v1840, 0.0
      %v2135 = vmax.f32 %v1843, 0.0
      %v2136 = vmax.f32 %v1848, 0.0
      %v2137 = vmax.f32 %v1851, 0.0
      %v2138 = vmax.f32 %v1856, 0.0
      %v2139 = vmax.f32 %v1859, 0.0
      %v2140 = vmax.f32 %v1864, 0.0
      %v2141 = vmax.f32 %v1867, 0.0
      %v2142 = vmax.f32 %v1872, 0.0
      %v2143 = vmax.f32 %v1875, 0.0
      %v2144 = vmax.f32 %v1880, 0.0
      %v2145 = vmax.f32 %v1883, 0.0
      %v2146 = vmax.f32 %v1888, 0.0
      %v2147 = vmax.f32 %v1891, 0.0
      %v2148 = vmax.f32 %v1896, 0.0
      %v2149 = vmax.f32 %v1899, 0.0
      %v2150 = vmax.f32 %v1904, 0.0
      %v2151 = vmax.f32 %v1907, 0.0
      %v2152 = vmax.f32 %v1912, 0.0
      %v2153 = vmax.f32 %v1915, 0.0
      %v2154 = vmax.f32 %v1920, 0.0
      %v2155 = vmax.f32 %v1923, 0.0
      %v2156 = vmax.f32 %v1928, 0.0
      %v2157 = vmax.f32 %v1931, 0.0
      %v2158 = vmax.f32 %v1936, 0.0
      %v2159 = vmax.f32 %v1939, 0.0
      %v2160 = vmax.f32 %v1944, 0.0
      %v2161 = vmax.f32 %v1947, 0.0
      %v2162 = vmax.f32 %v1952, 0.0
      %v2163 = vmax.f32 %v1955, 0.0
      %v2164 = vmax.f32 %v1960, 0.0
      %v2165 = vmax.f32 %v1963, 0.0
      %v2166 = vmax.f32 %v1968, 0.0
      %v2167 = vmax.f32 %v1971, 0.0
      %v2168 = vmax.f32 %v1976, 0.0
      %v2169 = vmax.f32 %v1979, 0.0
      %v2170 = vmax.f32 %v1984, 0.0
      %v2171 = vmax.f32 %v1987, 0.0
      %v2172 = vmax.f32 %v1992, 0.0
      %v2173 = vmax.f32 %v1995, 0.0
      %v2174 = vmax.f32 %v2000, 0.0
      %v2175 = vmax.f32 %v2003, 0.0
      %v2176 = vmax.f32 %v2008, 0.0
      %v2177 = vmax.f32 %v2011, 0.0
      %v2178 = vmax.f32 %v2016, 0.0
      %v2179 = vmax.f32 %v2019, 0.0
      %v2180 = vmax.f32 %v2024, 0.0
      %v2181 = vmax.f32 %v2027, 0.0
      %v2182 = vmax.f32 %v2032, 0.0
      %v2183 = vmax.f32 %v2035, 0.0
      %v2184 = vmax.f32 %v2040, 0.0
      %v2185 = vmax.f32 %v2043, 0.0
      %v2186 = vmax.f32 %v2048, 0.0
      %v2187 = vmax.f32 %v2051, 0.0
      %v2188 = vmax.f32 %v2056, 0.0
      %v2189 = vmax.f32 %v2059, 0.0
      %v2190 = vpack.c.bf16 %v2063, %v2062
      %v2191 = vpack.c.bf16 %v2065, %v2064
      %v2192 = vpack.c.bf16 %v2067, %v2066
      %v2193 = vpack.c.bf16 %v2069, %v2068
      %v2194 = vpack.c.bf16 %v2071, %v2070
      %v2195 = vpack.c.bf16 %v2073, %v2072
      %v2196 = vpack.c.bf16 %v2075, %v2074
      %v2197 = vpack.c.bf16 %v2077, %v2076
      %v2198 = vpack.c.bf16 %v2079, %v2078
      %v2199 = vpack.c.bf16 %v2081, %v2080
      %v2200 = vpack.c.bf16 %v2083, %v2082
      %v2201 = vpack.c.bf16 %v2085, %v2084
      %v2202 = vpack.c.bf16 %v2087, %v2086
      %v2203 = vpack.c.bf16 %v2089, %v2088
      %v2204 = vpack.c.bf16 %v2091, %v2090
      %v2205 = vpack.c.bf16 %v2093, %v2092
      %v2206 = vpack.c.bf16 %v2095, %v2094
      %v2207 = vpack.c.bf16 %v2097, %v2096
      %v2208 = vpack.c.bf16 %v2099, %v2098
      %v2209 = vpack.c.bf16 %v2101, %v2100
      %v2210 = vpack.c.bf16 %v2103, %v2102
      %v2211 = vpack.c.bf16 %v2105, %v2104
      %v2212 = vpack.c.bf16 %v2107, %v2106
      %v2213 = vpack.c.bf16 %v2109, %v2108
      %v2214 = vpack.c.bf16 %v2111, %v2110
      %v2215 = vpack.c.bf16 %v2113, %v2112
      %v2216 = vpack.c.bf16 %v2115, %v2114
      %v2217 = vpack.c.bf16 %v2117, %v2116
      %v2218 = vpack.c.bf16 %v2119, %v2118
      %v2219 = vpack.c.bf16 %v2121, %v2120
      %v2220 = vpack.c.bf16 %v2123, %v2122
      %v2221 = vpack.c.bf16 %v2125, %v2124
      %v2222 = vpack.c.bf16 %v2127, %v2126
      %v2223 = vpack.c.bf16 %v2129, %v2128
      %v2224 = vpack.c.bf16 %v2131, %v2130
      %v2225 = vpack.c.bf16 %v2133, %v2132
      %v2226 = vpack.c.bf16 %v2135, %v2134
      %v2227 = vpack.c.bf16 %v2137, %v2136
      %v2228 = vpack.c.bf16 %v2139, %v2138
      %v2229 = vpack.c.bf16 %v2141, %v2140
      %v2230 = vpack.c.bf16 %v2143, %v2142
      %v2231 = vpack.c.bf16 %v2145, %v2144
      %v2232 = vpack.c.bf16 %v2147, %v2146
      %v2233 = vpack.c.bf16 %v2149, %v2148
      %v2234 = vpack.c.bf16 %v2151, %v2150
      %v2235 = vpack.c.bf16 %v2153, %v2152
      %v2236 = vpack.c.bf16 %v2155, %v2154
      %v2237 = vpack.c.bf16 %v2157, %v2156
      %v2238 = vpack.c.bf16 %v2159, %v2158
      %v2239 = vpack.c.bf16 %v2161, %v2160
      %v2240 = vpack.c.bf16 %v2163, %v2162
      %v2241 = vpack.c.bf16 %v2165, %v2164
      %v2242 = vpack.c.bf16 %v2167, %v2166
      %v2243 = vpack.c.bf16 %v2169, %v2168
      %v2244 = vpack.c.bf16 %v2171, %v2170
      %v2245 = vpack.c.bf16 %v2173, %v2172
      %v2246 = vpack.c.bf16 %v2175, %v2174
      %v2247 = vpack.c.bf16 %v2177, %v2176
      %v2248 = vpack.c.bf16 %v2179, %v2178
      %v2249 = vpack.c.bf16 %v2181, %v2180
      %v2250 = vpack.c.bf16 %v2183, %v2182
      %v2251 = vpack.c.bf16 %v2185, %v2184
      %v2252 = vpack.c.bf16 %v2187, %v2186
      %v2253 = vpack.c.bf16 %v2189, %v2188
      %v2254 = vpack.c.bf16 %v448, %v447
      %v2255 = vpack.c.bf16 %v450, %v449
      %v2256 = vlaneseq
      %v2257 = vshrl.u32 %v2256, 7
      %v2258 = vsub.s32 0, %v2257
      %v2259 = vrot.slane %v451, %v2258
      %v2261 = vsel %vm418, %v2190, 0
      %v2264 = vsel %vm418, %v2191, 0
      %v2267 = vsel %vm418, %v2192, 0
      %v2270 = vsel %vm418, %v2193, 0
      %v2273 = vsel %vm418, %v2194, 0
      %v2276 = vsel %vm418, %v2195, 0
      %v2279 = vsel %vm418, %v2196, 0
      %v2282 = vsel %vm418, %v2197, 0
      %v2285 = vsel %vm418, %v2198, 0
      %v2288 = vsel %vm418, %v2199, 0
      %v2291 = vsel %vm418, %v2200, 0
      %v2294 = vsel %vm418, %v2201, 0
      %v2297 = vsel %vm418, %v2202, 0
      %v2300 = vsel %vm418, %v2203, 0
      %v2303 = vsel %vm418, %v2204, 0
      %v2306 = vsel %vm418, %v2205, 0
      %v2309 = vsel %vm418, %v2206, 0
      %v2312 = vsel %vm418, %v2207, 0
      %v2315 = vsel %vm418, %v2208, 0
      %v2318 = vsel %vm418, %v2209, 0
      %v2321 = vsel %vm418, %v2210, 0
      %v2324 = vsel %vm418, %v2211, 0
      %v2327 = vsel %vm418, %v2212, 0
      %v2330 = vsel %vm418, %v2213, 0
      %v2333 = vsel %vm418, %v2214, 0
      %v2336 = vsel %vm418, %v2215, 0
      %v2339 = vsel %vm418, %v2216, 0
      %v2342 = vsel %vm418, %v2217, 0
      %v2345 = vsel %vm418, %v2218, 0
      %v2348 = vsel %vm418, %v2219, 0
      %v2351 = vsel %vm418, %v2220, 0
      %v2354 = vsel %vm418, %v2221, 0
      %v2357 = vsel %vm418, %v2222, 0
      %v2360 = vsel %vm418, %v2223, 0
      %v2363 = vsel %vm418, %v2224, 0
      %v2366 = vsel %vm418, %v2225, 0
      %v2369 = vsel %vm418, %v2226, 0
      %v2372 = vsel %vm418, %v2227, 0
      %v2375 = vsel %vm418, %v2228, 0
      %v2378 = vsel %vm418, %v2229, 0
      %v2381 = vsel %vm418, %v2230, 0
      %v2384 = vsel %vm418, %v2231, 0
      %v2387 = vsel %vm418, %v2232, 0
      %v2390 = vsel %vm418, %v2233, 0
      %v2393 = vsel %vm418, %v2234, 0
      %v2396 = vsel %vm418, %v2235, 0
      %v2399 = vsel %vm418, %v2236, 0
      %v2402 = vsel %vm418, %v2237, 0
      %v2405 = vsel %vm418, %v2238, 0
      %v2408 = vsel %vm418, %v2239, 0
      %v2411 = vsel %vm418, %v2240, 0
      %v2414 = vsel %vm418, %v2241, 0
      %v2417 = vsel %vm418, %v2242, 0
      %v2420 = vsel %vm418, %v2243, 0
      %v2423 = vsel %vm418, %v2244, 0
      %v2426 = vsel %vm418, %v2245, 0
      %v2429 = vsel %vm418, %v2246, 0
      %v2432 = vsel %vm418, %v2247, 0
      %v2435 = vsel %vm418, %v2248, 0
      %v2438 = vsel %vm418, %v2249, 0
      %v2441 = vsel %vm418, %v2250, 0
      %v2444 = vsel %vm418, %v2251, 0
      %v2447 = vsel %vm418, %v2252, 0
      %v2450 = vsel %vm418, %v2253, 0
      %2452 = vmatprep.subr.bf16.mxu0 0
      %2453 = vmatpush1.bf16.msra.mxu0 0
      %2454 = vmatprep.subr.bf16.mxu0 0
      %2455 = vmatpush1.bf16.msra.mxu0 0
      %2456 = vmatprep.subr.bf16.mxu0 0
      %2457 = vmatpush1.bf16.msra.mxu0 0
      %2458 = vmatprep.subr.bf16.mxu0 0
      %2459 = vmatpush1.bf16.msra.mxu0 0
      %2460 = vmatprep.subr.bf16.mxu0 0
      %2461 = vmatpush1.bf16.msra.mxu0 0
      %2462 = vmatprep.subr.bf16.mxu0 0
      %2463 = vmatpush1.bf16.msra.mxu0 0
      %2464 = vmatprep.subr.bf16.mxu0 0
      %2465 = vmatpush1.bf16.msra.mxu0 %v2255
      %2466 = vmatprep.subr.bf16.mxu0 0
      %2467 = vmatpush1.bf16.msra.mxu0 %v2254
      %2468 = vmatprep.subr.bf16.mxu0 0
      %2469 = vmatpush2.bf16.msra.mxu0 0
      %2470 = vmatprep.subr.bf16.mxu0 0
      %2471 = vmatpush2.bf16.msra.mxu0 0
      %2472 = vmatprep.subr.bf16.mxu0 0
      %2473 = vmatpush2.bf16.msra.mxu0 0
      %2474 = vmatprep.subr.bf16.mxu0 0
      %2475 = vmatpush2.bf16.msra.mxu0 0
      %2476 = vmatprep.subr.bf16.mxu0 0
      %2477 = vmatpush2.bf16.msra.mxu0 0
      %2478 = vmatprep.subr.bf16.mxu0 0
      %2479 = vmatpush2.bf16.msra.mxu0 0
      %2480 = vmatprep.subr.bf16.mxu0 0
      %2481 = vmatpush2.bf16.msra.mxu0 0
      %2482 = vmatprep.subr.bf16.mxu0 0
      %2483 = vmatpush2.bf16.msra.mxu0 0
      %2484 = vmatprep.mubr.bf16.mxu0 0
      %2485 = vmatmul.mubr.bf16.gmra.mxu0 %v2261
      %v2486 = vpop.f32.mrf.mxu0
      %v2487 = vadd.f32 %v2259, %v2486
      %v2488 = vpop.f32.mrf.mxu0
      %v2489 = vpop.f32.mrf.mxu0
      %v2490 = vadd.f32 %v2259, %v2489
      %v2491 = vpop.f32.mrf.mxu0
      %2492 = vmatprep.mubr.bf16.mxu0 0
      %2493 = vmatmul.mubr.bf16.gmra.mxu0 %v2264
      %v2494 = vpop.f32.mrf.mxu0
      %v2495 = vadd.f32 %v2259, %v2494
      %v2496 = vpop.f32.mrf.mxu0
      %v2497 = vpop.f32.mrf.mxu0
      %v2498 = vadd.f32 %v2259, %v2497
      %v2499 = vpop.f32.mrf.mxu0
      %2500 = vmatprep.mubr.bf16.mxu0 0
      %2501 = vmatmul.mubr.bf16.gmra.mxu0 %v2267
      %v2502 = vpop.f32.mrf.mxu0
      %v2503 = vadd.f32 %v2259, %v2502
      %v2504 = vpop.f32.mrf.mxu0
      %v2505 = vpop.f32.mrf.mxu0
      %v2506 = vadd.f32 %v2259, %v2505
      %v2507 = vpop.f32.mrf.mxu0
      %2508 = vmatprep.mubr.bf16.mxu0 0
      %2509 = vmatmul.mubr.bf16.gmra.mxu0 %v2270
      %v2510 = vpop.f32.mrf.mxu0
      %v2511 = vadd.f32 %v2259, %v2510
      %v2512 = vpop.f32.mrf.mxu0
      %v2513 = vpop.f32.mrf.mxu0
      %v2514 = vadd.f32 %v2259, %v2513
      %v2515 = vpop.f32.mrf.mxu0
      %2516 = vmatprep.mubr.bf16.mxu0 0
      %2517 = vmatmul.mubr.bf16.gmra.mxu0 %v2273
      %v2518 = vpop.f32.mrf.mxu0
      %v2519 = vadd.f32 %v2259, %v2518
      %v2520 = vpop.f32.mrf.mxu0
      %v2521 = vpop.f32.mrf.mxu0
      %v2522 = vadd.f32 %v2259, %v2521
      %v2523 = vpop.f32.mrf.mxu0
      %2524 = vmatprep.mubr.bf16.mxu0 0
      %2525 = vmatmul.mubr.bf16.gmra.mxu0 %v2276
      %v2526 = vpop.f32.mrf.mxu0
      %v2527 = vadd.f32 %v2259, %v2526
      %v2528 = vpop.f32.mrf.mxu0
      %v2529 = vpop.f32.mrf.mxu0
      %v2530 = vadd.f32 %v2259, %v2529
      %v2531 = vpop.f32.mrf.mxu0
      %2532 = vmatprep.mubr.bf16.mxu0 0
      %2533 = vmatmul.mubr.bf16.gmra.mxu0 %v2279
      %v2534 = vpop.f32.mrf.mxu0
      %v2535 = vadd.f32 %v2259, %v2534
      %v2536 = vpop.f32.mrf.mxu0
      %v2537 = vpop.f32.mrf.mxu0
      %v2538 = vadd.f32 %v2259, %v2537
      %v2539 = vpop.f32.mrf.mxu0
      %2540 = vmatprep.mubr.bf16.mxu0 0
      %2541 = vmatmul.mubr.bf16.gmra.mxu0 %v2282
      %v2542 = vpop.f32.mrf.mxu0
      %v2543 = vadd.f32 %v2259, %v2542
      %v2544 = vpop.f32.mrf.mxu0
      %v2545 = vpop.f32.mrf.mxu0
      %v2546 = vadd.f32 %v2259, %v2545
      %v2547 = vpop.f32.mrf.mxu0
      %2548 = vmatprep.mubr.bf16.mxu0 0
      %2549 = vmatmul.mubr.bf16.gmra.mxu0 %v2285
      %v2550 = vpop.f32.mrf.mxu0
      %v2551 = vadd.f32 %v2259, %v2550
      %v2552 = vpop.f32.mrf.mxu0
      %v2553 = vpop.f32.mrf.mxu0
      %v2554 = vadd.f32 %v2259, %v2553
      %v2555 = vpop.f32.mrf.mxu0
      %2556 = vmatprep.mubr.bf16.mxu0 0
      %2557 = vmatmul.mubr.bf16.gmra.mxu0 %v2288
      %v2558 = vpop.f32.mrf.mxu0
      %v2559 = vadd.f32 %v2259, %v2558
      %v2560 = vpop.f32.mrf.mxu0
      %v2561 = vpop.f32.mrf.mxu0
      %v2562 = vadd.f32 %v2259, %v2561
      %v2563 = vpop.f32.mrf.mxu0
      %2564 = vmatprep.mubr.bf16.mxu0 0
      %2565 = vmatmul.mubr.bf16.gmra.mxu0 %v2291
      %v2566 = vpop.f32.mrf.mxu0
      %v2567 = vadd.f32 %v2259, %v2566
      %v2568 = vpop.f32.mrf.mxu0
      %v2569 = vpop.f32.mrf.mxu0
      %v2570 = vadd.f32 %v2259, %v2569
      %v2571 = vpop.f32.mrf.mxu0
      %2572 = vmatprep.mubr.bf16.mxu0 0
      %2573 = vmatmul.mubr.bf16.gmra.mxu0 %v2294
      %v2574 = vpop.f32.mrf.mxu0
      %v2575 = vadd.f32 %v2259, %v2574
      %v2576 = vpop.f32.mrf.mxu0
      %v2577 = vpop.f32.mrf.mxu0
      %v2578 = vadd.f32 %v2259, %v2577
      %v2579 = vpop.f32.mrf.mxu0
      %2580 = vmatprep.mubr.bf16.mxu0 0
      %2581 = vmatmul.mubr.bf16.gmra.mxu0 %v2297
      %v2582 = vpop.f32.mrf.mxu0
      %v2583 = vadd.f32 %v2259, %v2582
      %v2584 = vpop.f32.mrf.mxu0
      %v2585 = vpop.f32.mrf.mxu0
      %v2586 = vadd.f32 %v2259, %v2585
      %v2587 = vpop.f32.mrf.mxu0
      %2588 = vmatprep.mubr.bf16.mxu0 0
      %2589 = vmatmul.mubr.bf16.gmra.mxu0 %v2300
      %v2590 = vpop.f32.mrf.mxu0
      %v2591 = vadd.f32 %v2259, %v2590
      %v2592 = vpop.f32.mrf.mxu0
      %v2593 = vpop.f32.mrf.mxu0
      %v2594 = vadd.f32 %v2259, %v2593
      %v2595 = vpop.f32.mrf.mxu0
      %2596 = vmatprep.mubr.bf16.mxu0 0
      %2597 = vmatmul.mubr.bf16.gmra.mxu0 %v2303
      %v2598 = vpop.f32.mrf.mxu0
      %v2599 = vadd.f32 %v2259, %v2598
      %v2600 = vpop.f32.mrf.mxu0
      %v2601 = vpop.f32.mrf.mxu0
      %v2602 = vadd.f32 %v2259, %v2601
      %v2603 = vpop.f32.mrf.mxu0
      %2604 = vmatprep.mubr.bf16.mxu0 0
      %2605 = vmatmul.mubr.bf16.gmra.mxu0 %v2306
      %v2606 = vpop.f32.mrf.mxu0
      %v2607 = vadd.f32 %v2259, %v2606
      %v2608 = vpop.f32.mrf.mxu0
      %v2609 = vpop.f32.mrf.mxu0
      %v2610 = vadd.f32 %v2259, %v2609
      %v2611 = vpop.f32.mrf.mxu0
      %2612 = vmatprep.mubr.bf16.mxu0 0
      %2613 = vmatmul.mubr.bf16.gmra.mxu0 %v2309
      %v2614 = vpop.f32.mrf.mxu0
      %v2615 = vadd.f32 %v2259, %v2614
      %v2616 = vpop.f32.mrf.mxu0
      %v2617 = vpop.f32.mrf.mxu0
      %v2618 = vadd.f32 %v2259, %v2617
      %v2619 = vpop.f32.mrf.mxu0
      %2620 = vmatprep.mubr.bf16.mxu0 0
      %2621 = vmatmul.mubr.bf16.gmra.mxu0 %v2312
      %v2622 = vpop.f32.mrf.mxu0
      %v2623 = vadd.f32 %v2259, %v2622
      %v2624 = vpop.f32.mrf.mxu0
      %v2625 = vpop.f32.mrf.mxu0
      %v2626 = vadd.f32 %v2259, %v2625
      %v2627 = vpop.f32.mrf.mxu0
      %2628 = vmatprep.mubr.bf16.mxu0 0
      %2629 = vmatmul.mubr.bf16.gmra.mxu0 %v2315
      %v2630 = vpop.f32.mrf.mxu0
      %v2631 = vadd.f32 %v2259, %v2630
      %v2632 = vpop.f32.mrf.mxu0
      %v2633 = vpop.f32.mrf.mxu0
      %v2634 = vadd.f32 %v2259, %v2633
      %v2635 = vpop.f32.mrf.mxu0
      %2636 = vmatprep.mubr.bf16.mxu0 0
      %2637 = vmatmul.mubr.bf16.gmra.mxu0 %v2318
      %v2638 = vpop.f32.mrf.mxu0
      %v2639 = vadd.f32 %v2259, %v2638
      %v2640 = vpop.f32.mrf.mxu0
      %v2641 = vpop.f32.mrf.mxu0
      %v2642 = vadd.f32 %v2259, %v2641
      %v2643 = vpop.f32.mrf.mxu0
      %2644 = vmatprep.mubr.bf16.mxu0 0
      %2645 = vmatmul.mubr.bf16.gmra.mxu0 %v2321
      %v2646 = vpop.f32.mrf.mxu0
      %v2647 = vadd.f32 %v2259, %v2646
      %v2648 = vpop.f32.mrf.mxu0
      %v2649 = vpop.f32.mrf.mxu0
      %v2650 = vadd.f32 %v2259, %v2649
      %v2651 = vpop.f32.mrf.mxu0
      %2652 = vmatprep.mubr.bf16.mxu0 0
      %2653 = vmatmul.mubr.bf16.gmra.mxu0 %v2324
      %v2654 = vpop.f32.mrf.mxu0
      %v2655 = vadd.f32 %v2259, %v2654
      %v2656 = vpop.f32.mrf.mxu0
      %v2657 = vpop.f32.mrf.mxu0
      %v2658 = vadd.f32 %v2259, %v2657
      %v2659 = vpop.f32.mrf.mxu0
      %2660 = vmatprep.mubr.bf16.mxu0 0
      %2661 = vmatmul.mubr.bf16.gmra.mxu0 %v2327
      %v2662 = vpop.f32.mrf.mxu0
      %v2663 = vadd.f32 %v2259, %v2662
      %v2664 = vpop.f32.mrf.mxu0
      %v2665 = vpop.f32.mrf.mxu0
      %v2666 = vadd.f32 %v2259, %v2665
      %v2667 = vpop.f32.mrf.mxu0
      %2668 = vmatprep.mubr.bf16.mxu0 0
      %2669 = vmatmul.mubr.bf16.gmra.mxu0 %v2330
      %v2670 = vpop.f32.mrf.mxu0
      %v2671 = vadd.f32 %v2259, %v2670
      %v2672 = vpop.f32.mrf.mxu0
      %v2673 = vpop.f32.mrf.mxu0
      %v2674 = vadd.f32 %v2259, %v2673
      %v2675 = vpop.f32.mrf.mxu0
      %2676 = vmatprep.mubr.bf16.mxu0 0
      %2677 = vmatmul.mubr.bf16.gmra.mxu0 %v2333
      %v2678 = vpop.f32.mrf.mxu0
      %v2679 = vadd.f32 %v2259, %v2678
      %v2680 = vpop.f32.mrf.mxu0
      %v2681 = vpop.f32.mrf.mxu0
      %v2682 = vadd.f32 %v2259, %v2681
      %v2683 = vpop.f32.mrf.mxu0
      %2684 = vmatprep.mubr.bf16.mxu0 0
      %2685 = vmatmul.mubr.bf16.gmra.mxu0 %v2336
      %v2686 = vpop.f32.mrf.mxu0
      %v2687 = vadd.f32 %v2259, %v2686
      %v2688 = vpop.f32.mrf.mxu0
      %v2689 = vpop.f32.mrf.mxu0
      %v2690 = vadd.f32 %v2259, %v2689
      %v2691 = vpop.f32.mrf.mxu0
      %2692 = vmatprep.mubr.bf16.mxu0 0
      %2693 = vmatmul.mubr.bf16.gmra.mxu0 %v2339
      %v2694 = vpop.f32.mrf.mxu0
      %v2695 = vadd.f32 %v2259, %v2694
      %v2696 = vpop.f32.mrf.mxu0
      %v2697 = vpop.f32.mrf.mxu0
      %v2698 = vadd.f32 %v2259, %v2697
      %v2699 = vpop.f32.mrf.mxu0
      %2700 = vmatprep.mubr.bf16.mxu0 0
      %2701 = vmatmul.mubr.bf16.gmra.mxu0 %v2342
      %v2702 = vpop.f32.mrf.mxu0
      %v2703 = vadd.f32 %v2259, %v2702
      %v2704 = vpop.f32.mrf.mxu0
      %v2705 = vpop.f32.mrf.mxu0
      %v2706 = vadd.f32 %v2259, %v2705
      %v2707 = vpop.f32.mrf.mxu0
      %2708 = vmatprep.mubr.bf16.mxu0 0
      %2709 = vmatmul.mubr.bf16.gmra.mxu0 %v2345
      %v2710 = vpop.f32.mrf.mxu0
      %v2711 = vadd.f32 %v2259, %v2710
      %v2712 = vpop.f32.mrf.mxu0
      %v2713 = vpop.f32.mrf.mxu0
      %v2714 = vadd.f32 %v2259, %v2713
      %v2715 = vpop.f32.mrf.mxu0
      %2716 = vmatprep.mubr.bf16.mxu0 0
      %2717 = vmatmul.mubr.bf16.gmra.mxu0 %v2348
      %v2718 = vpop.f32.mrf.mxu0
      %v2719 = vadd.f32 %v2259, %v2718
      %v2720 = vpop.f32.mrf.mxu0
      %v2721 = vpop.f32.mrf.mxu0
      %v2722 = vadd.f32 %v2259, %v2721
      %v2723 = vpop.f32.mrf.mxu0
      %2724 = vmatprep.mubr.bf16.mxu0 0
      %2725 = vmatmul.mubr.bf16.gmra.mxu0 %v2351
      %v2726 = vpop.f32.mrf.mxu0
      %v2727 = vadd.f32 %v2259, %v2726
      %v2728 = vpop.f32.mrf.mxu0
      %v2729 = vpop.f32.mrf.mxu0
      %v2730 = vadd.f32 %v2259, %v2729
      %v2731 = vpop.f32.mrf.mxu0
      %2732 = vmatprep.mubr.bf16.mxu0 0
      %2733 = vmatmul.mubr.bf16.gmra.mxu0 %v2354
      %v2734 = vpop.f32.mrf.mxu0
      %v2735 = vadd.f32 %v2259, %v2734
      %v2736 = vpop.f32.mrf.mxu0
      %v2737 = vpop.f32.mrf.mxu0
      %v2738 = vadd.f32 %v2259, %v2737
      %v2739 = vpop.f32.mrf.mxu0
      %2740 = vmatprep.mubr.bf16.mxu0 0
      %2741 = vmatmul.mubr.bf16.gmra.mxu0 %v2357
      %v2742 = vpop.f32.mrf.mxu0
      %v2743 = vadd.f32 %v2259, %v2742
      %v2744 = vpop.f32.mrf.mxu0
      %v2745 = vpop.f32.mrf.mxu0
      %v2746 = vadd.f32 %v2259, %v2745
      %v2747 = vpop.f32.mrf.mxu0
      %2748 = vmatprep.mubr.bf16.mxu0 0
      %2749 = vmatmul.mubr.bf16.gmra.mxu0 %v2360
      %v2750 = vpop.f32.mrf.mxu0
      %v2751 = vadd.f32 %v2259, %v2750
      %v2752 = vpop.f32.mrf.mxu0
      %v2753 = vpop.f32.mrf.mxu0
      %v2754 = vadd.f32 %v2259, %v2753
      %v2755 = vpop.f32.mrf.mxu0
      %2756 = vmatprep.mubr.bf16.mxu0 0
      %2757 = vmatmul.mubr.bf16.gmra.mxu0 %v2363
      %v2758 = vpop.f32.mrf.mxu0
      %v2759 = vadd.f32 %v2259, %v2758
      %v2760 = vpop.f32.mrf.mxu0
      %v2761 = vpop.f32.mrf.mxu0
      %v2762 = vadd.f32 %v2259, %v2761
      %v2763 = vpop.f32.mrf.mxu0
      %2764 = vmatprep.mubr.bf16.mxu0 0
      %2765 = vmatmul.mubr.bf16.gmra.mxu0 %v2366
      %v2766 = vpop.f32.mrf.mxu0
      %v2767 = vadd.f32 %v2259, %v2766
      %v2768 = vpop.f32.mrf.mxu0
      %v2769 = vpop.f32.mrf.mxu0
      %v2770 = vadd.f32 %v2259, %v2769
      %v2771 = vpop.f32.mrf.mxu0
      %2772 = vmatprep.mubr.bf16.mxu0 0
      %2773 = vmatmul.mubr.bf16.gmra.mxu0 %v2369
      %v2774 = vpop.f32.mrf.mxu0
      %v2775 = vadd.f32 %v2259, %v2774
      %v2776 = vpop.f32.mrf.mxu0
      %v2777 = vpop.f32.mrf.mxu0
      %v2778 = vadd.f32 %v2259, %v2777
      %v2779 = vpop.f32.mrf.mxu0
      %2780 = vmatprep.mubr.bf16.mxu0 0
      %2781 = vmatmul.mubr.bf16.gmra.mxu0 %v2372
      %v2782 = vpop.f32.mrf.mxu0
      %v2783 = vadd.f32 %v2259, %v2782
      %v2784 = vpop.f32.mrf.mxu0
      %v2785 = vpop.f32.mrf.mxu0
      %v2786 = vadd.f32 %v2259, %v2785
      %v2787 = vpop.f32.mrf.mxu0
      %2788 = vmatprep.mubr.bf16.mxu0 0
      %2789 = vmatmul.mubr.bf16.gmra.mxu0 %v2375
      %v2790 = vpop.f32.mrf.mxu0
      %v2791 = vadd.f32 %v2259, %v2790
      %v2792 = vpop.f32.mrf.mxu0
      %v2793 = vpop.f32.mrf.mxu0
      %v2794 = vadd.f32 %v2259, %v2793
      %v2795 = vpop.f32.mrf.mxu0
      %2796 = vmatprep.mubr.bf16.mxu0 0
      %2797 = vmatmul.mubr.bf16.gmra.mxu0 %v2378
      %v2798 = vpop.f32.mrf.mxu0
      %v2799 = vadd.f32 %v2259, %v2798
      %v2800 = vpop.f32.mrf.mxu0
      %v2801 = vpop.f32.mrf.mxu0
      %v2802 = vadd.f32 %v2259, %v2801
      %v2803 = vpop.f32.mrf.mxu0
      %2804 = vmatprep.mubr.bf16.mxu0 0
      %2805 = vmatmul.mubr.bf16.gmra.mxu0 %v2381
      %v2806 = vpop.f32.mrf.mxu0
      %v2807 = vadd.f32 %v2259, %v2806
      %v2808 = vpop.f32.mrf.mxu0
      %v2809 = vpop.f32.mrf.mxu0
      %v2810 = vadd.f32 %v2259, %v2809
      %v2811 = vpop.f32.mrf.mxu0
      %2812 = vmatprep.mubr.bf16.mxu0 0
      %2813 = vmatmul.mubr.bf16.gmra.mxu0 %v2384
      %v2814 = vpop.f32.mrf.mxu0
      %v2815 = vadd.f32 %v2259, %v2814
      %v2816 = vpop.f32.mrf.mxu0
      %v2817 = vpop.f32.mrf.mxu0
      %v2818 = vadd.f32 %v2259, %v2817
      %v2819 = vpop.f32.mrf.mxu0
      %2820 = vmatprep.mubr.bf16.mxu0 0
      %2821 = vmatmul.mubr.bf16.gmra.mxu0 %v2387
      %v2822 = vpop.f32.mrf.mxu0
      %v2823 = vadd.f32 %v2259, %v2822
      %v2824 = vpop.f32.mrf.mxu0
      %v2825 = vpop.f32.mrf.mxu0
      %v2826 = vadd.f32 %v2259, %v2825
      %v2827 = vpop.f32.mrf.mxu0
      %2828 = vmatprep.mubr.bf16.mxu0 0
      %2829 = vmatmul.mubr.bf16.gmra.mxu0 %v2390
      %v2830 = vpop.f32.mrf.mxu0
      %v2831 = vadd.f32 %v2259, %v2830
      %v2832 = vpop.f32.mrf.mxu0
      %v2833 = vpop.f32.mrf.mxu0
      %v2834 = vadd.f32 %v2259, %v2833
      %v2835 = vpop.f32.mrf.mxu0
      %2836 = vmatprep.mubr.bf16.mxu0 0
      %2837 = vmatmul.mubr.bf16.gmra.mxu0 %v2393
      %v2838 = vpop.f32.mrf.mxu0
      %v2839 = vadd.f32 %v2259, %v2838
      %v2840 = vpop.f32.mrf.mxu0
      %v2841 = vpop.f32.mrf.mxu0
      %v2842 = vadd.f32 %v2259, %v2841
      %v2843 = vpop.f32.mrf.mxu0
      %2844 = vmatprep.mubr.bf16.mxu0 0
      %2845 = vmatmul.mubr.bf16.gmra.mxu0 %v2396
      %v2846 = vpop.f32.mrf.mxu0
      %v2847 = vadd.f32 %v2259, %v2846
      %v2848 = vpop.f32.mrf.mxu0
      %v2849 = vpop.f32.mrf.mxu0
      %v2850 = vadd.f32 %v2259, %v2849
      %v2851 = vpop.f32.mrf.mxu0
      %2852 = vmatprep.mubr.bf16.mxu0 0
      %2853 = vmatmul.mubr.bf16.gmra.mxu0 %v2399
      %v2854 = vpop.f32.mrf.mxu0
      %v2855 = vadd.f32 %v2259, %v2854
      %v2856 = vpop.f32.mrf.mxu0
      %v2857 = vpop.f32.mrf.mxu0
      %v2858 = vadd.f32 %v2259, %v2857
      %v2859 = vpop.f32.mrf.mxu0
      %2860 = vmatprep.mubr.bf16.mxu0 0
      %2861 = vmatmul.mubr.bf16.gmra.mxu0 %v2402
      %v2862 = vpop.f32.mrf.mxu0
      %v2863 = vadd.f32 %v2259, %v2862
      %v2864 = vpop.f32.mrf.mxu0
      %v2865 = vpop.f32.mrf.mxu0
      %v2866 = vadd.f32 %v2259, %v2865
      %v2867 = vpop.f32.mrf.mxu0
      %2868 = vmatprep.mubr.bf16.mxu0 0
      %2869 = vmatmul.mubr.bf16.gmra.mxu0 %v2405
      %v2870 = vpop.f32.mrf.mxu0
      %v2871 = vadd.f32 %v2259, %v2870
      %v2872 = vpop.f32.mrf.mxu0
      %v2873 = vpop.f32.mrf.mxu0
      %v2874 = vadd.f32 %v2259, %v2873
      %v2875 = vpop.f32.mrf.mxu0
      %2876 = vmatprep.mubr.bf16.mxu0 0
      %2877 = vmatmul.mubr.bf16.gmra.mxu0 %v2408
      %v2878 = vpop.f32.mrf.mxu0
      %v2879 = vadd.f32 %v2259, %v2878
      %v2880 = vpop.f32.mrf.mxu0
      %v2881 = vpop.f32.mrf.mxu0
      %v2882 = vadd.f32 %v2259, %v2881
      %v2883 = vpop.f32.mrf.mxu0
      %2884 = vmatprep.mubr.bf16.mxu0 0
      %2885 = vmatmul.mubr.bf16.gmra.mxu0 %v2411
      %v2886 = vpop.f32.mrf.mxu0
      %v2887 = vadd.f32 %v2259, %v2886
      %v2888 = vpop.f32.mrf.mxu0
      %v2889 = vpop.f32.mrf.mxu0
      %v2890 = vadd.f32 %v2259, %v2889
      %v2891 = vpop.f32.mrf.mxu0
      %2892 = vmatprep.mubr.bf16.mxu0 0
      %2893 = vmatmul.mubr.bf16.gmra.mxu0 %v2414
      %v2894 = vpop.f32.mrf.mxu0
      %v2895 = vadd.f32 %v2259, %v2894
      %v2896 = vpop.f32.mrf.mxu0
      %v2897 = vpop.f32.mrf.mxu0
      %v2898 = vadd.f32 %v2259, %v2897
      %v2899 = vpop.f32.mrf.mxu0
      %2900 = vmatprep.mubr.bf16.mxu0 0
      %2901 = vmatmul.mubr.bf16.gmra.mxu0 %v2417
      %v2902 = vpop.f32.mrf.mxu0
      %v2903 = vadd.f32 %v2259, %v2902
      %v2904 = vpop.f32.mrf.mxu0
      %v2905 = vpop.f32.mrf.mxu0
      %v2906 = vadd.f32 %v2259, %v2905
      %v2907 = vpop.f32.mrf.mxu0
      %2908 = vmatprep.mubr.bf16.mxu0 0
      %2909 = vmatmul.mubr.bf16.gmra.mxu0 %v2420
      %v2910 = vpop.f32.mrf.mxu0
      %v2911 = vadd.f32 %v2259, %v2910
      %v2912 = vpop.f32.mrf.mxu0
      %v2913 = vpop.f32.mrf.mxu0
      %v2914 = vadd.f32 %v2259, %v2913
      %v2915 = vpop.f32.mrf.mxu0
      %2916 = vmatprep.mubr.bf16.mxu0 0
      %2917 = vmatmul.mubr.bf16.gmra.mxu0 %v2423
      %v2918 = vpop.f32.mrf.mxu0
      %v2919 = vadd.f32 %v2259, %v2918
      %v2920 = vpop.f32.mrf.mxu0
      %v2921 = vpop.f32.mrf.mxu0
      %v2922 = vadd.f32 %v2259, %v2921
      %v2923 = vpop.f32.mrf.mxu0
      %2924 = vmatprep.mubr.bf16.mxu0 0
      %2925 = vmatmul.mubr.bf16.gmra.mxu0 %v2426
      %v2926 = vpop.f32.mrf.mxu0
      %v2927 = vadd.f32 %v2259, %v2926
      %v2928 = vpop.f32.mrf.mxu0
      %v2929 = vpop.f32.mrf.mxu0
      %v2930 = vadd.f32 %v2259, %v2929
      %v2931 = vpop.f32.mrf.mxu0
      %2932 = vmatprep.mubr.bf16.mxu0 0
      %2933 = vmatmul.mubr.bf16.gmra.mxu0 %v2429
      %v2934 = vpop.f32.mrf.mxu0
      %v2935 = vadd.f32 %v2259, %v2934
      %v2936 = vpop.f32.mrf.mxu0
      %v2937 = vpop.f32.mrf.mxu0
      %v2938 = vadd.f32 %v2259, %v2937
      %v2939 = vpop.f32.mrf.mxu0
      %2940 = vmatprep.mubr.bf16.mxu0 0
      %2941 = vmatmul.mubr.bf16.gmra.mxu0 %v2432
      %v2942 = vpop.f32.mrf.mxu0
      %v2943 = vadd.f32 %v2259, %v2942
      %v2944 = vpop.f32.mrf.mxu0
      %v2945 = vpop.f32.mrf.mxu0
      %v2946 = vadd.f32 %v2259, %v2945
      %v2947 = vpop.f32.mrf.mxu0
      %2948 = vmatprep.mubr.bf16.mxu0 0
      %2949 = vmatmul.mubr.bf16.gmra.mxu0 %v2435
      %v2950 = vpop.f32.mrf.mxu0
      %v2951 = vadd.f32 %v2259, %v2950
      %v2952 = vpop.f32.mrf.mxu0
      %v2953 = vpop.f32.mrf.mxu0
      %v2954 = vadd.f32 %v2259, %v2953
      %v2955 = vpop.f32.mrf.mxu0
      %2956 = vmatprep.mubr.bf16.mxu0 0
      %2957 = vmatmul.mubr.bf16.gmra.mxu0 %v2438
      %v2958 = vpop.f32.mrf.mxu0
      %v2959 = vadd.f32 %v2259, %v2958
      %v2960 = vpop.f32.mrf.mxu0
      %v2961 = vpop.f32.mrf.mxu0
      %v2962 = vadd.f32 %v2259, %v2961
      %v2963 = vpop.f32.mrf.mxu0
      %2964 = vmatprep.mubr.bf16.mxu0 0
      %2965 = vmatmul.mubr.bf16.gmra.mxu0 %v2441
      %v2966 = vpop.f32.mrf.mxu0
      %v2967 = vadd.f32 %v2259, %v2966
      %v2968 = vpop.f32.mrf.mxu0
      %v2969 = vpop.f32.mrf.mxu0
      %v2970 = vadd.f32 %v2259, %v2969
      %v2971 = vpop.f32.mrf.mxu0
      %2972 = vmatprep.mubr.bf16.mxu0 0
      %2973 = vmatmul.mubr.bf16.gmra.mxu0 %v2444
      %v2974 = vpop.f32.mrf.mxu0
      %v2975 = vadd.f32 %v2259, %v2974
      %v2976 = vpop.f32.mrf.mxu0
      %v2977 = vpop.f32.mrf.mxu0
      %v2978 = vadd.f32 %v2259, %v2977
      %v2979 = vpop.f32.mrf.mxu0
      %2980 = vmatprep.mubr.bf16.mxu0 0
      %2981 = vmatmul.mubr.bf16.gmra.mxu0 %v2447
      %v2982 = vpop.f32.mrf.mxu0
      %v2983 = vadd.f32 %v2259, %v2982
      %v2984 = vpop.f32.mrf.mxu0
      %v2985 = vpop.f32.mrf.mxu0
      %v2986 = vadd.f32 %v2259, %v2985
      %v2987 = vpop.f32.mrf.mxu0
      %2988 = vmatprep.mubr.bf16.mxu0 0
      %2989 = vmatmul.mubr.bf16.gmra.mxu0 %v2450
      %v2990 = vpop.f32.mrf.mxu0
      %v2991 = vadd.f32 %v2259, %v2990
      %v2992 = vpop.f32.mrf.mxu0
      %v2993 = vpop.f32.mrf.mxu0
      %v2994 = vadd.f32 %v2259, %v2993
      %v2995 = vpop.f32.mrf.mxu0
      %2996 = vdwg.mxu0
      %v2997 = vlaneseq
      %v2998 = vshrl.u32 %v2997, 7
      %v2999 = vsub.s32 0, %v2998
      %v3000 = vrot.slane %v406, %v2999
      %3002 = vbcast.lane.b32.xlu0 %v3000, 256
      %v3003 = vpop.permute.xlu0 %3002
      %s3005 = sor.u32 256, 8
      %3006 = vbcast.lane.b32.xlu0 %v3000, %s3005
      %v3007 = vpop.permute.xlu0 %3006
      %s3009 = sor.u32 256, 16
      %3010 = vbcast.lane.b32.xlu0 %v3000, %s3009
      %v3011 = vpop.permute.xlu0 %3010
      %s3013 = sor.u32 256, 24
      %3014 = vbcast.lane.b32.xlu0 %v3000, %s3013
      %v3015 = vpop.permute.xlu0 %3014
      %v3016 = vlaneseq
      %v3017 = vshrl.u32 %v3016, 7
      %v3018 = vsub.s32 1, %v3017
      %v3019 = vrot.slane %v406, %v3018
      %3021 = vbcast.lane.b32.xlu0 %v3019, 256
      %v3022 = vpop.permute.xlu0 %3021
      %s3024 = sor.u32 256, 8
      %3025 = vbcast.lane.b32.xlu0 %v3019, %s3024
      %v3026 = vpop.permute.xlu0 %3025
      %s3028 = sor.u32 256, 16
      %3029 = vbcast.lane.b32.xlu0 %v3019, %s3028
      %v3030 = vpop.permute.xlu0 %3029
      %s3032 = sor.u32 256, 24
      %3033 = vbcast.lane.b32.xlu0 %v3019, %s3032
      %v3034 = vpop.permute.xlu0 %3033
      %v3035 = vlaneseq
      %v3036 = vshrl.u32 %v3035, 7
      %v3037 = vsub.s32 2, %v3036
      %v3038 = vrot.slane %v406, %v3037
      %3040 = vbcast.lane.b32.xlu0 %v3038, 256
      %v3041 = vpop.permute.xlu0 %3040
      %s3043 = sor.u32 256, 8
      %3044 = vbcast.lane.b32.xlu0 %v3038, %s3043
      %v3045 = vpop.permute.xlu0 %3044
      %s3047 = sor.u32 256, 16
      %3048 = vbcast.lane.b32.xlu0 %v3038, %s3047
      %v3049 = vpop.permute.xlu0 %3048
      %s3051 = sor.u32 256, 24
      %3052 = vbcast.lane.b32.xlu0 %v3038, %s3051
      %v3053 = vpop.permute.xlu0 %3052
      %v3054 = vlaneseq
      %v3055 = vshrl.u32 %v3054, 7
      %v3056 = vsub.s32 3, %v3055
      %v3057 = vrot.slane %v406, %v3056
      %3059 = vbcast.lane.b32.xlu0 %v3057, 256
      %v3060 = vpop.permute.xlu0 %3059
      %s3062 = sor.u32 256, 8
      %3063 = vbcast.lane.b32.xlu0 %v3057, %s3062
      %v3064 = vpop.permute.xlu0 %3063
      %s3066 = sor.u32 256, 16
      %3067 = vbcast.lane.b32.xlu0 %v3057, %s3066
      %v3068 = vpop.permute.xlu0 %3067
      %s3070 = sor.u32 256, 24
      %3071 = vbcast.lane.b32.xlu0 %v3057, %s3070
      %v3072 = vpop.permute.xlu0 %3071
      %v3073 = vlaneseq
      %v3074 = vshrl.u32 %v3073, 7
      %v3075 = vsub.s32 4, %v3074
      %v3076 = vrot.slane %v406, %v3075
      %3078 = vbcast.lane.b32.xlu0 %v3076, 256
      %v3079 = vpop.permute.xlu0 %3078
      %s3081 = sor.u32 256, 8
      %3082 = vbcast.lane.b32.xlu0 %v3076, %s3081
      %v3083 = vpop.permute.xlu0 %3082
      %s3085 = sor.u32 256, 16
      %3086 = vbcast.lane.b32.xlu0 %v3076, %s3085
      %v3087 = vpop.permute.xlu0 %3086
      %s3089 = sor.u32 256, 24
      %3090 = vbcast.lane.b32.xlu0 %v3076, %s3089
      %v3091 = vpop.permute.xlu0 %3090
      %v3092 = vlaneseq
      %v3093 = vshrl.u32 %v3092, 7
      %v3094 = vsub.s32 5, %v3093
      %v3095 = vrot.slane %v406, %v3094
      %3097 = vbcast.lane.b32.xlu0 %v3095, 256
      %v3098 = vpop.permute.xlu0 %3097
      %s3100 = sor.u32 256, 8
      %3101 = vbcast.lane.b32.xlu0 %v3095, %s3100
      %v3102 = vpop.permute.xlu0 %3101
      %s3104 = sor.u32 256, 16
      %3105 = vbcast.lane.b32.xlu0 %v3095, %s3104
      %v3106 = vpop.permute.xlu0 %3105
      %s3108 = sor.u32 256, 24
      %3109 = vbcast.lane.b32.xlu0 %v3095, %s3108
      %v3110 = vpop.permute.xlu0 %3109
      %v3111 = vlaneseq
      %v3112 = vshrl.u32 %v3111, 7
      %v3113 = vsub.s32 6, %v3112
      %v3114 = vrot.slane %v406, %v3113
      %3116 = vbcast.lane.b32.xlu0 %v3114, 256
      %v3117 = vpop.permute.xlu0 %3116
      %s3119 = sor.u32 256, 8
      %3120 = vbcast.lane.b32.xlu0 %v3114, %s3119
      %v3121 = vpop.permute.xlu0 %3120
      %s3123 = sor.u32 256, 16
      %3124 = vbcast.lane.b32.xlu0 %v3114, %s3123
      %v3125 = vpop.permute.xlu0 %3124
      %s3127 = sor.u32 256, 24
      %3128 = vbcast.lane.b32.xlu0 %v3114, %s3127
      %v3129 = vpop.permute.xlu0 %3128
      %v3130 = vlaneseq
      %v3131 = vshrl.u32 %v3130, 7
      %v3132 = vsub.s32 7, %v3131
      %v3133 = vrot.slane %v406, %v3132
      %3135 = vbcast.lane.b32.xlu0 %v3133, 256
      %v3136 = vpop.permute.xlu0 %3135
      %s3138 = sor.u32 256, 8
      %3139 = vbcast.lane.b32.xlu0 %v3133, %s3138
      %v3140 = vpop.permute.xlu0 %3139
      %s3142 = sor.u32 256, 16
      %3143 = vbcast.lane.b32.xlu0 %v3133, %s3142
      %v3144 = vpop.permute.xlu0 %3143
      %s3146 = sor.u32 256, 24
      %3147 = vbcast.lane.b32.xlu0 %v3133, %s3146
      %v3148 = vpop.permute.xlu0 %3147
      %v3149 = vlaneseq
      %v3150 = vshrl.u32 %v3149, 7
      %v3151 = vsub.s32 0, %v3150
      %v3152 = vrot.slane %v407, %v3151
      %3154 = vbcast.lane.b32.xlu0 %v3152, 256
      %v3155 = vpop.permute.xlu0 %3154
      %s3157 = sor.u32 256, 8
      %3158 = vbcast.lane.b32.xlu0 %v3152, %s3157
      %v3159 = vpop.permute.xlu0 %3158
      %s3161 = sor.u32 256, 16
      %3162 = vbcast.lane.b32.xlu0 %v3152, %s3161
      %v3163 = vpop.permute.xlu0 %3162
      %s3165 = sor.u32 256, 24
      %3166 = vbcast.lane.b32.xlu0 %v3152, %s3165
      %v3167 = vpop.permute.xlu0 %3166
      %v3168 = vlaneseq
      %v3169 = vshrl.u32 %v3168, 7
      %v3170 = vsub.s32 1, %v3169
      %v3171 = vrot.slane %v407, %v3170
      %3173 = vbcast.lane.b32.xlu0 %v3171, 256
      %v3174 = vpop.permute.xlu0 %3173
      %s3176 = sor.u32 256, 8
      %3177 = vbcast.lane.b32.xlu0 %v3171, %s3176
      %v3178 = vpop.permute.xlu0 %3177
      %s3180 = sor.u32 256, 16
      %3181 = vbcast.lane.b32.xlu0 %v3171, %s3180
      %v3182 = vpop.permute.xlu0 %3181
      %s3184 = sor.u32 256, 24
      %3185 = vbcast.lane.b32.xlu0 %v3171, %s3184
      %v3186 = vpop.permute.xlu0 %3185
      %v3187 = vlaneseq
      %v3188 = vshrl.u32 %v3187, 7
      %v3189 = vsub.s32 2, %v3188
      %v3190 = vrot.slane %v407, %v3189
      %3192 = vbcast.lane.b32.xlu0 %v3190, 256
      %v3193 = vpop.permute.xlu0 %3192
      %s3195 = sor.u32 256, 8
      %3196 = vbcast.lane.b32.xlu0 %v3190, %s3195
      %v3197 = vpop.permute.xlu0 %3196
      %s3199 = sor.u32 256, 16
      %3200 = vbcast.lane.b32.xlu0 %v3190, %s3199
      %v3201 = vpop.permute.xlu0 %3200
      %s3203 = sor.u32 256, 24
      %3204 = vbcast.lane.b32.xlu0 %v3190, %s3203
      %v3205 = vpop.permute.xlu0 %3204
      %v3206 = vlaneseq
      %v3207 = vshrl.u32 %v3206, 7
      %v3208 = vsub.s32 3, %v3207
      %v3209 = vrot.slane %v407, %v3208
      %3211 = vbcast.lane.b32.xlu0 %v3209, 256
      %v3212 = vpop.permute.xlu0 %3211
      %s3214 = sor.u32 256, 8
      %3215 = vbcast.lane.b32.xlu0 %v3209, %s3214
      %v3216 = vpop.permute.xlu0 %3215
      %s3218 = sor.u32 256, 16
      %3219 = vbcast.lane.b32.xlu0 %v3209, %s3218
      %v3220 = vpop.permute.xlu0 %3219
      %s3222 = sor.u32 256, 24
      %3223 = vbcast.lane.b32.xlu0 %v3209, %s3222
      %v3224 = vpop.permute.xlu0 %3223
      %v3225 = vlaneseq
      %v3226 = vshrl.u32 %v3225, 7
      %v3227 = vsub.s32 4, %v3226
      %v3228 = vrot.slane %v407, %v3227
      %3230 = vbcast.lane.b32.xlu0 %v3228, 256
      %v3231 = vpop.permute.xlu0 %3230
      %s3233 = sor.u32 256, 8
      %3234 = vbcast.lane.b32.xlu0 %v3228, %s3233
      %v3235 = vpop.permute.xlu0 %3234
      %s3237 = sor.u32 256, 16
      %3238 = vbcast.lane.b32.xlu0 %v3228, %s3237
      %v3239 = vpop.permute.xlu0 %3238
      %s3241 = sor.u32 256, 24
      %3242 = vbcast.lane.b32.xlu0 %v3228, %s3241
      %v3243 = vpop.permute.xlu0 %3242
      %v3244 = vlaneseq
      %v3245 = vshrl.u32 %v3244, 7
      %v3246 = vsub.s32 5, %v3245
      %v3247 = vrot.slane %v407, %v3246
      %3249 = vbcast.lane.b32.xlu0 %v3247, 256
      %v3250 = vpop.permute.xlu0 %3249
      %s3252 = sor.u32 256, 8
      %3253 = vbcast.lane.b32.xlu0 %v3247, %s3252
      %v3254 = vpop.permute.xlu0 %3253
      %s3256 = sor.u32 256, 16
      %3257 = vbcast.lane.b32.xlu0 %v3247, %s3256
      %v3258 = vpop.permute.xlu0 %3257
      %s3260 = sor.u32 256, 24
      %3261 = vbcast.lane.b32.xlu0 %v3247, %s3260
      %v3262 = vpop.permute.xlu0 %3261
      %v3263 = vlaneseq
      %v3264 = vshrl.u32 %v3263, 7
      %v3265 = vsub.s32 6, %v3264
      %v3266 = vrot.slane %v407, %v3265
      %3268 = vbcast.lane.b32.xlu0 %v3266, 256
      %v3269 = vpop.permute.xlu0 %3268
      %s3271 = sor.u32 256, 8
      %3272 = vbcast.lane.b32.xlu0 %v3266, %s3271
      %v3273 = vpop.permute.xlu0 %3272
      %s3275 = sor.u32 256, 16
      %3276 = vbcast.lane.b32.xlu0 %v3266, %s3275
      %v3277 = vpop.permute.xlu0 %3276
      %s3279 = sor.u32 256, 24
      %3280 = vbcast.lane.b32.xlu0 %v3266, %s3279
      %v3281 = vpop.permute.xlu0 %3280
      %v3282 = vlaneseq
      %v3283 = vshrl.u32 %v3282, 7
      %v3284 = vsub.s32 7, %v3283
      %v3285 = vrot.slane %v407, %v3284
      %3287 = vbcast.lane.b32.xlu0 %v3285, 256
      %v3288 = vpop.permute.xlu0 %3287
      %s3290 = sor.u32 256, 8
      %3291 = vbcast.lane.b32.xlu0 %v3285, %s3290
      %v3292 = vpop.permute.xlu0 %3291
      %s3294 = sor.u32 256, 16
      %3295 = vbcast.lane.b32.xlu0 %v3285, %s3294
      %v3296 = vpop.permute.xlu0 %3295
      %s3298 = sor.u32 256, 24
      %3299 = vbcast.lane.b32.xlu0 %v3285, %s3298
      %v3300 = vpop.permute.xlu0 %3299
      %v3301 = vlaneseq
      %v3302 = vshrl.u32 %v3301, 7
      %v3303 = vsub.s32 0, %v3302
      %v3304 = vrot.slane %v408, %v3303
      %3306 = vbcast.lane.b32.xlu0 %v3304, 256
      %v3307 = vpop.permute.xlu0 %3306
      %s3309 = sor.u32 256, 8
      %3310 = vbcast.lane.b32.xlu0 %v3304, %s3309
      %v3311 = vpop.permute.xlu0 %3310
      %s3313 = sor.u32 256, 16
      %3314 = vbcast.lane.b32.xlu0 %v3304, %s3313
      %v3315 = vpop.permute.xlu0 %3314
      %s3317 = sor.u32 256, 24
      %3318 = vbcast.lane.b32.xlu0 %v3304, %s3317
      %v3319 = vpop.permute.xlu0 %3318
      %v3320 = vlaneseq
      %v3321 = vshrl.u32 %v3320, 7
      %v3322 = vsub.s32 1, %v3321
      %v3323 = vrot.slane %v408, %v3322
      %3325 = vbcast.lane.b32.xlu0 %v3323, 256
      %v3326 = vpop.permute.xlu0 %3325
      %s3328 = sor.u32 256, 8
      %3329 = vbcast.lane.b32.xlu0 %v3323, %s3328
      %v3330 = vpop.permute.xlu0 %3329
      %s3332 = sor.u32 256, 16
      %3333 = vbcast.lane.b32.xlu0 %v3323, %s3332
      %v3334 = vpop.permute.xlu0 %3333
      %s3336 = sor.u32 256, 24
      %3337 = vbcast.lane.b32.xlu0 %v3323, %s3336
      %v3338 = vpop.permute.xlu0 %3337
      %v3339 = vlaneseq
      %v3340 = vshrl.u32 %v3339, 7
      %v3341 = vsub.s32 2, %v3340
      %v3342 = vrot.slane %v408, %v3341
      %3344 = vbcast.lane.b32.xlu0 %v3342, 256
      %v3345 = vpop.permute.xlu0 %3344
      %s3347 = sor.u32 256, 8
      %3348 = vbcast.lane.b32.xlu0 %v3342, %s3347
      %v3349 = vpop.permute.xlu0 %3348
      %s3351 = sor.u32 256, 16
      %3352 = vbcast.lane.b32.xlu0 %v3342, %s3351
      %v3353 = vpop.permute.xlu0 %3352
      %s3355 = sor.u32 256, 24
      %3356 = vbcast.lane.b32.xlu0 %v3342, %s3355
      %v3357 = vpop.permute.xlu0 %3356
      %v3358 = vlaneseq
      %v3359 = vshrl.u32 %v3358, 7
      %v3360 = vsub.s32 3, %v3359
      %v3361 = vrot.slane %v408, %v3360
      %3363 = vbcast.lane.b32.xlu0 %v3361, 256
      %v3364 = vpop.permute.xlu0 %3363
      %s3366 = sor.u32 256, 8
      %3367 = vbcast.lane.b32.xlu0 %v3361, %s3366
      %v3368 = vpop.permute.xlu0 %3367
      %s3370 = sor.u32 256, 16
      %3371 = vbcast.lane.b32.xlu0 %v3361, %s3370
      %v3372 = vpop.permute.xlu0 %3371
      %s3374 = sor.u32 256, 24
      %3375 = vbcast.lane.b32.xlu0 %v3361, %s3374
      %v3376 = vpop.permute.xlu0 %3375
      %v3377 = vlaneseq
      %v3378 = vshrl.u32 %v3377, 7
      %v3379 = vsub.s32 4, %v3378
      %v3380 = vrot.slane %v408, %v3379
      %3382 = vbcast.lane.b32.xlu0 %v3380, 256
      %v3383 = vpop.permute.xlu0 %3382
      %s3385 = sor.u32 256, 8
      %3386 = vbcast.lane.b32.xlu0 %v3380, %s3385
      %v3387 = vpop.permute.xlu0 %3386
      %s3389 = sor.u32 256, 16
      %3390 = vbcast.lane.b32.xlu0 %v3380, %s3389
      %v3391 = vpop.permute.xlu0 %3390
      %s3393 = sor.u32 256, 24
      %3394 = vbcast.lane.b32.xlu0 %v3380, %s3393
      %v3395 = vpop.permute.xlu0 %3394
      %v3396 = vlaneseq
      %v3397 = vshrl.u32 %v3396, 7
      %v3398 = vsub.s32 5, %v3397
      %v3399 = vrot.slane %v408, %v3398
      %3401 = vbcast.lane.b32.xlu0 %v3399, 256
      %v3402 = vpop.permute.xlu0 %3401
      %s3404 = sor.u32 256, 8
      %3405 = vbcast.lane.b32.xlu0 %v3399, %s3404
      %v3406 = vpop.permute.xlu0 %3405
      %s3408 = sor.u32 256, 16
      %3409 = vbcast.lane.b32.xlu0 %v3399, %s3408
      %v3410 = vpop.permute.xlu0 %3409
      %s3412 = sor.u32 256, 24
      %3413 = vbcast.lane.b32.xlu0 %v3399, %s3412
      %v3414 = vpop.permute.xlu0 %3413
      %v3415 = vlaneseq
      %v3416 = vshrl.u32 %v3415, 7
      %v3417 = vsub.s32 6, %v3416
      %v3418 = vrot.slane %v408, %v3417
      %3420 = vbcast.lane.b32.xlu0 %v3418, 256
      %v3421 = vpop.permute.xlu0 %3420
      %s3423 = sor.u32 256, 8
      %3424 = vbcast.lane.b32.xlu0 %v3418, %s3423
      %v3425 = vpop.permute.xlu0 %3424
      %s3427 = sor.u32 256, 16
      %3428 = vbcast.lane.b32.xlu0 %v3418, %s3427
      %v3429 = vpop.permute.xlu0 %3428
      %s3431 = sor.u32 256, 24
      %3432 = vbcast.lane.b32.xlu0 %v3418, %s3431
      %v3433 = vpop.permute.xlu0 %3432
      %v3434 = vlaneseq
      %v3435 = vshrl.u32 %v3434, 7
      %v3436 = vsub.s32 7, %v3435
      %v3437 = vrot.slane %v408, %v3436
      %3439 = vbcast.lane.b32.xlu0 %v3437, 256
      %v3440 = vpop.permute.xlu0 %3439
      %s3442 = sor.u32 256, 8
      %3443 = vbcast.lane.b32.xlu0 %v3437, %s3442
      %v3444 = vpop.permute.xlu0 %3443
      %s3446 = sor.u32 256, 16
      %3447 = vbcast.lane.b32.xlu0 %v3437, %s3446
      %v3448 = vpop.permute.xlu0 %3447
      %s3450 = sor.u32 256, 24
      %3451 = vbcast.lane.b32.xlu0 %v3437, %s3450
      %v3452 = vpop.permute.xlu0 %3451
      %v3453 = vlaneseq
      %v3454 = vshrl.u32 %v3453, 7
      %v3455 = vsub.s32 0, %v3454
      %v3456 = vrot.slane %v409, %v3455
      %3458 = vbcast.lane.b32.xlu0 %v3456, 256
      %v3459 = vpop.permute.xlu0 %3458
      %s3461 = sor.u32 256, 8
      %3462 = vbcast.lane.b32.xlu0 %v3456, %s3461
      %v3463 = vpop.permute.xlu0 %3462
      %s3465 = sor.u32 256, 16
      %3466 = vbcast.lane.b32.xlu0 %v3456, %s3465
      %v3467 = vpop.permute.xlu0 %3466
      %s3469 = sor.u32 256, 24
      %3470 = vbcast.lane.b32.xlu0 %v3456, %s3469
      %v3471 = vpop.permute.xlu0 %3470
      %v3472 = vlaneseq
      %v3473 = vshrl.u32 %v3472, 7
      %v3474 = vsub.s32 1, %v3473
      %v3475 = vrot.slane %v409, %v3474
      %3477 = vbcast.lane.b32.xlu0 %v3475, 256
      %v3478 = vpop.permute.xlu0 %3477
      %s3480 = sor.u32 256, 8
      %3481 = vbcast.lane.b32.xlu0 %v3475, %s3480
      %v3482 = vpop.permute.xlu0 %3481
      %s3484 = sor.u32 256, 16
      %3485 = vbcast.lane.b32.xlu0 %v3475, %s3484
      %v3486 = vpop.permute.xlu0 %3485
      %s3488 = sor.u32 256, 24
      %3489 = vbcast.lane.b32.xlu0 %v3475, %s3488
      %v3490 = vpop.permute.xlu0 %3489
      %v3491 = vlaneseq
      %v3492 = vshrl.u32 %v3491, 7
      %v3493 = vsub.s32 2, %v3492
      %v3494 = vrot.slane %v409, %v3493
      %3496 = vbcast.lane.b32.xlu0 %v3494, 256
      %v3497 = vpop.permute.xlu0 %3496
      %s3499 = sor.u32 256, 8
      %3500 = vbcast.lane.b32.xlu0 %v3494, %s3499
      %v3501 = vpop.permute.xlu0 %3500
      %s3503 = sor.u32 256, 16
      %3504 = vbcast.lane.b32.xlu0 %v3494, %s3503
      %v3505 = vpop.permute.xlu0 %3504
      %s3507 = sor.u32 256, 24
      %3508 = vbcast.lane.b32.xlu0 %v3494, %s3507
      %v3509 = vpop.permute.xlu0 %3508
      %v3510 = vlaneseq
      %v3511 = vshrl.u32 %v3510, 7
      %v3512 = vsub.s32 3, %v3511
      %v3513 = vrot.slane %v409, %v3512
      %3515 = vbcast.lane.b32.xlu0 %v3513, 256
      %v3516 = vpop.permute.xlu0 %3515
      %s3518 = sor.u32 256, 8
      %3519 = vbcast.lane.b32.xlu0 %v3513, %s3518
      %v3520 = vpop.permute.xlu0 %3519
      %s3522 = sor.u32 256, 16
      %3523 = vbcast.lane.b32.xlu0 %v3513, %s3522
      %v3524 = vpop.permute.xlu0 %3523
      %s3526 = sor.u32 256, 24
      %3527 = vbcast.lane.b32.xlu0 %v3513, %s3526
      %v3528 = vpop.permute.xlu0 %3527
      %v3529 = vlaneseq
      %v3530 = vshrl.u32 %v3529, 7
      %v3531 = vsub.s32 4, %v3530
      %v3532 = vrot.slane %v409, %v3531
      %3534 = vbcast.lane.b32.xlu0 %v3532, 256
      %v3535 = vpop.permute.xlu0 %3534
      %s3537 = sor.u32 256, 8
      %3538 = vbcast.lane.b32.xlu0 %v3532, %s3537
      %v3539 = vpop.permute.xlu0 %3538
      %s3541 = sor.u32 256, 16
      %3542 = vbcast.lane.b32.xlu0 %v3532, %s3541
      %v3543 = vpop.permute.xlu0 %3542
      %s3545 = sor.u32 256, 24
      %3546 = vbcast.lane.b32.xlu0 %v3532, %s3545
      %v3547 = vpop.permute.xlu0 %3546
      %v3548 = vlaneseq
      %v3549 = vshrl.u32 %v3548, 7
      %v3550 = vsub.s32 5, %v3549
      %v3551 = vrot.slane %v409, %v3550
      %3553 = vbcast.lane.b32.xlu0 %v3551, 256
      %v3554 = vpop.permute.xlu0 %3553
      %s3556 = sor.u32 256, 8
      %3557 = vbcast.lane.b32.xlu0 %v3551, %s3556
      %v3558 = vpop.permute.xlu0 %3557
      %s3560 = sor.u32 256, 16
      %3561 = vbcast.lane.b32.xlu0 %v3551, %s3560
      %v3562 = vpop.permute.xlu0 %3561
      %s3564 = sor.u32 256, 24
      %3565 = vbcast.lane.b32.xlu0 %v3551, %s3564
      %v3566 = vpop.permute.xlu0 %3565
      %v3567 = vlaneseq
      %v3568 = vshrl.u32 %v3567, 7
      %v3569 = vsub.s32 6, %v3568
      %v3570 = vrot.slane %v409, %v3569
      %3572 = vbcast.lane.b32.xlu0 %v3570, 256
      %v3573 = vpop.permute.xlu0 %3572
      %s3575 = sor.u32 256, 8
      %3576 = vbcast.lane.b32.xlu0 %v3570, %s3575
      %v3577 = vpop.permute.xlu0 %3576
      %s3579 = sor.u32 256, 16
      %3580 = vbcast.lane.b32.xlu0 %v3570, %s3579
      %v3581 = vpop.permute.xlu0 %3580
      %s3583 = sor.u32 256, 24
      %3584 = vbcast.lane.b32.xlu0 %v3570, %s3583
      %v3585 = vpop.permute.xlu0 %3584
      %v3586 = vlaneseq
      %v3587 = vshrl.u32 %v3586, 7
      %v3588 = vsub.s32 7, %v3587
      %v3589 = vrot.slane %v409, %v3588
      %3591 = vbcast.lane.b32.xlu0 %v3589, 256
      %v3592 = vpop.permute.xlu0 %3591
      %s3594 = sor.u32 256, 8
      %3595 = vbcast.lane.b32.xlu0 %v3589, %s3594
      %v3596 = vpop.permute.xlu0 %3595
      %s3598 = sor.u32 256, 16
      %3599 = vbcast.lane.b32.xlu0 %v3589, %s3598
      %v3600 = vpop.permute.xlu0 %3599
      %s3602 = sor.u32 256, 24
      %3603 = vbcast.lane.b32.xlu0 %v3589, %s3602
      %v3604 = vpop.permute.xlu0 %3603
      %v3605 = vadd.f32 %v2487, %v3003
      %v3606 = vadd.f32 %v2490, %v3007
      %v3607 = vadd.f32 %v2495, %v3011
      %v3608 = vadd.f32 %v2498, %v3015
      %v3609 = vadd.f32 %v2503, %v3022
      %v3610 = vadd.f32 %v2506, %v3026
      %v3611 = vadd.f32 %v2511, %v3030
      %v3612 = vadd.f32 %v2514, %v3034
      %v3613 = vadd.f32 %v2519, %v3041
      %v3614 = vadd.f32 %v2522, %v3045
      %v3615 = vadd.f32 %v2527, %v3049
      %v3616 = vadd.f32 %v2530, %v3053
      %v3617 = vadd.f32 %v2535, %v3060
      %v3618 = vadd.f32 %v2538, %v3064
      %v3619 = vadd.f32 %v2543, %v3068
      %v3620 = vadd.f32 %v2546, %v3072
      %v3621 = vadd.f32 %v2551, %v3079
      %v3622 = vadd.f32 %v2554, %v3083
      %v3623 = vadd.f32 %v2559, %v3087
      %v3624 = vadd.f32 %v2562, %v3091
      %v3625 = vadd.f32 %v2567, %v3098
      %v3626 = vadd.f32 %v2570, %v3102
      %v3627 = vadd.f32 %v2575, %v3106
      %v3628 = vadd.f32 %v2578, %v3110
      %v3629 = vadd.f32 %v2583, %v3117
      %v3630 = vadd.f32 %v2586, %v3121
      %v3631 = vadd.f32 %v2591, %v3125
      %v3632 = vadd.f32 %v2594, %v3129
      %v3633 = vadd.f32 %v2599, %v3136
      %v3634 = vadd.f32 %v2602, %v3140
      %v3635 = vadd.f32 %v2607, %v3144
      %v3636 = vadd.f32 %v2610, %v3148
      %v3637 = vadd.f32 %v2615, %v3155
      %v3638 = vadd.f32 %v2618, %v3159
      %v3639 = vadd.f32 %v2623, %v3163
      %v3640 = vadd.f32 %v2626, %v3167
      %v3641 = vadd.f32 %v2631, %v3174
      %v3642 = vadd.f32 %v2634, %v3178
      %v3643 = vadd.f32 %v2639, %v3182
      %v3644 = vadd.f32 %v2642, %v3186
      %v3645 = vadd.f32 %v2647, %v3193
      %v3646 = vadd.f32 %v2650, %v3197
      %v3647 = vadd.f32 %v2655, %v3201
      %v3648 = vadd.f32 %v2658, %v3205
      %v3649 = vadd.f32 %v2663, %v3212
      %v3650 = vadd.f32 %v2666, %v3216
      %v3651 = vadd.f32 %v2671, %v3220
      %v3652 = vadd.f32 %v2674, %v3224
      %v3653 = vadd.f32 %v2679, %v3231
      %v3654 = vadd.f32 %v2682, %v3235
      %v3655 = vadd.f32 %v2687, %v3239
      %v3656 = vadd.f32 %v2690, %v3243
      %v3657 = vadd.f32 %v2695, %v3250
      %v3658 = vadd.f32 %v2698, %v3254
      %v3659 = vadd.f32 %v2703, %v3258
      %v3660 = vadd.f32 %v2706, %v3262
      %v3661 = vadd.f32 %v2711, %v3269
      %v3662 = vadd.f32 %v2714, %v3273
      %v3663 = vadd.f32 %v2719, %v3277
      %v3664 = vadd.f32 %v2722, %v3281
      %v3665 = vadd.f32 %v2727, %v3288
      %v3666 = vadd.f32 %v2730, %v3292
      %v3667 = vadd.f32 %v2735, %v3296
      %v3668 = vadd.f32 %v2738, %v3300
      %v3669 = vadd.f32 %v2743, %v3307
      %v3670 = vadd.f32 %v2746, %v3311
      %v3671 = vadd.f32 %v2751, %v3315
      %v3672 = vadd.f32 %v2754, %v3319
      %v3673 = vadd.f32 %v2759, %v3326
      %v3674 = vadd.f32 %v2762, %v3330
      %v3675 = vadd.f32 %v2767, %v3334
      %v3676 = vadd.f32 %v2770, %v3338
      %v3677 = vadd.f32 %v2775, %v3345
      %v3678 = vadd.f32 %v2778, %v3349
      %v3679 = vadd.f32 %v2783, %v3353
      %v3680 = vadd.f32 %v2786, %v3357
      %v3681 = vadd.f32 %v2791, %v3364
      %v3682 = vadd.f32 %v2794, %v3368
      %v3683 = vadd.f32 %v2799, %v3372
      %v3684 = vadd.f32 %v2802, %v3376
      %v3685 = vadd.f32 %v2807, %v3383
      %v3686 = vadd.f32 %v2810, %v3387
      %v3687 = vadd.f32 %v2815, %v3391
      %v3688 = vadd.f32 %v2818, %v3395
      %v3689 = vadd.f32 %v2823, %v3402
      %v3690 = vadd.f32 %v2826, %v3406
      %v3691 = vadd.f32 %v2831, %v3410
      %v3692 = vadd.f32 %v2834, %v3414
      %v3693 = vadd.f32 %v2839, %v3421
      %v3694 = vadd.f32 %v2842, %v3425
      %v3695 = vadd.f32 %v2847, %v3429
      %v3696 = vadd.f32 %v2850, %v3433
      %v3697 = vadd.f32 %v2855, %v3440
      %v3698 = vadd.f32 %v2858, %v3444
      %v3699 = vadd.f32 %v2863, %v3448
      %v3700 = vadd.f32 %v2866, %v3452
      %v3701 = vadd.f32 %v2871, %v3459
      %v3702 = vadd.f32 %v2874, %v3463
      %v3703 = vadd.f32 %v2879, %v3467
      %v3704 = vadd.f32 %v2882, %v3471
      %v3705 = vadd.f32 %v2887, %v3478
      %v3706 = vadd.f32 %v2890, %v3482
      %v3707 = vadd.f32 %v2895, %v3486
      %v3708 = vadd.f32 %v2898, %v3490
      %v3709 = vadd.f32 %v2903, %v3497
      %v3710 = vadd.f32 %v2906, %v3501
      %v3711 = vadd.f32 %v2911, %v3505
      %v3712 = vadd.f32 %v2914, %v3509
      %v3713 = vadd.f32 %v2919, %v3516
      %v3714 = vadd.f32 %v2922, %v3520
      %v3715 = vadd.f32 %v2927, %v3524
      %v3716 = vadd.f32 %v2930, %v3528
      %v3717 = vadd.f32 %v2935, %v3535
      %v3718 = vadd.f32 %v2938, %v3539
      %v3719 = vadd.f32 %v2943, %v3543
      %v3720 = vadd.f32 %v2946, %v3547
      %v3721 = vadd.f32 %v2951, %v3554
      %v3722 = vadd.f32 %v2954, %v3558
      %v3723 = vadd.f32 %v2959, %v3562
      %v3724 = vadd.f32 %v2962, %v3566
      %v3725 = vadd.f32 %v2967, %v3573
      %v3726 = vadd.f32 %v2970, %v3577
      %v3727 = vadd.f32 %v2975, %v3581
      %v3728 = vadd.f32 %v2978, %v3585
      %v3729 = vadd.f32 %v2983, %v3592
      %v3730 = vadd.f32 %v2986, %v3596
      %v3731 = vadd.f32 %v2991, %v3600
      %v3732 = vadd.f32 %v2994, %v3604
      %vm3733 = vcmask 130048
      %v3734 = vsel %vm3733, %v3605, -inf
      %v3735 = vsel %vm3733, %v3609, -inf
      %v3736 = vmax.f32 %v3734, %v3735
      %v3737 = vsel %vm3733, %v3613, -inf
      %v3738 = vmax.f32 %v3736, %v3737
      %v3739 = vsel %vm3733, %v3617, -inf
      %v3740 = vmax.f32 %v3738, %v3739
      %v3741 = vsel %vm3733, %v3621, -inf
      %v3742 = vmax.f32 %v3740, %v3741
      %v3743 = vsel %vm3733, %v3625, -inf
      %v3744 = vmax.f32 %v3742, %v3743
      %v3745 = vsel %vm3733, %v3629, -inf
      %v3746 = vmax.f32 %v3744, %v3745
      %v3747 = vsel %vm3733, %v3633, -inf
      %v3748 = vmax.f32 %v3746, %v3747
      %v3749 = vsel %vm3733, %v3637, -inf
      %v3750 = vmax.f32 %v3748, %v3749
      %v3751 = vsel %vm3733, %v3641, -inf
      %v3752 = vmax.f32 %v3750, %v3751
      %v3753 = vsel %vm3733, %v3645, -inf
      %v3754 = vmax.f32 %v3752, %v3753
      %v3755 = vsel %vm3733, %v3649, -inf
      %v3756 = vmax.f32 %v3754, %v3755
      %v3757 = vsel %vm3733, %v3653, -inf
      %v3758 = vmax.f32 %v3756, %v3757
      %v3759 = vsel %vm3733, %v3657, -inf
      %v3760 = vmax.f32 %v3758, %v3759
      %v3761 = vsel %vm3733, %v3661, -inf
      %v3762 = vmax.f32 %v3760, %v3761
      %v3763 = vsel %vm3733, %v3665, -inf
      %v3764 = vmax.f32 %v3762, %v3763
      %v3765 = vsel %vm3733, %v3669, -inf
      %v3766 = vmax.f32 %v3764, %v3765
      %v3767 = vsel %vm3733, %v3673, -inf
      %v3768 = vmax.f32 %v3766, %v3767
      %v3769 = vsel %vm3733, %v3677, -inf
      %v3770 = vmax.f32 %v3768, %v3769
      %v3771 = vsel %vm3733, %v3681, -inf
      %v3772 = vmax.f32 %v3770, %v3771
      %v3773 = vsel %vm3733, %v3685, -inf
      %v3774 = vmax.f32 %v3772, %v3773
      %v3775 = vsel %vm3733, %v3689, -inf
      %v3776 = vmax.f32 %v3774, %v3775
      %v3777 = vsel %vm3733, %v3693, -inf
      %v3778 = vmax.f32 %v3776, %v3777
      %v3779 = vsel %vm3733, %v3697, -inf
      %v3780 = vmax.f32 %v3778, %v3779
      %v3781 = vsel %vm3733, %v3701, -inf
      %v3782 = vmax.f32 %v3780, %v3781
      %v3783 = vsel %vm3733, %v3705, -inf
      %v3784 = vmax.f32 %v3782, %v3783
      %v3785 = vsel %vm3733, %v3709, -inf
      %v3786 = vmax.f32 %v3784, %v3785
      %v3787 = vsel %vm3733, %v3713, -inf
      %v3788 = vmax.f32 %v3786, %v3787
      %v3789 = vsel %vm3733, %v3717, -inf
      %v3790 = vmax.f32 %v3788, %v3789
      %v3791 = vsel %vm3733, %v3721, -inf
      %v3792 = vmax.f32 %v3790, %v3791
      %v3793 = vsel %vm3733, %v3725, -inf
      %v3794 = vmax.f32 %v3792, %v3793
      %v3795 = vsel %vm3733, %v3729, -inf
      %v3796 = vmax.f32 %v3794, %v3795
      %v3797 = vsel %vm3733, %v3606, -inf
      %v3798 = vsel %vm3733, %v3610, -inf
      %v3799 = vmax.f32 %v3797, %v3798
      %v3800 = vsel %vm3733, %v3614, -inf
      %v3801 = vmax.f32 %v3799, %v3800
      %v3802 = vsel %vm3733, %v3618, -inf
      %v3803 = vmax.f32 %v3801, %v3802
      %v3804 = vsel %vm3733, %v3622, -inf
      %v3805 = vmax.f32 %v3803, %v3804
      %v3806 = vsel %vm3733, %v3626, -inf
      %v3807 = vmax.f32 %v3805, %v3806
      %v3808 = vsel %vm3733, %v3630, -inf
      %v3809 = vmax.f32 %v3807, %v3808
      %v3810 = vsel %vm3733, %v3634, -inf
      %v3811 = vmax.f32 %v3809, %v3810
      %v3812 = vsel %vm3733, %v3638, -inf
      %v3813 = vmax.f32 %v3811, %v3812
      %v3814 = vsel %vm3733, %v3642, -inf
      %v3815 = vmax.f32 %v3813, %v3814
      %v3816 = vsel %vm3733, %v3646, -inf
      %v3817 = vmax.f32 %v3815, %v3816
      %v3818 = vsel %vm3733, %v3650, -inf
      %v3819 = vmax.f32 %v3817, %v3818
      %v3820 = vsel %vm3733, %v3654, -inf
      %v3821 = vmax.f32 %v3819, %v3820
      %v3822 = vsel %vm3733, %v3658, -inf
      %v3823 = vmax.f32 %v3821, %v3822
      %v3824 = vsel %vm3733, %v3662, -inf
      %v3825 = vmax.f32 %v3823, %v3824
      %v3826 = vsel %vm3733, %v3666, -inf
      %v3827 = vmax.f32 %v3825, %v3826
      %v3828 = vsel %vm3733, %v3670, -inf
      %v3829 = vmax.f32 %v3827, %v3828
      %v3830 = vsel %vm3733, %v3674, -inf
      %v3831 = vmax.f32 %v3829, %v3830
      %v3832 = vsel %vm3733, %v3678, -inf
      %v3833 = vmax.f32 %v3831, %v3832
      %v3834 = vsel %vm3733, %v3682, -inf
      %v3835 = vmax.f32 %v3833, %v3834
      %v3836 = vsel %vm3733, %v3686, -inf
      %v3837 = vmax.f32 %v3835, %v3836
      %v3838 = vsel %vm3733, %v3690, -inf
      %v3839 = vmax.f32 %v3837, %v3838
      %v3840 = vsel %vm3733, %v3694, -inf
      %v3841 = vmax.f32 %v3839, %v3840
      %v3842 = vsel %vm3733, %v3698, -inf
      %v3843 = vmax.f32 %v3841, %v3842
      %v3844 = vsel %vm3733, %v3702, -inf
      %v3845 = vmax.f32 %v3843, %v3844
      %v3846 = vsel %vm3733, %v3706, -inf
      %v3847 = vmax.f32 %v3845, %v3846
      %v3848 = vsel %vm3733, %v3710, -inf
      %v3849 = vmax.f32 %v3847, %v3848
      %v3850 = vsel %vm3733, %v3714, -inf
      %v3851 = vmax.f32 %v3849, %v3850
      %v3852 = vsel %vm3733, %v3718, -inf
      %v3853 = vmax.f32 %v3851, %v3852
      %v3854 = vsel %vm3733, %v3722, -inf
      %v3855 = vmax.f32 %v3853, %v3854
      %v3856 = vsel %vm3733, %v3726, -inf
      %v3857 = vmax.f32 %v3855, %v3856
      %v3858 = vsel %vm3733, %v3730, -inf
      %v3859 = vmax.f32 %v3857, %v3858
      %v3860 = vsel %vm3733, %v3607, -inf
      %v3861 = vsel %vm3733, %v3611, -inf
      %v3862 = vmax.f32 %v3860, %v3861
      %v3863 = vsel %vm3733, %v3615, -inf
      %v3864 = vmax.f32 %v3862, %v3863
      %v3865 = vsel %vm3733, %v3619, -inf
      %v3866 = vmax.f32 %v3864, %v3865
      %v3867 = vsel %vm3733, %v3623, -inf
      %v3868 = vmax.f32 %v3866, %v3867
      %v3869 = vsel %vm3733, %v3627, -inf
      %v3870 = vmax.f32 %v3868, %v3869
      %v3871 = vsel %vm3733, %v3631, -inf
      %v3872 = vmax.f32 %v3870, %v3871
      %v3873 = vsel %vm3733, %v3635, -inf
      %v3874 = vmax.f32 %v3872, %v3873
      %v3875 = vsel %vm3733, %v3639, -inf
      %v3876 = vmax.f32 %v3874, %v3875
      %v3877 = vsel %vm3733, %v3643, -inf
      %v3878 = vmax.f32 %v3876, %v3877
      %v3879 = vsel %vm3733, %v3647, -inf
      %v3880 = vmax.f32 %v3878, %v3879
      %v3881 = vsel %vm3733, %v3651, -inf
      %v3882 = vmax.f32 %v3880, %v3881
      %v3883 = vsel %vm3733, %v3655, -inf
      %v3884 = vmax.f32 %v3882, %v3883
      %v3885 = vsel %vm3733, %v3659, -inf
      %v3886 = vmax.f32 %v3884, %v3885
      %v3887 = vsel %vm3733, %v3663, -inf
      %v3888 = vmax.f32 %v3886, %v3887
      %v3889 = vsel %vm3733, %v3667, -inf
      %v3890 = vmax.f32 %v3888, %v3889
      %v3891 = vsel %vm3733, %v3671, -inf
      %v3892 = vmax.f32 %v3890, %v3891
      %v3893 = vsel %vm3733, %v3675, -inf
      %v3894 = vmax.f32 %v3892, %v3893
      %v3895 = vsel %vm3733, %v3679, -inf
      %v3896 = vmax.f32 %v3894, %v3895
      %v3897 = vsel %vm3733, %v3683, -inf
      %v3898 = vmax.f32 %v3896, %v3897
      %v3899 = vsel %vm3733, %v3687, -inf
      %v3900 = vmax.f32 %v3898, %v3899
      %v3901 = vsel %vm3733, %v3691, -inf
      %v3902 = vmax.f32 %v3900, %v3901
      %v3903 = vsel %vm3733, %v3695, -inf
      %v3904 = vmax.f32 %v3902, %v3903
      %v3905 = vsel %vm3733, %v3699, -inf
      %v3906 = vmax.f32 %v3904, %v3905
      %v3907 = vsel %vm3733, %v3703, -inf
      %v3908 = vmax.f32 %v3906, %v3907
      %v3909 = vsel %vm3733, %v3707, -inf
      %v3910 = vmax.f32 %v3908, %v3909
      %v3911 = vsel %vm3733, %v3711, -inf
      %v3912 = vmax.f32 %v3910, %v3911
      %v3913 = vsel %vm3733, %v3715, -inf
      %v3914 = vmax.f32 %v3912, %v3913
      %v3915 = vsel %vm3733, %v3719, -inf
      %v3916 = vmax.f32 %v3914, %v3915
      %v3917 = vsel %vm3733, %v3723, -inf
      %v3918 = vmax.f32 %v3916, %v3917
      %v3919 = vsel %vm3733, %v3727, -inf
      %v3920 = vmax.f32 %v3918, %v3919
      %v3921 = vsel %vm3733, %v3731, -inf
      %v3922 = vmax.f32 %v3920, %v3921
      %v3923 = vsel %vm3733, %v3608, -inf
      %v3924 = vsel %vm3733, %v3612, -inf
      %v3925 = vmax.f32 %v3923, %v3924
      %v3926 = vsel %vm3733, %v3616, -inf
      %v3927 = vmax.f32 %v3925, %v3926
      %v3928 = vsel %vm3733, %v3620, -inf
      %v3929 = vmax.f32 %v3927, %v3928
      %v3930 = vsel %vm3733, %v3624, -inf
      %v3931 = vmax.f32 %v3929, %v3930
      %v3932 = vsel %vm3733, %v3628, -inf
      %v3933 = vmax.f32 %v3931, %v3932
      %v3934 = vsel %vm3733, %v3632, -inf
      %v3935 = vmax.f32 %v3933, %v3934
      %v3936 = vsel %vm3733, %v3636, -inf
      %v3937 = vmax.f32 %v3935, %v3936
      %v3938 = vsel %vm3733, %v3640, -inf
      %v3939 = vmax.f32 %v3937, %v3938
      %v3940 = vsel %vm3733, %v3644, -inf
      %v3941 = vmax.f32 %v3939, %v3940
      %v3942 = vsel %vm3733, %v3648, -inf
      %v3943 = vmax.f32 %v3941, %v3942
      %v3944 = vsel %vm3733, %v3652, -inf
      %v3945 = vmax.f32 %v3943, %v3944
      %v3946 = vsel %vm3733, %v3656, -inf
      %v3947 = vmax.f32 %v3945, %v3946
      %v3948 = vsel %vm3733, %v3660, -inf
      %v3949 = vmax.f32 %v3947, %v3948
      %v3950 = vsel %vm3733, %v3664, -inf
      %v3951 = vmax.f32 %v3949, %v3950
      %v3952 = vsel %vm3733, %v3668, -inf
      %v3953 = vmax.f32 %v3951, %v3952
      %v3954 = vsel %vm3733, %v3672, -inf
      %v3955 = vmax.f32 %v3953, %v3954
      %v3956 = vsel %vm3733, %v3676, -inf
      %v3957 = vmax.f32 %v3955, %v3956
      %v3958 = vsel %vm3733, %v3680, -inf
      %v3959 = vmax.f32 %v3957, %v3958
      %v3960 = vsel %vm3733, %v3684, -inf
      %v3961 = vmax.f32 %v3959, %v3960
      %v3962 = vsel %vm3733, %v3688, -inf
      %v3963 = vmax.f32 %v3961, %v3962
      %v3964 = vsel %vm3733, %v3692, -inf
      %v3965 = vmax.f32 %v3963, %v3964
      %v3966 = vsel %vm3733, %v3696, -inf
      %v3967 = vmax.f32 %v3965, %v3966
      %v3968 = vsel %vm3733, %v3700, -inf
      %v3969 = vmax.f32 %v3967, %v3968
      %v3970 = vsel %vm3733, %v3704, -inf
      %v3971 = vmax.f32 %v3969, %v3970
      %v3972 = vsel %vm3733, %v3708, -inf
      %v3973 = vmax.f32 %v3971, %v3972
      %v3974 = vsel %vm3733, %v3712, -inf
      %v3975 = vmax.f32 %v3973, %v3974
      %v3976 = vsel %vm3733, %v3716, -inf
      %v3977 = vmax.f32 %v3975, %v3976
      %v3978 = vsel %vm3733, %v3720, -inf
      %v3979 = vmax.f32 %v3977, %v3978
      %v3980 = vsel %vm3733, %v3724, -inf
      %v3981 = vmax.f32 %v3979, %v3980
      %v3982 = vsel %vm3733, %v3728, -inf
      %v3983 = vmax.f32 %v3981, %v3982
      %v3984 = vsel %vm3733, %v3732, -inf
      %v3985 = vmax.f32 %v3983, %v3984
      %v3986 = vmax.f32 %v3796, 0.0
      %v3987 = vmax.f32 %v3859, 0.0
      %v3988 = vmax.f32 %v3922, 0.0
      %v3989 = vmax.f32 %v3985, 0.0
      %v3990 = vsel %vm431, 1, 0
      %v3991 = vsel %vm432, 1, 0
      %v3992 = vsel %vm433, 1, 0
      %v3993 = vsel %vm434, 1, 0
      %vm3994 = vcmp.eq.s32.totalorder %v3990, 1
      %vm3995 = vcmp.eq.s32.totalorder %v3991, 1
      %vm3996 = vcmp.eq.s32.totalorder %v3992, 1
      %vm3997 = vcmp.eq.s32.totalorder %v3993, 1
      %v3998 = vsel %vm3994, %v3986, 0.0
      %v3999 = vsel %vm3995, %v3987, 0.0
      %v4000 = vsel %vm3996, %v3988, 0.0
      %v4001 = vsel %vm3997, %v3989, 0.0
      %v4002 = vld [vmem:[%s4 + $0x68] sm:$0xff]
      %v4003 = vld [vmem:[%s4 + $0x70] sm:$0xff]
      %v4004 = vld [vmem:[%s4 + $0x78] sm:$0xff]
      %v4005 = vld [vmem:[%s4 + $0x80] sm:$0xff]
      %v4006 = vld [vmem:[%s4 + $0x88] sm:$0xff]
      %v4007 = vld [vmem:[%s4 + $0x90] sm:$0xff]
      %v4008 = vld [vmem:[%s4 + $0x98] sm:$0xff]
      %v4009 = vld [vmem:[%s4 + $0xa0] sm:$0xff]
      %v4010 = vld [vmem:[%s4 + $0xa8] sm:$0xff]
      %v4011 = vld [vmem:[%s4 + $0xb0] sm:$0xff]
      %v4012 = vld [vmem:[%s4 + $0xb8] sm:$0xff]
      %v4013 = vld [vmem:[%s4 + $0xc0] sm:$0xff]
      %v4014 = vld [vmem:[%s4 + $0xc8] sm:$0xff]
      %v4015 = vld [vmem:[%s4 + $0xd0] sm:$0xff]
      %v4016 = vld [vmem:[%s4 + $0xd8] sm:$0xff]
      %v4017 = vlaneseq
      %v4018 = vshrl.u32 %v4017, 7
      %v4019 = vsub.s32 0, %v4018
      %v4020 = vrot.slane %v4006, %v4019
      %v4022 = vsel %vm3733, %v3998, 0
      %v4025 = vsel %vm3733, %v3999, 0
      %v4028 = vsel %vm3733, %v4000, 0
      %v4031 = vsel %vm3733, %v4001, 0
      %4033 = vmatprep.subr.mxu0 0.0
      %4034 = vmatpush1.msra.mxu0 0.0
      %4035 = vmatprep.subr.mxu0 0.0
      %4036 = vmatpush1.msra.mxu0 0.0
      %4037 = vmatprep.subr.mxu0 0.0
      %4038 = vmatpush1.msra.mxu0 0.0
      %4039 = vmatprep.subr.mxu0 0.0
      %4040 = vmatpush1.msra.mxu0 0.0
      %4041 = vmatprep.subr.mxu0 0.0
      %4042 = vmatpush1.msra.mxu0 0.0
      %4043 = vmatprep.subr.mxu0 0.0
      %4044 = vmatpush1.msra.mxu0 0.0
      %4045 = vmatprep.subr.mxu0 0.0
      %4046 = vmatpush1.msra.mxu0 0.0
      %4047 = vmatprep.subr.mxu0 0.0
      %4048 = vmatpush1.msra.mxu0 0.0
      %4049 = vmatprep.subr.mxu0 0.0
      %4050 = vmatpush1.msra.mxu0 0.0
      %4051 = vmatprep.subr.mxu0 0.0
      %4052 = vmatpush1.msra.mxu0 0.0
      %4053 = vmatprep.subr.mxu0 0.0
      %4054 = vmatpush1.msra.mxu0 0.0
      %4055 = vmatprep.subr.mxu0 0.0
      %4056 = vmatpush1.msra.mxu0 0.0
      %4057 = vmatprep.subr.mxu0 0.0
      %4058 = vmatpush1.msra.mxu0 0.0
      %4059 = vmatprep.subr.mxu0 0.0
      %4060 = vmatpush1.msra.mxu0 0.0
      %4061 = vmatprep.subr.mxu0 0.0
      %4062 = vmatpush1.msra.mxu0 %v4003
      %4063 = vmatprep.subr.mxu0 0.0
      %4064 = vmatpush1.msra.mxu0 %v4002
      %4065 = vmatprep.subr.mxu0 0.0
      %4066 = vmatpush2.msra.mxu0 0.0
      %4067 = vmatprep.subr.mxu0 0.0
      %4068 = vmatpush2.msra.mxu0 0.0
      %4069 = vmatprep.subr.mxu0 0.0
      %4070 = vmatpush2.msra.mxu0 0.0
      %4071 = vmatprep.subr.mxu0 0.0
      %4072 = vmatpush2.msra.mxu0 0.0
      %4073 = vmatprep.subr.mxu0 0.0
      %4074 = vmatpush2.msra.mxu0 0.0
      %4075 = vmatprep.subr.mxu0 0.0
      %4076 = vmatpush2.msra.mxu0 0.0
      %4077 = vmatprep.subr.mxu0 0.0
      %4078 = vmatpush2.msra.mxu0 0.0
      %4079 = vmatprep.subr.mxu0 0.0
      %4080 = vmatpush2.msra.mxu0 0.0
      %4081 = vmatprep.subr.mxu0 0.0
      %4082 = vmatpush2.msra.mxu0 0.0
      %4083 = vmatprep.subr.mxu0 0.0
      %4084 = vmatpush2.msra.mxu0 0.0
      %4085 = vmatprep.subr.mxu0 0.0
      %4086 = vmatpush2.msra.mxu0 0.0
      %4087 = vmatprep.subr.mxu0 0.0
      %4088 = vmatpush2.msra.mxu0 0.0
      %4089 = vmatprep.subr.mxu0 0.0
      %4090 = vmatpush2.msra.mxu0 0.0
      %4091 = vmatprep.subr.mxu0 0.0
      %4092 = vmatpush2.msra.mxu0 0.0
      %4093 = vmatprep.subr.mxu0 0.0
      %4094 = vmatpush2.msra.mxu0 0.0
      %4095 = vmatprep.subr.mxu0 0.0
      %4096 = vmatpush2.msra.mxu0 0.0
      %4097 = vmatprep.mubr.f32.mxu0 0.0
      %4098 = vmatmul.mubr.f32.gmra.mxu0 %v4022
      %v4099 = vpop.f32.mrf.mxu0
      %v4100 = vadd.f32 %v4020, %v4099
      %v4101 = vpop.f32.mrf.mxu0
      %4102 = vmatprep.mubr.f32.mxu0 0.0
      %4103 = vmatmul.mubr.f32.gmra.mxu0 %v4025
      %v4104 = vpop.f32.mrf.mxu0
      %v4105 = vadd.f32 %v4020, %v4104
      %v4106 = vpop.f32.mrf.mxu0
      %4107 = vmatprep.mubr.f32.mxu0 0.0
      %4108 = vmatmul.mubr.f32.gmra.mxu0 %v4028
      %v4109 = vpop.f32.mrf.mxu0
      %v4110 = vadd.f32 %v4020, %v4109
      %v4111 = vpop.f32.mrf.mxu0
      %4112 = vmatprep.mubr.f32.mxu0 0.0
      %4113 = vmatmul.mubr.f32.gmra.mxu0 %v4031
      %v4114 = vpop.f32.mrf.mxu0
      %v4115 = vadd.f32 %v4020, %v4114
      %v4116 = vpop.f32.mrf.mxu0
      %4117 = vdwg.mxu0
      %4118 = vmatprep.subr.mxu0 0.0
      %4119 = vmatpush1.msra.mxu0 0.0
      %4120 = vmatprep.subr.mxu0 0.0
      %4121 = vmatpush1.msra.mxu0 0.0
      %4122 = vmatprep.subr.mxu0 0.0
      %4123 = vmatpush1.msra.mxu0 0.0
      %4124 = vmatprep.subr.mxu0 0.0
      %4125 = vmatpush1.msra.mxu0 0.0
      %4126 = vmatprep.subr.mxu0 0.0
      %4127 = vmatpush1.msra.mxu0 0.0
      %4128 = vmatprep.subr.mxu0 0.0
      %4129 = vmatpush1.msra.mxu0 0.0
      %4130 = vmatprep.subr.mxu0 0.0
      %4131 = vmatpush1.msra.mxu0 0.0
      %4132 = vmatprep.subr.mxu0 0.0
      %4133 = vmatpush1.msra.mxu0 0.0
      %4134 = vmatprep.subr.mxu0 0.0
      %4135 = vmatpush1.msra.mxu0 0.0
      %4136 = vmatprep.subr.mxu0 0.0
      %4137 = vmatpush1.msra.mxu0 0.0
      %4138 = vmatprep.subr.mxu0 0.0
      %4139 = vmatpush1.msra.mxu0 0.0
      %4140 = vmatprep.subr.mxu0 0.0
      %4141 = vmatpush1.msra.mxu0 0.0
      %4142 = vmatprep.subr.mxu0 0.0
      %4143 = vmatpush1.msra.mxu0 0.0
      %4144 = vmatprep.subr.mxu0 0.0
      %4145 = vmatpush1.msra.mxu0 0.0
      %4146 = vmatprep.subr.mxu0 0.0
      %4147 = vmatpush1.msra.mxu0 %v4005
      %4148 = vmatprep.subr.mxu0 0.0
      %4149 = vmatpush1.msra.mxu0 %v4004
      %4150 = vmatprep.subr.mxu0 0.0
      %4151 = vmatpush2.msra.mxu0 0.0
      %4152 = vmatprep.subr.mxu0 0.0
      %4153 = vmatpush2.msra.mxu0 0.0
      %4154 = vmatprep.subr.mxu0 0.0
      %4155 = vmatpush2.msra.mxu0 0.0
      %4156 = vmatprep.subr.mxu0 0.0
      %4157 = vmatpush2.msra.mxu0 0.0
      %4158 = vmatprep.subr.mxu0 0.0
      %4159 = vmatpush2.msra.mxu0 0.0
      %4160 = vmatprep.subr.mxu0 0.0
      %4161 = vmatpush2.msra.mxu0 0.0
      %4162 = vmatprep.subr.mxu0 0.0
      %4163 = vmatpush2.msra.mxu0 0.0
      %4164 = vmatprep.subr.mxu0 0.0
      %4165 = vmatpush2.msra.mxu0 0.0
      %4166 = vmatprep.subr.mxu0 0.0
      %4167 = vmatpush2.msra.mxu0 0.0
      %4168 = vmatprep.subr.mxu0 0.0
      %4169 = vmatpush2.msra.mxu0 0.0
      %4170 = vmatprep.subr.mxu0 0.0
      %4171 = vmatpush2.msra.mxu0 0.0
      %4172 = vmatprep.subr.mxu0 0.0
      %4173 = vmatpush2.msra.mxu0 0.0
      %4174 = vmatprep.subr.mxu0 0.0
      %4175 = vmatpush2.msra.mxu0 0.0
      %4176 = vmatprep.subr.mxu0 0.0
      %4177 = vmatpush2.msra.mxu0 0.0
      %4178 = vmatprep.subr.mxu0 0.0
      %4179 = vmatpush2.msra.mxu0 0.0
      %4180 = vmatprep.subr.mxu0 0.0
      %4181 = vmatpush2.msra.mxu0 0.0
      %4182 = vmatprep.mubr.f32.mxu0 0.0
      %4183 = vmatmul.mubr.f32.gmra.mxu0 %v4022
      %v4184 = vpop.f32.mrf.mxu0
      %v4185 = vadd.f32 0.0, %v4184
      %v4186 = vpop.f32.mrf.mxu0
      %4187 = vmatprep.mubr.f32.mxu0 0.0
      %4188 = vmatmul.mubr.f32.gmra.mxu0 %v4025
      %v4189 = vpop.f32.mrf.mxu0
      %v4190 = vadd.f32 0.0, %v4189
      %v4191 = vpop.f32.mrf.mxu0
      %4192 = vmatprep.mubr.f32.mxu0 0.0
      %4193 = vmatmul.mubr.f32.gmra.mxu0 %v4028
      %v4194 = vpop.f32.mrf.mxu0
      %v4195 = vadd.f32 0.0, %v4194
      %v4196 = vpop.f32.mrf.mxu0
      %4197 = vmatprep.mubr.f32.mxu0 0.0
      %4198 = vmatmul.mubr.f32.gmra.mxu0 %v4031
      %v4199 = vpop.f32.mrf.mxu0
      %v4200 = vadd.f32 0.0, %v4199
      %v4201 = vpop.f32.mrf.mxu0
      %4202 = vdwg.mxu0
      %v4207 = vcombine.high %v4185, %v4185
      %v4209 = vunpack.c.l.s4 1966171168
      %v4210 = vunpack.c.0.s8 %v4209
      %v4211 = vlaneseq
      %v4212 = vshrl.u32 %v4211, 7
      %v4213 = vsub.s32 %v4210, %v4212
      %v4214 = vrot.slane %v4185, %v4213
      %v4216 = vunpack.c.l.s4 1966171168
      %v4217 = vunpack.c.0.s8 %v4216
      %v4218 = vlaneseq
      %v4219 = vshrl.u32 %v4218, 7
      %v4220 = vsub.s32 %v4217, %v4219
      %v4221 = vrot.slane %v4207, %v4220
      %v4222 = vcombine.high %v4214, %v4214
      %v4223 = vcombine.high %v4221, %v4221
      %v4225 = vunpack.c.l.s4 1966171168
      %v4226 = vunpack.c.0.s8 %v4225
      %v4227 = vlaneseq
      %v4228 = vshrl.u32 %v4227, 7
      %v4229 = vsub.s32 %v4226, %v4228
      %v4230 = vrot.slane %v4214, %v4229
      %v4232 = vunpack.c.l.s4 1966171168
      %v4233 = vunpack.c.0.s8 %v4232
      %v4234 = vlaneseq
      %v4235 = vshrl.u32 %v4234, 7
      %v4236 = vsub.s32 %v4233, %v4235
      %v4237 = vrot.slane %v4221, %v4236
      %v4239 = vunpack.c.l.s4 1966171168
      %v4240 = vunpack.c.0.s8 %v4239
      %v4241 = vlaneseq
      %v4242 = vshrl.u32 %v4241, 7
      %v4243 = vsub.s32 %v4240, %v4242
      %v4244 = vrot.slane %v4222, %v4243
      %v4246 = vunpack.c.l.s4 1966171168
      %v4247 = vunpack.c.0.s8 %v4246
      %v4248 = vlaneseq
      %v4249 = vshrl.u32 %v4248, 7
      %v4250 = vsub.s32 %v4247, %v4249
      %v4251 = vrot.slane %v4223, %v4250
      %v4252 = vcombine.high %v4230, %v4230
      %v4253 = vcombine.high %v4237, %v4237
      %v4254 = vcombine.high %v4244, %v4244
      %v4255 = vcombine.high %v4251, %v4251
      %v4256 = vcombine.high %v4190, %v4190
      %v4258 = vunpack.c.l.s4 1966171168
      %v4259 = vunpack.c.0.s8 %v4258
      %v4260 = vlaneseq
      %v4261 = vshrl.u32 %v4260, 7
      %v4262 = vsub.s32 %v4259, %v4261
      %v4263 = vrot.slane %v4190, %v4262
      %v4265 = vunpack.c.l.s4 1966171168
      %v4266 = vunpack.c.0.s8 %v4265
      %v4267 = vlaneseq
      %v4268 = vshrl.u32 %v4267, 7
      %v4269 = vsub.s32 %v4266, %v4268
      %v4270 = vrot.slane %v4256, %v4269
      %v4271 = vcombine.high %v4263, %v4263
      %v4272 = vcombine.high %v4270, %v4270
      %v4274 = vunpack.c.l.s4 1966171168
      %v4275 = vunpack.c.0.s8 %v4274
      %v4276 = vlaneseq
      %v4277 = vshrl.u32 %v4276, 7
      %v4278 = vsub.s32 %v4275, %v4277
      %v4279 = vrot.slane %v4263, %v4278
      %v4281 = vunpack.c.l.s4 1966171168
      %v4282 = vunpack.c.0.s8 %v4281
      %v4283 = vlaneseq
      %v4284 = vshrl.u32 %v4283, 7
      %v4285 = vsub.s32 %v4282, %v4284
      %v4286 = vrot.slane %v4270, %v4285
      %v4288 = vunpack.c.l.s4 1966171168
      %v4289 = vunpack.c.0.s8 %v4288
      %v4290 = vlaneseq
      %v4291 = vshrl.u32 %v4290, 7
      %v4292 = vsub.s32 %v4289, %v4291
      %v4293 = vrot.slane %v4271, %v4292
      %v4295 = vunpack.c.l.s4 1966171168
      %v4296 = vunpack.c.0.s8 %v4295
      %v4297 = vlaneseq
      %v4298 = vshrl.u32 %v4297, 7
      %v4299 = vsub.s32 %v4296, %v4298
      %v4300 = vrot.slane %v4272, %v4299
      %v4301 = vcombine.high %v4279, %v4279
      %v4302 = vcombine.high %v4286, %v4286
      %v4303 = vcombine.high %v4293, %v4293
      %v4304 = vcombine.high %v4300, %v4300
      %v4305 = vcombine.high %v4195, %v4195
      %v4307 = vunpack.c.l.s4 1966171168
      %v4308 = vunpack.c.0.s8 %v4307
      %v4309 = vlaneseq
      %v4310 = vshrl.u32 %v4309, 7
      %v4311 = vsub.s32 %v4308, %v4310
      %v4312 = vrot.slane %v4195, %v4311
      %v4314 = vunpack.c.l.s4 1966171168
      %v4315 = vunpack.c.0.s8 %v4314
      %v4316 = vlaneseq
      %v4317 = vshrl.u32 %v4316, 7
      %v4318 = vsub.s32 %v4315, %v4317
      %v4319 = vrot.slane %v4305, %v4318
      %v4320 = vcombine.high %v4312, %v4312
      %v4321 = vcombine.high %v4319, %v4319
      %v4323 = vunpack.c.l.s4 1966171168
      %v4324 = vunpack.c.0.s8 %v4323
      %v4325 = vlaneseq
      %v4326 = vshrl.u32 %v4325, 7
      %v4327 = vsub.s32 %v4324, %v4326
      %v4328 = vrot.slane %v4312, %v4327
      %v4330 = vunpack.c.l.s4 1966171168
      %v4331 = vunpack.c.0.s8 %v4330
      %v4332 = vlaneseq
      %v4333 = vshrl.u32 %v4332, 7
      %v4334 = vsub.s32 %v4331, %v4333
      %v4335 = vrot.slane %v4319, %v4334
      %v4337 = vunpack.c.l.s4 1966171168
      %v4338 = vunpack.c.0.s8 %v4337
      %v4339 = vlaneseq
      %v4340 = vshrl.u32 %v4339, 7
      %v4341 = vsub.s32 %v4338, %v4340
      %v4342 = vrot.slane %v4320, %v4341
      %v4344 = vunpack.c.l.s4 1966171168
      %v4345 = vunpack.c.0.s8 %v4344
      %v4346 = vlaneseq
      %v4347 = vshrl.u32 %v4346, 7
      %v4348 = vsub.s32 %v4345, %v4347
      %v4349 = vrot.slane %v4321, %v4348
      %v4350 = vcombine.high %v4328, %v4328
      %v4351 = vcombine.high %v4335, %v4335
      %v4352 = vcombine.high %v4342, %v4342
      %v4353 = vcombine.high %v4349, %v4349
      %v4354 = vcombine.high %v4200, %v4200
      %v4356 = vunpack.c.l.s4 1966171168
      %v4357 = vunpack.c.0.s8 %v4356
      %v4358 = vlaneseq
      %v4359 = vshrl.u32 %v4358, 7
      %v4360 = vsub.s32 %v4357, %v4359
      %v4361 = vrot.slane %v4200, %v4360
      %v4363 = vunpack.c.l.s4 1966171168
      %v4364 = vunpack.c.0.s8 %v4363
      %v4365 = vlaneseq
      %v4366 = vshrl.u32 %v4365, 7
      %v4367 = vsub.s32 %v4364, %v4366
      %v4368 = vrot.slane %v4354, %v4367
      %v4369 = vcombine.high %v4361, %v4361
      %v4370 = vcombine.high %v4368, %v4368
      %v4372 = vunpack.c.l.s4 1966171168
      %v4373 = vunpack.c.0.s8 %v4372
      %v4374 = vlaneseq
      %v4375 = vshrl.u32 %v4374, 7
      %v4376 = vsub.s32 %v4373, %v4375
      %v4377 = vrot.slane %v4361, %v4376
      %v4379 = vunpack.c.l.s4 1966171168
      %v4380 = vunpack.c.0.s8 %v4379
      %v4381 = vlaneseq
      %v4382 = vshrl.u32 %v4381, 7
      %v4383 = vsub.s32 %v4380, %v4382
      %v4384 = vrot.slane %v4368, %v4383
      %v4386 = vunpack.c.l.s4 1966171168
      %v4387 = vunpack.c.0.s8 %v4386
      %v4388 = vlaneseq
      %v4389 = vshrl.u32 %v4388, 7
      %v4390 = vsub.s32 %v4387, %v4389
      %v4391 = vrot.slane %v4369, %v4390
      %v4393 = vunpack.c.l.s4 1966171168
      %v4394 = vunpack.c.0.s8 %v4393
      %v4395 = vlaneseq
      %v4396 = vshrl.u32 %v4395, 7
      %v4397 = vsub.s32 %v4394, %v4396
      %v4398 = vrot.slane %v4370, %v4397
      %v4399 = vcombine.high %v4377, %v4377
      %v4400 = vcombine.high %v4384, %v4384
      %v4401 = vcombine.high %v4391, %v4391
      %v4402 = vcombine.high %v4398, %v4398
      %v4403 = vlaneseq
      %v4404 = vshrl.u32 %v4403, 7
      %v4405 = vsub.s32 0, %v4404
      %v4406 = vrot.slane %v4230, %v4405
      %v4407 = vlaneseq
      %v4408 = vshrl.u32 %v4407, 7
      %v4409 = vsub.s32 0, %v4408
      %v4410 = vrot.slane %v4244, %v4409
      %v4411 = vlaneseq
      %v4412 = vshrl.u32 %v4411, 7
      %v4413 = vsub.s32 0, %v4412
      %v4414 = vrot.slane %v4252, %v4413
      %v4415 = vlaneseq
      %v4416 = vshrl.u32 %v4415, 7
      %v4417 = vsub.s32 0, %v4416
      %v4418 = vrot.slane %v4254, %v4417
      %v4419 = vlaneseq
      %v4420 = vshrl.u32 %v4419, 7
      %v4421 = vsub.s32 0, %v4420
      %v4422 = vrot.slane %v4237, %v4421
      %v4423 = vlaneseq
      %v4424 = vshrl.u32 %v4423, 7
      %v4425 = vsub.s32 0, %v4424
      %v4426 = vrot.slane %v4251, %v4425
      %v4427 = vlaneseq
      %v4428 = vshrl.u32 %v4427, 7
      %v4429 = vsub.s32 0, %v4428
      %v4430 = vrot.slane %v4253, %v4429
      %v4431 = vlaneseq
      %v4432 = vshrl.u32 %v4431, 7
      %v4433 = vsub.s32 0, %v4432
      %v4434 = vrot.slane %v4255, %v4433
      %v4435 = vlaneseq
      %v4436 = vshrl.u32 %v4435, 7
      %v4437 = vsub.s32 0, %v4436
      %v4438 = vrot.slane %v4279, %v4437
      %v4439 = vlaneseq
      %v4440 = vshrl.u32 %v4439, 7
      %v4441 = vsub.s32 0, %v4440
      %v4442 = vrot.slane %v4293, %v4441
      %v4443 = vlaneseq
      %v4444 = vshrl.u32 %v4443, 7
      %v4445 = vsub.s32 0, %v4444
      %v4446 = vrot.slane %v4301, %v4445
      %v4447 = vlaneseq
      %v4448 = vshrl.u32 %v4447, 7
      %v4449 = vsub.s32 0, %v4448
      %v4450 = vrot.slane %v4303, %v4449
      %v4451 = vlaneseq
      %v4452 = vshrl.u32 %v4451, 7
      %v4453 = vsub.s32 0, %v4452
      %v4454 = vrot.slane %v4286, %v4453
      %v4455 = vlaneseq
      %v4456 = vshrl.u32 %v4455, 7
      %v4457 = vsub.s32 0, %v4456
      %v4458 = vrot.slane %v4300, %v4457
      %v4459 = vlaneseq
      %v4460 = vshrl.u32 %v4459, 7
      %v4461 = vsub.s32 0, %v4460
      %v4462 = vrot.slane %v4302, %v4461
      %v4463 = vlaneseq
      %v4464 = vshrl.u32 %v4463, 7
      %v4465 = vsub.s32 0, %v4464
      %v4466 = vrot.slane %v4304, %v4465
      %v4467 = vlaneseq
      %v4468 = vshrl.u32 %v4467, 7
      %v4469 = vsub.s32 0, %v4468
      %v4470 = vrot.slane %v4328, %v4469
      %v4471 = vlaneseq
      %v4472 = vshrl.u32 %v4471, 7
      %v4473 = vsub.s32 0, %v4472
      %v4474 = vrot.slane %v4342, %v4473
      %v4475 = vlaneseq
      %v4476 = vshrl.u32 %v4475, 7
      %v4477 = vsub.s32 0, %v4476
      %v4478 = vrot.slane %v4350, %v4477
      %v4479 = vlaneseq
      %v4480 = vshrl.u32 %v4479, 7
      %v4481 = vsub.s32 0, %v4480
      %v4482 = vrot.slane %v4352, %v4481
      %v4483 = vlaneseq
      %v4484 = vshrl.u32 %v4483, 7
      %v4485 = vsub.s32 0, %v4484
      %v4486 = vrot.slane %v4335, %v4485
      %v4487 = vlaneseq
      %v4488 = vshrl.u32 %v4487, 7
      %v4489 = vsub.s32 0, %v4488
      %v4490 = vrot.slane %v4349, %v4489
      %v4491 = vlaneseq
      %v4492 = vshrl.u32 %v4491, 7
      %v4493 = vsub.s32 0, %v4492
      %v4494 = vrot.slane %v4351, %v4493
      %v4495 = vlaneseq
      %v4496 = vshrl.u32 %v4495, 7
      %v4497 = vsub.s32 0, %v4496
      %v4498 = vrot.slane %v4353, %v4497
      %v4499 = vlaneseq
      %v4500 = vshrl.u32 %v4499, 7
      %v4501 = vsub.s32 0, %v4500
      %v4502 = vrot.slane %v4377, %v4501
      %v4503 = vlaneseq
      %v4504 = vshrl.u32 %v4503, 7
      %v4505 = vsub.s32 0, %v4504
      %v4506 = vrot.slane %v4391, %v4505
      %v4507 = vlaneseq
      %v4508 = vshrl.u32 %v4507, 7
      %v4509 = vsub.s32 0, %v4508
      %v4510 = vrot.slane %v4399, %v4509
      %v4511 = vlaneseq
      %v4512 = vshrl.u32 %v4511, 7
      %v4513 = vsub.s32 0, %v4512
      %v4514 = vrot.slane %v4401, %v4513
      %v4515 = vlaneseq
      %v4516 = vshrl.u32 %v4515, 7
      %v4517 = vsub.s32 0, %v4516
      %v4518 = vrot.slane %v4384, %v4517
      %v4519 = vlaneseq
      %v4520 = vshrl.u32 %v4519, 7
      %v4521 = vsub.s32 0, %v4520
      %v4522 = vrot.slane %v4398, %v4521
      %v4523 = vlaneseq
      %v4524 = vshrl.u32 %v4523, 7
      %v4525 = vsub.s32 0, %v4524
      %v4526 = vrot.slane %v4400, %v4525
      %v4527 = vlaneseq
      %v4528 = vshrl.u32 %v4527, 7
      %v4529 = vsub.s32 0, %v4528
      %v4530 = vrot.slane %v4402, %v4529
      %v4563 = vadd.f32 %v4406, %v4100
      %v4564 = vadd.f32 %v4406, %v4105
      %v4565 = vadd.f32 %v4406, %v4110
      %v4566 = vadd.f32 %v4406, %v4115
      %v4567 = vadd.f32 %v4410, %v4100
      %v4568 = vadd.f32 %v4410, %v4105
      %v4569 = vadd.f32 %v4410, %v4110
      %v4570 = vadd.f32 %v4410, %v4115
      %v4571 = vadd.f32 %v4414, %v4100
      %v4572 = vadd.f32 %v4414, %v4105
      %v4573 = vadd.f32 %v4414, %v4110
      %v4574 = vadd.f32 %v4414, %v4115
      %v4575 = vadd.f32 %v4418, %v4100
      %v4576 = vadd.f32 %v4418, %v4105
      %v4577 = vadd.f32 %v4418, %v4110
      %v4578 = vadd.f32 %v4418, %v4115
      %v4579 = vadd.f32 %v4422, %v4100
      %v4580 = vadd.f32 %v4422, %v4105
      %v4581 = vadd.f32 %v4422, %v4110
      %v4582 = vadd.f32 %v4422, %v4115
      %v4583 = vadd.f32 %v4426, %v4100
      %v4584 = vadd.f32 %v4426, %v4105
      %v4585 = vadd.f32 %v4426, %v4110
      %v4586 = vadd.f32 %v4426, %v4115
      %v4587 = vadd.f32 %v4430, %v4100
      %v4588 = vadd.f32 %v4430, %v4105
      %v4589 = vadd.f32 %v4430, %v4110
      %v4590 = vadd.f32 %v4430, %v4115
      %v4591 = vadd.f32 %v4434, %v4100
      %v4592 = vadd.f32 %v4434, %v4105
      %v4593 = vadd.f32 %v4434, %v4110
      %v4594 = vadd.f32 %v4434, %v4115
      %v4595 = vadd.f32 %v4438, %v4100
      %v4596 = vadd.f32 %v4438, %v4105
      %v4597 = vadd.f32 %v4438, %v4110
      %v4598 = vadd.f32 %v4438, %v4115
      %v4599 = vadd.f32 %v4442, %v4100
      %v4600 = vadd.f32 %v4442, %v4105
      %v4601 = vadd.f32 %v4442, %v4110
      %v4602 = vadd.f32 %v4442, %v4115
      %v4603 = vadd.f32 %v4446, %v4100
      %v4604 = vadd.f32 %v4446, %v4105
      %v4605 = vadd.f32 %v4446, %v4110
      %v4606 = vadd.f32 %v4446, %v4115
      %v4607 = vadd.f32 %v4450, %v4100
      %v4608 = vadd.f32 %v4450, %v4105
      %v4609 = vadd.f32 %v4450, %v4110
      %v4610 = vadd.f32 %v4450, %v4115
      %v4611 = vadd.f32 %v4454, %v4100
      %v4612 = vadd.f32 %v4454, %v4105
      %v4613 = vadd.f32 %v4454, %v4110
      %v4614 = vadd.f32 %v4454, %v4115
      %v4615 = vadd.f32 %v4458, %v4100
      %v4616 = vadd.f32 %v4458, %v4105
      %v4617 = vadd.f32 %v4458, %v4110
      %v4618 = vadd.f32 %v4458, %v4115
      %v4619 = vadd.f32 %v4462, %v4100
      %v4620 = vadd.f32 %v4462, %v4105
      %v4621 = vadd.f32 %v4462, %v4110
      %v4622 = vadd.f32 %v4462, %v4115
      %v4623 = vadd.f32 %v4466, %v4100
      %v4624 = vadd.f32 %v4466, %v4105
      %v4625 = vadd.f32 %v4466, %v4110
      %v4626 = vadd.f32 %v4466, %v4115
      %v4627 = vadd.f32 %v4470, %v4100
      %v4628 = vadd.f32 %v4470, %v4105
      %v4629 = vadd.f32 %v4470, %v4110
      %v4630 = vadd.f32 %v4470, %v4115
      %v4631 = vadd.f32 %v4474, %v4100
      %v4632 = vadd.f32 %v4474, %v4105
      %v4633 = vadd.f32 %v4474, %v4110
      %v4634 = vadd.f32 %v4474, %v4115
      %v4635 = vadd.f32 %v4478, %v4100
      %v4636 = vadd.f32 %v4478, %v4105
      %v4637 = vadd.f32 %v4478, %v4110
      %v4638 = vadd.f32 %v4478, %v4115
      %v4639 = vadd.f32 %v4482, %v4100
      %v4640 = vadd.f32 %v4482, %v4105
      %v4641 = vadd.f32 %v4482, %v4110
      %v4642 = vadd.f32 %v4482, %v4115
      %v4643 = vadd.f32 %v4486, %v4100
      %v4644 = vadd.f32 %v4486, %v4105
      %v4645 = vadd.f32 %v4486, %v4110
      %v4646 = vadd.f32 %v4486, %v4115
      %v4647 = vadd.f32 %v4490, %v4100
      %v4648 = vadd.f32 %v4490, %v4105
      %v4649 = vadd.f32 %v4490, %v4110
      %v4650 = vadd.f32 %v4490, %v4115
      %v4651 = vadd.f32 %v4494, %v4100
      %v4652 = vadd.f32 %v4494, %v4105
      %v4653 = vadd.f32 %v4494, %v4110
      %v4654 = vadd.f32 %v4494, %v4115
      %v4655 = vadd.f32 %v4498, %v4100
      %v4656 = vadd.f32 %v4498, %v4105
      %v4657 = vadd.f32 %v4498, %v4110
      %v4658 = vadd.f32 %v4498, %v4115
      %v4659 = vadd.f32 %v4502, %v4100
      %v4660 = vadd.f32 %v4502, %v4105
      %v4661 = vadd.f32 %v4502, %v4110
      %v4662 = vadd.f32 %v4502, %v4115
      %v4663 = vadd.f32 %v4506, %v4100
      %v4664 = vadd.f32 %v4506, %v4105
      %v4665 = vadd.f32 %v4506, %v4110
      %v4666 = vadd.f32 %v4506, %v4115
      %v4667 = vadd.f32 %v4510, %v4100
      %v4668 = vadd.f32 %v4510, %v4105
      %v4669 = vadd.f32 %v4510, %v4110
      %v4670 = vadd.f32 %v4510, %v4115
      %v4671 = vadd.f32 %v4514, %v4100
      %v4672 = vadd.f32 %v4514, %v4105
      %v4673 = vadd.f32 %v4514, %v4110
      %v4674 = vadd.f32 %v4514, %v4115
      %v4675 = vadd.f32 %v4518, %v4100
      %v4676 = vadd.f32 %v4518, %v4105
      %v4677 = vadd.f32 %v4518, %v4110
      %v4678 = vadd.f32 %v4518, %v4115
      %v4679 = vadd.f32 %v4522, %v4100
      %v4680 = vadd.f32 %v4522, %v4105
      %v4681 = vadd.f32 %v4522, %v4110
      %v4682 = vadd.f32 %v4522, %v4115
      %v4683 = vadd.f32 %v4526, %v4100
      %v4684 = vadd.f32 %v4526, %v4105
      %v4685 = vadd.f32 %v4526, %v4110
      %v4686 = vadd.f32 %v4526, %v4115
      %v4687 = vadd.f32 %v4530, %v4100
      %v4688 = vadd.f32 %v4530, %v4105
      %v4689 = vadd.f32 %v4530, %v4110
      %v4690 = vadd.f32 %v4530, %v4115
      %v4691 = vmax.f32 %v4563, 0.0
      %v4692 = vmax.f32 %v4564, 0.0
      %v4693 = vmax.f32 %v4565, 0.0
      %v4694 = vmax.f32 %v4566, 0.0
      %v4695 = vmax.f32 %v4567, 0.0
      %v4696 = vmax.f32 %v4568, 0.0
      %v4697 = vmax.f32 %v4569, 0.0
      %v4698 = vmax.f32 %v4570, 0.0
      %v4699 = vmax.f32 %v4571, 0.0
      %v4700 = vmax.f32 %v4572, 0.0
      %v4701 = vmax.f32 %v4573, 0.0
      %v4702 = vmax.f32 %v4574, 0.0
      %v4703 = vmax.f32 %v4575, 0.0
      %v4704 = vmax.f32 %v4576, 0.0
      %v4705 = vmax.f32 %v4577, 0.0
      %v4706 = vmax.f32 %v4578, 0.0
      %v4707 = vmax.f32 %v4579, 0.0
      %v4708 = vmax.f32 %v4580, 0.0
      %v4709 = vmax.f32 %v4581, 0.0
      %v4710 = vmax.f32 %v4582, 0.0
      %v4711 = vmax.f32 %v4583, 0.0
      %v4712 = vmax.f32 %v4584, 0.0
      %v4713 = vmax.f32 %v4585, 0.0
      %v4714 = vmax.f32 %v4586, 0.0
      %v4715 = vmax.f32 %v4587, 0.0
      %v4716 = vmax.f32 %v4588, 0.0
      %v4717 = vmax.f32 %v4589, 0.0
      %v4718 = vmax.f32 %v4590, 0.0
      %v4719 = vmax.f32 %v4591, 0.0
      %v4720 = vmax.f32 %v4592, 0.0
      %v4721 = vmax.f32 %v4593, 0.0
      %v4722 = vmax.f32 %v4594, 0.0
      %v4723 = vmax.f32 %v4595, 0.0
      %v4724 = vmax.f32 %v4596, 0.0
      %v4725 = vmax.f32 %v4597, 0.0
      %v4726 = vmax.f32 %v4598, 0.0
      %v4727 = vmax.f32 %v4599, 0.0
      %v4728 = vmax.f32 %v4600, 0.0
      %v4729 = vmax.f32 %v4601, 0.0
      %v4730 = vmax.f32 %v4602, 0.0
      %v4731 = vmax.f32 %v4603, 0.0
      %v4732 = vmax.f32 %v4604, 0.0
      %v4733 = vmax.f32 %v4605, 0.0
      %v4734 = vmax.f32 %v4606, 0.0
      %v4735 = vmax.f32 %v4607, 0.0
      %v4736 = vmax.f32 %v4608, 0.0
      %v4737 = vmax.f32 %v4609, 0.0
      %v4738 = vmax.f32 %v4610, 0.0
      %v4739 = vmax.f32 %v4611, 0.0
      %v4740 = vmax.f32 %v4612, 0.0
      %v4741 = vmax.f32 %v4613, 0.0
      %v4742 = vmax.f32 %v4614, 0.0
      %v4743 = vmax.f32 %v4615, 0.0
      %v4744 = vmax.f32 %v4616, 0.0
      %v4745 = vmax.f32 %v4617, 0.0
      %v4746 = vmax.f32 %v4618, 0.0
      %v4747 = vmax.f32 %v4619, 0.0
      %v4748 = vmax.f32 %v4620, 0.0
      %v4749 = vmax.f32 %v4621, 0.0
      %v4750 = vmax.f32 %v4622, 0.0
      %v4751 = vmax.f32 %v4623, 0.0
      %v4752 = vmax.f32 %v4624, 0.0
      %v4753 = vmax.f32 %v4625, 0.0
      %v4754 = vmax.f32 %v4626, 0.0
      %v4755 = vmax.f32 %v4627, 0.0
      %v4756 = vmax.f32 %v4628, 0.0
      %v4757 = vmax.f32 %v4629, 0.0
      %v4758 = vmax.f32 %v4630, 0.0
      %v4759 = vmax.f32 %v4631, 0.0
      %v4760 = vmax.f32 %v4632, 0.0
      %v4761 = vmax.f32 %v4633, 0.0
      %v4762 = vmax.f32 %v4634, 0.0
      %v4763 = vmax.f32 %v4635, 0.0
      %v4764 = vmax.f32 %v4636, 0.0
      %v4765 = vmax.f32 %v4637, 0.0
      %v4766 = vmax.f32 %v4638, 0.0
      %v4767 = vmax.f32 %v4639, 0.0
      %v4768 = vmax.f32 %v4640, 0.0
      %v4769 = vmax.f32 %v4641, 0.0
      %v4770 = vmax.f32 %v4642, 0.0
      %v4771 = vmax.f32 %v4643, 0.0
      %v4772 = vmax.f32 %v4644, 0.0
      %v4773 = vmax.f32 %v4645, 0.0
      %v4774 = vmax.f32 %v4646, 0.0
      %v4775 = vmax.f32 %v4647, 0.0
      %v4776 = vmax.f32 %v4648, 0.0
      %v4777 = vmax.f32 %v4649, 0.0
      %v4778 = vmax.f32 %v4650, 0.0
      %v4779 = vmax.f32 %v4651, 0.0
      %v4780 = vmax.f32 %v4652, 0.0
      %v4781 = vmax.f32 %v4653, 0.0
      %v4782 = vmax.f32 %v4654, 0.0
      %v4783 = vmax.f32 %v4655, 0.0
      %v4784 = vmax.f32 %v4656, 0.0
      %v4785 = vmax.f32 %v4657, 0.0
      %v4786 = vmax.f32 %v4658, 0.0
      %v4787 = vmax.f32 %v4659, 0.0
      %v4788 = vmax.f32 %v4660, 0.0
      %v4789 = vmax.f32 %v4661, 0.0
      %v4790 = vmax.f32 %v4662, 0.0
      %v4791 = vmax.f32 %v4663, 0.0
      %v4792 = vmax.f32 %v4664, 0.0
      %v4793 = vmax.f32 %v4665, 0.0
      %v4794 = vmax.f32 %v4666, 0.0
      %v4795 = vmax.f32 %v4667, 0.0
      %v4796 = vmax.f32 %v4668, 0.0
      %v4797 = vmax.f32 %v4669, 0.0
      %v4798 = vmax.f32 %v4670, 0.0
      %v4799 = vmax.f32 %v4671, 0.0
      %v4800 = vmax.f32 %v4672, 0.0
      %v4801 = vmax.f32 %v4673, 0.0
      %v4802 = vmax.f32 %v4674, 0.0
      %v4803 = vmax.f32 %v4675, 0.0
      %v4804 = vmax.f32 %v4676, 0.0
      %v4805 = vmax.f32 %v4677, 0.0
      %v4806 = vmax.f32 %v4678, 0.0
      %v4807 = vmax.f32 %v4679, 0.0
      %v4808 = vmax.f32 %v4680, 0.0
      %v4809 = vmax.f32 %v4681, 0.0
      %v4810 = vmax.f32 %v4682, 0.0
      %v4811 = vmax.f32 %v4683, 0.0
      %v4812 = vmax.f32 %v4684, 0.0
      %v4813 = vmax.f32 %v4685, 0.0
      %v4814 = vmax.f32 %v4686, 0.0
      %v4815 = vmax.f32 %v4687, 0.0
      %v4816 = vmax.f32 %v4688, 0.0
      %v4817 = vmax.f32 %v4689, 0.0
      %v4818 = vmax.f32 %v4690, 0.0
      %v4819 = vpack.c.bf16 %v4692, %v4691
      %v4820 = vpack.c.bf16 %v4694, %v4693
      %v4821 = vpack.c.bf16 %v4696, %v4695
      %v4822 = vpack.c.bf16 %v4698, %v4697
      %v4823 = vpack.c.bf16 %v4700, %v4699
      %v4824 = vpack.c.bf16 %v4702, %v4701
      %v4825 = vpack.c.bf16 %v4704, %v4703
      %v4826 = vpack.c.bf16 %v4706, %v4705
      %v4827 = vpack.c.bf16 %v4708, %v4707
      %v4828 = vpack.c.bf16 %v4710, %v4709
      %v4829 = vpack.c.bf16 %v4712, %v4711
      %v4830 = vpack.c.bf16 %v4714, %v4713
      %v4831 = vpack.c.bf16 %v4716, %v4715
      %v4832 = vpack.c.bf16 %v4718, %v4717
      %v4833 = vpack.c.bf16 %v4720, %v4719
      %v4834 = vpack.c.bf16 %v4722, %v4721
      %v4835 = vpack.c.bf16 %v4724, %v4723
      %v4836 = vpack.c.bf16 %v4726, %v4725
      %v4837 = vpack.c.bf16 %v4728, %v4727
      %v4838 = vpack.c.bf16 %v4730, %v4729
      %v4839 = vpack.c.bf16 %v4732, %v4731
      %v4840 = vpack.c.bf16 %v4734, %v4733
      %v4841 = vpack.c.bf16 %v4736, %v4735
      %v4842 = vpack.c.bf16 %v4738, %v4737
      %v4843 = vpack.c.bf16 %v4740, %v4739
      %v4844 = vpack.c.bf16 %v4742, %v4741
      %v4845 = vpack.c.bf16 %v4744, %v4743
      %v4846 = vpack.c.bf16 %v4746, %v4745
      %v4847 = vpack.c.bf16 %v4748, %v4747
      %v4848 = vpack.c.bf16 %v4750, %v4749
      %v4849 = vpack.c.bf16 %v4752, %v4751
      %v4850 = vpack.c.bf16 %v4754, %v4753
      %v4851 = vpack.c.bf16 %v4756, %v4755
      %v4852 = vpack.c.bf16 %v4758, %v4757
      %v4853 = vpack.c.bf16 %v4760, %v4759
      %v4854 = vpack.c.bf16 %v4762, %v4761
      %v4855 = vpack.c.bf16 %v4764, %v4763
      %v4856 = vpack.c.bf16 %v4766, %v4765
      %v4857 = vpack.c.bf16 %v4768, %v4767
      %v4858 = vpack.c.bf16 %v4770, %v4769
      %v4859 = vpack.c.bf16 %v4772, %v4771
      %v4860 = vpack.c.bf16 %v4774, %v4773
      %v4861 = vpack.c.bf16 %v4776, %v4775
      %v4862 = vpack.c.bf16 %v4778, %v4777
      %v4863 = vpack.c.bf16 %v4780, %v4779
      %v4864 = vpack.c.bf16 %v4782, %v4781
      %v4865 = vpack.c.bf16 %v4784, %v4783
      %v4866 = vpack.c.bf16 %v4786, %v4785
      %v4867 = vpack.c.bf16 %v4788, %v4787
      %v4868 = vpack.c.bf16 %v4790, %v4789
      %v4869 = vpack.c.bf16 %v4792, %v4791
      %v4870 = vpack.c.bf16 %v4794, %v4793
      %v4871 = vpack.c.bf16 %v4796, %v4795
      %v4872 = vpack.c.bf16 %v4798, %v4797
      %v4873 = vpack.c.bf16 %v4800, %v4799
      %v4874 = vpack.c.bf16 %v4802, %v4801
      %v4875 = vpack.c.bf16 %v4804, %v4803
      %v4876 = vpack.c.bf16 %v4806, %v4805
      %v4877 = vpack.c.bf16 %v4808, %v4807
      %v4878 = vpack.c.bf16 %v4810, %v4809
      %v4879 = vpack.c.bf16 %v4812, %v4811
      %v4880 = vpack.c.bf16 %v4814, %v4813
      %v4881 = vpack.c.bf16 %v4816, %v4815
      %v4882 = vpack.c.bf16 %v4818, %v4817
      %v4883 = vpack.c.bf16 %v4008, %v4007
      %v4884 = vpack.c.bf16 %v4010, %v4009
      %v4885 = vlaneseq
      %v4886 = vshrl.u32 %v4885, 7
      %v4887 = vsub.s32 0, %v4886
      %v4888 = vrot.slane %v4011, %v4887
      %v4890 = vsel %vm418, %v4819, 0
      %v4893 = vsel %vm418, %v4820, 0
      %v4896 = vsel %vm418, %v4821, 0
      %v4899 = vsel %vm418, %v4822, 0
      %v4902 = vsel %vm418, %v4823, 0
      %v4905 = vsel %vm418, %v4824, 0
      %v4908 = vsel %vm418, %v4825, 0
      %v4911 = vsel %vm418, %v4826, 0
      %v4914 = vsel %vm418, %v4827, 0
      %v4917 = vsel %vm418, %v4828, 0
      %v4920 = vsel %vm418, %v4829, 0
      %v4923 = vsel %vm418, %v4830, 0
      %v4926 = vsel %vm418, %v4831, 0
      %v4929 = vsel %vm418, %v4832, 0
      %v4932 = vsel %vm418, %v4833, 0
      %v4935 = vsel %vm418, %v4834, 0
      %v4938 = vsel %vm418, %v4835, 0
      %v4941 = vsel %vm418, %v4836, 0
      %v4944 = vsel %vm418, %v4837, 0
      %v4947 = vsel %vm418, %v4838, 0
      %v4950 = vsel %vm418, %v4839, 0
      %v4953 = vsel %vm418, %v4840, 0
      %v4956 = vsel %vm418, %v4841, 0
      %v4959 = vsel %vm418, %v4842, 0
      %v4962 = vsel %vm418, %v4843, 0
      %v4965 = vsel %vm418, %v4844, 0
      %v4968 = vsel %vm418, %v4845, 0
      %v4971 = vsel %vm418, %v4846, 0
      %v4974 = vsel %vm418, %v4847, 0
      %v4977 = vsel %vm418, %v4848, 0
      %v4980 = vsel %vm418, %v4849, 0
      %v4983 = vsel %vm418, %v4850, 0
      %v4986 = vsel %vm418, %v4851, 0
      %v4989 = vsel %vm418, %v4852, 0
      %v4992 = vsel %vm418, %v4853, 0
      %v4995 = vsel %vm418, %v4854, 0
      %v4998 = vsel %vm418, %v4855, 0
      %v5001 = vsel %vm418, %v4856, 0
      %v5004 = vsel %vm418, %v4857, 0
      %v5007 = vsel %vm418, %v4858, 0
      %v5010 = vsel %vm418, %v4859, 0
      %v5013 = vsel %vm418, %v4860, 0
      %v5016 = vsel %vm418, %v4861, 0
      %v5019 = vsel %vm418, %v4862, 0
      %v5022 = vsel %vm418, %v4863, 0
      %v5025 = vsel %vm418, %v4864, 0
      %v5028 = vsel %vm418, %v4865, 0
      %v5031 = vsel %vm418, %v4866, 0
      %v5034 = vsel %vm418, %v4867, 0
      %v5037 = vsel %vm418, %v4868, 0
      %v5040 = vsel %vm418, %v4869, 0
      %v5043 = vsel %vm418, %v4870, 0
      %v5046 = vsel %vm418, %v4871, 0
      %v5049 = vsel %vm418, %v4872, 0
      %v5052 = vsel %vm418, %v4873, 0
      %v5055 = vsel %vm418, %v4874, 0
      %v5058 = vsel %vm418, %v4875, 0
      %v5061 = vsel %vm418, %v4876, 0
      %v5064 = vsel %vm418, %v4877, 0
      %v5067 = vsel %vm418, %v4878, 0
      %v5070 = vsel %vm418, %v4879, 0
      %v5073 = vsel %vm418, %v4880, 0
      %v5076 = vsel %vm418, %v4881, 0
      %v5079 = vsel %vm418, %v4882, 0
      %5081 = vmatprep.subr.bf16.mxu0 0
      %5082 = vmatpush1.bf16.msra.mxu0 0
      %5083 = vmatprep.subr.bf16.mxu0 0
      %5084 = vmatpush1.bf16.msra.mxu0 0
      %5085 = vmatprep.subr.bf16.mxu0 0
      %5086 = vmatpush1.bf16.msra.mxu0 0
      %5087 = vmatprep.subr.bf16.mxu0 0
      %5088 = vmatpush1.bf16.msra.mxu0 0
      %5089 = vmatprep.subr.bf16.mxu0 0
      %5090 = vmatpush1.bf16.msra.mxu0 0
      %5091 = vmatprep.subr.bf16.mxu0 0
      %5092 = vmatpush1.bf16.msra.mxu0 0
      %5093 = vmatprep.subr.bf16.mxu0 0
      %5094 = vmatpush1.bf16.msra.mxu0 %v4884
      %5095 = vmatprep.subr.bf16.mxu0 0
      %5096 = vmatpush1.bf16.msra.mxu0 %v4883
      %5097 = vmatprep.subr.bf16.mxu0 0
      %5098 = vmatpush2.bf16.msra.mxu0 0
      %5099 = vmatprep.subr.bf16.mxu0 0
      %5100 = vmatpush2.bf16.msra.mxu0 0
      %5101 = vmatprep.subr.bf16.mxu0 0
      %5102 = vmatpush2.bf16.msra.mxu0 0
      %5103 = vmatprep.subr.bf16.mxu0 0
      %5104 = vmatpush2.bf16.msra.mxu0 0
      %5105 = vmatprep.subr.bf16.mxu0 0
      %5106 = vmatpush2.bf16.msra.mxu0 0
      %5107 = vmatprep.subr.bf16.mxu0 0
      %5108 = vmatpush2.bf16.msra.mxu0 0
      %5109 = vmatprep.subr.bf16.mxu0 0
      %5110 = vmatpush2.bf16.msra.mxu0 0
      %5111 = vmatprep.subr.bf16.mxu0 0
      %5112 = vmatpush2.bf16.msra.mxu0 0
      %5113 = vmatprep.mubr.bf16.mxu0 0
      %5114 = vmatmul.mubr.bf16.gmra.mxu0 %v4890
      %v5115 = vpop.f32.mrf.mxu0
      %v5116 = vadd.f32 %v4888, %v5115
      %v5117 = vpop.f32.mrf.mxu0
      %v5118 = vpop.f32.mrf.mxu0
      %v5119 = vadd.f32 %v4888, %v5118
      %v5120 = vpop.f32.mrf.mxu0
      %5121 = vmatprep.mubr.bf16.mxu0 0
      %5122 = vmatmul.mubr.bf16.gmra.mxu0 %v4893
      %v5123 = vpop.f32.mrf.mxu0
      %v5124 = vadd.f32 %v4888, %v5123
      %v5125 = vpop.f32.mrf.mxu0
      %v5126 = vpop.f32.mrf.mxu0
      %v5127 = vadd.f32 %v4888, %v5126
      %v5128 = vpop.f32.mrf.mxu0
      %5129 = vmatprep.mubr.bf16.mxu0 0
      %5130 = vmatmul.mubr.bf16.gmra.mxu0 %v4896
      %v5131 = vpop.f32.mrf.mxu0
      %v5132 = vadd.f32 %v4888, %v5131
      %v5133 = vpop.f32.mrf.mxu0
      %v5134 = vpop.f32.mrf.mxu0
      %v5135 = vadd.f32 %v4888, %v5134
      %v5136 = vpop.f32.mrf.mxu0
      %5137 = vmatprep.mubr.bf16.mxu0 0
      %5138 = vmatmul.mubr.bf16.gmra.mxu0 %v4899
      %v5139 = vpop.f32.mrf.mxu0
      %v5140 = vadd.f32 %v4888, %v5139
      %v5141 = vpop.f32.mrf.mxu0
      %v5142 = vpop.f32.mrf.mxu0
      %v5143 = vadd.f32 %v4888, %v5142
      %v5144 = vpop.f32.mrf.mxu0
      %5145 = vmatprep.mubr.bf16.mxu0 0
      %5146 = vmatmul.mubr.bf16.gmra.mxu0 %v4902
      %v5147 = vpop.f32.mrf.mxu0
      %v5148 = vadd.f32 %v4888, %v5147
      %v5149 = vpop.f32.mrf.mxu0
      %v5150 = vpop.f32.mrf.mxu0
      %v5151 = vadd.f32 %v4888, %v5150
      %v5152 = vpop.f32.mrf.mxu0
      %5153 = vmatprep.mubr.bf16.mxu0 0
      %5154 = vmatmul.mubr.bf16.gmra.mxu0 %v4905
      %v5155 = vpop.f32.mrf.mxu0
      %v5156 = vadd.f32 %v4888, %v5155
      %v5157 = vpop.f32.mrf.mxu0
      %v5158 = vpop.f32.mrf.mxu0
      %v5159 = vadd.f32 %v4888, %v5158
      %v5160 = vpop.f32.mrf.mxu0
      %5161 = vmatprep.mubr.bf16.mxu0 0
      %5162 = vmatmul.mubr.bf16.gmra.mxu0 %v4908
      %v5163 = vpop.f32.mrf.mxu0
      %v5164 = vadd.f32 %v4888, %v5163
      %v5165 = vpop.f32.mrf.mxu0
      %v5166 = vpop.f32.mrf.mxu0
      %v5167 = vadd.f32 %v4888, %v5166
      %v5168 = vpop.f32.mrf.mxu0
      %5169 = vmatprep.mubr.bf16.mxu0 0
      %5170 = vmatmul.mubr.bf16.gmra.mxu0 %v4911
      %v5171 = vpop.f32.mrf.mxu0
      %v5172 = vadd.f32 %v4888, %v5171
      %v5173 = vpop.f32.mrf.mxu0
      %v5174 = vpop.f32.mrf.mxu0
      %v5175 = vadd.f32 %v4888, %v5174
      %v5176 = vpop.f32.mrf.mxu0
      %5177 = vmatprep.mubr.bf16.mxu0 0
      %5178 = vmatmul.mubr.bf16.gmra.mxu0 %v4914
      %v5179 = vpop.f32.mrf.mxu0
      %v5180 = vadd.f32 %v4888, %v5179
      %v5181 = vpop.f32.mrf.mxu0
      %v5182 = vpop.f32.mrf.mxu0
      %v5183 = vadd.f32 %v4888, %v5182
      %v5184 = vpop.f32.mrf.mxu0
      %5185 = vmatprep.mubr.bf16.mxu0 0
      %5186 = vmatmul.mubr.bf16.gmra.mxu0 %v4917
      %v5187 = vpop.f32.mrf.mxu0
      %v5188 = vadd.f32 %v4888, %v5187
      %v5189 = vpop.f32.mrf.mxu0
      %v5190 = vpop.f32.mrf.mxu0
      %v5191 = vadd.f32 %v4888, %v5190
      %v5192 = vpop.f32.mrf.mxu0
      %5193 = vmatprep.mubr.bf16.mxu0 0
      %5194 = vmatmul.mubr.bf16.gmra.mxu0 %v4920
      %v5195 = vpop.f32.mrf.mxu0
      %v5196 = vadd.f32 %v4888, %v5195
      %v5197 = vpop.f32.mrf.mxu0
      %v5198 = vpop.f32.mrf.mxu0
      %v5199 = vadd.f32 %v4888, %v5198
      %v5200 = vpop.f32.mrf.mxu0
      %5201 = vmatprep.mubr.bf16.mxu0 0
      %5202 = vmatmul.mubr.bf16.gmra.mxu0 %v4923
      %v5203 = vpop.f32.mrf.mxu0
      %v5204 = vadd.f32 %v4888, %v5203
      %v5205 = vpop.f32.mrf.mxu0
      %v5206 = vpop.f32.mrf.mxu0
      %v5207 = vadd.f32 %v4888, %v5206
      %v5208 = vpop.f32.mrf.mxu0
      %5209 = vmatprep.mubr.bf16.mxu0 0
      %5210 = vmatmul.mubr.bf16.gmra.mxu0 %v4926
      %v5211 = vpop.f32.mrf.mxu0
      %v5212 = vadd.f32 %v4888, %v5211
      %v5213 = vpop.f32.mrf.mxu0
      %v5214 = vpop.f32.mrf.mxu0
      %v5215 = vadd.f32 %v4888, %v5214
      %v5216 = vpop.f32.mrf.mxu0
      %5217 = vmatprep.mubr.bf16.mxu0 0
      %5218 = vmatmul.mubr.bf16.gmra.mxu0 %v4929
      %v5219 = vpop.f32.mrf.mxu0
      %v5220 = vadd.f32 %v4888, %v5219
      %v5221 = vpop.f32.mrf.mxu0
      %v5222 = vpop.f32.mrf.mxu0
      %v5223 = vadd.f32 %v4888, %v5222
      %v5224 = vpop.f32.mrf.mxu0
      %5225 = vmatprep.mubr.bf16.mxu0 0
      %5226 = vmatmul.mubr.bf16.gmra.mxu0 %v4932
      %v5227 = vpop.f32.mrf.mxu0
      %v5228 = vadd.f32 %v4888, %v5227
      %v5229 = vpop.f32.mrf.mxu0
      %v5230 = vpop.f32.mrf.mxu0
      %v5231 = vadd.f32 %v4888, %v5230
      %v5232 = vpop.f32.mrf.mxu0
      %5233 = vmatprep.mubr.bf16.mxu0 0
      %5234 = vmatmul.mubr.bf16.gmra.mxu0 %v4935
      %v5235 = vpop.f32.mrf.mxu0
      %v5236 = vadd.f32 %v4888, %v5235
      %v5237 = vpop.f32.mrf.mxu0
      %v5238 = vpop.f32.mrf.mxu0
      %v5239 = vadd.f32 %v4888, %v5238
      %v5240 = vpop.f32.mrf.mxu0
      %5241 = vmatprep.mubr.bf16.mxu0 0
      %5242 = vmatmul.mubr.bf16.gmra.mxu0 %v4938
      %v5243 = vpop.f32.mrf.mxu0
      %v5244 = vadd.f32 %v4888, %v5243
      %v5245 = vpop.f32.mrf.mxu0
      %v5246 = vpop.f32.mrf.mxu0
      %v5247 = vadd.f32 %v4888, %v5246
      %v5248 = vpop.f32.mrf.mxu0
      %5249 = vmatprep.mubr.bf16.mxu0 0
      %5250 = vmatmul.mubr.bf16.gmra.mxu0 %v4941
      %v5251 = vpop.f32.mrf.mxu0
      %v5252 = vadd.f32 %v4888, %v5251
      %v5253 = vpop.f32.mrf.mxu0
      %v5254 = vpop.f32.mrf.mxu0
      %v5255 = vadd.f32 %v4888, %v5254
      %v5256 = vpop.f32.mrf.mxu0
      %5257 = vmatprep.mubr.bf16.mxu0 0
      %5258 = vmatmul.mubr.bf16.gmra.mxu0 %v4944
      %v5259 = vpop.f32.mrf.mxu0
      %v5260 = vadd.f32 %v4888, %v5259
      %v5261 = vpop.f32.mrf.mxu0
      %v5262 = vpop.f32.mrf.mxu0
      %v5263 = vadd.f32 %v4888, %v5262
      %v5264 = vpop.f32.mrf.mxu0
      %5265 = vmatprep.mubr.bf16.mxu0 0
      %5266 = vmatmul.mubr.bf16.gmra.mxu0 %v4947
      %v5267 = vpop.f32.mrf.mxu0
      %v5268 = vadd.f32 %v4888, %v5267
      %v5269 = vpop.f32.mrf.mxu0
      %v5270 = vpop.f32.mrf.mxu0
      %v5271 = vadd.f32 %v4888, %v5270
      %v5272 = vpop.f32.mrf.mxu0
      %5273 = vmatprep.mubr.bf16.mxu0 0
      %5274 = vmatmul.mubr.bf16.gmra.mxu0 %v4950
      %v5275 = vpop.f32.mrf.mxu0
      %v5276 = vadd.f32 %v4888, %v5275
      %v5277 = vpop.f32.mrf.mxu0
      %v5278 = vpop.f32.mrf.mxu0
      %v5279 = vadd.f32 %v4888, %v5278
      %v5280 = vpop.f32.mrf.mxu0
      %5281 = vmatprep.mubr.bf16.mxu0 0
      %5282 = vmatmul.mubr.bf16.gmra.mxu0 %v4953
      %v5283 = vpop.f32.mrf.mxu0
      %v5284 = vadd.f32 %v4888, %v5283
      %v5285 = vpop.f32.mrf.mxu0
      %v5286 = vpop.f32.mrf.mxu0
      %v5287 = vadd.f32 %v4888, %v5286
      %v5288 = vpop.f32.mrf.mxu0
      %5289 = vmatprep.mubr.bf16.mxu0 0
      %5290 = vmatmul.mubr.bf16.gmra.mxu0 %v4956
      %v5291 = vpop.f32.mrf.mxu0
      %v5292 = vadd.f32 %v4888, %v5291
      %v5293 = vpop.f32.mrf.mxu0
      %v5294 = vpop.f32.mrf.mxu0
      %v5295 = vadd.f32 %v4888, %v5294
      %v5296 = vpop.f32.mrf.mxu0
      %5297 = vmatprep.mubr.bf16.mxu0 0
      %5298 = vmatmul.mubr.bf16.gmra.mxu0 %v4959
      %v5299 = vpop.f32.mrf.mxu0
      %v5300 = vadd.f32 %v4888, %v5299
      %v5301 = vpop.f32.mrf.mxu0
      %v5302 = vpop.f32.mrf.mxu0
      %v5303 = vadd.f32 %v4888, %v5302
      %v5304 = vpop.f32.mrf.mxu0
      %5305 = vmatprep.mubr.bf16.mxu0 0
      %5306 = vmatmul.mubr.bf16.gmra.mxu0 %v4962
      %v5307 = vpop.f32.mrf.mxu0
      %v5308 = vadd.f32 %v4888, %v5307
      %v5309 = vpop.f32.mrf.mxu0
      %v5310 = vpop.f32.mrf.mxu0
      %v5311 = vadd.f32 %v4888, %v5310
      %v5312 = vpop.f32.mrf.mxu0
      %5313 = vmatprep.mubr.bf16.mxu0 0
      %5314 = vmatmul.mubr.bf16.gmra.mxu0 %v4965
      %v5315 = vpop.f32.mrf.mxu0
      %v5316 = vadd.f32 %v4888, %v5315
      %v5317 = vpop.f32.mrf.mxu0
      %v5318 = vpop.f32.mrf.mxu0
      %v5319 = vadd.f32 %v4888, %v5318
      %v5320 = vpop.f32.mrf.mxu0
      %5321 = vmatprep.mubr.bf16.mxu0 0
      %5322 = vmatmul.mubr.bf16.gmra.mxu0 %v4968
      %v5323 = vpop.f32.mrf.mxu0
      %v5324 = vadd.f32 %v4888, %v5323
      %v5325 = vpop.f32.mrf.mxu0
      %v5326 = vpop.f32.mrf.mxu0
      %v5327 = vadd.f32 %v4888, %v5326
      %v5328 = vpop.f32.mrf.mxu0
      %5329 = vmatprep.mubr.bf16.mxu0 0
      %5330 = vmatmul.mubr.bf16.gmra.mxu0 %v4971
      %v5331 = vpop.f32.mrf.mxu0
      %v5332 = vadd.f32 %v4888, %v5331
      %v5333 = vpop.f32.mrf.mxu0
      %v5334 = vpop.f32.mrf.mxu0
      %v5335 = vadd.f32 %v4888, %v5334
      %v5336 = vpop.f32.mrf.mxu0
      %5337 = vmatprep.mubr.bf16.mxu0 0
      %5338 = vmatmul.mubr.bf16.gmra.mxu0 %v4974
      %v5339 = vpop.f32.mrf.mxu0
      %v5340 = vadd.f32 %v4888, %v5339
      %v5341 = vpop.f32.mrf.mxu0
      %v5342 = vpop.f32.mrf.mxu0
      %v5343 = vadd.f32 %v4888, %v5342
      %v5344 = vpop.f32.mrf.mxu0
      %5345 = vmatprep.mubr.bf16.mxu0 0
      %5346 = vmatmul.mubr.bf16.gmra.mxu0 %v4977
      %v5347 = vpop.f32.mrf.mxu0
      %v5348 = vadd.f32 %v4888, %v5347
      %v5349 = vpop.f32.mrf.mxu0
      %v5350 = vpop.f32.mrf.mxu0
      %v5351 = vadd.f32 %v4888, %v5350
      %v5352 = vpop.f32.mrf.mxu0
      %5353 = vmatprep.mubr.bf16.mxu0 0
      %5354 = vmatmul.mubr.bf16.gmra.mxu0 %v4980
      %v5355 = vpop.f32.mrf.mxu0
      %v5356 = vadd.f32 %v4888, %v5355
      %v5357 = vpop.f32.mrf.mxu0
      %v5358 = vpop.f32.mrf.mxu0
      %v5359 = vadd.f32 %v4888, %v5358
      %v5360 = vpop.f32.mrf.mxu0
      %5361 = vmatprep.mubr.bf16.mxu0 0
      %5362 = vmatmul.mubr.bf16.gmra.mxu0 %v4983
      %v5363 = vpop.f32.mrf.mxu0
      %v5364 = vadd.f32 %v4888, %v5363
      %v5365 = vpop.f32.mrf.mxu0
      %v5366 = vpop.f32.mrf.mxu0
      %v5367 = vadd.f32 %v4888, %v5366
      %v5368 = vpop.f32.mrf.mxu0
      %5369 = vmatprep.mubr.bf16.mxu0 0
      %5370 = vmatmul.mubr.bf16.gmra.mxu0 %v4986
      %v5371 = vpop.f32.mrf.mxu0
      %v5372 = vadd.f32 %v4888, %v5371
      %v5373 = vpop.f32.mrf.mxu0
      %v5374 = vpop.f32.mrf.mxu0
      %v5375 = vadd.f32 %v4888, %v5374
      %v5376 = vpop.f32.mrf.mxu0
      %5377 = vmatprep.mubr.bf16.mxu0 0
      %5378 = vmatmul.mubr.bf16.gmra.mxu0 %v4989
      %v5379 = vpop.f32.mrf.mxu0
      %v5380 = vadd.f32 %v4888, %v5379
      %v5381 = vpop.f32.mrf.mxu0
      %v5382 = vpop.f32.mrf.mxu0
      %v5383 = vadd.f32 %v4888, %v5382
      %v5384 = vpop.f32.mrf.mxu0
      %5385 = vmatprep.mubr.bf16.mxu0 0
      %5386 = vmatmul.mubr.bf16.gmra.mxu0 %v4992
      %v5387 = vpop.f32.mrf.mxu0
      %v5388 = vadd.f32 %v4888, %v5387
      %v5389 = vpop.f32.mrf.mxu0
      %v5390 = vpop.f32.mrf.mxu0
      %v5391 = vadd.f32 %v4888, %v5390
      %v5392 = vpop.f32.mrf.mxu0
      %5393 = vmatprep.mubr.bf16.mxu0 0
      %5394 = vmatmul.mubr.bf16.gmra.mxu0 %v4995
      %v5395 = vpop.f32.mrf.mxu0
      %v5396 = vadd.f32 %v4888, %v5395
      %v5397 = vpop.f32.mrf.mxu0
      %v5398 = vpop.f32.mrf.mxu0
      %v5399 = vadd.f32 %v4888, %v5398
      %v5400 = vpop.f32.mrf.mxu0
      %5401 = vmatprep.mubr.bf16.mxu0 0
      %5402 = vmatmul.mubr.bf16.gmra.mxu0 %v4998
      %v5403 = vpop.f32.mrf.mxu0
      %v5404 = vadd.f32 %v4888, %v5403
      %v5405 = vpop.f32.mrf.mxu0
      %v5406 = vpop.f32.mrf.mxu0
      %v5407 = vadd.f32 %v4888, %v5406
      %v5408 = vpop.f32.mrf.mxu0
      %5409 = vmatprep.mubr.bf16.mxu0 0
      %5410 = vmatmul.mubr.bf16.gmra.mxu0 %v5001
      %v5411 = vpop.f32.mrf.mxu0
      %v5412 = vadd.f32 %v4888, %v5411
      %v5413 = vpop.f32.mrf.mxu0
      %v5414 = vpop.f32.mrf.mxu0
      %v5415 = vadd.f32 %v4888, %v5414
      %v5416 = vpop.f32.mrf.mxu0
      %5417 = vmatprep.mubr.bf16.mxu0 0
      %5418 = vmatmul.mubr.bf16.gmra.mxu0 %v5004
      %v5419 = vpop.f32.mrf.mxu0
      %v5420 = vadd.f32 %v4888, %v5419
      %v5421 = vpop.f32.mrf.mxu0
      %v5422 = vpop.f32.mrf.mxu0
      %v5423 = vadd.f32 %v4888, %v5422
      %v5424 = vpop.f32.mrf.mxu0
      %5425 = vmatprep.mubr.bf16.mxu0 0
      %5426 = vmatmul.mubr.bf16.gmra.mxu0 %v5007
      %v5427 = vpop.f32.mrf.mxu0
      %v5428 = vadd.f32 %v4888, %v5427
      %v5429 = vpop.f32.mrf.mxu0
      %v5430 = vpop.f32.mrf.mxu0
      %v5431 = vadd.f32 %v4888, %v5430
      %v5432 = vpop.f32.mrf.mxu0
      %5433 = vmatprep.mubr.bf16.mxu0 0
      %5434 = vmatmul.mubr.bf16.gmra.mxu0 %v5010
      %v5435 = vpop.f32.mrf.mxu0
      %v5436 = vadd.f32 %v4888, %v5435
      %v5437 = vpop.f32.mrf.mxu0
      %v5438 = vpop.f32.mrf.mxu0
      %v5439 = vadd.f32 %v4888, %v5438
      %v5440 = vpop.f32.mrf.mxu0
      %5441 = vmatprep.mubr.bf16.mxu0 0
      %5442 = vmatmul.mubr.bf16.gmra.mxu0 %v5013
      %v5443 = vpop.f32.mrf.mxu0
      %v5444 = vadd.f32 %v4888, %v5443
      %v5445 = vpop.f32.mrf.mxu0
      %v5446 = vpop.f32.mrf.mxu0
      %v5447 = vadd.f32 %v4888, %v5446
      %v5448 = vpop.f32.mrf.mxu0
      %5449 = vmatprep.mubr.bf16.mxu0 0
      %5450 = vmatmul.mubr.bf16.gmra.mxu0 %v5016
      %v5451 = vpop.f32.mrf.mxu0
      %v5452 = vadd.f32 %v4888, %v5451
      %v5453 = vpop.f32.mrf.mxu0
      %v5454 = vpop.f32.mrf.mxu0
      %v5455 = vadd.f32 %v4888, %v5454
      %v5456 = vpop.f32.mrf.mxu0
      %5457 = vmatprep.mubr.bf16.mxu0 0
      %5458 = vmatmul.mubr.bf16.gmra.mxu0 %v5019
      %v5459 = vpop.f32.mrf.mxu0
      %v5460 = vadd.f32 %v4888, %v5459
      %v5461 = vpop.f32.mrf.mxu0
      %v5462 = vpop.f32.mrf.mxu0
      %v5463 = vadd.f32 %v4888, %v5462
      %v5464 = vpop.f32.mrf.mxu0
      %5465 = vmatprep.mubr.bf16.mxu0 0
      %5466 = vmatmul.mubr.bf16.gmra.mxu0 %v5022
      %v5467 = vpop.f32.mrf.mxu0
      %v5468 = vadd.f32 %v4888, %v5467
      %v5469 = vpop.f32.mrf.mxu0
      %v5470 = vpop.f32.mrf.mxu0
      %v5471 = vadd.f32 %v4888, %v5470
      %v5472 = vpop.f32.mrf.mxu0
      %5473 = vmatprep.mubr.bf16.mxu0 0
      %5474 = vmatmul.mubr.bf16.gmra.mxu0 %v5025
      %v5475 = vpop.f32.mrf.mxu0
      %v5476 = vadd.f32 %v4888, %v5475
      %v5477 = vpop.f32.mrf.mxu0
      %v5478 = vpop.f32.mrf.mxu0
      %v5479 = vadd.f32 %v4888, %v5478
      %v5480 = vpop.f32.mrf.mxu0
      %5481 = vmatprep.mubr.bf16.mxu0 0
      %5482 = vmatmul.mubr.bf16.gmra.mxu0 %v5028
      %v5483 = vpop.f32.mrf.mxu0
      %v5484 = vadd.f32 %v4888, %v5483
      %v5485 = vpop.f32.mrf.mxu0
      %v5486 = vpop.f32.mrf.mxu0
      %v5487 = vadd.f32 %v4888, %v5486
      %v5488 = vpop.f32.mrf.mxu0
      %5489 = vmatprep.mubr.bf16.mxu0 0
      %5490 = vmatmul.mubr.bf16.gmra.mxu0 %v5031
      %v5491 = vpop.f32.mrf.mxu0
      %v5492 = vadd.f32 %v4888, %v5491
      %v5493 = vpop.f32.mrf.mxu0
      %v5494 = vpop.f32.mrf.mxu0
      %v5495 = vadd.f32 %v4888, %v5494
      %v5496 = vpop.f32.mrf.mxu0
      %5497 = vmatprep.mubr.bf16.mxu0 0
      %5498 = vmatmul.mubr.bf16.gmra.mxu0 %v5034
      %v5499 = vpop.f32.mrf.mxu0
      %v5500 = vadd.f32 %v4888, %v5499
      %v5501 = vpop.f32.mrf.mxu0
      %v5502 = vpop.f32.mrf.mxu0
      %v5503 = vadd.f32 %v4888, %v5502
      %v5504 = vpop.f32.mrf.mxu0
      %5505 = vmatprep.mubr.bf16.mxu0 0
      %5506 = vmatmul.mubr.bf16.gmra.mxu0 %v5037
      %v5507 = vpop.f32.mrf.mxu0
      %v5508 = vadd.f32 %v4888, %v5507
      %v5509 = vpop.f32.mrf.mxu0
      %v5510 = vpop.f32.mrf.mxu0
      %v5511 = vadd.f32 %v4888, %v5510
      %v5512 = vpop.f32.mrf.mxu0
      %5513 = vmatprep.mubr.bf16.mxu0 0
      %5514 = vmatmul.mubr.bf16.gmra.mxu0 %v5040
      %v5515 = vpop.f32.mrf.mxu0
      %v5516 = vadd.f32 %v4888, %v5515
      %v5517 = vpop.f32.mrf.mxu0
      %v5518 = vpop.f32.mrf.mxu0
      %v5519 = vadd.f32 %v4888, %v5518
      %v5520 = vpop.f32.mrf.mxu0
      %5521 = vmatprep.mubr.bf16.mxu0 0
      %5522 = vmatmul.mubr.bf16.gmra.mxu0 %v5043
      %v5523 = vpop.f32.mrf.mxu0
      %v5524 = vadd.f32 %v4888, %v5523
      %v5525 = vpop.f32.mrf.mxu0
      %v5526 = vpop.f32.mrf.mxu0
      %v5527 = vadd.f32 %v4888, %v5526
      %v5528 = vpop.f32.mrf.mxu0
      %5529 = vmatprep.mubr.bf16.mxu0 0
      %5530 = vmatmul.mubr.bf16.gmra.mxu0 %v5046
      %v5531 = vpop.f32.mrf.mxu0
      %v5532 = vadd.f32 %v4888, %v5531
      %v5533 = vpop.f32.mrf.mxu0
      %v5534 = vpop.f32.mrf.mxu0
      %v5535 = vadd.f32 %v4888, %v5534
      %v5536 = vpop.f32.mrf.mxu0
      %5537 = vmatprep.mubr.bf16.mxu0 0
      %5538 = vmatmul.mubr.bf16.gmra.mxu0 %v5049
      %v5539 = vpop.f32.mrf.mxu0
      %v5540 = vadd.f32 %v4888, %v5539
      %v5541 = vpop.f32.mrf.mxu0
      %v5542 = vpop.f32.mrf.mxu0
      %v5543 = vadd.f32 %v4888, %v5542
      %v5544 = vpop.f32.mrf.mxu0
      %5545 = vmatprep.mubr.bf16.mxu0 0
      %5546 = vmatmul.mubr.bf16.gmra.mxu0 %v5052
      %v5547 = vpop.f32.mrf.mxu0
      %v5548 = vadd.f32 %v4888, %v5547
      %v5549 = vpop.f32.mrf.mxu0
      %v5550 = vpop.f32.mrf.mxu0
      %v5551 = vadd.f32 %v4888, %v5550
      %v5552 = vpop.f32.mrf.mxu0
      %5553 = vmatprep.mubr.bf16.mxu0 0
      %5554 = vmatmul.mubr.bf16.gmra.mxu0 %v5055
      %v5555 = vpop.f32.mrf.mxu0
      %v5556 = vadd.f32 %v4888, %v5555
      %v5557 = vpop.f32.mrf.mxu0
      %v5558 = vpop.f32.mrf.mxu0
      %v5559 = vadd.f32 %v4888, %v5558
      %v5560 = vpop.f32.mrf.mxu0
      %5561 = vmatprep.mubr.bf16.mxu0 0
      %5562 = vmatmul.mubr.bf16.gmra.mxu0 %v5058
      %v5563 = vpop.f32.mrf.mxu0
      %v5564 = vadd.f32 %v4888, %v5563
      %v5565 = vpop.f32.mrf.mxu0
      %v5566 = vpop.f32.mrf.mxu0
      %v5567 = vadd.f32 %v4888, %v5566
      %v5568 = vpop.f32.mrf.mxu0
      %5569 = vmatprep.mubr.bf16.mxu0 0
      %5570 = vmatmul.mubr.bf16.gmra.mxu0 %v5061
      %v5571 = vpop.f32.mrf.mxu0
      %v5572 = vadd.f32 %v4888, %v5571
      %v5573 = vpop.f32.mrf.mxu0
      %v5574 = vpop.f32.mrf.mxu0
      %v5575 = vadd.f32 %v4888, %v5574
      %v5576 = vpop.f32.mrf.mxu0
      %5577 = vmatprep.mubr.bf16.mxu0 0
      %5578 = vmatmul.mubr.bf16.gmra.mxu0 %v5064
      %v5579 = vpop.f32.mrf.mxu0
      %v5580 = vadd.f32 %v4888, %v5579
      %v5581 = vpop.f32.mrf.mxu0
      %v5582 = vpop.f32.mrf.mxu0
      %v5583 = vadd.f32 %v4888, %v5582
      %v5584 = vpop.f32.mrf.mxu0
      %5585 = vmatprep.mubr.bf16.mxu0 0
      %5586 = vmatmul.mubr.bf16.gmra.mxu0 %v5067
      %v5587 = vpop.f32.mrf.mxu0
      %v5588 = vadd.f32 %v4888, %v5587
      %v5589 = vpop.f32.mrf.mxu0
      %v5590 = vpop.f32.mrf.mxu0
      %v5591 = vadd.f32 %v4888, %v5590
      %v5592 = vpop.f32.mrf.mxu0
      %5593 = vmatprep.mubr.bf16.mxu0 0
      %5594 = vmatmul.mubr.bf16.gmra.mxu0 %v5070
      %v5595 = vpop.f32.mrf.mxu0
      %v5596 = vadd.f32 %v4888, %v5595
      %v5597 = vpop.f32.mrf.mxu0
      %v5598 = vpop.f32.mrf.mxu0
      %v5599 = vadd.f32 %v4888, %v5598
      %v5600 = vpop.f32.mrf.mxu0
      %5601 = vmatprep.mubr.bf16.mxu0 0
      %5602 = vmatmul.mubr.bf16.gmra.mxu0 %v5073
      %v5603 = vpop.f32.mrf.mxu0
      %v5604 = vadd.f32 %v4888, %v5603
      %v5605 = vpop.f32.mrf.mxu0
      %v5606 = vpop.f32.mrf.mxu0
      %v5607 = vadd.f32 %v4888, %v5606
      %v5608 = vpop.f32.mrf.mxu0
      %5609 = vmatprep.mubr.bf16.mxu0 0
      %5610 = vmatmul.mubr.bf16.gmra.mxu0 %v5076
      %v5611 = vpop.f32.mrf.mxu0
      %v5612 = vadd.f32 %v4888, %v5611
      %v5613 = vpop.f32.mrf.mxu0
      %v5614 = vpop.f32.mrf.mxu0
      %v5615 = vadd.f32 %v4888, %v5614
      %v5616 = vpop.f32.mrf.mxu0
      %5617 = vmatprep.mubr.bf16.mxu0 0
      %5618 = vmatmul.mubr.bf16.gmra.mxu0 %v5079
      %v5619 = vpop.f32.mrf.mxu0
      %v5620 = vadd.f32 %v4888, %v5619
      %v5621 = vpop.f32.mrf.mxu0
      %v5622 = vpop.f32.mrf.mxu0
      %v5623 = vadd.f32 %v4888, %v5622
      %v5624 = vpop.f32.mrf.mxu0
      %5625 = vdwg.mxu0
      %v5626 = vmax.f32 %v5116, 0.0
      %v5627 = vmax.f32 %v5119, 0.0
      %v5628 = vmax.f32 %v5124, 0.0
      %v5629 = vmax.f32 %v5127, 0.0
      %v5630 = vmax.f32 %v5132, 0.0
      %v5631 = vmax.f32 %v5135, 0.0
      %v5632 = vmax.f32 %v5140, 0.0
      %v5633 = vmax.f32 %v5143, 0.0
      %v5634 = vmax.f32 %v5148, 0.0
      %v5635 = vmax.f32 %v5151, 0.0
      %v5636 = vmax.f32 %v5156, 0.0
      %v5637 = vmax.f32 %v5159, 0.0
      %v5638 = vmax.f32 %v5164, 0.0
      %v5639 = vmax.f32 %v5167, 0.0
      %v5640 = vmax.f32 %v5172, 0.0
      %v5641 = vmax.f32 %v5175, 0.0
      %v5642 = vmax.f32 %v5180, 0.0
      %v5643 = vmax.f32 %v5183, 0.0
      %v5644 = vmax.f32 %v5188, 0.0
      %v5645 = vmax.f32 %v5191, 0.0
      %v5646 = vmax.f32 %v5196, 0.0
      %v5647 = vmax.f32 %v5199, 0.0
      %v5648 = vmax.f32 %v5204, 0.0
      %v5649 = vmax.f32 %v5207, 0.0
      %v5650 = vmax.f32 %v5212, 0.0
      %v5651 = vmax.f32 %v5215, 0.0
      %v5652 = vmax.f32 %v5220, 0.0
      %v5653 = vmax.f32 %v5223, 0.0
      %v5654 = vmax.f32 %v5228, 0.0
      %v5655 = vmax.f32 %v5231, 0.0
      %v5656 = vmax.f32 %v5236, 0.0
      %v5657 = vmax.f32 %v5239, 0.0
      %v5658 = vmax.f32 %v5244, 0.0
      %v5659 = vmax.f32 %v5247, 0.0
      %v5660 = vmax.f32 %v5252, 0.0
      %v5661 = vmax.f32 %v5255, 0.0
      %v5662 = vmax.f32 %v5260, 0.0
      %v5663 = vmax.f32 %v5263, 0.0
      %v5664 = vmax.f32 %v5268, 0.0
      %v5665 = vmax.f32 %v5271, 0.0
      %v5666 = vmax.f32 %v5276, 0.0
      %v5667 = vmax.f32 %v5279, 0.0
      %v5668 = vmax.f32 %v5284, 0.0
      %v5669 = vmax.f32 %v5287, 0.0
      %v5670 = vmax.f32 %v5292, 0.0
      %v5671 = vmax.f32 %v5295, 0.0
      %v5672 = vmax.f32 %v5300, 0.0
      %v5673 = vmax.f32 %v5303, 0.0
      %v5674 = vmax.f32 %v5308, 0.0
      %v5675 = vmax.f32 %v5311, 0.0
      %v5676 = vmax.f32 %v5316, 0.0
      %v5677 = vmax.f32 %v5319, 0.0
      %v5678 = vmax.f32 %v5324, 0.0
      %v5679 = vmax.f32 %v5327, 0.0
      %v5680 = vmax.f32 %v5332, 0.0
      %v5681 = vmax.f32 %v5335, 0.0
      %v5682 = vmax.f32 %v5340, 0.0
      %v5683 = vmax.f32 %v5343, 0.0
      %v5684 = vmax.f32 %v5348, 0.0
      %v5685 = vmax.f32 %v5351, 0.0
      %v5686 = vmax.f32 %v5356, 0.0
      %v5687 = vmax.f32 %v5359, 0.0
      %v5688 = vmax.f32 %v5364, 0.0
      %v5689 = vmax.f32 %v5367, 0.0
      %v5690 = vmax.f32 %v5372, 0.0
      %v5691 = vmax.f32 %v5375, 0.0
      %v5692 = vmax.f32 %v5380, 0.0
      %v5693 = vmax.f32 %v5383, 0.0
      %v5694 = vmax.f32 %v5388, 0.0
      %v5695 = vmax.f32 %v5391, 0.0
      %v5696 = vmax.f32 %v5396, 0.0
      %v5697 = vmax.f32 %v5399, 0.0
      %v5698 = vmax.f32 %v5404, 0.0
      %v5699 = vmax.f32 %v5407, 0.0
      %v5700 = vmax.f32 %v5412, 0.0
      %v5701 = vmax.f32 %v5415, 0.0
      %v5702 = vmax.f32 %v5420, 0.0
      %v5703 = vmax.f32 %v5423, 0.0
      %v5704 = vmax.f32 %v5428, 0.0
      %v5705 = vmax.f32 %v5431, 0.0
      %v5706 = vmax.f32 %v5436, 0.0
      %v5707 = vmax.f32 %v5439, 0.0
      %v5708 = vmax.f32 %v5444, 0.0
      %v5709 = vmax.f32 %v5447, 0.0
      %v5710 = vmax.f32 %v5452, 0.0
      %v5711 = vmax.f32 %v5455, 0.0
      %v5712 = vmax.f32 %v5460, 0.0
      %v5713 = vmax.f32 %v5463, 0.0
      %v5714 = vmax.f32 %v5468, 0.0
      %v5715 = vmax.f32 %v5471, 0.0
      %v5716 = vmax.f32 %v5476, 0.0
      %v5717 = vmax.f32 %v5479, 0.0
      %v5718 = vmax.f32 %v5484, 0.0
      %v5719 = vmax.f32 %v5487, 0.0
      %v5720 = vmax.f32 %v5492, 0.0
      %v5721 = vmax.f32 %v5495, 0.0
      %v5722 = vmax.f32 %v5500, 0.0
      %v5723 = vmax.f32 %v5503, 0.0
      %v5724 = vmax.f32 %v5508, 0.0
      %v5725 = vmax.f32 %v5511, 0.0
      %v5726 = vmax.f32 %v5516, 0.0
      %v5727 = vmax.f32 %v5519, 0.0
      %v5728 = vmax.f32 %v5524, 0.0
      %v5729 = vmax.f32 %v5527, 0.0
      %v5730 = vmax.f32 %v5532, 0.0
      %v5731 = vmax.f32 %v5535, 0.0
      %v5732 = vmax.f32 %v5540, 0.0
      %v5733 = vmax.f32 %v5543, 0.0
      %v5734 = vmax.f32 %v5548, 0.0
      %v5735 = vmax.f32 %v5551, 0.0
      %v5736 = vmax.f32 %v5556, 0.0
      %v5737 = vmax.f32 %v5559, 0.0
      %v5738 = vmax.f32 %v5564, 0.0
      %v5739 = vmax.f32 %v5567, 0.0
      %v5740 = vmax.f32 %v5572, 0.0
      %v5741 = vmax.f32 %v5575, 0.0
      %v5742 = vmax.f32 %v5580, 0.0
      %v5743 = vmax.f32 %v5583, 0.0
      %v5744 = vmax.f32 %v5588, 0.0
      %v5745 = vmax.f32 %v5591, 0.0
      %v5746 = vmax.f32 %v5596, 0.0
      %v5747 = vmax.f32 %v5599, 0.0
      %v5748 = vmax.f32 %v5604, 0.0
      %v5749 = vmax.f32 %v5607, 0.0
      %v5750 = vmax.f32 %v5612, 0.0
      %v5751 = vmax.f32 %v5615, 0.0
      %v5752 = vmax.f32 %v5620, 0.0
      %v5753 = vmax.f32 %v5623, 0.0
      %v5754 = vpack.c.bf16 %v5627, %v5626
      %v5755 = vpack.c.bf16 %v5629, %v5628
      %v5756 = vpack.c.bf16 %v5631, %v5630
      %v5757 = vpack.c.bf16 %v5633, %v5632
      %v5758 = vpack.c.bf16 %v5635, %v5634
      %v5759 = vpack.c.bf16 %v5637, %v5636
      %v5760 = vpack.c.bf16 %v5639, %v5638
      %v5761 = vpack.c.bf16 %v5641, %v5640
      %v5762 = vpack.c.bf16 %v5643, %v5642
      %v5763 = vpack.c.bf16 %v5645, %v5644
      %v5764 = vpack.c.bf16 %v5647, %v5646
      %v5765 = vpack.c.bf16 %v5649, %v5648
      %v5766 = vpack.c.bf16 %v5651, %v5650
      %v5767 = vpack.c.bf16 %v5653, %v5652
      %v5768 = vpack.c.bf16 %v5655, %v5654
      %v5769 = vpack.c.bf16 %v5657, %v5656
      %v5770 = vpack.c.bf16 %v5659, %v5658
      %v5771 = vpack.c.bf16 %v5661, %v5660
      %v5772 = vpack.c.bf16 %v5663, %v5662
      %v5773 = vpack.c.bf16 %v5665, %v5664
      %v5774 = vpack.c.bf16 %v5667, %v5666
      %v5775 = vpack.c.bf16 %v5669, %v5668
      %v5776 = vpack.c.bf16 %v5671, %v5670
      %v5777 = vpack.c.bf16 %v5673, %v5672
      %v5778 = vpack.c.bf16 %v5675, %v5674
      %v5779 = vpack.c.bf16 %v5677, %v5676
      %v5780 = vpack.c.bf16 %v5679, %v5678
      %v5781 = vpack.c.bf16 %v5681, %v5680
      %v5782 = vpack.c.bf16 %v5683, %v5682
      %v5783 = vpack.c.bf16 %v5685, %v5684
      %v5784 = vpack.c.bf16 %v5687, %v5686
      %v5785 = vpack.c.bf16 %v5689, %v5688
      %v5786 = vpack.c.bf16 %v5691, %v5690
      %v5787 = vpack.c.bf16 %v5693, %v5692
      %v5788 = vpack.c.bf16 %v5695, %v5694
      %v5789 = vpack.c.bf16 %v5697, %v5696
      %v5790 = vpack.c.bf16 %v5699, %v5698
      %v5791 = vpack.c.bf16 %v5701, %v5700
      %v5792 = vpack.c.bf16 %v5703, %v5702
      %v5793 = vpack.c.bf16 %v5705, %v5704
      %v5794 = vpack.c.bf16 %v5707, %v5706
      %v5795 = vpack.c.bf16 %v5709, %v5708
      %v5796 = vpack.c.bf16 %v5711, %v5710
      %v5797 = vpack.c.bf16 %v5713, %v5712
      %v5798 = vpack.c.bf16 %v5715, %v5714
      %v5799 = vpack.c.bf16 %v5717, %v5716
      %v5800 = vpack.c.bf16 %v5719, %v5718
      %v5801 = vpack.c.bf16 %v5721, %v5720
      %v5802 = vpack.c.bf16 %v5723, %v5722
      %v5803 = vpack.c.bf16 %v5725, %v5724
      %v5804 = vpack.c.bf16 %v5727, %v5726
      %v5805 = vpack.c.bf16 %v5729, %v5728
      %v5806 = vpack.c.bf16 %v5731, %v5730
      %v5807 = vpack.c.bf16 %v5733, %v5732
      %v5808 = vpack.c.bf16 %v5735, %v5734
      %v5809 = vpack.c.bf16 %v5737, %v5736
      %v5810 = vpack.c.bf16 %v5739, %v5738
      %v5811 = vpack.c.bf16 %v5741, %v5740
      %v5812 = vpack.c.bf16 %v5743, %v5742
      %v5813 = vpack.c.bf16 %v5745, %v5744
      %v5814 = vpack.c.bf16 %v5747, %v5746
      %v5815 = vpack.c.bf16 %v5749, %v5748
      %v5816 = vpack.c.bf16 %v5751, %v5750
      %v5817 = vpack.c.bf16 %v5753, %v5752
      %v5818 = vpack.c.bf16 %v4013, %v4012
      %v5819 = vpack.c.bf16 %v4015, %v4014
      %v5820 = vlaneseq
      %v5821 = vshrl.u32 %v5820, 7
      %v5822 = vsub.s32 0, %v5821
      %v5823 = vrot.slane %v4016, %v5822
      %v5825 = vsel %vm418, %v5754, 0
      %v5828 = vsel %vm418, %v5755, 0
      %v5831 = vsel %vm418, %v5756, 0
      %v5834 = vsel %vm418, %v5757, 0
      %v5837 = vsel %vm418, %v5758, 0
      %v5840 = vsel %vm418, %v5759, 0
      %v5843 = vsel %vm418, %v5760, 0
      %v5846 = vsel %vm418, %v5761, 0
      %v5849 = vsel %vm418, %v5762, 0
      %v5852 = vsel %vm418, %v5763, 0
      %v5855 = vsel %vm418, %v5764, 0
      %v5858 = vsel %vm418, %v5765, 0
      %v5861 = vsel %vm418, %v5766, 0
      %v5864 = vsel %vm418, %v5767, 0
      %v5867 = vsel %vm418, %v5768, 0
      %v5870 = vsel %vm418, %v5769, 0
      %v5873 = vsel %vm418, %v5770, 0
      %v5876 = vsel %vm418, %v5771, 0
      %v5879 = vsel %vm418, %v5772, 0
      %v5882 = vsel %vm418, %v5773, 0
      %v5885 = vsel %vm418, %v5774, 0
      %v5888 = vsel %vm418, %v5775, 0
      %v5891 = vsel %vm418, %v5776, 0
      %v5894 = vsel %vm418, %v5777, 0
      %v5897 = vsel %vm418, %v5778, 0
      %v5900 = vsel %vm418, %v5779, 0
      %v5903 = vsel %vm418, %v5780, 0
      %v5906 = vsel %vm418, %v5781, 0
      %v5909 = vsel %vm418, %v5782, 0
      %v5912 = vsel %vm418, %v5783, 0
      %v5915 = vsel %vm418, %v5784, 0
      %v5918 = vsel %vm418, %v5785, 0
      %v5921 = vsel %vm418, %v5786, 0
      %v5924 = vsel %vm418, %v5787, 0
      %v5927 = vsel %vm418, %v5788, 0
      %v5930 = vsel %vm418, %v5789, 0
      %v5933 = vsel %vm418, %v5790, 0
      %v5936 = vsel %vm418, %v5791, 0
      %v5939 = vsel %vm418, %v5792, 0
      %v5942 = vsel %vm418, %v5793, 0
      %v5945 = vsel %vm418, %v5794, 0
      %v5948 = vsel %vm418, %v5795, 0
      %v5951 = vsel %vm418, %v5796, 0
      %v5954 = vsel %vm418, %v5797, 0
      %v5957 = vsel %vm418, %v5798, 0
      %v5960 = vsel %vm418, %v5799, 0
      %v5963 = vsel %vm418, %v5800, 0
      %v5966 = vsel %vm418, %v5801, 0
      %v5969 = vsel %vm418, %v5802, 0
      %v5972 = vsel %vm418, %v5803, 0
      %v5975 = vsel %vm418, %v5804, 0
      %v5978 = vsel %vm418, %v5805, 0
      %v5981 = vsel %vm418, %v5806, 0
      %v5984 = vsel %vm418, %v5807, 0
      %v5987 = vsel %vm418, %v5808, 0
      %v5990 = vsel %vm418, %v5809, 0
      %v5993 = vsel %vm418, %v5810, 0
      %v5996 = vsel %vm418, %v5811, 0
      %v5999 = vsel %vm418, %v5812, 0
      %v6002 = vsel %vm418, %v5813, 0
      %v6005 = vsel %vm418, %v5814, 0
      %v6008 = vsel %vm418, %v5815, 0
      %v6011 = vsel %vm418, %v5816, 0
      %v6014 = vsel %vm418, %v5817, 0
      %6016 = vmatprep.subr.bf16.mxu0 0
      %6017 = vmatpush1.bf16.msra.mxu0 0
      %6018 = vmatprep.subr.bf16.mxu0 0
      %6019 = vmatpush1.bf16.msra.mxu0 0
      %6020 = vmatprep.subr.bf16.mxu0 0
      %6021 = vmatpush1.bf16.msra.mxu0 0
      %6022 = vmatprep.subr.bf16.mxu0 0
      %6023 = vmatpush1.bf16.msra.mxu0 0
      %6024 = vmatprep.subr.bf16.mxu0 0
      %6025 = vmatpush1.bf16.msra.mxu0 0
      %6026 = vmatprep.subr.bf16.mxu0 0
      %6027 = vmatpush1.bf16.msra.mxu0 0
      %6028 = vmatprep.subr.bf16.mxu0 0
      %6029 = vmatpush1.bf16.msra.mxu0 %v5819
      %6030 = vmatprep.subr.bf16.mxu0 0
      %6031 = vmatpush1.bf16.msra.mxu0 %v5818
      %6032 = vmatprep.subr.bf16.mxu0 0
      %6033 = vmatpush2.bf16.msra.mxu0 0
      %6034 = vmatprep.subr.bf16.mxu0 0
      %6035 = vmatpush2.bf16.msra.mxu0 0
      %6036 = vmatprep.subr.bf16.mxu0 0
      %6037 = vmatpush2.bf16.msra.mxu0 0
      %6038 = vmatprep.subr.bf16.mxu0 0
      %6039 = vmatpush2.bf16.msra.mxu0 0
      %6040 = vmatprep.subr.bf16.mxu0 0
      %6041 = vmatpush2.bf16.msra.mxu0 0
      %6042 = vmatprep.subr.bf16.mxu0 0
      %6043 = vmatpush2.bf16.msra.mxu0 0
      %6044 = vmatprep.subr.bf16.mxu0 0
      %6045 = vmatpush2.bf16.msra.mxu0 0
      %6046 = vmatprep.subr.bf16.mxu0 0
      %6047 = vmatpush2.bf16.msra.mxu0 0
      %6048 = vmatprep.mubr.bf16.mxu0 0
      %6049 = vmatmul.mubr.bf16.gmra.mxu0 %v5825
      %v6050 = vpop.f32.mrf.mxu0
      %v6051 = vadd.f32 %v5823, %v6050
      %v6052 = vpop.f32.mrf.mxu0
      %v6053 = vpop.f32.mrf.mxu0
      %v6054 = vadd.f32 %v5823, %v6053
      %v6055 = vpop.f32.mrf.mxu0
      %6056 = vmatprep.mubr.bf16.mxu0 0
      %6057 = vmatmul.mubr.bf16.gmra.mxu0 %v5828
      %v6058 = vpop.f32.mrf.mxu0
      %v6059 = vadd.f32 %v5823, %v6058
      %v6060 = vpop.f32.mrf.mxu0
      %v6061 = vpop.f32.mrf.mxu0
      %v6062 = vadd.f32 %v5823, %v6061
      %v6063 = vpop.f32.mrf.mxu0
      %6064 = vmatprep.mubr.bf16.mxu0 0
      %6065 = vmatmul.mubr.bf16.gmra.mxu0 %v5831
      %v6066 = vpop.f32.mrf.mxu0
      %v6067 = vadd.f32 %v5823, %v6066
      %v6068 = vpop.f32.mrf.mxu0
      %v6069 = vpop.f32.mrf.mxu0
      %v6070 = vadd.f32 %v5823, %v6069
      %v6071 = vpop.f32.mrf.mxu0
      %6072 = vmatprep.mubr.bf16.mxu0 0
      %6073 = vmatmul.mubr.bf16.gmra.mxu0 %v5834
      %v6074 = vpop.f32.mrf.mxu0
      %v6075 = vadd.f32 %v5823, %v6074
      %v6076 = vpop.f32.mrf.mxu0
      %v6077 = vpop.f32.mrf.mxu0
      %v6078 = vadd.f32 %v5823, %v6077
      %v6079 = vpop.f32.mrf.mxu0
      %6080 = vmatprep.mubr.bf16.mxu0 0
      %6081 = vmatmul.mubr.bf16.gmra.mxu0 %v5837
      %v6082 = vpop.f32.mrf.mxu0
      %v6083 = vadd.f32 %v5823, %v6082
      %v6084 = vpop.f32.mrf.mxu0
      %v6085 = vpop.f32.mrf.mxu0
      %v6086 = vadd.f32 %v5823, %v6085
      %v6087 = vpop.f32.mrf.mxu0
      %6088 = vmatprep.mubr.bf16.mxu0 0
      %6089 = vmatmul.mubr.bf16.gmra.mxu0 %v5840
      %v6090 = vpop.f32.mrf.mxu0
      %v6091 = vadd.f32 %v5823, %v6090
      %v6092 = vpop.f32.mrf.mxu0
      %v6093 = vpop.f32.mrf.mxu0
      %v6094 = vadd.f32 %v5823, %v6093
      %v6095 = vpop.f32.mrf.mxu0
      %6096 = vmatprep.mubr.bf16.mxu0 0
      %6097 = vmatmul.mubr.bf16.gmra.mxu0 %v5843
      %v6098 = vpop.f32.mrf.mxu0
      %v6099 = vadd.f32 %v5823, %v6098
      %v6100 = vpop.f32.mrf.mxu0
      %v6101 = vpop.f32.mrf.mxu0
      %v6102 = vadd.f32 %v5823, %v6101
      %v6103 = vpop.f32.mrf.mxu0
      %6104 = vmatprep.mubr.bf16.mxu0 0
      %6105 = vmatmul.mubr.bf16.gmra.mxu0 %v5846
      %v6106 = vpop.f32.mrf.mxu0
      %v6107 = vadd.f32 %v5823, %v6106
      %v6108 = vpop.f32.mrf.mxu0
      %v6109 = vpop.f32.mrf.mxu0
      %v6110 = vadd.f32 %v5823, %v6109
      %v6111 = vpop.f32.mrf.mxu0
      %6112 = vmatprep.mubr.bf16.mxu0 0
      %6113 = vmatmul.mubr.bf16.gmra.mxu0 %v5849
      %v6114 = vpop.f32.mrf.mxu0
      %v6115 = vadd.f32 %v5823, %v6114
      %v6116 = vpop.f32.mrf.mxu0
      %v6117 = vpop.f32.mrf.mxu0
      %v6118 = vadd.f32 %v5823, %v6117
      %v6119 = vpop.f32.mrf.mxu0
      %6120 = vmatprep.mubr.bf16.mxu0 0
      %6121 = vmatmul.mubr.bf16.gmra.mxu0 %v5852
      %v6122 = vpop.f32.mrf.mxu0
      %v6123 = vadd.f32 %v5823, %v6122
      %v6124 = vpop.f32.mrf.mxu0
      %v6125 = vpop.f32.mrf.mxu0
      %v6126 = vadd.f32 %v5823, %v6125
      %v6127 = vpop.f32.mrf.mxu0
      %6128 = vmatprep.mubr.bf16.mxu0 0
      %6129 = vmatmul.mubr.bf16.gmra.mxu0 %v5855
      %v6130 = vpop.f32.mrf.mxu0
      %v6131 = vadd.f32 %v5823, %v6130
      %v6132 = vpop.f32.mrf.mxu0
      %v6133 = vpop.f32.mrf.mxu0
      %v6134 = vadd.f32 %v5823, %v6133
      %v6135 = vpop.f32.mrf.mxu0
      %6136 = vmatprep.mubr.bf16.mxu0 0
      %6137 = vmatmul.mubr.bf16.gmra.mxu0 %v5858
      %v6138 = vpop.f32.mrf.mxu0
      %v6139 = vadd.f32 %v5823, %v6138
      %v6140 = vpop.f32.mrf.mxu0
      %v6141 = vpop.f32.mrf.mxu0
      %v6142 = vadd.f32 %v5823, %v6141
      %v6143 = vpop.f32.mrf.mxu0
      %6144 = vmatprep.mubr.bf16.mxu0 0
      %6145 = vmatmul.mubr.bf16.gmra.mxu0 %v5861
      %v6146 = vpop.f32.mrf.mxu0
      %v6147 = vadd.f32 %v5823, %v6146
      %v6148 = vpop.f32.mrf.mxu0
      %v6149 = vpop.f32.mrf.mxu0
      %v6150 = vadd.f32 %v5823, %v6149
      %v6151 = vpop.f32.mrf.mxu0
      %6152 = vmatprep.mubr.bf16.mxu0 0
      %6153 = vmatmul.mubr.bf16.gmra.mxu0 %v5864
      %v6154 = vpop.f32.mrf.mxu0
      %v6155 = vadd.f32 %v5823, %v6154
      %v6156 = vpop.f32.mrf.mxu0
      %v6157 = vpop.f32.mrf.mxu0
      %v6158 = vadd.f32 %v5823, %v6157
      %v6159 = vpop.f32.mrf.mxu0
      %6160 = vmatprep.mubr.bf16.mxu0 0
      %6161 = vmatmul.mubr.bf16.gmra.mxu0 %v5867
      %v6162 = vpop.f32.mrf.mxu0
      %v6163 = vadd.f32 %v5823, %v6162
      %v6164 = vpop.f32.mrf.mxu0
      %v6165 = vpop.f32.mrf.mxu0
      %v6166 = vadd.f32 %v5823, %v6165
      %v6167 = vpop.f32.mrf.mxu0
      %6168 = vmatprep.mubr.bf16.mxu0 0
      %6169 = vmatmul.mubr.bf16.gmra.mxu0 %v5870
      %v6170 = vpop.f32.mrf.mxu0
      %v6171 = vadd.f32 %v5823, %v6170
      %v6172 = vpop.f32.mrf.mxu0
      %v6173 = vpop.f32.mrf.mxu0
      %v6174 = vadd.f32 %v5823, %v6173
      %v6175 = vpop.f32.mrf.mxu0
      %6176 = vmatprep.mubr.bf16.mxu0 0
      %6177 = vmatmul.mubr.bf16.gmra.mxu0 %v5873
      %v6178 = vpop.f32.mrf.mxu0
      %v6179 = vadd.f32 %v5823, %v6178
      %v6180 = vpop.f32.mrf.mxu0
      %v6181 = vpop.f32.mrf.mxu0
      %v6182 = vadd.f32 %v5823, %v6181
      %v6183 = vpop.f32.mrf.mxu0
      %6184 = vmatprep.mubr.bf16.mxu0 0
      %6185 = vmatmul.mubr.bf16.gmra.mxu0 %v5876
      %v6186 = vpop.f32.mrf.mxu0
      %v6187 = vadd.f32 %v5823, %v6186
      %v6188 = vpop.f32.mrf.mxu0
      %v6189 = vpop.f32.mrf.mxu0
      %v6190 = vadd.f32 %v5823, %v6189
      %v6191 = vpop.f32.mrf.mxu0
      %6192 = vmatprep.mubr.bf16.mxu0 0
      %6193 = vmatmul.mubr.bf16.gmra.mxu0 %v5879
      %v6194 = vpop.f32.mrf.mxu0
      %v6195 = vadd.f32 %v5823, %v6194
      %v6196 = vpop.f32.mrf.mxu0
      %v6197 = vpop.f32.mrf.mxu0
      %v6198 = vadd.f32 %v5823, %v6197
      %v6199 = vpop.f32.mrf.mxu0
      %6200 = vmatprep.mubr.bf16.mxu0 0
      %6201 = vmatmul.mubr.bf16.gmra.mxu0 %v5882
      %v6202 = vpop.f32.mrf.mxu0
      %v6203 = vadd.f32 %v5823, %v6202
      %v6204 = vpop.f32.mrf.mxu0
      %v6205 = vpop.f32.mrf.mxu0
      %v6206 = vadd.f32 %v5823, %v6205
      %v6207 = vpop.f32.mrf.mxu0
      %6208 = vmatprep.mubr.bf16.mxu0 0
      %6209 = vmatmul.mubr.bf16.gmra.mxu0 %v5885
      %v6210 = vpop.f32.mrf.mxu0
      %v6211 = vadd.f32 %v5823, %v6210
      %v6212 = vpop.f32.mrf.mxu0
      %v6213 = vpop.f32.mrf.mxu0
      %v6214 = vadd.f32 %v5823, %v6213
      %v6215 = vpop.f32.mrf.mxu0
      %6216 = vmatprep.mubr.bf16.mxu0 0
      %6217 = vmatmul.mubr.bf16.gmra.mxu0 %v5888
      %v6218 = vpop.f32.mrf.mxu0
      %v6219 = vadd.f32 %v5823, %v6218
      %v6220 = vpop.f32.mrf.mxu0
      %v6221 = vpop.f32.mrf.mxu0
      %v6222 = vadd.f32 %v5823, %v6221
      %v6223 = vpop.f32.mrf.mxu0
      %6224 = vmatprep.mubr.bf16.mxu0 0
      %6225 = vmatmul.mubr.bf16.gmra.mxu0 %v5891
      %v6226 = vpop.f32.mrf.mxu0
      %v6227 = vadd.f32 %v5823, %v6226
      %v6228 = vpop.f32.mrf.mxu0
      %v6229 = vpop.f32.mrf.mxu0
      %v6230 = vadd.f32 %v5823, %v6229
      %v6231 = vpop.f32.mrf.mxu0
      %6232 = vmatprep.mubr.bf16.mxu0 0
      %6233 = vmatmul.mubr.bf16.gmra.mxu0 %v5894
      %v6234 = vpop.f32.mrf.mxu0
      %v6235 = vadd.f32 %v5823, %v6234
      %v6236 = vpop.f32.mrf.mxu0
      %v6237 = vpop.f32.mrf.mxu0
      %v6238 = vadd.f32 %v5823, %v6237
      %v6239 = vpop.f32.mrf.mxu0
      %6240 = vmatprep.mubr.bf16.mxu0 0
      %6241 = vmatmul.mubr.bf16.gmra.mxu0 %v5897
      %v6242 = vpop.f32.mrf.mxu0
      %v6243 = vadd.f32 %v5823, %v6242
      %v6244 = vpop.f32.mrf.mxu0
      %v6245 = vpop.f32.mrf.mxu0
      %v6246 = vadd.f32 %v5823, %v6245
      %v6247 = vpop.f32.mrf.mxu0
      %6248 = vmatprep.mubr.bf16.mxu0 0
      %6249 = vmatmul.mubr.bf16.gmra.mxu0 %v5900
      %v6250 = vpop.f32.mrf.mxu0
      %v6251 = vadd.f32 %v5823, %v6250
      %v6252 = vpop.f32.mrf.mxu0
      %v6253 = vpop.f32.mrf.mxu0
      %v6254 = vadd.f32 %v5823, %v6253
      %v6255 = vpop.f32.mrf.mxu0
      %6256 = vmatprep.mubr.bf16.mxu0 0
      %6257 = vmatmul.mubr.bf16.gmra.mxu0 %v5903
      %v6258 = vpop.f32.mrf.mxu0
      %v6259 = vadd.f32 %v5823, %v6258
      %v6260 = vpop.f32.mrf.mxu0
      %v6261 = vpop.f32.mrf.mxu0
      %v6262 = vadd.f32 %v5823, %v6261
      %v6263 = vpop.f32.mrf.mxu0
      %6264 = vmatprep.mubr.bf16.mxu0 0
      %6265 = vmatmul.mubr.bf16.gmra.mxu0 %v5906
      %v6266 = vpop.f32.mrf.mxu0
      %v6267 = vadd.f32 %v5823, %v6266
      %v6268 = vpop.f32.mrf.mxu0
      %v6269 = vpop.f32.mrf.mxu0
      %v6270 = vadd.f32 %v5823, %v6269
      %v6271 = vpop.f32.mrf.mxu0
      %6272 = vmatprep.mubr.bf16.mxu0 0
      %6273 = vmatmul.mubr.bf16.gmra.mxu0 %v5909
      %v6274 = vpop.f32.mrf.mxu0
      %v6275 = vadd.f32 %v5823, %v6274
      %v6276 = vpop.f32.mrf.mxu0
      %v6277 = vpop.f32.mrf.mxu0
      %v6278 = vadd.f32 %v5823, %v6277
      %v6279 = vpop.f32.mrf.mxu0
      %6280 = vmatprep.mubr.bf16.mxu0 0
      %6281 = vmatmul.mubr.bf16.gmra.mxu0 %v5912
      %v6282 = vpop.f32.mrf.mxu0
      %v6283 = vadd.f32 %v5823, %v6282
      %v6284 = vpop.f32.mrf.mxu0
      %v6285 = vpop.f32.mrf.mxu0
      %v6286 = vadd.f32 %v5823, %v6285
      %v6287 = vpop.f32.mrf.mxu0
      %6288 = vmatprep.mubr.bf16.mxu0 0
      %6289 = vmatmul.mubr.bf16.gmra.mxu0 %v5915
      %v6290 = vpop.f32.mrf.mxu0
      %v6291 = vadd.f32 %v5823, %v6290
      %v6292 = vpop.f32.mrf.mxu0
      %v6293 = vpop.f32.mrf.mxu0
      %v6294 = vadd.f32 %v5823, %v6293
      %v6295 = vpop.f32.mrf.mxu0
      %6296 = vmatprep.mubr.bf16.mxu0 0
      %6297 = vmatmul.mubr.bf16.gmra.mxu0 %v5918
      %v6298 = vpop.f32.mrf.mxu0
      %v6299 = vadd.f32 %v5823, %v6298
      %v6300 = vpop.f32.mrf.mxu0
      %v6301 = vpop.f32.mrf.mxu0
      %v6302 = vadd.f32 %v5823, %v6301
      %v6303 = vpop.f32.mrf.mxu0
      %6304 = vmatprep.mubr.bf16.mxu0 0
      %6305 = vmatmul.mubr.bf16.gmra.mxu0 %v5921
      %v6306 = vpop.f32.mrf.mxu0
      %v6307 = vadd.f32 %v5823, %v6306
      %v6308 = vpop.f32.mrf.mxu0
      %v6309 = vpop.f32.mrf.mxu0
      %v6310 = vadd.f32 %v5823, %v6309
      %v6311 = vpop.f32.mrf.mxu0
      %6312 = vmatprep.mubr.bf16.mxu0 0
      %6313 = vmatmul.mubr.bf16.gmra.mxu0 %v5924
      %v6314 = vpop.f32.mrf.mxu0
      %v6315 = vadd.f32 %v5823, %v6314
      %v6316 = vpop.f32.mrf.mxu0
      %v6317 = vpop.f32.mrf.mxu0
      %v6318 = vadd.f32 %v5823, %v6317
      %v6319 = vpop.f32.mrf.mxu0
      %6320 = vmatprep.mubr.bf16.mxu0 0
      %6321 = vmatmul.mubr.bf16.gmra.mxu0 %v5927
      %v6322 = vpop.f32.mrf.mxu0
      %v6323 = vadd.f32 %v5823, %v6322
      %v6324 = vpop.f32.mrf.mxu0
      %v6325 = vpop.f32.mrf.mxu0
      %v6326 = vadd.f32 %v5823, %v6325
      %v6327 = vpop.f32.mrf.mxu0
      %6328 = vmatprep.mubr.bf16.mxu0 0
      %6329 = vmatmul.mubr.bf16.gmra.mxu0 %v5930
      %v6330 = vpop.f32.mrf.mxu0
      %v6331 = vadd.f32 %v5823, %v6330
      %v6332 = vpop.f32.mrf.mxu0
      %v6333 = vpop.f32.mrf.mxu0
      %v6334 = vadd.f32 %v5823, %v6333
      %v6335 = vpop.f32.mrf.mxu0
      %6336 = vmatprep.mubr.bf16.mxu0 0
      %6337 = vmatmul.mubr.bf16.gmra.mxu0 %v5933
      %v6338 = vpop.f32.mrf.mxu0
      %v6339 = vadd.f32 %v5823, %v6338
      %v6340 = vpop.f32.mrf.mxu0
      %v6341 = vpop.f32.mrf.mxu0
      %v6342 = vadd.f32 %v5823, %v6341
      %v6343 = vpop.f32.mrf.mxu0
      %6344 = vmatprep.mubr.bf16.mxu0 0
      %6345 = vmatmul.mubr.bf16.gmra.mxu0 %v5936
      %v6346 = vpop.f32.mrf.mxu0
      %v6347 = vadd.f32 %v5823, %v6346
      %v6348 = vpop.f32.mrf.mxu0
      %v6349 = vpop.f32.mrf.mxu0
      %v6350 = vadd.f32 %v5823, %v6349
      %v6351 = vpop.f32.mrf.mxu0
      %6352 = vmatprep.mubr.bf16.mxu0 0
      %6353 = vmatmul.mubr.bf16.gmra.mxu0 %v5939
      %v6354 = vpop.f32.mrf.mxu0
      %v6355 = vadd.f32 %v5823, %v6354
      %v6356 = vpop.f32.mrf.mxu0
      %v6357 = vpop.f32.mrf.mxu0
      %v6358 = vadd.f32 %v5823, %v6357
      %v6359 = vpop.f32.mrf.mxu0
      %6360 = vmatprep.mubr.bf16.mxu0 0
      %6361 = vmatmul.mubr.bf16.gmra.mxu0 %v5942
      %v6362 = vpop.f32.mrf.mxu0
      %v6363 = vadd.f32 %v5823, %v6362
      %v6364 = vpop.f32.mrf.mxu0
      %v6365 = vpop.f32.mrf.mxu0
      %v6366 = vadd.f32 %v5823, %v6365
      %v6367 = vpop.f32.mrf.mxu0
      %6368 = vmatprep.mubr.bf16.mxu0 0
      %6369 = vmatmul.mubr.bf16.gmra.mxu0 %v5945
      %v6370 = vpop.f32.mrf.mxu0
      %v6371 = vadd.f32 %v5823, %v6370
      %v6372 = vpop.f32.mrf.mxu0
      %v6373 = vpop.f32.mrf.mxu0
      %v6374 = vadd.f32 %v5823, %v6373
      %v6375 = vpop.f32.mrf.mxu0
      %6376 = vmatprep.mubr.bf16.mxu0 0
      %6377 = vmatmul.mubr.bf16.gmra.mxu0 %v5948
      %v6378 = vpop.f32.mrf.mxu0
      %v6379 = vadd.f32 %v5823, %v6378
      %v6380 = vpop.f32.mrf.mxu0
      %v6381 = vpop.f32.mrf.mxu0
      %v6382 = vadd.f32 %v5823, %v6381
      %v6383 = vpop.f32.mrf.mxu0
      %6384 = vmatprep.mubr.bf16.mxu0 0
      %6385 = vmatmul.mubr.bf16.gmra.mxu0 %v5951
      %v6386 = vpop.f32.mrf.mxu0
      %v6387 = vadd.f32 %v5823, %v6386
      %v6388 = vpop.f32.mrf.mxu0
      %v6389 = vpop.f32.mrf.mxu0
      %v6390 = vadd.f32 %v5823, %v6389
      %v6391 = vpop.f32.mrf.mxu0
      %6392 = vmatprep.mubr.bf16.mxu0 0
      %6393 = vmatmul.mubr.bf16.gmra.mxu0 %v5954
      %v6394 = vpop.f32.mrf.mxu0
      %v6395 = vadd.f32 %v5823, %v6394
      %v6396 = vpop.f32.mrf.mxu0
      %v6397 = vpop.f32.mrf.mxu0
      %v6398 = vadd.f32 %v5823, %v6397
      %v6399 = vpop.f32.mrf.mxu0
      %6400 = vmatprep.mubr.bf16.mxu0 0
      %6401 = vmatmul.mubr.bf16.gmra.mxu0 %v5957
      %v6402 = vpop.f32.mrf.mxu0
      %v6403 = vadd.f32 %v5823, %v6402
      %v6404 = vpop.f32.mrf.mxu0
      %v6405 = vpop.f32.mrf.mxu0
      %v6406 = vadd.f32 %v5823, %v6405
      %v6407 = vpop.f32.mrf.mxu0
      %6408 = vmatprep.mubr.bf16.mxu0 0
      %6409 = vmatmul.mubr.bf16.gmra.mxu0 %v5960
      %v6410 = vpop.f32.mrf.mxu0
      %v6411 = vadd.f32 %v5823, %v6410
      %v6412 = vpop.f32.mrf.mxu0
      %v6413 = vpop.f32.mrf.mxu0
      %v6414 = vadd.f32 %v5823, %v6413
      %v6415 = vpop.f32.mrf.mxu0
      %6416 = vmatprep.mubr.bf16.mxu0 0
      %6417 = vmatmul.mubr.bf16.gmra.mxu0 %v5963
      %v6418 = vpop.f32.mrf.mxu0
      %v6419 = vadd.f32 %v5823, %v6418
      %v6420 = vpop.f32.mrf.mxu0
      %v6421 = vpop.f32.mrf.mxu0
      %v6422 = vadd.f32 %v5823, %v6421
      %v6423 = vpop.f32.mrf.mxu0
      %6424 = vmatprep.mubr.bf16.mxu0 0
      %6425 = vmatmul.mubr.bf16.gmra.mxu0 %v5966
      %v6426 = vpop.f32.mrf.mxu0
      %v6427 = vadd.f32 %v5823, %v6426
      %v6428 = vpop.f32.mrf.mxu0
      %v6429 = vpop.f32.mrf.mxu0
      %v6430 = vadd.f32 %v5823, %v6429
      %v6431 = vpop.f32.mrf.mxu0
      %6432 = vmatprep.mubr.bf16.mxu0 0
      %6433 = vmatmul.mubr.bf16.gmra.mxu0 %v5969
      %v6434 = vpop.f32.mrf.mxu0
      %v6435 = vadd.f32 %v5823, %v6434
      %v6436 = vpop.f32.mrf.mxu0
      %v6437 = vpop.f32.mrf.mxu0
      %v6438 = vadd.f32 %v5823, %v6437
      %v6439 = vpop.f32.mrf.mxu0
      %6440 = vmatprep.mubr.bf16.mxu0 0
      %6441 = vmatmul.mubr.bf16.gmra.mxu0 %v5972
      %v6442 = vpop.f32.mrf.mxu0
      %v6443 = vadd.f32 %v5823, %v6442
      %v6444 = vpop.f32.mrf.mxu0
      %v6445 = vpop.f32.mrf.mxu0
      %v6446 = vadd.f32 %v5823, %v6445
      %v6447 = vpop.f32.mrf.mxu0
      %6448 = vmatprep.mubr.bf16.mxu0 0
      %6449 = vmatmul.mubr.bf16.gmra.mxu0 %v5975
      %v6450 = vpop.f32.mrf.mxu0
      %v6451 = vadd.f32 %v5823, %v6450
      %v6452 = vpop.f32.mrf.mxu0
      %v6453 = vpop.f32.mrf.mxu0
      %v6454 = vadd.f32 %v5823, %v6453
      %v6455 = vpop.f32.mrf.mxu0
      %6456 = vmatprep.mubr.bf16.mxu0 0
      %6457 = vmatmul.mubr.bf16.gmra.mxu0 %v5978
      %v6458 = vpop.f32.mrf.mxu0
      %v6459 = vadd.f32 %v5823, %v6458
      %v6460 = vpop.f32.mrf.mxu0
      %v6461 = vpop.f32.mrf.mxu0
      %v6462 = vadd.f32 %v5823, %v6461
      %v6463 = vpop.f32.mrf.mxu0
      %6464 = vmatprep.mubr.bf16.mxu0 0
      %6465 = vmatmul.mubr.bf16.gmra.mxu0 %v5981
      %v6466 = vpop.f32.mrf.mxu0
      %v6467 = vadd.f32 %v5823, %v6466
      %v6468 = vpop.f32.mrf.mxu0
      %v6469 = vpop.f32.mrf.mxu0
      %v6470 = vadd.f32 %v5823, %v6469
      %v6471 = vpop.f32.mrf.mxu0
      %6472 = vmatprep.mubr.bf16.mxu0 0
      %6473 = vmatmul.mubr.bf16.gmra.mxu0 %v5984
      %v6474 = vpop.f32.mrf.mxu0
      %v6475 = vadd.f32 %v5823, %v6474
      %v6476 = vpop.f32.mrf.mxu0
      %v6477 = vpop.f32.mrf.mxu0
      %v6478 = vadd.f32 %v5823, %v6477
      %v6479 = vpop.f32.mrf.mxu0
      %6480 = vmatprep.mubr.bf16.mxu0 0
      %6481 = vmatmul.mubr.bf16.gmra.mxu0 %v5987
      %v6482 = vpop.f32.mrf.mxu0
      %v6483 = vadd.f32 %v5823, %v6482
      %v6484 = vpop.f32.mrf.mxu0
      %v6485 = vpop.f32.mrf.mxu0
      %v6486 = vadd.f32 %v5823, %v6485
      %v6487 = vpop.f32.mrf.mxu0
      %6488 = vmatprep.mubr.bf16.mxu0 0
      %6489 = vmatmul.mubr.bf16.gmra.mxu0 %v5990
      %v6490 = vpop.f32.mrf.mxu0
      %v6491 = vadd.f32 %v5823, %v6490
      %v6492 = vpop.f32.mrf.mxu0
      %v6493 = vpop.f32.mrf.mxu0
      %v6494 = vadd.f32 %v5823, %v6493
      %v6495 = vpop.f32.mrf.mxu0
      %6496 = vmatprep.mubr.bf16.mxu0 0
      %6497 = vmatmul.mubr.bf16.gmra.mxu0 %v5993
      %v6498 = vpop.f32.mrf.mxu0
      %v6499 = vadd.f32 %v5823, %v6498
      %v6500 = vpop.f32.mrf.mxu0
      %v6501 = vpop.f32.mrf.mxu0
      %v6502 = vadd.f32 %v5823, %v6501
      %v6503 = vpop.f32.mrf.mxu0
      %6504 = vmatprep.mubr.bf16.mxu0 0
      %6505 = vmatmul.mubr.bf16.gmra.mxu0 %v5996
      %v6506 = vpop.f32.mrf.mxu0
      %v6507 = vadd.f32 %v5823, %v6506
      %v6508 = vpop.f32.mrf.mxu0
      %v6509 = vpop.f32.mrf.mxu0
      %v6510 = vadd.f32 %v5823, %v6509
      %v6511 = vpop.f32.mrf.mxu0
      %6512 = vmatprep.mubr.bf16.mxu0 0
      %6513 = vmatmul.mubr.bf16.gmra.mxu0 %v5999
      %v6514 = vpop.f32.mrf.mxu0
      %v6515 = vadd.f32 %v5823, %v6514
      %v6516 = vpop.f32.mrf.mxu0
      %v6517 = vpop.f32.mrf.mxu0
      %v6518 = vadd.f32 %v5823, %v6517
      %v6519 = vpop.f32.mrf.mxu0
      %6520 = vmatprep.mubr.bf16.mxu0 0
      %6521 = vmatmul.mubr.bf16.gmra.mxu0 %v6002
      %v6522 = vpop.f32.mrf.mxu0
      %v6523 = vadd.f32 %v5823, %v6522
      %v6524 = vpop.f32.mrf.mxu0
      %v6525 = vpop.f32.mrf.mxu0
      %v6526 = vadd.f32 %v5823, %v6525
      %v6527 = vpop.f32.mrf.mxu0
      %6528 = vmatprep.mubr.bf16.mxu0 0
      %6529 = vmatmul.mubr.bf16.gmra.mxu0 %v6005
      %v6530 = vpop.f32.mrf.mxu0
      %v6531 = vadd.f32 %v5823, %v6530
      %v6532 = vpop.f32.mrf.mxu0
      %v6533 = vpop.f32.mrf.mxu0
      %v6534 = vadd.f32 %v5823, %v6533
      %v6535 = vpop.f32.mrf.mxu0
      %6536 = vmatprep.mubr.bf16.mxu0 0
      %6537 = vmatmul.mubr.bf16.gmra.mxu0 %v6008
      %v6538 = vpop.f32.mrf.mxu0
      %v6539 = vadd.f32 %v5823, %v6538
      %v6540 = vpop.f32.mrf.mxu0
      %v6541 = vpop.f32.mrf.mxu0
      %v6542 = vadd.f32 %v5823, %v6541
      %v6543 = vpop.f32.mrf.mxu0
      %6544 = vmatprep.mubr.bf16.mxu0 0
      %6545 = vmatmul.mubr.bf16.gmra.mxu0 %v6011
      %v6546 = vpop.f32.mrf.mxu0
      %v6547 = vadd.f32 %v5823, %v6546
      %v6548 = vpop.f32.mrf.mxu0
      %v6549 = vpop.f32.mrf.mxu0
      %v6550 = vadd.f32 %v5823, %v6549
      %v6551 = vpop.f32.mrf.mxu0
      %6552 = vmatprep.mubr.bf16.mxu0 0
      %6553 = vmatmul.mubr.bf16.gmra.mxu0 %v6014
      %v6554 = vpop.f32.mrf.mxu0
      %v6555 = vadd.f32 %v5823, %v6554
      %v6556 = vpop.f32.mrf.mxu0
      %v6557 = vpop.f32.mrf.mxu0
      %v6558 = vadd.f32 %v5823, %v6557
      %v6559 = vpop.f32.mrf.mxu0
      %6560 = vdwg.mxu0
      %v6561 = vadd.f32 %v6051, %v3003
      %v6562 = vadd.f32 %v6054, %v3007
      %v6563 = vadd.f32 %v6059, %v3011
      %v6564 = vadd.f32 %v6062, %v3015
      %v6565 = vadd.f32 %v6067, %v3022
      %v6566 = vadd.f32 %v6070, %v3026
      %v6567 = vadd.f32 %v6075, %v3030
      %v6568 = vadd.f32 %v6078, %v3034
      %v6569 = vadd.f32 %v6083, %v3041
      %v6570 = vadd.f32 %v6086, %v3045
      %v6571 = vadd.f32 %v6091, %v3049
      %v6572 = vadd.f32 %v6094, %v3053
      %v6573 = vadd.f32 %v6099, %v3060
      %v6574 = vadd.f32 %v6102, %v3064
      %v6575 = vadd.f32 %v6107, %v3068
      %v6576 = vadd.f32 %v6110, %v3072
      %v6577 = vadd.f32 %v6115, %v3079
      %v6578 = vadd.f32 %v6118, %v3083
      %v6579 = vadd.f32 %v6123, %v3087
      %v6580 = vadd.f32 %v6126, %v3091
      %v6581 = vadd.f32 %v6131, %v3098
      %v6582 = vadd.f32 %v6134, %v3102
      %v6583 = vadd.f32 %v6139, %v3106
      %v6584 = vadd.f32 %v6142, %v3110
      %v6585 = vadd.f32 %v6147, %v3117
      %v6586 = vadd.f32 %v6150, %v3121
      %v6587 = vadd.f32 %v6155, %v3125
      %v6588 = vadd.f32 %v6158, %v3129
      %v6589 = vadd.f32 %v6163, %v3136
      %v6590 = vadd.f32 %v6166, %v3140
      %v6591 = vadd.f32 %v6171, %v3144
      %v6592 = vadd.f32 %v6174, %v3148
      %v6593 = vadd.f32 %v6179, %v3155
      %v6594 = vadd.f32 %v6182, %v3159
      %v6595 = vadd.f32 %v6187, %v3163
      %v6596 = vadd.f32 %v6190, %v3167
      %v6597 = vadd.f32 %v6195, %v3174
      %v6598 = vadd.f32 %v6198, %v3178
      %v6599 = vadd.f32 %v6203, %v3182
      %v6600 = vadd.f32 %v6206, %v3186
      %v6601 = vadd.f32 %v6211, %v3193
      %v6602 = vadd.f32 %v6214, %v3197
      %v6603 = vadd.f32 %v6219, %v3201
      %v6604 = vadd.f32 %v6222, %v3205
      %v6605 = vadd.f32 %v6227, %v3212
      %v6606 = vadd.f32 %v6230, %v3216
      %v6607 = vadd.f32 %v6235, %v3220
      %v6608 = vadd.f32 %v6238, %v3224
      %v6609 = vadd.f32 %v6243, %v3231
      %v6610 = vadd.f32 %v6246, %v3235
      %v6611 = vadd.f32 %v6251, %v3239
      %v6612 = vadd.f32 %v6254, %v3243
      %v6613 = vadd.f32 %v6259, %v3250
      %v6614 = vadd.f32 %v6262, %v3254
      %v6615 = vadd.f32 %v6267, %v3258
      %v6616 = vadd.f32 %v6270, %v3262
      %v6617 = vadd.f32 %v6275, %v3269
      %v6618 = vadd.f32 %v6278, %v3273
      %v6619 = vadd.f32 %v6283, %v3277
      %v6620 = vadd.f32 %v6286, %v3281
      %v6621 = vadd.f32 %v6291, %v3288
      %v6622 = vadd.f32 %v6294, %v3292
      %v6623 = vadd.f32 %v6299, %v3296
      %v6624 = vadd.f32 %v6302, %v3300
      %v6625 = vadd.f32 %v6307, %v3307
      %v6626 = vadd.f32 %v6310, %v3311
      %v6627 = vadd.f32 %v6315, %v3315
      %v6628 = vadd.f32 %v6318, %v3319
      %v6629 = vadd.f32 %v6323, %v3326
      %v6630 = vadd.f32 %v6326, %v3330
      %v6631 = vadd.f32 %v6331, %v3334
      %v6632 = vadd.f32 %v6334, %v3338
      %v6633 = vadd.f32 %v6339, %v3345
      %v6634 = vadd.f32 %v6342, %v3349
      %v6635 = vadd.f32 %v6347, %v3353
      %v6636 = vadd.f32 %v6350, %v3357
      %v6637 = vadd.f32 %v6355, %v3364
      %v6638 = vadd.f32 %v6358, %v3368
      %v6639 = vadd.f32 %v6363, %v3372
      %v6640 = vadd.f32 %v6366, %v3376
      %v6641 = vadd.f32 %v6371, %v3383
      %v6642 = vadd.f32 %v6374, %v3387
      %v6643 = vadd.f32 %v6379, %v3391
      %v6644 = vadd.f32 %v6382, %v3395
      %v6645 = vadd.f32 %v6387, %v3402
      %v6646 = vadd.f32 %v6390, %v3406
      %v6647 = vadd.f32 %v6395, %v3410
      %v6648 = vadd.f32 %v6398, %v3414
      %v6649 = vadd.f32 %v6403, %v3421
      %v6650 = vadd.f32 %v6406, %v3425
      %v6651 = vadd.f32 %v6411, %v3429
      %v6652 = vadd.f32 %v6414, %v3433
      %v6653 = vadd.f32 %v6419, %v3440
      %v6654 = vadd.f32 %v6422, %v3444
      %v6655 = vadd.f32 %v6427, %v3448
      %v6656 = vadd.f32 %v6430, %v3452
      %v6657 = vadd.f32 %v6435, %v3459
      %v6658 = vadd.f32 %v6438, %v3463
      %v6659 = vadd.f32 %v6443, %v3467
      %v6660 = vadd.f32 %v6446, %v3471
      %v6661 = vadd.f32 %v6451, %v3478
      %v6662 = vadd.f32 %v6454, %v3482
      %v6663 = vadd.f32 %v6459, %v3486
      %v6664 = vadd.f32 %v6462, %v3490
      %v6665 = vadd.f32 %v6467, %v3497
      %v6666 = vadd.f32 %v6470, %v3501
      %v6667 = vadd.f32 %v6475, %v3505
      %v6668 = vadd.f32 %v6478, %v3509
      %v6669 = vadd.f32 %v6483, %v3516
      %v6670 = vadd.f32 %v6486, %v3520
      %v6671 = vadd.f32 %v6491, %v3524
      %v6672 = vadd.f32 %v6494, %v3528
      %v6673 = vadd.f32 %v6499, %v3535
      %v6674 = vadd.f32 %v6502, %v3539
      %v6675 = vadd.f32 %v6507, %v3543
      %v6676 = vadd.f32 %v6510, %v3547
      %v6677 = vadd.f32 %v6515, %v3554
      %v6678 = vadd.f32 %v6518, %v3558
      %v6679 = vadd.f32 %v6523, %v3562
      %v6680 = vadd.f32 %v6526, %v3566
      %v6681 = vadd.f32 %v6531, %v3573
      %v6682 = vadd.f32 %v6534, %v3577
      %v6683 = vadd.f32 %v6539, %v3581
      %v6684 = vadd.f32 %v6542, %v3585
      %v6685 = vadd.f32 %v6547, %v3592
      %v6686 = vadd.f32 %v6550, %v3596
      %v6687 = vadd.f32 %v6555, %v3600
      %v6688 = vadd.f32 %v6558, %v3604
      %v6689 = vsel %vm3733, %v6561, -inf
      %v6690 = vsel %vm3733, %v6565, -inf
      %v6691 = vmax.f32 %v6689, %v6690
      %v6692 = vsel %vm3733, %v6569, -inf
      %v6693 = vmax.f32 %v6691, %v6692
      %v6694 = vsel %vm3733, %v6573, -inf
      %v6695 = vmax.f32 %v6693, %v6694
      %v6696 = vsel %vm3733, %v6577, -inf
      %v6697 = vmax.f32 %v6695, %v6696
      %v6698 = vsel %vm3733, %v6581, -inf
      %v6699 = vmax.f32 %v6697, %v6698
      %v6700 = vsel %vm3733, %v6585, -inf
      %v6701 = vmax.f32 %v6699, %v6700
      %v6702 = vsel %vm3733, %v6589, -inf
      %v6703 = vmax.f32 %v6701, %v6702
      %v6704 = vsel %vm3733, %v6593, -inf
      %v6705 = vmax.f32 %v6703, %v6704
      %v6706 = vsel %vm3733, %v6597, -inf
      %v6707 = vmax.f32 %v6705, %v6706
      %v6708 = vsel %vm3733, %v6601, -inf
      %v6709 = vmax.f32 %v6707, %v6708
      %v6710 = vsel %vm3733, %v6605, -inf
      %v6711 = vmax.f32 %v6709, %v6710
      %v6712 = vsel %vm3733, %v6609, -inf
      %v6713 = vmax.f32 %v6711, %v6712
      %v6714 = vsel %vm3733, %v6613, -inf
      %v6715 = vmax.f32 %v6713, %v6714
      %v6716 = vsel %vm3733, %v6617, -inf
      %v6717 = vmax.f32 %v6715, %v6716
      %v6718 = vsel %vm3733, %v6621, -inf
      %v6719 = vmax.f32 %v6717, %v6718
      %v6720 = vsel %vm3733, %v6625, -inf
      %v6721 = vmax.f32 %v6719, %v6720
      %v6722 = vsel %vm3733, %v6629, -inf
      %v6723 = vmax.f32 %v6721, %v6722
      %v6724 = vsel %vm3733, %v6633, -inf
      %v6725 = vmax.f32 %v6723, %v6724
      %v6726 = vsel %vm3733, %v6637, -inf
      %v6727 = vmax.f32 %v6725, %v6726
      %v6728 = vsel %vm3733, %v6641, -inf
      %v6729 = vmax.f32 %v6727, %v6728
      %v6730 = vsel %vm3733, %v6645, -inf
      %v6731 = vmax.f32 %v6729, %v6730
      %v6732 = vsel %vm3733, %v6649, -inf
      %v6733 = vmax.f32 %v6731, %v6732
      %v6734 = vsel %vm3733, %v6653, -inf
      %v6735 = vmax.f32 %v6733, %v6734
      %v6736 = vsel %vm3733, %v6657, -inf
      %v6737 = vmax.f32 %v6735, %v6736
      %v6738 = vsel %vm3733, %v6661, -inf
      %v6739 = vmax.f32 %v6737, %v6738
      %v6740 = vsel %vm3733, %v6665, -inf
      %v6741 = vmax.f32 %v6739, %v6740
      %v6742 = vsel %vm3733, %v6669, -inf
      %v6743 = vmax.f32 %v6741, %v6742
      %v6744 = vsel %vm3733, %v6673, -inf
      %v6745 = vmax.f32 %v6743, %v6744
      %v6746 = vsel %vm3733, %v6677, -inf
      %v6747 = vmax.f32 %v6745, %v6746
      %v6748 = vsel %vm3733, %v6681, -inf
      %v6749 = vmax.f32 %v6747, %v6748
      %v6750 = vsel %vm3733, %v6685, -inf
      %v6751 = vmax.f32 %v6749, %v6750
      %v6752 = vsel %vm3733, %v6562, -inf
      %v6753 = vsel %vm3733, %v6566, -inf
      %v6754 = vmax.f32 %v6752, %v6753
      %v6755 = vsel %vm3733, %v6570, -inf
      %v6756 = vmax.f32 %v6754, %v6755
      %v6757 = vsel %vm3733, %v6574, -inf
      %v6758 = vmax.f32 %v6756, %v6757
      %v6759 = vsel %vm3733, %v6578, -inf
      %v6760 = vmax.f32 %v6758, %v6759
      %v6761 = vsel %vm3733, %v6582, -inf
      %v6762 = vmax.f32 %v6760, %v6761
      %v6763 = vsel %vm3733, %v6586, -inf
      %v6764 = vmax.f32 %v6762, %v6763
      %v6765 = vsel %vm3733, %v6590, -inf
      %v6766 = vmax.f32 %v6764, %v6765
      %v6767 = vsel %vm3733, %v6594, -inf
      %v6768 = vmax.f32 %v6766, %v6767
      %v6769 = vsel %vm3733, %v6598, -inf
      %v6770 = vmax.f32 %v6768, %v6769
      %v6771 = vsel %vm3733, %v6602, -inf
      %v6772 = vmax.f32 %v6770, %v6771
      %v6773 = vsel %vm3733, %v6606, -inf
      %v6774 = vmax.f32 %v6772, %v6773
      %v6775 = vsel %vm3733, %v6610, -inf
      %v6776 = vmax.f32 %v6774, %v6775
      %v6777 = vsel %vm3733, %v6614, -inf
      %v6778 = vmax.f32 %v6776, %v6777
      %v6779 = vsel %vm3733, %v6618, -inf
      %v6780 = vmax.f32 %v6778, %v6779
      %v6781 = vsel %vm3733, %v6622, -inf
      %v6782 = vmax.f32 %v6780, %v6781
      %v6783 = vsel %vm3733, %v6626, -inf
      %v6784 = vmax.f32 %v6782, %v6783
      %v6785 = vsel %vm3733, %v6630, -inf
      %v6786 = vmax.f32 %v6784, %v6785
      %v6787 = vsel %vm3733, %v6634, -inf
      %v6788 = vmax.f32 %v6786, %v6787
      %v6789 = vsel %vm3733, %v6638, -inf
      %v6790 = vmax.f32 %v6788, %v6789
      %v6791 = vsel %vm3733, %v6642, -inf
      %v6792 = vmax.f32 %v6790, %v6791
      %v6793 = vsel %vm3733, %v6646, -inf
      %v6794 = vmax.f32 %v6792, %v6793
      %v6795 = vsel %vm3733, %v6650, -inf
      %v6796 = vmax.f32 %v6794, %v6795
      %v6797 = vsel %vm3733, %v6654, -inf
      %v6798 = vmax.f32 %v6796, %v6797
      %v6799 = vsel %vm3733, %v6658, -inf
      %v6800 = vmax.f32 %v6798, %v6799
      %v6801 = vsel %vm3733, %v6662, -inf
      %v6802 = vmax.f32 %v6800, %v6801
      %v6803 = vsel %vm3733, %v6666, -inf
      %v6804 = vmax.f32 %v6802, %v6803
      %v6805 = vsel %vm3733, %v6670, -inf
      %v6806 = vmax.f32 %v6804, %v6805
      %v6807 = vsel %vm3733, %v6674, -inf
      %v6808 = vmax.f32 %v6806, %v6807
      %v6809 = vsel %vm3733, %v6678, -inf
      %v6810 = vmax.f32 %v6808, %v6809
      %v6811 = vsel %vm3733, %v6682, -inf
      %v6812 = vmax.f32 %v6810, %v6811
      %v6813 = vsel %vm3733, %v6686, -inf
      %v6814 = vmax.f32 %v6812, %v6813
      %v6815 = vsel %vm3733, %v6563, -inf
      %v6816 = vsel %vm3733, %v6567, -inf
      %v6817 = vmax.f32 %v6815, %v6816
      %v6818 = vsel %vm3733, %v6571, -inf
      %v6819 = vmax.f32 %v6817, %v6818
      %v6820 = vsel %vm3733, %v6575, -inf
      %v6821 = vmax.f32 %v6819, %v6820
      %v6822 = vsel %vm3733, %v6579, -inf
      %v6823 = vmax.f32 %v6821, %v6822
      %v6824 = vsel %vm3733, %v6583, -inf
      %v6825 = vmax.f32 %v6823, %v6824
      %v6826 = vsel %vm3733, %v6587, -inf
      %v6827 = vmax.f32 %v6825, %v6826
      %v6828 = vsel %vm3733, %v6591, -inf
      %v6829 = vmax.f32 %v6827, %v6828
      %v6830 = vsel %vm3733, %v6595, -inf
      %v6831 = vmax.f32 %v6829, %v6830
      %v6832 = vsel %vm3733, %v6599, -inf
      %v6833 = vmax.f32 %v6831, %v6832
      %v6834 = vsel %vm3733, %v6603, -inf
      %v6835 = vmax.f32 %v6833, %v6834
      %v6836 = vsel %vm3733, %v6607, -inf
      %v6837 = vmax.f32 %v6835, %v6836
      %v6838 = vsel %vm3733, %v6611, -inf
      %v6839 = vmax.f32 %v6837, %v6838
      %v6840 = vsel %vm3733, %v6615, -inf
      %v6841 = vmax.f32 %v6839, %v6840
      %v6842 = vsel %vm3733, %v6619, -inf
      %v6843 = vmax.f32 %v6841, %v6842
      %v6844 = vsel %vm3733, %v6623, -inf
      %v6845 = vmax.f32 %v6843, %v6844
      %v6846 = vsel %vm3733, %v6627, -inf
      %v6847 = vmax.f32 %v6845, %v6846
      %v6848 = vsel %vm3733, %v6631, -inf
      %v6849 = vmax.f32 %v6847, %v6848
      %v6850 = vsel %vm3733, %v6635, -inf
      %v6851 = vmax.f32 %v6849, %v6850
      %v6852 = vsel %vm3733, %v6639, -inf
      %v6853 = vmax.f32 %v6851, %v6852
      %v6854 = vsel %vm3733, %v6643, -inf
      %v6855 = vmax.f32 %v6853, %v6854
      %v6856 = vsel %vm3733, %v6647, -inf
      %v6857 = vmax.f32 %v6855, %v6856
      %v6858 = vsel %vm3733, %v6651, -inf
      %v6859 = vmax.f32 %v6857, %v6858
      %v6860 = vsel %vm3733, %v6655, -inf
      %v6861 = vmax.f32 %v6859, %v6860
      %v6862 = vsel %vm3733, %v6659, -inf
      %v6863 = vmax.f32 %v6861, %v6862
      %v6864 = vsel %vm3733, %v6663, -inf
      %v6865 = vmax.f32 %v6863, %v6864
      %v6866 = vsel %vm3733, %v6667, -inf
      %v6867 = vmax.f32 %v6865, %v6866
      %v6868 = vsel %vm3733, %v6671, -inf
      %v6869 = vmax.f32 %v6867, %v6868
      %v6870 = vsel %vm3733, %v6675, -inf
      %v6871 = vmax.f32 %v6869, %v6870
      %v6872 = vsel %vm3733, %v6679, -inf
      %v6873 = vmax.f32 %v6871, %v6872
      %v6874 = vsel %vm3733, %v6683, -inf
      %v6875 = vmax.f32 %v6873, %v6874
      %v6876 = vsel %vm3733, %v6687, -inf
      %v6877 = vmax.f32 %v6875, %v6876
      %v6878 = vsel %vm3733, %v6564, -inf
      %v6879 = vsel %vm3733, %v6568, -inf
      %v6880 = vmax.f32 %v6878, %v6879
      %v6881 = vsel %vm3733, %v6572, -inf
      %v6882 = vmax.f32 %v6880, %v6881
      %v6883 = vsel %vm3733, %v6576, -inf
      %v6884 = vmax.f32 %v6882, %v6883
      %v6885 = vsel %vm3733, %v6580, -inf
      %v6886 = vmax.f32 %v6884, %v6885
      %v6887 = vsel %vm3733, %v6584, -inf
      %v6888 = vmax.f32 %v6886, %v6887
      %v6889 = vsel %vm3733, %v6588, -inf
      %v6890 = vmax.f32 %v6888, %v6889
      %v6891 = vsel %vm3733, %v6592, -inf
      %v6892 = vmax.f32 %v6890, %v6891
      %v6893 = vsel %vm3733, %v6596, -inf
      %v6894 = vmax.f32 %v6892, %v6893
      %v6895 = vsel %vm3733, %v6600, -inf
      %v6896 = vmax.f32 %v6894, %v6895
      %v6897 = vsel %vm3733, %v6604, -inf
      %v6898 = vmax.f32 %v6896, %v6897
      %v6899 = vsel %vm3733, %v6608, -inf
      %v6900 = vmax.f32 %v6898, %v6899
      %v6901 = vsel %vm3733, %v6612, -inf
      %v6902 = vmax.f32 %v6900, %v6901
      %v6903 = vsel %vm3733, %v6616, -inf
      %v6904 = vmax.f32 %v6902, %v6903
      %v6905 = vsel %vm3733, %v6620, -inf
      %v6906 = vmax.f32 %v6904, %v6905
      %v6907 = vsel %vm3733, %v6624, -inf
      %v6908 = vmax.f32 %v6906, %v6907
      %v6909 = vsel %vm3733, %v6628, -inf
      %v6910 = vmax.f32 %v6908, %v6909
      %v6911 = vsel %vm3733, %v6632, -inf
      %v6912 = vmax.f32 %v6910, %v6911
      %v6913 = vsel %vm3733, %v6636, -inf
      %v6914 = vmax.f32 %v6912, %v6913
      %v6915 = vsel %vm3733, %v6640, -inf
      %v6916 = vmax.f32 %v6914, %v6915
      %v6917 = vsel %vm3733, %v6644, -inf
      %v6918 = vmax.f32 %v6916, %v6917
      %v6919 = vsel %vm3733, %v6648, -inf
      %v6920 = vmax.f32 %v6918, %v6919
      %v6921 = vsel %vm3733, %v6652, -inf
      %v6922 = vmax.f32 %v6920, %v6921
      %v6923 = vsel %vm3733, %v6656, -inf
      %v6924 = vmax.f32 %v6922, %v6923
      %v6925 = vsel %vm3733, %v6660, -inf
      %v6926 = vmax.f32 %v6924, %v6925
      %v6927 = vsel %vm3733, %v6664, -inf
      %v6928 = vmax.f32 %v6926, %v6927
      %v6929 = vsel %vm3733, %v6668, -inf
      %v6930 = vmax.f32 %v6928, %v6929
      %v6931 = vsel %vm3733, %v6672, -inf
      %v6932 = vmax.f32 %v6930, %v6931
      %v6933 = vsel %vm3733, %v6676, -inf
      %v6934 = vmax.f32 %v6932, %v6933
      %v6935 = vsel %vm3733, %v6680, -inf
      %v6936 = vmax.f32 %v6934, %v6935
      %v6937 = vsel %vm3733, %v6684, -inf
      %v6938 = vmax.f32 %v6936, %v6937
      %v6939 = vsel %vm3733, %v6688, -inf
      %v6940 = vmax.f32 %v6938, %v6939
      %v6941 = vmax.f32 %v6751, 0.0
      %v6942 = vmax.f32 %v6814, 0.0
      %v6943 = vmax.f32 %v6877, 0.0
      %v6944 = vmax.f32 %v6940, 0.0
      %v6945 = vsel %vm3994, %v6941, 0.0
      %v6946 = vsel %vm3995, %v6942, 0.0
      %v6947 = vsel %vm3996, %v6943, 0.0
      %v6948 = vsel %vm3997, %v6944, 0.0
      %v6949 = vsel %vm3733, %v6945, 0.0
      %v6950 = vsel %vm3733, %v6946, 0.0
      %v6951 = vadd.f32 %v6949, %v6950
      %v6952 = vsel %vm3733, %v6947, 0.0
      %v6953 = vadd.f32 %v6951, %v6952
      %v6954 = vsel %vm3733, %v6948, 0.0
      %v6955 = vadd.f32 %v6953, %v6954
      %v6956 = vrot.slane %v6955, 4
      %v6957 = vadd.f32 %v6955, %v6956
      %v6958 = vrot.slane %v6957, 2
      %v6959 = vadd.f32 %v6957, %v6958
      %v6960 = vrot.slane %v6959, 1
      %v6961 = vadd.f32 %v6959, %v6960
      %v6962 = vmul.f32 %v6961, 0.03125
      %v6963 = vsel %vm3733, %v6945, -inf
      %v6964 = vsel %vm3733, %v6946, -inf
      %v6965 = vsel %vm3733, %v6947, -inf
      %v6966 = vsel %vm3733, %v6948, -inf
      %v6967 = vmax.f32 %v6963, %v6964
      %v6968 = vmax.f32 %v6965, %v6966
      %v6969 = vmax.f32 %v6967, %v6968
      %v6970 = vrot.slane %v6969, 4
      %v6971 = vmax.f32 %v6969, %v6970
      %v6972 = vrot.slane %v6971, 2
      %v6973 = vmax.f32 %v6971, %v6972
      %v6974 = vrot.slane %v6973, 1
      %v6975 = vmax.f32 %v6973, %v6974
      %v6976 = vld [vmem:[%s276] sm:$0xff]
      %6978 = vrot.lane.b32.xlu0 %v6962, 16
      %v6979 = vpop.permute.xlu0 %6978
      %6982 = vrot.lane.b32.xlu0 %v6975, 32
      %v6983 = vpop.permute.xlu0 %6982
      %6986 = vrot.lane.b32.xlu0 %v6976, 48
      %v6987 = vpop.permute.xlu0 %6986
      %v6989 = vsel %vm3733, %v6961, %v6979
      %v6990 = vsel %vm418, %v6989, %v6983
      %vm6991 = vcmask 392192
      %v6992 = vsel %vm6991, %v6990, %v6987
      %v6993 = vld [vmem:[%s4 + $0xe0] sm:$0xff]
      %v6994 = vld [vmem:[%s4 + $0xe8] sm:$0xff]
      %v6995 = vld [vmem:[%s4 + $0xf0] sm:$0xff]
      %v6996 = vld [vmem:[%s4 + $0xf8] sm:$0xff]
      %v6997 = vld [vmem:[%s4 + $0x100] sm:$0xff]
      %v6998 = vld [vmem:[%s4 + $0x108] sm:$0xff]
      %v6999 = vld [vmem:[%s4 + $0x110] sm:$0xff]
      %v7000 = vld [vmem:[%s4 + $0x118] sm:$0xff]
      %vm7001 = vcmask 408576
      %v7003 = vsel %vm7001, %v6992, 0
      %vm7005 = vcmask 1041408
      %v7007 = vsel %vm7005, %v6999, 0
      %7009 = vmatprep.subr.mxu0 0.0
      %7010 = vmatpush1.msra.mxu0 0.0
      %7011 = vmatprep.subr.mxu0 0.0
      %7012 = vmatpush1.msra.mxu0 0.0
      %7013 = vmatprep.subr.mxu0 0.0
      %7014 = vmatpush1.msra.mxu0 0.0
      %7015 = vmatprep.subr.mxu0 0.0
      %7016 = vmatpush1.msra.mxu0 0.0
      %7017 = vmatprep.subr.mxu0 0.0
      %7018 = vmatpush1.msra.mxu0 0.0
      %7019 = vmatprep.subr.mxu0 0.0
      %7020 = vmatpush1.msra.mxu0 0.0
      %7021 = vmatprep.subr.mxu0 0.0
      %7022 = vmatpush1.msra.mxu0 0.0
      %7023 = vmatprep.subr.mxu0 0.0
      %7024 = vmatpush1.msra.mxu0 0.0
      %7025 = vmatprep.subr.mxu0 0.0
      %7026 = vmatpush1.msra.mxu0 0.0
      %7027 = vmatprep.subr.mxu0 0.0
      %7028 = vmatpush1.msra.mxu0 %v7007
      %7029 = vmatprep.subr.mxu0 0.0
      %7030 = vmatpush1.msra.mxu0 %v6998
      %7031 = vmatprep.subr.mxu0 0.0
      %7032 = vmatpush1.msra.mxu0 %v6997
      %7033 = vmatprep.subr.mxu0 0.0
      %7034 = vmatpush1.msra.mxu0 %v6996
      %7035 = vmatprep.subr.mxu0 0.0
      %7036 = vmatpush1.msra.mxu0 %v6995
      %7037 = vmatprep.subr.mxu0 0.0
      %7038 = vmatpush1.msra.mxu0 %v6994
      %7039 = vmatprep.subr.mxu0 0.0
      %7040 = vmatpush1.msra.mxu0 %v6993
      %7041 = vmatprep.subr.mxu0 0.0
      %7042 = vmatpush2.msra.mxu0 0.0
      %7043 = vmatprep.subr.mxu0 0.0
      %7044 = vmatpush2.msra.mxu0 0.0
      %7045 = vmatprep.subr.mxu0 0.0
      %7046 = vmatpush2.msra.mxu0 0.0
      %7047 = vmatprep.subr.mxu0 0.0
      %7048 = vmatpush2.msra.mxu0 0.0
      %7049 = vmatprep.subr.mxu0 0.0
      %7050 = vmatpush2.msra.mxu0 0.0
      %7051 = vmatprep.subr.mxu0 0.0
      %7052 = vmatpush2.msra.mxu0 0.0
      %7053 = vmatprep.subr.mxu0 0.0
      %7054 = vmatpush2.msra.mxu0 0.0
      %7055 = vmatprep.subr.mxu0 0.0
      %7056 = vmatpush2.msra.mxu0 0.0
      %7057 = vmatprep.subr.mxu0 0.0
      %7058 = vmatpush2.msra.mxu0 0.0
      %7059 = vmatprep.subr.mxu0 0.0
      %7060 = vmatpush2.msra.mxu0 0.0
      %7061 = vmatprep.subr.mxu0 0.0
      %7062 = vmatpush2.msra.mxu0 0.0
      %7063 = vmatprep.subr.mxu0 0.0
      %7064 = vmatpush2.msra.mxu0 0.0
      %7065 = vmatprep.subr.mxu0 0.0
      %7066 = vmatpush2.msra.mxu0 0.0
      %7067 = vmatprep.subr.mxu0 0.0
      %7068 = vmatpush2.msra.mxu0 0.0
      %7069 = vmatprep.subr.mxu0 0.0
      %7070 = vmatpush2.msra.mxu0 0.0
      %7071 = vmatprep.subr.mxu0 0.0
      %7072 = vmatpush2.msra.mxu0 0.0
      %7073 = vmatprep.mubr.f32.mxu0 0.0
      %7074 = vmatmul.mubr.f32.gmra.mxu0 %v7003
      %v7075 = vpop.f32.mrf.mxu0
      %v7076 = vadd.f32 %v7000, %v7075
      %v7077 = vpop.f32.mrf.mxu0
      %7078 = vdwg.mxu0
      %v7079 = vmax.f32 %v7076, 0.0
      %v7080 = vld [vmem:[%s4 + $0x120] sm:$0xff]
      %v7081 = vld [vmem:[%s4 + $0x128] sm:$0xff]
      %v7082 = vld [vmem:[%s4 + $0x130] sm:$0xff]
      %v7084 = vsel %vm3733, %v7079, 0
      %7086 = vmatprep.subr.mxu0 0.0
      %7087 = vmatpush1.msra.mxu0 0.0
      %7088 = vmatprep.subr.mxu0 0.0
      %7089 = vmatpush1.msra.mxu0 0.0
      %7090 = vmatprep.subr.mxu0 0.0
      %7091 = vmatpush1.msra.mxu0 0.0
      %7092 = vmatprep.subr.mxu0 0.0
      %7093 = vmatpush1.msra.mxu0 0.0
      %7094 = vmatprep.subr.mxu0 0.0
      %7095 = vmatpush1.msra.mxu0 0.0
      %7096 = vmatprep.subr.mxu0 0.0
      %7097 = vmatpush1.msra.mxu0 0.0
      %7098 = vmatprep.subr.mxu0 0.0
      %7099 = vmatpush1.msra.mxu0 0.0
      %7100 = vmatprep.subr.mxu0 0.0
      %7101 = vmatpush1.msra.mxu0 0.0
      %7102 = vmatprep.subr.mxu0 0.0
      %7103 = vmatpush1.msra.mxu0 0.0
      %7104 = vmatprep.subr.mxu0 0.0
      %7105 = vmatpush1.msra.mxu0 0.0
      %7106 = vmatprep.subr.mxu0 0.0
      %7107 = vmatpush1.msra.mxu0 0.0
      %7108 = vmatprep.subr.mxu0 0.0
      %7109 = vmatpush1.msra.mxu0 0.0
      %7110 = vmatprep.subr.mxu0 0.0
      %7111 = vmatpush1.msra.mxu0 0.0
      %7112 = vmatprep.subr.mxu0 0.0
      %7113 = vmatpush1.msra.mxu0 0.0
      %7114 = vmatprep.subr.mxu0 0.0
      %7115 = vmatpush1.msra.mxu0 %v7081
      %7116 = vmatprep.subr.mxu0 0.0
      %7117 = vmatpush1.msra.mxu0 %v7080
      %7118 = vmatprep.subr.mxu0 0.0
      %7119 = vmatpush2.msra.mxu0 0.0
      %7120 = vmatprep.subr.mxu0 0.0
      %7121 = vmatpush2.msra.mxu0 0.0
      %7122 = vmatprep.subr.mxu0 0.0
      %7123 = vmatpush2.msra.mxu0 0.0
      %7124 = vmatprep.subr.mxu0 0.0
      %7125 = vmatpush2.msra.mxu0 0.0
      %7126 = vmatprep.subr.mxu0 0.0
      %7127 = vmatpush2.msra.mxu0 0.0
      %7128 = vmatprep.subr.mxu0 0.0
      %7129 = vmatpush2.msra.mxu0 0.0
      %7130 = vmatprep.subr.mxu0 0.0
      %7131 = vmatpush2.msra.mxu0 0.0
      %7132 = vmatprep.subr.mxu0 0.0
      %7133 = vmatpush2.msra.mxu0 0.0
      %7134 = vmatprep.subr.mxu0 0.0
      %7135 = vmatpush2.msra.mxu0 0.0
      %7136 = vmatprep.subr.mxu0 0.0
      %7137 = vmatpush2.msra.mxu0 0.0
      %7138 = vmatprep.subr.mxu0 0.0
      %7139 = vmatpush2.msra.mxu0 0.0
      %7140 = vmatprep.subr.mxu0 0.0
      %7141 = vmatpush2.msra.mxu0 0.0
      %7142 = vmatprep.subr.mxu0 0.0
      %7143 = vmatpush2.msra.mxu0 0.0
      %7144 = vmatprep.subr.mxu0 0.0
      %7145 = vmatpush2.msra.mxu0 0.0
      %7146 = vmatprep.subr.mxu0 0.0
      %7147 = vmatpush2.msra.mxu0 0.0
      %7148 = vmatprep.subr.mxu0 0.0
      %7149 = vmatpush2.msra.mxu0 0.0
      %7150 = vmatprep.mubr.f32.mxu0 0.0
      %7151 = vmatmul.mubr.f32.gmra.mxu0 %v7084
      %v7152 = vpop.f32.mrf.mxu0
      %v7153 = vadd.f32 %v7082, %v7152
      %v7154 = vpop.f32.mrf.mxu0
      %7155 = vdwg.mxu0
      %v7156 = vmax.f32 %v7153, 0.0
      %v7157 = vld [vmem:[%s4 + $0x138] sm:$0xff]
      %v7158 = vld [vmem:[%s4 + $0x140] sm:$0xff]
      %v7159 = vld [vmem:[%s4 + $0x148] sm:$0xff]
      %v7161 = vsel %vm3733, %v7156, 0
      %7163 = vmatprep.subr.mxu0 0.0
      %7164 = vmatpush1.msra.mxu0 0.0
      %7165 = vmatprep.subr.mxu0 0.0
      %7166 = vmatpush1.msra.mxu0 0.0
      %7167 = vmatprep.subr.mxu0 0.0
      %7168 = vmatpush1.msra.mxu0 0.0
      %7169 = vmatprep.subr.mxu0 0.0
      %7170 = vmatpush1.msra.mxu0 0.0
      %7171 = vmatprep.subr.mxu0 0.0
      %7172 = vmatpush1.msra.mxu0 0.0
      %7173 = vmatprep.subr.mxu0 0.0
      %7174 = vmatpush1.msra.mxu0 0.0
      %7175 = vmatprep.subr.mxu0 0.0
      %7176 = vmatpush1.msra.mxu0 0.0
      %7177 = vmatprep.subr.mxu0 0.0
      %7178 = vmatpush1.msra.mxu0 0.0
      %7179 = vmatprep.subr.mxu0 0.0
      %7180 = vmatpush1.msra.mxu0 0.0
      %7181 = vmatprep.subr.mxu0 0.0
      %7182 = vmatpush1.msra.mxu0 0.0
      %7183 = vmatprep.subr.mxu0 0.0
      %7184 = vmatpush1.msra.mxu0 0.0
      %7185 = vmatprep.subr.mxu0 0.0
      %7186 = vmatpush1.msra.mxu0 0.0
      %7187 = vmatprep.subr.mxu0 0.0
      %7188 = vmatpush1.msra.mxu0 0.0
      %7189 = vmatprep.subr.mxu0 0.0
      %7190 = vmatpush1.msra.mxu0 0.0
      %7191 = vmatprep.subr.mxu0 0.0
      %7192 = vmatpush1.msra.mxu0 %v7158
      %7193 = vmatprep.subr.mxu0 0.0
      %7194 = vmatpush1.msra.mxu0 %v7157
      %7195 = vmatprep.subr.mxu0 0.0
      %7196 = vmatpush2.msra.mxu0 0.0
      %7197 = vmatprep.subr.mxu0 0.0
      %7198 = vmatpush2.msra.mxu0 0.0
      %7199 = vmatprep.subr.mxu0 0.0
      %7200 = vmatpush2.msra.mxu0 0.0
      %7201 = vmatprep.subr.mxu0 0.0
      %7202 = vmatpush2.msra.mxu0 0.0
      %7203 = vmatprep.subr.mxu0 0.0
      %7204 = vmatpush2.msra.mxu0 0.0
      %7205 = vmatprep.subr.mxu0 0.0
      %7206 = vmatpush2.msra.mxu0 0.0
      %7207 = vmatprep.subr.mxu0 0.0
      %7208 = vmatpush2.msra.mxu0 0.0
      %7209 = vmatprep.subr.mxu0 0.0
      %7210 = vmatpush2.msra.mxu0 0.0
      %7211 = vmatprep.subr.mxu0 0.0
      %7212 = vmatpush2.msra.mxu0 0.0
      %7213 = vmatprep.subr.mxu0 0.0
      %7214 = vmatpush2.msra.mxu0 0.0
      %7215 = vmatprep.subr.mxu0 0.0
      %7216 = vmatpush2.msra.mxu0 0.0
      %7217 = vmatprep.subr.mxu0 0.0
      %7218 = vmatpush2.msra.mxu0 0.0
      %7219 = vmatprep.subr.mxu0 0.0
      %7220 = vmatpush2.msra.mxu0 0.0
      %7221 = vmatprep.subr.mxu0 0.0
      %7222 = vmatpush2.msra.mxu0 0.0
      %7223 = vmatprep.subr.mxu0 0.0
      %7224 = vmatpush2.msra.mxu0 0.0
      %7225 = vmatprep.subr.mxu0 0.0
      %7226 = vmatpush2.msra.mxu0 0.0
      %7227 = vmatprep.mubr.f32.mxu0 0.0
      %7228 = vmatmul.mubr.f32.gmra.mxu0 %v7161
      %v7229 = vpop.f32.mrf.mxu0
      %v7230 = vadd.f32 %v7159, %v7229
      %v7231 = vpop.f32.mrf.mxu0
      %7232 = vdwg.mxu0
      %v7233 = vlaneseq
      %v7234 = vshrl.u32 %v7233, 7
      %v7235 = vsub.s32 0, %v7234
      %v7236 = vrot.slane %v7230, %v7235
      %vm7237 = vcmask 15360
      %7238 = vst.msk [vmem:[%s280] sm:$0xff] %vm7237, %v7236
      %p7239 = scmp.lt.s32.totalorder %s16, 1
      %s7240 = scalar_select %p7239, %s16, 1
      %s7241 = smul.addr %s7240, 8
      %s7242 = scalar_lea.vmem %s5, %s7241
      // Predicated region
      $region41: #{model_gnn_forward.1} parent=39 // pred_check
        %p7243 = pneg %p159
      $region42: #{model_gnn_forward.1} parent=39 // pred_check_branch
        %7245 = sbr.rel (%p7243) target = $region44
      $region43: #{model_gnn_forward.1} parent=39 // pred_region
        _
      $region44: #{model_gnn_forward.1} parent=39 // pred_fallthru
        _
    $region40: #{model_gnn_forward.1} parent=5 // pred_fallthru
      _
    %p7246 = scmp.le.s32.totalorder 2, %s11
    // Predicated region
    $region45: #{model_gnn_forward.1} parent=5 // pred_check
      %p7247 = pneg %p7246
    $region46: #{model_gnn_forward.1} parent=5 // pred_check_branch
      %7249 = sbr.rel (%p7247) target = $region48
    $region47: #{model_gnn_forward.1} parent=5 // pred_region
      %s7250 = ssub.s32 %s11, 2
      // Predicated region
      $region49: #{model_gnn_forward.1} parent=47 // pred_check
        %p7251 = pneg %p165
      $region50: #{model_gnn_forward.1} parent=47 // pred_check_branch
        %7253 = sbr.rel (%p7251) target = $region52
      $region51: #{model_gnn_forward.1} parent=47 // pred_region
        %p7254 = scmp.lt.s32.totalorder %s17, 1
        %s7255 = scalar_select %p7254, %s17, 1
        %s7256 = smul.addr %s7255, 8
        %s7257 = scalar_lea.vmem %s5, %s7256
      $region52: #{model_gnn_forward.1} parent=47 // pred_fallthru
        _
    $region48: #{model_gnn_forward.1} parent=5 // pred_fallthru
      _
  $region6: #{model_gnn_forward.1} parent=0 // loop_footer
    %s15 = sadd.s32 1, %s11
  $region7: #{model_gnn_forward.1} parent=0 // loop_footer_branch
    %10 = sbr.rel target = $region3
  $region8: #{model_gnn_forward.1} parent=0 // loop_exit
    _

</llo_original>
